<compile_context>
chip_gen: v7x
topology: tpu7x:2x2x1
jax: 0.10.0
libtpu: 0.0.40
codegen_flags: <defaults>
</compile_context>

<pallas_src>
import functools

import jax
import jax.numpy as jnp
import numpy as np
from jax.experimental import pallas as pl
from jax.experimental.pallas import tpu as pltpu

EPS = 1e-5
CPAD = 8          # padded input-channel dim (3 -> 8) so the first matmul is dense-ish
HEAD_PAD = 128    # lane-dense padded output width for the small heads


# ----------------------------- Pallas kernels ------------------------------ #
def _point_stack_maxpool_kernel(x_ref, w1_ref, w2_ref, w3_ref,
                                b1_ref, b2_ref, b3_ref, o_ref, *, relu_last):
    """Fused (TN,8)@W1 -> ReLU -> @W2 -> ReLU -> @W3 [-> ReLU] -> max over points.

    grid = (B, N // TN).  o_ref is a per-batch (1, 1024) running-max accumulator
    that stays resident in VMEM across the N-tile axis (same block index).
    """
    m = pl.program_id(1)

    x = x_ref[...]                                   # (TN, 8)  bf16
    h = jnp.dot(x, w1_ref[...], preferred_element_type=jnp.float32) + b1_ref[...]
    h = jnp.maximum(h, 0.0).astype(jnp.bfloat16)     # (TN, 64)
    h = jnp.dot(h, w2_ref[...], preferred_element_type=jnp.float32) + b2_ref[...]
    h = jnp.maximum(h, 0.0).astype(jnp.bfloat16)     # (TN, 128)
    h = jnp.dot(h, w3_ref[...], preferred_element_type=jnp.float32) + b3_ref[...]
    if relu_last:
        h = jnp.maximum(h, 0.0)                      # (TN, 1024) f32

    tile_max = jnp.max(h, axis=0, keepdims=True)     # (1, 1024) f32

    @pl.when(m == 0)
    def _():
        o_ref[...] = tile_max

    @pl.when(m != 0)
    def _():
        o_ref[...] = jnp.maximum(o_ref[...], tile_max)


def _head_kernel(g_ref, w1_ref, b1_ref, w2_ref, b2_ref, w3_ref, b3_ref, o_ref,
                 *, out_dim, apply_log_softmax):
    """Fused 1024 -> 512 (ReLU) -> 256 (ReLU) -> HEAD_PAD head MLP.

    Last-layer weight/bias are zero-padded to HEAD_PAD lanes so the store is
    lane-dense; valid columns are [0, out_dim).  Optional masked log_softmax.
    """
    g = g_ref[...].astype(jnp.bfloat16)                               # (B, 1024)
    h = jnp.dot(g, w1_ref[...], preferred_element_type=jnp.float32) + b1_ref[...]
    h = jnp.maximum(h, 0.0).astype(jnp.bfloat16)                      # (B, 512)
    h = jnp.dot(h, w2_ref[...], preferred_element_type=jnp.float32) + b2_ref[...]
    h = jnp.maximum(h, 0.0).astype(jnp.bfloat16)                      # (B, 256)
    y = jnp.dot(h, w3_ref[...], preferred_element_type=jnp.float32) + b3_ref[...]

    if apply_log_softmax:
        col = jax.lax.broadcasted_iota(jnp.int32, y.shape, 1)
        valid = col < out_dim
        y_masked = jnp.where(valid, y, -jnp.inf)
        mx = jnp.max(y_masked, axis=-1, keepdims=True)
        s = y - mx
        e = jnp.where(valid, jnp.exp(s), 0.0)
        lse = jnp.log(jnp.sum(e, axis=-1, keepdims=True))
        y = s - lse

    o_ref[...] = y.astype(o_ref.dtype)


# ------------------------------ Pallas wrappers ----------------------------- #
def _choose_point_tile(n, max_tile=512):
    """Largest multiple-of-8 divisor of n that is <= max_tile (fallback: n)."""
    if n <= max_tile:
        return n
    best = None
    for t in range(8, max_tile + 1, 8):
        if n % t == 0:
            best = t
    return best if best is not None else n


def point_stack_maxpool(x_pad, w1b, w2, w3, b1, b2, b3, *, relu_last, tile_n):
    """x_pad: (B, N, CPAD) bf16; w1b: (B, CPAD, 64) bf16 (per-batch first weight).
    Returns the pooled global feature (B, 1024) f32."""
    B, N, cpad = x_pad.shape
    assert N % tile_n == 0
    grid = (B, N // tile_n)
    out = pl.pallas_call(
        functools.partial(_point_stack_maxpool_kernel, relu_last=relu_last),
        out_shape=jax.ShapeDtypeStruct((B, 1, 1024), jnp.float32),
        grid=grid,
        in_specs=[
            pl.BlockSpec((None, tile_n, cpad), lambda b, m: (b, m, 0)),  # x tile
            pl.BlockSpec((None, cpad, 64), lambda b, m: (b, 0, 0)),      # W1[b]
            pl.BlockSpec((64, 128), lambda b, m: (0, 0)),                # W2 (resident)
            pl.BlockSpec((128, 1024), lambda b, m: (0, 0)),              # W3 (resident)
            pl.BlockSpec((1, 64), lambda b, m: (0, 0)),                  # shift1
            pl.BlockSpec((1, 128), lambda b, m: (0, 0)),                 # shift2
            pl.BlockSpec((1, 1024), lambda b, m: (0, 0)),                # shift3
        ],
        out_specs=pl.BlockSpec((None, 1, 1024), lambda b, m: (b, 0, 0)),
        compiler_params=pltpu.CompilerParams(
            dimension_semantics=("parallel", "arbitrary"),
            vmem_limit_bytes=32 * 1024 * 1024,
        ),
    )(x_pad, w1b, w2, w3, b1, b2, b3)
    return out.reshape(B, 1024)


def head_mlp(g, w1, b1, w2, b2, w3p, b3p, *, out_dim, apply_log_softmax):
    """g: (B, 1024) f32 global feature.  Returns (B, HEAD_PAD) f32 padded slab."""
    B = g.shape[0]
    return pl.pallas_call(
        functools.partial(_head_kernel, out_dim=out_dim,
                          apply_log_softmax=apply_log_softmax),
        out_shape=jax.ShapeDtypeStruct((B, HEAD_PAD), jnp.float32),
        grid=(1,),
        in_specs=[
            pl.BlockSpec((B, 1024), lambda i: (0, 0)),
            pl.BlockSpec((1024, 512), lambda i: (0, 0)),
            pl.BlockSpec((1, 512), lambda i: (0, 0)),
            pl.BlockSpec((512, 256), lambda i: (0, 0)),
            pl.BlockSpec((1, 256), lambda i: (0, 0)),
            pl.BlockSpec((256, HEAD_PAD), lambda i: (0, 0)),
            pl.BlockSpec((1, HEAD_PAD), lambda i: (0, 0)),
        ],
        out_specs=pl.BlockSpec((B, HEAD_PAD), lambda i: (0, 0)),
        compiler_params=pltpu.CompilerParams(dimension_semantics=("arbitrary",)),
    )(g, w1, b1, w2, b2, w3p, b3p)


# ------------------------------ Parameter setup ----------------------------- #
def _fold_bn_layer(key, cin, cout, *, bn):
    """Random Conv1d/Linear(+BN eval-mode) layer, with the BN scale folded into
    the weight columns.  Returns (W_folded f32 (cin,cout), shift f32 (1,cout))."""
    k1, k2, k3, k4, k5, k6 = jax.random.split(key, 6)
    w = jax.random.normal(k1, (cin, cout), jnp.float32) * (1.0 / np.sqrt(cin))
    b = 0.01 * jax.random.normal(k2, (cout,), jnp.float32)
    if bn:
        gamma = 1.0 + 0.05 * jax.random.normal(k3, (cout,), jnp.float32)
        beta = 0.05 * jax.random.normal(k4, (cout,), jnp.float32)
        mean = 0.05 * jax.random.normal(k5, (cout,), jnp.float32)
        var = 1.0 + 0.05 * jnp.abs(jax.random.normal(k6, (cout,), jnp.float32))
        s = gamma / jnp.sqrt(var + EPS)
        w_fold = w * s[None, :]
        shift = (b - mean) * s + beta
    else:
        w_fold = w
        shift = b
    return w_fold, shift.reshape(1, cout)


def init_params(key, k_classes=2):
    ks = jax.random.split(key, 12)
    # TransLayer.layer1 (STN conv stack)
    sw1, sb1 = _fold_bn_layer(ks[0], 3, 64, bn=True)
    sw2, sb2 = _fold_bn_layer(ks[1], 64, 128, bn=True)
    sw3, sb3 = _fold_bn_layer(ks[2], 128, 1024, bn=True)
    stn_w1_pad = jnp.pad(sw1, ((0, CPAD - 3), (0, 0))).astype(jnp.bfloat16)   # (8, 64)

    # TransLayer.layer2 (STN FC head); identity folded into last shift
    f1, fb1 = _fold_bn_layer(ks[3], 1024, 512, bn=True)
    f2, fb2 = _fold_bn_layer(ks[4], 512, 256, bn=True)
    f3, fb3 = _fold_bn_layer(ks[5], 256, 9, bn=False)
    iden = jnp.array([1, 0, 0, 0, 1, 0, 0, 0, 1], jnp.float32).reshape(1, 9)
    f3_pad = jnp.pad(f3, ((0, 0), (0, HEAD_PAD - 9))).astype(jnp.bfloat16)    # (256, 128)
    fb3_pad = jnp.pad(fb3 + iden, ((0, 0), (0, HEAD_PAD - 9)))                # (1, 128)

    # PointNetfeat conv1..3 (+BN); no ReLU after bn3
    c1, cb1 = _fold_bn_layer(ks[6], 3, 64, bn=True)     # kept f32 for trans folding
    c2, cb2 = _fold_bn_layer(ks[7], 64, 128, bn=True)
    c3, cb3 = _fold_bn_layer(ks[8], 128, 1024, bn=True)

    # Classifier head
    h1, hb1 = _fold_bn_layer(ks[9], 1024, 512, bn=True)
    h2, hb2 = _fold_bn_layer(ks[10], 512, 256, bn=True)
    h3, hb3 = _fold_bn_layer(ks[11], 256, k_classes, bn=False)
    h3_pad = jnp.pad(h3, ((0, 0), (0, HEAD_PAD - k_classes))).astype(jnp.bfloat16)
    hb3_pad = jnp.pad(hb3, ((0, 0), (0, HEAD_PAD - k_classes)))

    return {
        "stn_conv": dict(w1=stn_w1_pad, w2=sw2.astype(jnp.bfloat16),
                         w3=sw3.astype(jnp.bfloat16), b1=sb1, b2=sb2, b3=sb3),
        "stn_fc": (f1.astype(jnp.bfloat16), fb1,
                   f2.astype(jnp.bfloat16), fb2, f3_pad, fb3_pad),
        "feat_conv": dict(w1_f32=c1, w2=c2.astype(jnp.bfloat16),
                          w3=c3.astype(jnp.bfloat16), b1=cb1, b2=cb2, b3=cb3),
        "cls": (h1.astype(jnp.bfloat16), hb1,
                h2.astype(jnp.bfloat16), hb2, h3_pad, hb3_pad),
    }


# ------------------------------ Forward pass -------------------------------- #
def pointnet_cls_forward(x, params, *, k_classes):
    """x: (B, 3, N) float32 — PyTorch Conv1d NCW layout.  Returns (log_probs, trans)."""
    B, _, N = x.shape
    tile_n = _choose_point_tile(N)

    x_bn3 = jnp.transpose(x, (0, 2, 1))                                     # (B, N, 3)
    x_pad = jnp.pad(x_bn3, ((0, 0), (0, 0), (0, CPAD - 3))).astype(jnp.bfloat16)

    # ---- TransLayer (STN): fused conv stack + maxpool, then fused FC head ----
    sc = params["stn_conv"]
    w1b = jnp.broadcast_to(sc["w1"][None], (B, CPAD, 64))
    g_stn = point_stack_maxpool(x_pad, w1b, sc["w2"], sc["w3"],
                                sc["b1"], sc["b2"], sc["b3"],
                                relu_last=True, tile_n=tile_n)              # (B, 1024)
    trans_pad = head_mlp(g_stn, *params["stn_fc"],
                         out_dim=9, apply_log_softmax=False)                # (B, 128)
    trans = trans_pad[:, :9].reshape(B, 3, 3)

    # ---- PointNetfeat: fold 3x3 transform into conv1 weight, fused stack ----
    fc = params["feat_conv"]
    w1_eff = jnp.einsum("bij,jk->bik", trans, fc["w1_f32"])                 # (B, 3, 64)
    w1_eff = jnp.pad(w1_eff, ((0, 0), (0, CPAD - 3), (0, 0))).astype(jnp.bfloat16)
    g_feat = point_stack_maxpool(x_pad, w1_eff, fc["w2"], fc["w3"],
                                 fc["b1"], fc["b2"], fc["b3"],
                                 relu_last=False, tile_n=tile_n)            # (B, 1024)

    # ---- Classifier head + log_softmax (fused) ----
    logits_pad = head_mlp(g_feat, *params["cls"],
                          out_dim=k_classes, apply_log_softmax=True)        # (B, 128)
    log_probs = logits_pad[:, :k_classes]
    return log_probs, trans


# ----------------------------------- Main ----------------------------------- #
if __name__ == "__main__":
    B, N, K = 2, 16, 2                               # small shapes; num_points = 16
    key = jax.random.PRNGKey(0)
    k_in, k_par = jax.random.split(key)
    x = jax.random.normal(k_in, (B, 3, N), jnp.float32)   # (batch, 3, num_points)
    params = init_params(k_par, k_classes=K)

    fwd = jax.jit(lambda xx: pointnet_cls_forward(xx, params, k_classes=K))
    log_probs, trans = fwd(x)
    jax.block_until_ready((log_probs, trans))

    assert log_probs.shape == (B, K)
    assert trans.shape == (B, 3, 3)
    # log_softmax sanity: rows exponentiate and sum to 1
    assert np.allclose(np.exp(np.asarray(log_probs, np.float64)).sum(-1), 1.0, atol=1e-4)
    print("KERNEL_OK")
</pallas_src>

<mosaic_0001>
module attributes {stable_mosaic.version = 11 : i64} {
  func.func @_point_stack_maxpool_kernel(%arg0: i32, %arg1: i32, %arg2: memref<1x16x8xbf16, #tpu.memory_space<vmem>>, %arg3: memref<1x8x64xbf16, #tpu.memory_space<vmem>>, %arg4: memref<64x128xbf16, #tpu.memory_space<vmem>>, %arg5: memref<128x1024xbf16, #tpu.memory_space<vmem>>, %arg6: memref<1x64xf32, #tpu.memory_space<vmem>>, %arg7: memref<1x128xf32, #tpu.memory_space<vmem>>, %arg8: memref<1x1024xf32, #tpu.memory_space<vmem>>, %arg9: memref<1x1x1024xf32, #tpu.memory_space<vmem>>) attributes {dimension_semantics = [#tpu.dimension_semantics<parallel>, #tpu.dimension_semantics<arbitrary>], iteration_bounds = array<i64: 2, 1>, scalar_prefetch = 0 : i64, scratch_operands = 0 : i64, tpu.core_type = #tpu.core_type<tc>, window_params = [{transform_indices = @transform_0, window_bounds = array<i64: 1, 16, 8>}, {transform_indices = @transform_1, window_bounds = array<i64: 1, 8, 64>}, {pipeline_mode = #tpu.pipeline_mode<synchronous>, transform_indices = @transform_2, window_bounds = array<i64: 64, 128>}, {pipeline_mode = #tpu.pipeline_mode<synchronous>, transform_indices = @transform_3, window_bounds = array<i64: 128, 1024>}, {pipeline_mode = #tpu.pipeline_mode<synchronous>, transform_indices = @transform_4, window_bounds = array<i64: 1, 64>}, {pipeline_mode = #tpu.pipeline_mode<synchronous>, transform_indices = @transform_5, window_bounds = array<i64: 1, 128>}, {pipeline_mode = #tpu.pipeline_mode<synchronous>, transform_indices = @transform_6, window_bounds = array<i64: 1, 1024>}, {transform_indices = @transform_7, window_bounds = array<i64: 1, 1, 1024>}]} {
    %c0 = arith.constant 0 : index
    %c0_0 = arith.constant 0 : index
    %c0_1 = arith.constant 0 : index
    %0 = vector.load %arg2[%c0, %c0_0, %c0_1] : memref<1x16x8xbf16, #tpu.memory_space<vmem>>, vector<1x16x8xbf16>
    %1 = vector.shape_cast %0 : vector<1x16x8xbf16> to vector<16x8xbf16>
    %c0_2 = arith.constant 0 : index
    %c0_3 = arith.constant 0 : index
    %c0_4 = arith.constant 0 : index
    %2 = vector.load %arg3[%c0_2, %c0_3, %c0_4] : memref<1x8x64xbf16, #tpu.memory_space<vmem>>, vector<1x8x64xbf16>
    %3 = vector.shape_cast %2 : vector<1x8x64xbf16> to vector<8x64xbf16>
    %cst = arith.constant dense<0.000000e+00> : vector<16x64xf32>
    %4 = tpu.matmul %1, %3, %cst {dimension_numbers = #tpu.dot_dimension_numbers<[1], [0], [0], [1], [0, 0, 1, 1], [], []>} : vector<16x8xbf16>, vector<8x64xbf16>, vector<16x64xf32> -> vector<16x64xf32>
    %c0_5 = arith.constant 0 : index
    %c0_6 = arith.constant 0 : index
    %5 = vector.load %arg6[%c0_5, %c0_6] : memref<1x64xf32, #tpu.memory_space<vmem>>, vector<1x64xf32>
    %6 = vector.broadcast %5 : vector<1x64xf32> to vector<16x64xf32>
    %7 = arith.addf %4, %6 : vector<16x64xf32>
    %cst_7 = arith.constant 0.000000e+00 : f32
    %8 = vector.broadcast %cst_7 : f32 to vector<16x64xf32>
    %9 = arith.maximumf %7, %8 : vector<16x64xf32>
    %10 = arith.truncf %9 : vector<16x64xf32> to vector<16x64xbf16>
    %c0_8 = arith.constant 0 : index
    %c0_9 = arith.constant 0 : index
    %11 = vector.load %arg4[%c0_8, %c0_9] : memref<64x128xbf16, #tpu.memory_space<vmem>>, vector<64x128xbf16>
    %cst_10 = arith.constant dense<0.000000e+00> : vector<16x128xf32>
    %12 = tpu.matmul %10, %11, %cst_10 {dimension_numbers = #tpu.dot_dimension_numbers<[1], [0], [0], [1], [0, 0, 1, 1], [], []>} : vector<16x64xbf16>, vector<64x128xbf16>, vector<16x128xf32> -> vector<16x128xf32>
    %c0_11 = arith.constant 0 : index
    %c0_12 = arith.constant 0 : index
    %13 = vector.load %arg7[%c0_11, %c0_12] : memref<1x128xf32, #tpu.memory_space<vmem>>, vector<1x128xf32>
    %14 = vector.broadcast %13 : vector<1x128xf32> to vector<16x128xf32>
    %15 = arith.addf %12, %14 : vector<16x128xf32>
    %cst_13 = arith.constant 0.000000e+00 : f32
    %16 = vector.broadcast %cst_13 : f32 to vector<16x128xf32>
    %17 = arith.maximumf %15, %16 : vector<16x128xf32>
    %18 = arith.truncf %17 : vector<16x128xf32> to vector<16x128xbf16>
    %c0_14 = arith.constant 0 : index
    %c0_15 = arith.constant 0 : index
    %19 = vector.load %arg5[%c0_14, %c0_15] : memref<128x1024xbf16, #tpu.memory_space<vmem>>, vector<128x1024xbf16>
    %cst_16 = arith.constant dense<0.000000e+00> : vector<16x1024xf32>
    %20 = tpu.matmul %18, %19, %cst_16 {dimension_numbers = #tpu.dot_dimension_numbers<[1], [0], [0], [1], [0, 0, 1, 1], [], []>} : vector<16x128xbf16>, vector<128x1024xbf16>, vector<16x1024xf32> -> vector<16x1024xf32>
    %c0_17 = arith.constant 0 : index
    %c0_18 = arith.constant 0 : index
    %21 = vector.load %arg8[%c0_17, %c0_18] : memref<1x1024xf32, #tpu.memory_space<vmem>>, vector<1x1024xf32>
    %22 = vector.broadcast %21 : vector<1x1024xf32> to vector<16x1024xf32>
    %23 = arith.addf %20, %22 : vector<16x1024xf32>
    %cst_19 = arith.constant 0.000000e+00 : f32
    %24 = vector.broadcast %cst_19 : f32 to vector<16x1024xf32>
    %25 = arith.maximumf %23, %24 : vector<16x1024xf32>
    %cst_20 = arith.constant dense<0xFF800000> : vector<1024xf32>
    %26 = vector.multi_reduction <maximumf>, %25, %cst_20 [0] : vector<16x1024xf32> to vector<1024xf32>
    %27 = vector.shape_cast %26 : vector<1024xf32> to vector<1x1024xf32>
    %c0_i32 = arith.constant 0 : i32
    %28 = arith.cmpi eq, %arg1, %c0_i32 : i32
    %29 = arith.extui %28 : i1 to i32
    %c0_i32_21 = arith.constant 0 : i32
    %30 = arith.cmpi ne, %29, %c0_i32_21 : i32
    scf.if %30 {
      %c0_24 = arith.constant 0 : index
      %c0_25 = arith.constant 0 : index
      %c0_26 = arith.constant 0 : index
      %34 = vector.load %arg9[%c0_24, %c0_25, %c0_26] : memref<1x1x1024xf32, #tpu.memory_space<vmem>>, vector<1x1x1024xf32>
      %35 = vector.shape_cast %34 : vector<1x1x1024xf32> to vector<1x1024xf32>
      %36 = vector.shape_cast %27 : vector<1x1024xf32> to vector<1x1x1024xf32>
      tpu.vector_store %arg9[%c0_24, %c0_25, %c0_26], %36 {strides = array<i32>} : memref<1x1x1024xf32, #tpu.memory_space<vmem>>, vector<1x1x1024xf32>,
    } else {
    }
    %c0_i32_22 = arith.constant 0 : i32
    %31 = arith.cmpi ne, %arg1, %c0_i32_22 : i32
    %32 = arith.extui %31 : i1 to i32
    %c0_i32_23 = arith.constant 0 : i32
    %33 = arith.cmpi ne, %32, %c0_i32_23 : i32
    scf.if %33 {
      %c0_24 = arith.constant 0 : index
      %c0_25 = arith.constant 0 : index
      %c0_26 = arith.constant 0 : index
      %34 = vector.load %arg9[%c0_24, %c0_25, %c0_26] : memref<1x1x1024xf32, #tpu.memory_space<vmem>>, vector<1x1x1024xf32>
      %35 = vector.shape_cast %34 : vector<1x1x1024xf32> to vector<1x1024xf32>
      %36 = arith.maximumf %35, %27 : vector<1x1024xf32>
      %c0_27 = arith.constant 0 : index
      %c0_28 = arith.constant 0 : index
      %c0_29 = arith.constant 0 : index
      %37 = vector.load %arg9[%c0_27, %c0_28, %c0_29] : memref<1x1x1024xf32, #tpu.memory_space<vmem>>, vector<1x1x1024xf32>
      %38 = vector.shape_cast %37 : vector<1x1x1024xf32> to vector<1x1024xf32>
      %39 = vector.shape_cast %36 : vector<1x1024xf32> to vector<1x1x1024xf32>
      tpu.vector_store %arg9[%c0_27, %c0_28, %c0_29], %39 {strides = array<i32>} : memref<1x1x1024xf32, #tpu.memory_space<vmem>>, vector<1x1x1024xf32>,
    } else {
    }
    return
  }
  func.func @transform_0(%arg0: i32, %arg1: i32) -> (i32, i32, i32) {
    %c0_i32 = arith.constant 0 : i32
    %c0_i32_0 = arith.constant 0 : i32
    return %arg0, %arg1, %c0_i32 : i32, i32, i32
  }
  func.func @transform_1(%arg0: i32, %arg1: i32) -> (i32, i32, i32) {
    %c0_i32 = arith.constant 0 : i32
    %c0_i32_0 = arith.constant 0 : i32
    %c0_i32_1 = arith.constant 0 : i32
    return %arg0, %c0_i32, %c0_i32_0 : i32, i32, i32
  }
  func.func @transform_2(%arg0: i32, %arg1: i32) -> (i32, i32) {
    %c0_i32 = arith.constant 0 : i32
    %c0_i32_0 = arith.constant 0 : i32
    %c0_i32_1 = arith.constant 0 : i32
    return %c0_i32, %c0_i32_0 : i32, i32
  }
  func.func @transform_3(%arg0: i32, %arg1: i32) -> (i32, i32) {
    %c0_i32 = arith.constant 0 : i32
    %c0_i32_0 = arith.constant 0 : i32
    %c0_i32_1 = arith.constant 0 : i32
    return %c0_i32, %c0_i32_0 : i32, i32
  }
  func.func @transform_4(%arg0: i32, %arg1: i32) -> (i32, i32) {
    %c0_i32 = arith.constant 0 : i32
    %c0_i32_0 = arith.constant 0 : i32
    %c0_i32_1 = arith.constant 0 : i32
    return %c0_i32, %c0_i32_0 : i32, i32
  }
  func.func @transform_5(%arg0: i32, %arg1: i32) -> (i32, i32) {
    %c0_i32 = arith.constant 0 : i32
    %c0_i32_0 = arith.constant 0 : i32
    %c0_i32_1 = arith.constant 0 : i32
    return %c0_i32, %c0_i32_0 : i32, i32
  }
  func.func @transform_6(%arg0: i32, %arg1: i32) -> (i32, i32) {
    %c0_i32 = arith.constant 0 : i32
    %c0_i32_0 = arith.constant 0 : i32
    %c0_i32_1 = arith.constant 0 : i32
    return %c0_i32, %c0_i32_0 : i32, i32
  }
  func.func @transform_7(%arg0: i32, %arg1: i32) -> (i32, i32, i32) {
    %c0_i32 = arith.constant 0 : i32
    %c0_i32_0 = arith.constant 0 : i32
    %c0_i32_1 = arith.constant 0 : i32
    return %arg0, %c0_i32, %c0_i32_0 : i32, i32, i32
  }
}

module attributes {stable_mosaic.version = 11 : i64} {
  func.func @_head_kernel(%arg0: i32, %arg1: memref<2x1024xf32, #tpu.memory_space<vmem>>, %arg2: memref<1024x512xbf16, #tpu.memory_space<vmem>>, %arg3: memref<1x512xf32, #tpu.memory_space<vmem>>, %arg4: memref<512x256xbf16, #tpu.memory_space<vmem>>, %arg5: memref<1x256xf32, #tpu.memory_space<vmem>>, %arg6: memref<256x128xbf16, #tpu.memory_space<vmem>>, %arg7: memref<1x128xf32, #tpu.memory_space<vmem>>, %arg8: memref<2x128xf32, #tpu.memory_space<vmem>>) attributes {dimension_semantics = [#tpu.dimension_semantics<arbitrary>], iteration_bounds = array<i64: 1>, scalar_prefetch = 0 : i64, scratch_operands = 0 : i64, tpu.core_type = #tpu.core_type<tc>, window_params = [{pipeline_mode = #tpu.pipeline_mode<synchronous>, transform_indices = @transform_0, window_bounds = array<i64: 2, 1024>}, {pipeline_mode = #tpu.pipeline_mode<synchronous>, transform_indices = @transform_1, window_bounds = array<i64: 1024, 512>}, {pipeline_mode = #tpu.pipeline_mode<synchronous>, transform_indices = @transform_2, window_bounds = array<i64: 1, 512>}, {pipeline_mode = #tpu.pipeline_mode<synchronous>, transform_indices = @transform_3, window_bounds = array<i64: 512, 256>}, {pipeline_mode = #tpu.pipeline_mode<synchronous>, transform_indices = @transform_4, window_bounds = array<i64: 1, 256>}, {pipeline_mode = #tpu.pipeline_mode<synchronous>, transform_indices = @transform_5, window_bounds = array<i64: 256, 128>}, {pipeline_mode = #tpu.pipeline_mode<synchronous>, transform_indices = @transform_6, window_bounds = array<i64: 1, 128>}, {pipeline_mode = #tpu.pipeline_mode<synchronous>, transform_indices = @transform_7, window_bounds = array<i64: 2, 128>}]} {
    %c0 = arith.constant 0 : index
    %c0_0 = arith.constant 0 : index
    %0 = vector.load %arg1[%c0, %c0_0] : memref<2x1024xf32, #tpu.memory_space<vmem>>, vector<2x1024xf32>
    %1 = arith.truncf %0 : vector<2x1024xf32> to vector<2x1024xbf16>
    %c0_1 = arith.constant 0 : index
    %c0_2 = arith.constant 0 : index
    %2 = vector.load %arg2[%c0_1, %c0_2] : memref<1024x512xbf16, #tpu.memory_space<vmem>>, vector<1024x512xbf16>
    %cst = arith.constant dense<0.000000e+00> : vector<2x512xf32>
    %3 = tpu.matmul %1, %2, %cst {dimension_numbers = #tpu.dot_dimension_numbers<[1], [0], [0], [1], [0, 0, 1, 1], [], []>} : vector<2x1024xbf16>, vector<1024x512xbf16>, vector<2x512xf32> -> vector<2x512xf32>
    %c0_3 = arith.constant 0 : index
    %c0_4 = arith.constant 0 : index
    %4 = vector.load %arg3[%c0_3, %c0_4] : memref<1x512xf32, #tpu.memory_space<vmem>>, vector<1x512xf32>
    %5 = vector.broadcast %4 : vector<1x512xf32> to vector<2x512xf32>
    %6 = arith.addf %3, %5 : vector<2x512xf32>
    %cst_5 = arith.constant 0.000000e+00 : f32
    %7 = vector.broadcast %cst_5 : f32 to vector<2x512xf32>
    %8 = arith.maximumf %6, %7 : vector<2x512xf32>
    %9 = arith.truncf %8 : vector<2x512xf32> to vector<2x512xbf16>
    %c0_6 = arith.constant 0 : index
    %c0_7 = arith.constant 0 : index
    %10 = vector.load %arg4[%c0_6, %c0_7] : memref<512x256xbf16, #tpu.memory_space<vmem>>, vector<512x256xbf16>
    %cst_8 = arith.constant dense<0.000000e+00> : vector<2x256xf32>
    %11 = tpu.matmul %9, %10, %cst_8 {dimension_numbers = #tpu.dot_dimension_numbers<[1], [0], [0], [1], [0, 0, 1, 1], [], []>} : vector<2x512xbf16>, vector<512x256xbf16>, vector<2x256xf32> -> vector<2x256xf32>
    %c0_9 = arith.constant 0 : index
    %c0_10 = arith.constant 0 : index
    %12 = vector.load %arg5[%c0_9, %c0_10] : memref<1x256xf32, #tpu.memory_space<vmem>>, vector<1x256xf32>
    %13 = vector.broadcast %12 : vector<1x256xf32> to vector<2x256xf32>
    %14 = arith.addf %11, %13 : vector<2x256xf32>
    %cst_11 = arith.constant 0.000000e+00 : f32
    %15 = vector.broadcast %cst_11 : f32 to vector<2x256xf32>
    %16 = arith.maximumf %14, %15 : vector<2x256xf32>
    %17 = arith.truncf %16 : vector<2x256xf32> to vector<2x256xbf16>
    %c0_12 = arith.constant 0 : index
    %c0_13 = arith.constant 0 : index
    %18 = vector.load %arg6[%c0_12, %c0_13] : memref<256x128xbf16, #tpu.memory_space<vmem>>, vector<256x128xbf16>
    %cst_14 = arith.constant dense<0.000000e+00> : vector<2x128xf32>
    %19 = tpu.matmul %17, %18, %cst_14 {dimension_numbers = #tpu.dot_dimension_numbers<[1], [0], [0], [1], [0, 0, 1, 1], [], []>} : vector<2x256xbf16>, vector<256x128xbf16>, vector<2x128xf32> -> vector<2x128xf32>
    %c0_15 = arith.constant 0 : index
    %c0_16 = arith.constant 0 : index
    %20 = vector.load %arg7[%c0_15, %c0_16] : memref<1x128xf32, #tpu.memory_space<vmem>>, vector<1x128xf32>
    %21 = vector.broadcast %20 : vector<1x128xf32> to vector<2x128xf32>
    %22 = arith.addf %19, %21 : vector<2x128xf32>
    %c0_17 = arith.constant 0 : index
    %c0_18 = arith.constant 0 : index
    %23 = vector.load %arg8[%c0_17, %c0_18] : memref<2x128xf32, #tpu.memory_space<vmem>>, vector<2x128xf32>
    tpu.vector_store %arg8[%c0_17, %c0_18], %22 {strides = array<i32>} : memref<2x128xf32, #tpu.memory_space<vmem>>, vector<2x128xf32>,
    return
  }
  func.func @transform_0(%arg0: i32) -> (i32, i32) {
    %c0_i32 = arith.constant 0 : i32
    %c0_i32_0 = arith.constant 0 : i32
    %c0_i32_1 = arith.constant 0 : i32
    return %c0_i32, %c0_i32_0 : i32, i32
  }
  func.func @transform_1(%arg0: i32) -> (i32, i32) {
    %c0_i32 = arith.constant 0 : i32
    %c0_i32_0 = arith.constant 0 : i32
    %c0_i32_1 = arith.constant 0 : i32
    return %c0_i32, %c0_i32_0 : i32, i32
  }
  func.func @transform_2(%arg0: i32) -> (i32, i32) {
    %c0_i32 = arith.constant 0 : i32
    %c0_i32_0 = arith.constant 0 : i32
    %c0_i32_1 = arith.constant 0 : i32
    return %c0_i32, %c0_i32_0 : i32, i32
  }
  func.func @transform_3(%arg0: i32) -> (i32, i32) {
    %c0_i32 = arith.constant 0 : i32
    %c0_i32_0 = arith.constant 0 : i32
    %c0_i32_1 = arith.constant 0 : i32
    return %c0_i32, %c0_i32_0 : i32, i32
  }
  func.func @transform_4(%arg0: i32) -> (i32, i32) {
    %c0_i32 = arith.constant 0 : i32
    %c0_i32_0 = arith.constant 0 : i32
    %c0_i32_1 = arith.constant 0 : i32
    return %c0_i32, %c0_i32_0 : i32, i32
  }
  func.func @transform_5(%arg0: i32) -> (i32, i32) {
    %c0_i32 = arith.constant 0 : i32
    %c0_i32_0 = arith.constant 0 : i32
    %c0_i32_1 = arith.constant 0 : i32
    return %c0_i32, %c0_i32_0 : i32, i32
  }
  func.func @transform_6(%arg0: i32) -> (i32, i32) {
    %c0_i32 = arith.constant 0 : i32
    %c0_i32_0 = arith.constant 0 : i32
    %c0_i32_1 = arith.constant 0 : i32
    return %c0_i32, %c0_i32_0 : i32, i32
  }
  func.func @transform_7(%arg0: i32) -> (i32, i32) {
    %c0_i32 = arith.constant 0 : i32
    %c0_i32_0 = arith.constant 0 : i32
    %c0_i32_1 = arith.constant 0 : i32
    return %c0_i32, %c0_i32_0 : i32, i32
  }
}

module attributes {stable_mosaic.version = 11 : i64} {
  func.func @_point_stack_maxpool_kernel(%arg0: i32, %arg1: i32, %arg2: memref<1x16x8xbf16, #tpu.memory_space<vmem>>, %arg3: memref<1x8x64xbf16, #tpu.memory_space<vmem>>, %arg4: memref<64x128xbf16, #tpu.memory_space<vmem>>, %arg5: memref<128x1024xbf16, #tpu.memory_space<vmem>>, %arg6: memref<1x64xf32, #tpu.memory_space<vmem>>, %arg7: memref<1x128xf32, #tpu.memory_space<vmem>>, %arg8: memref<1x1024xf32, #tpu.memory_space<vmem>>, %arg9: memref<1x1x1024xf32, #tpu.memory_space<vmem>>) attributes {dimension_semantics = [#tpu.dimension_semantics<parallel>, #tpu.dimension_semantics<arbitrary>], iteration_bounds = array<i64: 2, 1>, scalar_prefetch = 0 : i64, scratch_operands = 0 : i64, tpu.core_type = #tpu.core_type<tc>, window_params = [{transform_indices = @transform_0, window_bounds = array<i64: 1, 16, 8>}, {transform_indices = @transform_1, window_bounds = array<i64: 1, 8, 64>}, {pipeline_mode = #tpu.pipeline_mode<synchronous>, transform_indices = @transform_2, window_bounds = array<i64: 64, 128>}, {pipeline_mode = #tpu.pipeline_mode<synchronous>, transform_indices = @transform_3, window_bounds = array<i64: 128, 1024>}, {pipeline_mode = #tpu.pipeline_mode<synchronous>, transform_indices = @transform_4, window_bounds = array<i64: 1, 64>}, {pipeline_mode = #tpu.pipeline_mode<synchronous>, transform_indices = @transform_5, window_bounds = array<i64: 1, 128>}, {pipeline_mode = #tpu.pipeline_mode<synchronous>, transform_indices = @transform_6, window_bounds = array<i64: 1, 1024>}, {transform_indices = @transform_7, window_bounds = array<i64: 1, 1, 1024>}]} {
    %c0 = arith.constant 0 : index
    %c0_0 = arith.constant 0 : index
    %c0_1 = arith.constant 0 : index
    %0 = vector.load %arg2[%c0, %c0_0, %c0_1] : memref<1x16x8xbf16, #tpu.memory_space<vmem>>, vector<1x16x8xbf16>
    %1 = vector.shape_cast %0 : vector<1x16x8xbf16> to vector<16x8xbf16>
    %c0_2 = arith.constant 0 : index
    %c0_3 = arith.constant 0 : index
    %c0_4 = arith.constant 0 : index
    %2 = vector.load %arg3[%c0_2, %c0_3, %c0_4] : memref<1x8x64xbf16, #tpu.memory_space<vmem>>, vector<1x8x64xbf16>
    %3 = vector.shape_cast %2 : vector<1x8x64xbf16> to vector<8x64xbf16>
    %cst = arith.constant dense<0.000000e+00> : vector<16x64xf32>
    %4 = tpu.matmul %1, %3, %cst {dimension_numbers = #tpu.dot_dimension_numbers<[1], [0], [0], [1], [0, 0, 1, 1], [], []>} : vector<16x8xbf16>, vector<8x64xbf16>, vector<16x64xf32> -> vector<16x64xf32>
    %c0_5 = arith.constant 0 : index
    %c0_6 = arith.constant 0 : index
    %5 = vector.load %arg6[%c0_5, %c0_6] : memref<1x64xf32, #tpu.memory_space<vmem>>, vector<1x64xf32>
    %6 = vector.broadcast %5 : vector<1x64xf32> to vector<16x64xf32>
    %7 = arith.addf %4, %6 : vector<16x64xf32>
    %cst_7 = arith.constant 0.000000e+00 : f32
    %8 = vector.broadcast %cst_7 : f32 to vector<16x64xf32>
    %9 = arith.maximumf %7, %8 : vector<16x64xf32>
    %10 = arith.truncf %9 : vector<16x64xf32> to vector<16x64xbf16>
    %c0_8 = arith.constant 0 : index
    %c0_9 = arith.constant 0 : index
    %11 = vector.load %arg4[%c0_8, %c0_9] : memref<64x128xbf16, #tpu.memory_space<vmem>>, vector<64x128xbf16>
    %cst_10 = arith.constant dense<0.000000e+00> : vector<16x128xf32>
    %12 = tpu.matmul %10, %11, %cst_10 {dimension_numbers = #tpu.dot_dimension_numbers<[1], [0], [0], [1], [0, 0, 1, 1], [], []>} : vector<16x64xbf16>, vector<64x128xbf16>, vector<16x128xf32> -> vector<16x128xf32>
    %c0_11 = arith.constant 0 : index
    %c0_12 = arith.constant 0 : index
    %13 = vector.load %arg7[%c0_11, %c0_12] : memref<1x128xf32, #tpu.memory_space<vmem>>, vector<1x128xf32>
    %14 = vector.broadcast %13 : vector<1x128xf32> to vector<16x128xf32>
    %15 = arith.addf %12, %14 : vector<16x128xf32>
    %cst_13 = arith.constant 0.000000e+00 : f32
    %16 = vector.broadcast %cst_13 : f32 to vector<16x128xf32>
    %17 = arith.maximumf %15, %16 : vector<16x128xf32>
    %18 = arith.truncf %17 : vector<16x128xf32> to vector<16x128xbf16>
    %c0_14 = arith.constant 0 : index
    %c0_15 = arith.constant 0 : index
    %19 = vector.load %arg5[%c0_14, %c0_15] : memref<128x1024xbf16, #tpu.memory_space<vmem>>, vector<128x1024xbf16>
    %cst_16 = arith.constant dense<0.000000e+00> : vector<16x1024xf32>
    %20 = tpu.matmul %18, %19, %cst_16 {dimension_numbers = #tpu.dot_dimension_numbers<[1], [0], [0], [1], [0, 0, 1, 1], [], []>} : vector<16x128xbf16>, vector<128x1024xbf16>, vector<16x1024xf32> -> vector<16x1024xf32>
    %c0_17 = arith.constant 0 : index
    %c0_18 = arith.constant 0 : index
    %21 = vector.load %arg8[%c0_17, %c0_18] : memref<1x1024xf32, #tpu.memory_space<vmem>>, vector<1x1024xf32>
    %22 = vector.broadcast %21 : vector<1x1024xf32> to vector<16x1024xf32>
    %23 = arith.addf %20, %22 : vector<16x1024xf32>
    %cst_19 = arith.constant dense<0xFF800000> : vector<1024xf32>
    %24 = vector.multi_reduction <maximumf>, %23, %cst_19 [0] : vector<16x1024xf32> to vector<1024xf32>
    %25 = vector.shape_cast %24 : vector<1024xf32> to vector<1x1024xf32>
    %c0_i32 = arith.constant 0 : i32
    %26 = arith.cmpi eq, %arg1, %c0_i32 : i32
    %27 = arith.extui %26 : i1 to i32
    %c0_i32_20 = arith.constant 0 : i32
    %28 = arith.cmpi ne, %27, %c0_i32_20 : i32
    scf.if %28 {
      %c0_23 = arith.constant 0 : index
      %c0_24 = arith.constant 0 : index
      %c0_25 = arith.constant 0 : index
      %32 = vector.load %arg9[%c0_23, %c0_24, %c0_25] : memref<1x1x1024xf32, #tpu.memory_space<vmem>>, vector<1x1x1024xf32>
      %33 = vector.shape_cast %32 : vector<1x1x1024xf32> to vector<1x1024xf32>
      %34 = vector.shape_cast %25 : vector<1x1024xf32> to vector<1x1x1024xf32>
      tpu.vector_store %arg9[%c0_23, %c0_24, %c0_25], %34 {strides = array<i32>} : memref<1x1x1024xf32, #tpu.memory_space<vmem>>, vector<1x1x1024xf32>,
    } else {
    }
    %c0_i32_21 = arith.constant 0 : i32
    %29 = arith.cmpi ne, %arg1, %c0_i32_21 : i32
    %30 = arith.extui %29 : i1 to i32
    %c0_i32_22 = arith.constant 0 : i32
    %31 = arith.cmpi ne, %30, %c0_i32_22 : i32
    scf.if %31 {
      %c0_23 = arith.constant 0 : index
      %c0_24 = arith.constant 0 : index
      %c0_25 = arith.constant 0 : index
      %32 = vector.load %arg9[%c0_23, %c0_24, %c0_25] : memref<1x1x1024xf32, #tpu.memory_space<vmem>>, vector<1x1x1024xf32>
      %33 = vector.shape_cast %32 : vector<1x1x1024xf32> to vector<1x1024xf32>
      %34 = arith.maximumf %33, %25 : vector<1x1024xf32>
      %c0_26 = arith.constant 0 : index
      %c0_27 = arith.constant 0 : index
      %c0_28 = arith.constant 0 : index
      %35 = vector.load %arg9[%c0_26, %c0_27, %c0_28] : memref<1x1x1024xf32, #tpu.memory_space<vmem>>, vector<1x1x1024xf32>
      %36 = vector.shape_cast %35 : vector<1x1x1024xf32> to vector<1x1024xf32>
      %37 = vector.shape_cast %34 : vector<1x1024xf32> to vector<1x1x1024xf32>
      tpu.vector_store %arg9[%c0_26, %c0_27, %c0_28], %37 {strides = array<i32>} : memref<1x1x1024xf32, #tpu.memory_space<vmem>>, vector<1x1x1024xf32>,
    } else {
    }
    return
  }
  func.func @transform_0(%arg0: i32, %arg1: i32) -> (i32, i32, i32) {
    %c0_i32 = arith.constant 0 : i32
    %c0_i32_0 = arith.constant 0 : i32
    return %arg0, %arg1, %c0_i32 : i32, i32, i32
  }
  func.func @transform_1(%arg0: i32, %arg1: i32) -> (i32, i32, i32) {
    %c0_i32 = arith.constant 0 : i32
    %c0_i32_0 = arith.constant 0 : i32
    %c0_i32_1 = arith.constant 0 : i32
    return %arg0, %c0_i32, %c0_i32_0 : i32, i32, i32
  }
  func.func @transform_2(%arg0: i32, %arg1: i32) -> (i32, i32) {
    %c0_i32 = arith.constant 0 : i32
    %c0_i32_0 = arith.constant 0 : i32
    %c0_i32_1 = arith.constant 0 : i32
    return %c0_i32, %c0_i32_0 : i32, i32
  }
  func.func @transform_3(%arg0: i32, %arg1: i32) -> (i32, i32) {
    %c0_i32 = arith.constant 0 : i32
    %c0_i32_0 = arith.constant 0 : i32
    %c0_i32_1 = arith.constant 0 : i32
    return %c0_i32, %c0_i32_0 : i32, i32
  }
  func.func @transform_4(%arg0: i32, %arg1: i32) -> (i32, i32) {
    %c0_i32 = arith.constant 0 : i32
    %c0_i32_0 = arith.constant 0 : i32
    %c0_i32_1 = arith.constant 0 : i32
    return %c0_i32, %c0_i32_0 : i32, i32
  }
  func.func @transform_5(%arg0: i32, %arg1: i32) -> (i32, i32) {
    %c0_i32 = arith.constant 0 : i32
    %c0_i32_0 = arith.constant 0 : i32
    %c0_i32_1 = arith.constant 0 : i32
    return %c0_i32, %c0_i32_0 : i32, i32
  }
  func.func @transform_6(%arg0: i32, %arg1: i32) -> (i32, i32) {
    %c0_i32 = arith.constant 0 : i32
    %c0_i32_0 = arith.constant 0 : i32
    %c0_i32_1 = arith.constant 0 : i32
    return %c0_i32, %c0_i32_0 : i32, i32
  }
  func.func @transform_7(%arg0: i32, %arg1: i32) -> (i32, i32, i32) {
    %c0_i32 = arith.constant 0 : i32
    %c0_i32_0 = arith.constant 0 : i32
    %c0_i32_1 = arith.constant 0 : i32
    return %arg0, %c0_i32, %c0_i32_0 : i32, i32, i32
  }
}

module attributes {stable_mosaic.version = 11 : i64} {
  func.func @_head_kernel(%arg0: i32, %arg1: memref<2x1024xf32, #tpu.memory_space<vmem>>, %arg2: memref<1024x512xbf16, #tpu.memory_space<vmem>>, %arg3: memref<1x512xf32, #tpu.memory_space<vmem>>, %arg4: memref<512x256xbf16, #tpu.memory_space<vmem>>, %arg5: memref<1x256xf32, #tpu.memory_space<vmem>>, %arg6: memref<256x128xbf16, #tpu.memory_space<vmem>>, %arg7: memref<1x128xf32, #tpu.memory_space<vmem>>, %arg8: memref<2x128xf32, #tpu.memory_space<vmem>>) attributes {dimension_semantics = [#tpu.dimension_semantics<arbitrary>], iteration_bounds = array<i64: 1>, scalar_prefetch = 0 : i64, scratch_operands = 0 : i64, tpu.core_type = #tpu.core_type<tc>, window_params = [{pipeline_mode = #tpu.pipeline_mode<synchronous>, transform_indices = @transform_0, window_bounds = array<i64: 2, 1024>}, {pipeline_mode = #tpu.pipeline_mode<synchronous>, transform_indices = @transform_1, window_bounds = array<i64: 1024, 512>}, {pipeline_mode = #tpu.pipeline_mode<synchronous>, transform_indices = @transform_2, window_bounds = array<i64: 1, 512>}, {pipeline_mode = #tpu.pipeline_mode<synchronous>, transform_indices = @transform_3, window_bounds = array<i64: 512, 256>}, {pipeline_mode = #tpu.pipeline_mode<synchronous>, transform_indices = @transform_4, window_bounds = array<i64: 1, 256>}, {pipeline_mode = #tpu.pipeline_mode<synchronous>, transform_indices = @transform_5, window_bounds = array<i64: 256, 128>}, {pipeline_mode = #tpu.pipeline_mode<synchronous>, transform_indices = @transform_6, window_bounds = array<i64: 1, 128>}, {pipeline_mode = #tpu.pipeline_mode<synchronous>, transform_indices = @transform_7, window_bounds = array<i64: 2, 128>}]} {
    %c0 = arith.constant 0 : index
    %c0_0 = arith.constant 0 : index
    %0 = vector.load %arg1[%c0, %c0_0] : memref<2x1024xf32, #tpu.memory_space<vmem>>, vector<2x1024xf32>
    %1 = arith.truncf %0 : vector<2x1024xf32> to vector<2x1024xbf16>
    %c0_1 = arith.constant 0 : index
    %c0_2 = arith.constant 0 : index
    %2 = vector.load %arg2[%c0_1, %c0_2] : memref<1024x512xbf16, #tpu.memory_space<vmem>>, vector<1024x512xbf16>
    %cst = arith.constant dense<0.000000e+00> : vector<2x512xf32>
    %3 = tpu.matmul %1, %2, %cst {dimension_numbers = #tpu.dot_dimension_numbers<[1], [0], [0], [1], [0, 0, 1, 1], [], []>} : vector<2x1024xbf16>, vector<1024x512xbf16>, vector<2x512xf32> -> vector<2x512xf32>
    %c0_3 = arith.constant 0 : index
    %c0_4 = arith.constant 0 : index
    %4 = vector.load %arg3[%c0_3, %c0_4] : memref<1x512xf32, #tpu.memory_space<vmem>>, vector<1x512xf32>
    %5 = vector.broadcast %4 : vector<1x512xf32> to vector<2x512xf32>
    %6 = arith.addf %3, %5 : vector<2x512xf32>
    %cst_5 = arith.constant 0.000000e+00 : f32
    %7 = vector.broadcast %cst_5 : f32 to vector<2x512xf32>
    %8 = arith.maximumf %6, %7 : vector<2x512xf32>
    %9 = arith.truncf %8 : vector<2x512xf32> to vector<2x512xbf16>
    %c0_6 = arith.constant 0 : index
    %c0_7 = arith.constant 0 : index
    %10 = vector.load %arg4[%c0_6, %c0_7] : memref<512x256xbf16, #tpu.memory_space<vmem>>, vector<512x256xbf16>
    %cst_8 = arith.constant dense<0.000000e+00> : vector<2x256xf32>
    %11 = tpu.matmul %9, %10, %cst_8 {dimension_numbers = #tpu.dot_dimension_numbers<[1], [0], [0], [1], [0, 0, 1, 1], [], []>} : vector<2x512xbf16>, vector<512x256xbf16>, vector<2x256xf32> -> vector<2x256xf32>
    %c0_9 = arith.constant 0 : index
    %c0_10 = arith.constant 0 : index
    %12 = vector.load %arg5[%c0_9, %c0_10] : memref<1x256xf32, #tpu.memory_space<vmem>>, vector<1x256xf32>
    %13 = vector.broadcast %12 : vector<1x256xf32> to vector<2x256xf32>
    %14 = arith.addf %11, %13 : vector<2x256xf32>
    %cst_11 = arith.constant 0.000000e+00 : f32
    %15 = vector.broadcast %cst_11 : f32 to vector<2x256xf32>
    %16 = arith.maximumf %14, %15 : vector<2x256xf32>
    %17 = arith.truncf %16 : vector<2x256xf32> to vector<2x256xbf16>
    %c0_12 = arith.constant 0 : index
    %c0_13 = arith.constant 0 : index
    %18 = vector.load %arg6[%c0_12, %c0_13] : memref<256x128xbf16, #tpu.memory_space<vmem>>, vector<256x128xbf16>
    %cst_14 = arith.constant dense<0.000000e+00> : vector<2x128xf32>
    %19 = tpu.matmul %17, %18, %cst_14 {dimension_numbers = #tpu.dot_dimension_numbers<[1], [0], [0], [1], [0, 0, 1, 1], [], []>} : vector<2x256xbf16>, vector<256x128xbf16>, vector<2x128xf32> -> vector<2x128xf32>
    %c0_15 = arith.constant 0 : index
    %c0_16 = arith.constant 0 : index
    %20 = vector.load %arg7[%c0_15, %c0_16] : memref<1x128xf32, #tpu.memory_space<vmem>>, vector<1x128xf32>
    %21 = vector.broadcast %20 : vector<1x128xf32> to vector<2x128xf32>
    %22 = arith.addf %19, %21 : vector<2x128xf32>
    %23 = tpu.iota {dimensions = array<i32: 1>} : vector<2x128xi32>
    %c2_i32 = arith.constant 2 : i32
    %24 = vector.broadcast %c2_i32 : i32 to vector<2x128xi32>
    %25 = arith.cmpi slt, %23, %24 : vector<2x128xi32>
    %cst_17 = arith.constant 0xFF800000 : f32
    %26 = vector.broadcast %cst_17 : f32 to vector<2x128xf32>
    %27 = arith.select %25, %22, %26 : vector<2x128xi1>, vector<2x128xf32>
    %cst_18 = arith.constant dense<0xFF800000> : vector<2xf32>
    %28 = vector.multi_reduction <maximumf>, %27, %cst_18 [1] : vector<2x128xf32> to vector<2xf32>
    %29 = vector.shape_cast %28 : vector<2xf32> to vector<2x1xf32>
    %30 = vector.broadcast %29 : vector<2x1xf32> to vector<2x128xf32>
    %31 = arith.subf %22, %30 : vector<2x128xf32>
    %32 = math.exp %31 : vector<2x128xf32>
    %cst_19 = arith.constant 0.000000e+00 : f32
    %33 = vector.broadcast %cst_19 : f32 to vector<2x128xf32>
    %34 = arith.select %25, %32, %33 : vector<2x128xi1>, vector<2x128xf32>
    %cst_20 = arith.constant dense<0.000000e+00> : vector<2xf32>
    %35 = vector.multi_reduction <add>, %34, %cst_20 [1] : vector<2x128xf32> to vector<2xf32>
    %36 = vector.shape_cast %35 : vector<2xf32> to vector<2x1xf32>
    %37 = math.log %36 : vector<2x1xf32>
    %38 = vector.broadcast %37 : vector<2x1xf32> to vector<2x128xf32>
    %39 = arith.subf %31, %38 : vector<2x128xf32>
    %c0_21 = arith.constant 0 : index
    %c0_22 = arith.constant 0 : index
    %40 = vector.load %arg8[%c0_21, %c0_22] : memref<2x128xf32, #tpu.memory_space<vmem>>, vector<2x128xf32>
    tpu.vector_store %arg8[%c0_21, %c0_22], %39 {strides = array<i32>} : memref<2x128xf32, #tpu.memory_space<vmem>>, vector<2x128xf32>,
    return
  }
  func.func @transform_0(%arg0: i32) -> (i32, i32) {
    %c0_i32 = arith.constant 0 : i32
    %c0_i32_0 = arith.constant 0 : i32
    %c0_i32_1 = arith.constant 0 : i32
    return %c0_i32, %c0_i32_0 : i32, i32
  }
  func.func @transform_1(%arg0: i32) -> (i32, i32) {
    %c0_i32 = arith.constant 0 : i32
    %c0_i32_0 = arith.constant 0 : i32
    %c0_i32_1 = arith.constant 0 : i32
    return %c0_i32, %c0_i32_0 : i32, i32
  }
  func.func @transform_2(%arg0: i32) -> (i32, i32) {
    %c0_i32 = arith.constant 0 : i32
    %c0_i32_0 = arith.constant 0 : i32
    %c0_i32_1 = arith.constant 0 : i32
    return %c0_i32, %c0_i32_0 : i32, i32
  }
  func.func @transform_3(%arg0: i32) -> (i32, i32) {
    %c0_i32 = arith.constant 0 : i32
    %c0_i32_0 = arith.constant 0 : i32
    %c0_i32_1 = arith.constant 0 : i32
    return %c0_i32, %c0_i32_0 : i32, i32
  }
  func.func @transform_4(%arg0: i32) -> (i32, i32) {
    %c0_i32 = arith.constant 0 : i32
    %c0_i32_0 = arith.constant 0 : i32
    %c0_i32_1 = arith.constant 0 : i32
    return %c0_i32, %c0_i32_0 : i32, i32
  }
  func.func @transform_5(%arg0: i32) -> (i32, i32) {
    %c0_i32 = arith.constant 0 : i32
    %c0_i32_0 = arith.constant 0 : i32
    %c0_i32_1 = arith.constant 0 : i32
    return %c0_i32, %c0_i32_0 : i32, i32
  }
  func.func @transform_6(%arg0: i32) -> (i32, i32) {
    %c0_i32 = arith.constant 0 : i32
    %c0_i32_0 = arith.constant 0 : i32
    %c0_i32_1 = arith.constant 0 : i32
    return %c0_i32, %c0_i32_0 : i32, i32
  }
  func.func @transform_7(%arg0: i32) -> (i32, i32) {
    %c0_i32 = arith.constant 0 : i32
    %c0_i32_0 = arith.constant 0 : i32
    %c0_i32_1 = arith.constant 0 : i32
    return %c0_i32, %c0_i32_0 : i32, i32
  }
}

</mosaic_0001>

<llo_original>
// kernel: _lambda_.4
$region0: #{_lambda_.4}
  #allocation0 [shape = 'u32[]', space=smem, size = 0x4, offset = 0x4, fixed_abs, tag = 'smem constant byte address 0x4 - core index']
  #allocation1 [shape = 'u32[144,128]{1,0:T(1,128)}', space=vmem, size = 0x12000, scoped, tag = 'internal scratch']
  %s0 = inlined_call_operand.vmem [shape: bf16[2,16,8], index: 0, kind: input, shape index: {}]
  %s1 = inlined_call_operand.vmem [shape: bf16[2,8,64], index: 1, kind: input, shape index: {}]
  %s2 = inlined_call_operand.vmem [shape: bf16[64,128], index: 2, kind: input, shape index: {}]
  %s3 = inlined_call_operand.vmem [shape: bf16[128,1024], index: 3, kind: input, shape index: {}]
  %s4 = inlined_call_operand.vmem [shape: f32[1,64], index: 4, kind: input, shape index: {}]
  %s5 = inlined_call_operand.vmem [shape: f32[1,128], index: 5, kind: input, shape index: {}]
  %s6 = inlined_call_operand.vmem [shape: f32[1,1024], index: 6, kind: input, shape index: {}]
  %s7 = inlined_call_operand.vmem [shape: f32[2,1,1024], index: 7, kind: output, shape index: {}]
  %s8 = sld [smem:[#allocation0]]
  $region69: #{_lambda_.4} parent=0
    _
  %s10 = ssub.s32 1, %s8
  %s11 = scalar_select 0, %s10, %s8
  loop: start=0, step=1, limit=4
  $region2: #{_lambda_.4} parent=0 // loop_pre_header
    _
  $region3: #{_lambda_.4} parent=0 // loop_header
    %s13 = sphi 0, %s17
    %p14 = scmp.ge.s32.totalorder %s13, 4
    %s20 = sphi 0, %s32
    %s21 = sphi 0, %s28
    %s22 = sphi 0, %s20
    %s23 = sphi 0, %s21
    %s24 = sphi 0, %s22
    %s25 = sphi 0, %s23
    %s37 = sphi 0, %s39
    %s40 = sphi 0, %s37
    %s41 = sphi 0, %s40
    %s57 = sphi 0, %s41
    %s63 = sphi 0, %s65
    %s66 = sphi 0, %s63
    %s67 = sphi 0, %s66
    %s83 = sphi 0, %s67
    %s87 = sphi 0, %s87
    %s89 = sphi 0, %s87
    %s90 = sphi 0, %s89
    %s104 = sphi 0, %s90
    %s108 = sphi 0, %s108
    %s110 = sphi 0, %s108
    %s111 = sphi 0, %s110
    %s125 = sphi 0, %s111
    %s129 = sphi 0, %s129
    %s131 = sphi 0, %s129
    %s132 = sphi 0, %s131
    %s146 = sphi 0, %s132
    %s150 = sphi 0, %s150
    %s152 = sphi 0, %s150
    %s153 = sphi 0, %s152
    %s167 = sphi 0, %s153
    %s171 = sphi 0, %s171
    %s173 = sphi 0, %s171
    %s174 = sphi 0, %s173
    %s188 = sphi 0, %s174
    %s194 = sphi 0, %s196
    %s197 = sphi 0, %s194
    %s198 = sphi 0, %s197
    %s214 = sphi 0, %s198
  $region4: #{_lambda_.4} parent=0 // loop_header_branch
    %16 = sbr.rel (%p14) target = $region8
  $region5: #{_lambda_.4} parent=0 // loop_body
    %s18 = ssub.s32 %s13, 1
    %s19 = ssub.s32 %s13, 2
    %s26 = sadd.s32 1, %s21
    %p27 = scmp.ge.s32.totalorder %s26, 1
    %s28 = scalar_select %p27, 0, %s26
    %s29 = sadd.s32 1, %s20
    %s30 = scalar_select %p27, %s29, %s20
    %p31 = scmp.ge.s32.totalorder %s30, 2
    %s32 = scalar_select %p31, 0, %s30
    %s33 = ssub.s32 %s20, %s32
    %s34 = ssub.s32 %s21, %s28
    %s35 = sor.u32 %s33, %s34
    %p36 = scmp.eq.s32.totalorder %s35, 0
    %s38 = sadd.s32 %s37, 1
    %s39 = scalar_select %p36, %s37, %s38
    %p42 = pneg %p36
    %p43 = scmp.eq.s32.totalorder %s13, 1
    %p44 = por %p42, %p43
    %p45 = scmp.ne.s32.totalorder %s37, %s40
    %p46 = scmp.eq.s32.totalorder %s13, 0
    %p47 = por %p45, %p46
    %p48 = scmp.ne.s32.totalorder %s37, %s40
    %p49 = scmp.eq.s32.totalorder %s18, 1
    %p50 = por %p48, %p49
    %p51 = scmp.ne.s32.totalorder %s40, %s41
    %p52 = scmp.eq.s32.totalorder %s18, 0
    %p53 = por %p51, %p52
    %p54 = scmp.ne.s32.totalorder %s40, %s41
    %p55 = scmp.eq.s32.totalorder %s19, 1
    %p56 = por %p54, %p55
    %p58 = scmp.ne.s32.totalorder %s41, %s57
    %p59 = scmp.eq.s32.totalorder %s19, 0
    %p60 = por %p58, %p59
    %s61 = ssub.s32 %s20, %s32
    %p62 = scmp.eq.s32.totalorder %s61, 0
    %s64 = sadd.s32 %s63, 1
    %s65 = scalar_select %p62, %s63, %s64
    %p68 = pneg %p62
    %p69 = scmp.eq.s32.totalorder %s13, 1
    %p70 = por %p68, %p69
    %p71 = scmp.ne.s32.totalorder %s63, %s66
    %p72 = scmp.eq.s32.totalorder %s13, 0
    %p73 = por %p71, %p72
    %p74 = scmp.ne.s32.totalorder %s63, %s66
    %p75 = scmp.eq.s32.totalorder %s18, 1
    %p76 = por %p74, %p75
    %p77 = scmp.ne.s32.totalorder %s66, %s67
    %p78 = scmp.eq.s32.totalorder %s18, 0
    %p79 = por %p77, %p78
    %p80 = scmp.ne.s32.totalorder %s66, %s67
    %p81 = scmp.eq.s32.totalorder %s19, 1
    %p82 = por %p80, %p81
    %p84 = scmp.ne.s32.totalorder %s67, %s83
    %p85 = scmp.eq.s32.totalorder %s19, 0
    %p86 = por %p84, %p85
    %s88 = sadd.s32 %s87, 1
    %p91 = scmp.eq.s32.totalorder %s13, 1
    %p92 = scmp.ne.s32.totalorder %s87, %s89
    %p93 = scmp.eq.s32.totalorder %s13, 0
    %p94 = por %p92, %p93
    %p95 = scmp.ne.s32.totalorder %s87, %s89
    %p96 = scmp.eq.s32.totalorder %s18, 1
    %p97 = por %p95, %p96
    %p98 = scmp.ne.s32.totalorder %s89, %s90
    %p99 = scmp.eq.s32.totalorder %s18, 0
    %p100 = por %p98, %p99
    %p101 = scmp.ne.s32.totalorder %s89, %s90
    %p102 = scmp.eq.s32.totalorder %s19, 1
    %p103 = por %p101, %p102
    %p105 = scmp.ne.s32.totalorder %s90, %s104
    %p106 = scmp.eq.s32.totalorder %s19, 0
    %p107 = por %p105, %p106
    %s109 = sadd.s32 %s108, 1
    %p112 = scmp.eq.s32.totalorder %s13, 1
    %p113 = scmp.ne.s32.totalorder %s108, %s110
    %p114 = scmp.eq.s32.totalorder %s13, 0
    %p115 = por %p113, %p114
    %p116 = scmp.ne.s32.totalorder %s108, %s110
    %p117 = scmp.eq.s32.totalorder %s18, 1
    %p118 = por %p116, %p117
    %p119 = scmp.ne.s32.totalorder %s110, %s111
    %p120 = scmp.eq.s32.totalorder %s18, 0
    %p121 = por %p119, %p120
    %p122 = scmp.ne.s32.totalorder %s110, %s111
    %p123 = scmp.eq.s32.totalorder %s19, 1
    %p124 = por %p122, %p123
    %p126 = scmp.ne.s32.totalorder %s111, %s125
    %p127 = scmp.eq.s32.totalorder %s19, 0
    %p128 = por %p126, %p127
    %s130 = sadd.s32 %s129, 1
    %p133 = scmp.eq.s32.totalorder %s13, 1
    %p134 = scmp.ne.s32.totalorder %s129, %s131
    %p135 = scmp.eq.s32.totalorder %s13, 0
    %p136 = por %p134, %p135
    %p137 = scmp.ne.s32.totalorder %s129, %s131
    %p138 = scmp.eq.s32.totalorder %s18, 1
    %p139 = por %p137, %p138
    %p140 = scmp.ne.s32.totalorder %s131, %s132
    %p141 = scmp.eq.s32.totalorder %s18, 0
    %p142 = por %p140, %p141
    %p143 = scmp.ne.s32.totalorder %s131, %s132
    %p144 = scmp.eq.s32.totalorder %s19, 1
    %p145 = por %p143, %p144
    %p147 = scmp.ne.s32.totalorder %s132, %s146
    %p148 = scmp.eq.s32.totalorder %s19, 0
    %p149 = por %p147, %p148
    %s151 = sadd.s32 %s150, 1
    %p154 = scmp.eq.s32.totalorder %s13, 1
    %p155 = scmp.ne.s32.totalorder %s150, %s152
    %p156 = scmp.eq.s32.totalorder %s13, 0
    %p157 = por %p155, %p156
    %p158 = scmp.ne.s32.totalorder %s150, %s152
    %p159 = scmp.eq.s32.totalorder %s18, 1
    %p160 = por %p158, %p159
    %p161 = scmp.ne.s32.totalorder %s152, %s153
    %p162 = scmp.eq.s32.totalorder %s18, 0
    %p163 = por %p161, %p162
    %p164 = scmp.ne.s32.totalorder %s152, %s153
    %p165 = scmp.eq.s32.totalorder %s19, 1
    %p166 = por %p164, %p165
    %p168 = scmp.ne.s32.totalorder %s153, %s167
    %p169 = scmp.eq.s32.totalorder %s19, 0
    %p170 = por %p168, %p169
    %s172 = sadd.s32 %s171, 1
    %p175 = scmp.eq.s32.totalorder %s13, 1
    %p176 = scmp.ne.s32.totalorder %s171, %s173
    %p177 = scmp.eq.s32.totalorder %s13, 0
    %p178 = por %p176, %p177
    %p179 = scmp.ne.s32.totalorder %s171, %s173
    %p180 = scmp.eq.s32.totalorder %s18, 1
    %p181 = por %p179, %p180
    %p182 = scmp.ne.s32.totalorder %s173, %s174
    %p183 = scmp.eq.s32.totalorder %s18, 0
    %p184 = por %p182, %p183
    %p185 = scmp.ne.s32.totalorder %s173, %s174
    %p186 = scmp.eq.s32.totalorder %s19, 1
    %p187 = por %p185, %p186
    %p189 = scmp.ne.s32.totalorder %s174, %s188
    %p190 = scmp.eq.s32.totalorder %s19, 0
    %p191 = por %p189, %p190
    %s192 = ssub.s32 %s20, %s32
    %p193 = scmp.eq.s32.totalorder %s192, 0
    %s195 = sadd.s32 %s194, 1
    %s196 = scalar_select %p193, %s194, %s195
    %p199 = pneg %p193
    %p200 = scmp.eq.s32.totalorder %s13, 1
    %p201 = por %p199, %p200
    %p202 = scmp.ne.s32.totalorder %s194, %s197
    %p203 = scmp.eq.s32.totalorder %s13, 0
    %p204 = por %p202, %p203
    %p205 = scmp.ne.s32.totalorder %s194, %s197
    %p206 = scmp.eq.s32.totalorder %s18, 1
    %p207 = por %p205, %p206
    %p208 = scmp.ne.s32.totalorder %s197, %s198
    %p209 = scmp.eq.s32.totalorder %s18, 0
    %p210 = por %p208, %p209
    %p211 = scmp.ne.s32.totalorder %s197, %s198
    %p212 = scmp.eq.s32.totalorder %s19, 1
    %p213 = por %p211, %p212
    %p215 = scmp.ne.s32.totalorder %s198, %s214
    %p216 = scmp.eq.s32.totalorder %s19, 0
    %p217 = por %p215, %p216
    %p218 = scmp.le.s32.totalorder 1, %s13
    %p219 = scmp.lt.s32.totalorder %s13, 3
    %p220 = pnand %p218, %p219
    %p221 = pneg %p220
    // Predicated region
    $region9: #{_lambda_.4} parent=5 // pred_check
      _
    $region10: #{_lambda_.4} parent=5 // pred_check_branch
      %223 = sbr.rel (%p220) target = $region12
    $region11: #{_lambda_.4} parent=5 // pred_region
      %s224 = ssub.s32 %s13, 1
      // Predicated region
      $region13: #{_lambda_.4} parent=11 // pred_check
        %p225 = pneg %p100
      $region14: #{_lambda_.4} parent=11 // pred_check_branch
        %227 = sbr.rel (%p225) target = $region16
      $region15: #{_lambda_.4} parent=11 // pred_region
        _
      $region16: #{_lambda_.4} parent=11 // pred_fallthru
        _
      // Predicated region
      $region17: #{_lambda_.4} parent=11 // pred_check
        %p228 = pneg %p121
      $region18: #{_lambda_.4} parent=11 // pred_check_branch
        %230 = sbr.rel (%p228) target = $region20
      $region19: #{_lambda_.4} parent=11 // pred_region
        _
      $region20: #{_lambda_.4} parent=11 // pred_fallthru
        _
      // Predicated region
      $region21: #{_lambda_.4} parent=11 // pred_check
        %p231 = pneg %p142
      $region22: #{_lambda_.4} parent=11 // pred_check_branch
        %233 = sbr.rel (%p231) target = $region24
      $region23: #{_lambda_.4} parent=11 // pred_region
        _
      $region24: #{_lambda_.4} parent=11 // pred_fallthru
        _
      // Predicated region
      $region25: #{_lambda_.4} parent=11 // pred_check
        %p234 = pneg %p163
      $region26: #{_lambda_.4} parent=11 // pred_check_branch
        %236 = sbr.rel (%p234) target = $region28
      $region27: #{_lambda_.4} parent=11 // pred_region
        _
      $region28: #{_lambda_.4} parent=11 // pred_fallthru
        _
      // Predicated region
      $region29: #{_lambda_.4} parent=11 // pred_check
        %p237 = pneg %p184
      $region30: #{_lambda_.4} parent=11 // pred_check_branch
        %239 = sbr.rel (%p237) target = $region32
      $region31: #{_lambda_.4} parent=11 // pred_region
        _
      $region32: #{_lambda_.4} parent=11 // pred_fallthru
        _
    $region12: #{_lambda_.4} parent=5 // pred_fallthru
      _
    %p240 = scmp.lt.s32.totalorder %s13, 2
    // Predicated region
    $region33: #{_lambda_.4} parent=5 // pred_check
      %p241 = pneg %p240
    $region34: #{_lambda_.4} parent=5 // pred_check_branch
      %243 = sbr.rel (%p241) target = $region36
    $region35: #{_lambda_.4} parent=5 // pred_region
      // Predicated region
      $region37: #{_lambda_.4} parent=35 // pred_check
        %p244 = pneg %p47
      $region38: #{_lambda_.4} parent=35 // pred_check_branch
        %246 = sbr.rel (%p244) target = $region40
      $region39: #{_lambda_.4} parent=35 // pred_region
        %s247 = smul.u32 2, %s21
        %p248 = scmp.lt.s32.totalorder %s20, 1
        %s249 = scalar_select %p248, %s20, 1
        %p250 = scmp.lt.s32.totalorder %s247, 1
        %s251 = scalar_select %p250, %s247, 1
        %s252 = smul.addr %s249, 2
        %s253 = sadd.s32 %s251, %s252
        %s254 = smul.addr %s253, 4
        %s255 = scalar_lea.vmem %s0, %s254
        %s256 = smul.u32 2, %s21
      $region40: #{_lambda_.4} parent=35 // pred_fallthru
        _
      // Predicated region
      $region41: #{_lambda_.4} parent=35 // pred_check
        %p257 = pneg %p73
      $region42: #{_lambda_.4} parent=35 // pred_check_branch
        %259 = sbr.rel (%p257) target = $region44
      $region43: #{_lambda_.4} parent=35 // pred_region
        %p260 = scmp.lt.s32.totalorder %s20, 1
        %s261 = scalar_select %p260, %s20, 1
        %s262 = smul.addr %s261, 4
        %s263 = scalar_lea.vmem %s1, %s262
      $region44: #{_lambda_.4} parent=35 // pred_fallthru
        _
    $region36: #{_lambda_.4} parent=5 // pred_fallthru
      _
    %p264 = scmp.le.s32.totalorder 1, %s13
    %p265 = scmp.lt.s32.totalorder %s13, 3
    %p266 = pnand %p264, %p265
    %p267 = pneg %p266
    // Predicated region
    $region45: #{_lambda_.4} parent=5 // pred_check
      _
    $region46: #{_lambda_.4} parent=5 // pred_check_branch
      %269 = sbr.rel (%p266) target = $region48
    $region47: #{_lambda_.4} parent=5 // pred_region
      %s270 = ssub.s32 %s13, 1
      %s271 = smul.u32 2, %s23
      %p272 = scmp.lt.s32.totalorder %s22, 1
      %s273 = scalar_select %p272, %s22, 1
      %p274 = scmp.lt.s32.totalorder %s271, 1
      %s275 = scalar_select %p274, %s271, 1
      %s276 = smul.addr %s273, 2
      %s277 = sadd.s32 %s275, %s276
      %s278 = smul.addr %s277, 4
      %s279 = scalar_lea.vmem %s0, %s278
      %p280 = pneg %p53
      %p281 = pneg %p50
      %p282 = scmp.lt.s32.totalorder %s22, 1
      %s283 = scalar_select %p282, %s22, 1
      %s284 = smul.addr %s283, 4
      %s285 = scalar_lea.vmem %s1, %s284
      %p286 = pneg %p79
      %p287 = pneg %p76
      %p288 = pneg %p100
      %p289 = pneg %p97
      %p290 = pneg %p121
      %p291 = pneg %p118
      %p292 = pneg %p142
      %p293 = pneg %p139
      %p294 = pneg %p163
      %p295 = pneg %p160
      %p296 = pneg %p184
      %p297 = pneg %p181
      %p298 = pneg %p210
      %p299 = pneg %p207
      %p300 = scmp.lt.s32.totalorder %s22, 1
      %s301 = scalar_select %p300, %s22, 1
      %s302 = smul.addr %s301, 8
      %s303 = scalar_lea.vmem %s7, %s302
      %s304 = smul.u32 2, %s23
      %p305 = scmp.lt.s32.totalorder %s22, 1
      %s306 = scalar_select %p305, %s22, 1
      %p307 = scmp.lt.s32.totalorder %s304, 1
      %s308 = scalar_select %p307, %s304, 1
      %s309 = smul.addr %s306, 2
      %s310 = sadd.s32 %s308, %s309
      %s311 = smul.addr %s310, 4
      %s312 = scalar_lea.vmem %s0, %s311
      %s313 = smul.u32 2, %s23
      %p314 = scmp.lt.s32.totalorder %s22, 1
      %s315 = scalar_select %p314, %s22, 1
      %s316 = smul.addr %s315, 4
      %s317 = scalar_lea.vmem %s1, %s316
      %p318 = scmp.lt.s32.totalorder %s22, 1
      %s319 = scalar_select %p318, %s22, 1
      %s320 = smul.addr %s319, 8
      %s321 = scalar_lea.vmem %s7, %s320
      %v323 = vld [vmem:[%s312] sm:$0xf]
      %v324 = vld [vmem:[%s312 + $0x4] sm:$0xf]
      %v325 = vld [vmem:[%s317] sm:$0xf]
      %v326 = vld [vmem:[%s4] sm:$0x1]
      %v328 = vlaneseq
      %v329 = vshrl.u32 %v328, 7
      %v330 = vsub.s32 0, %v329
      %v331 = vrot.slane %v326, %v330
      %v335 = vunpack.c.l.b16 %v323
      %v336 = vunpack.c.l.b16 %v324
      %v337 = vpack.c.b16 %v336, %v335
      %vm338 = vcmask 64512
      %v340 = vsel %vm338, %v337, 0
      %vm342 = vcmask 1043456
      %v344 = vsel %vm342, %v325, 0
      %346 = vmatprep.subr.bf16.mxu0 0
      %347 = vmatpush1.bf16.msra.mxu0 %v344
      %348 = vmatprep.subr.bf16.mxu0 0
      %349 = vmatpush1.bf16.msra.mxu0 0
      %350 = vmatprep.subr.bf16.mxu0 0
      %351 = vmatpush1.bf16.msra.mxu0 0
      %352 = vmatprep.subr.bf16.mxu0 0
      %353 = vmatpush1.bf16.msra.mxu0 0
      %354 = vmatprep.subr.bf16.mxu0 0
      %355 = vmatpush1.bf16.msra.mxu0 0
      %356 = vmatprep.subr.bf16.mxu0 0
      %357 = vmatpush1.bf16.msra.mxu0 0
      %358 = vmatprep.subr.bf16.mxu0 0
      %359 = vmatpush1.bf16.msra.mxu0 0
      %360 = vmatprep.subr.bf16.mxu0 0
      %361 = vmatpush1.bf16.msra.mxu0 0
      %362 = vmatprep.subr.bf16.mxu0 0
      %363 = vmatpush1.bf16.msra.mxu0 0
      %364 = vmatprep.subr.bf16.mxu0 0
      %365 = vmatpush1.bf16.msra.mxu0 0
      %366 = vmatprep.subr.bf16.mxu0 0
      %367 = vmatpush1.bf16.msra.mxu0 0
      %368 = vmatprep.subr.bf16.mxu0 0
      %369 = vmatpush1.bf16.msra.mxu0 0
      %370 = vmatprep.subr.bf16.mxu0 0
      %371 = vmatpush1.bf16.msra.mxu0 0
      %372 = vmatprep.subr.bf16.mxu0 0
      %373 = vmatpush1.bf16.msra.mxu0 0
      %374 = vmatprep.subr.bf16.mxu0 0
      %375 = vmatpush1.bf16.msra.mxu0 0
      %376 = vmatprep.subr.bf16.mxu0 0
      %377 = vmatpush1.bf16.msra.mxu0 0
      %378 = vmatprep.mubr.bf16.mxu0 0
      %379 = vmatmul.mubr.bf16.gmra.mrb[0].mxu0 %v340
      %v380 = vpop.f32.mrb[0].mxu0
      %v381 = vadd.f32 %v331, %v380
      %v382 = vpop.f32.mrb[0].mxu0
      %v383 = vpop.f32.mrb[0].mxu0
      %v384 = vadd.f32 %v331, %v383
      %v385 = vpop.f32.mrb[0].mxu0
      %386 = vdwg.mxu0
      %v387 = vmax.f32 %v381, 0.0
      %v388 = vmax.f32 %v384, 0.0
      %v389 = vpack.c.bf16 %v388, %v387
      %v390 = vld [vmem:[%s2] sm:$0xf]
      %v391 = vld [vmem:[%s2 + $0x4] sm:$0xf]
      %v392 = vld [vmem:[%s2 + $0x8] sm:$0xf]
      %v393 = vld [vmem:[%s2 + $0xc] sm:$0xf]
      %v394 = vld [vmem:[%s2 + $0x10] sm:$0xf]
      %v395 = vld [vmem:[%s2 + $0x14] sm:$0xf]
      %v396 = vld [vmem:[%s2 + $0x18] sm:$0xf]
      %v397 = vld [vmem:[%s2 + $0x1c] sm:$0xf]
      %v398 = vld [vmem:[%s5] sm:$0x1]
      %v400 = vlaneseq
      %v401 = vshrl.u32 %v400, 7
      %v402 = vsub.s32 0, %v401
      %v403 = vrot.slane %v398, %v402
      %v413 = vunpack.c.l.b16 %v390
      %v414 = vunpack.c.l.b16 %v391
      %v415 = vunpack.c.l.b16 %v392
      %v416 = vunpack.c.l.b16 %v393
      %v417 = vunpack.c.l.b16 %v394
      %v418 = vunpack.c.l.b16 %v395
      %v419 = vunpack.c.l.b16 %v396
      %v420 = vunpack.c.l.b16 %v397
      %v421 = vpack.c.b16 %v414, %v413
      %v422 = vpack.c.b16 %v416, %v415
      %v423 = vpack.c.b16 %v418, %v417
      %v424 = vpack.c.b16 %v420, %v419
      %vm429 = vcmask 523264
      %v431 = vsel %vm429, %v389, 0
      %433 = vmatprep.subr.bf16.mxu0 0
      %434 = vmatpush1.bf16.msra.mxu0 %v421
      %435 = vmatprep.subr.bf16.mxu0 0
      %436 = vmatpush1.bf16.msra.mxu0 %v422
      %437 = vmatprep.subr.bf16.mxu0 0
      %438 = vmatpush1.bf16.msra.mxu0 %v423
      %439 = vmatprep.subr.bf16.mxu0 0
      %440 = vmatpush1.bf16.msra.mxu0 %v424
      %441 = vmatprep.subr.bf16.mxu0 0
      %442 = vmatpush1.bf16.msra.mxu0 0
      %443 = vmatprep.subr.bf16.mxu0 0
      %444 = vmatpush1.bf16.msra.mxu0 0
      %445 = vmatprep.subr.bf16.mxu0 0
      %446 = vmatpush1.bf16.msra.mxu0 0
      %447 = vmatprep.subr.bf16.mxu0 0
      %448 = vmatpush1.bf16.msra.mxu0 0
      %449 = vmatprep.subr.bf16.mxu0 0
      %450 = vmatpush1.bf16.msra.mxu0 0
      %451 = vmatprep.subr.bf16.mxu0 0
      %452 = vmatpush1.bf16.msra.mxu0 0
      %453 = vmatprep.subr.bf16.mxu0 0
      %454 = vmatpush1.bf16.msra.mxu0 0
      %455 = vmatprep.subr.bf16.mxu0 0
      %456 = vmatpush1.bf16.msra.mxu0 0
      %457 = vmatprep.subr.bf16.mxu0 0
      %458 = vmatpush1.bf16.msra.mxu0 0
      %459 = vmatprep.subr.bf16.mxu0 0
      %460 = vmatpush1.bf16.msra.mxu0 0
      %461 = vmatprep.subr.bf16.mxu0 0
      %462 = vmatpush1.bf16.msra.mxu0 0
      %463 = vmatprep.subr.bf16.mxu0 0
      %464 = vmatpush1.bf16.msra.mxu0 0
      %465 = vmatprep.mubr.bf16.mxu0 0
      %466 = vmatmul.mubr.bf16.gmra.mrb[0].mxu0 %v431
      %v467 = vpop.f32.mrb[0].mxu0
      %v468 = vadd.f32 %v403, %v467
      %v469 = vpop.f32.mrb[0].mxu0
      %v470 = vpop.f32.mrb[0].mxu0
      %v471 = vadd.f32 %v403, %v470
      %v472 = vpop.f32.mrb[0].mxu0
      %473 = vdwg.mxu0
      %v474 = vmax.f32 %v468, 0.0
      %v475 = vmax.f32 %v471, 0.0
      %v476 = vpack.c.bf16 %v475, %v474
      %v477 = vld [vmem:[%s3] sm:$0xff]
      %v478 = vld [vmem:[%s3 + $0x8] sm:$0xff]
      %v479 = vld [vmem:[%s3 + $0x10] sm:$0xff]
      %v480 = vld [vmem:[%s3 + $0x18] sm:$0xff]
      %v481 = vld [vmem:[%s3 + $0x20] sm:$0xff]
      %v482 = vld [vmem:[%s3 + $0x28] sm:$0xff]
      %v483 = vld [vmem:[%s3 + $0x30] sm:$0xff]
      %v484 = vld [vmem:[%s3 + $0x38] sm:$0xff]
      %v485 = vld [vmem:[%s3 + $0x40] sm:$0xff]
      %v486 = vld [vmem:[%s3 + $0x48] sm:$0xff]
      %v487 = vld [vmem:[%s3 + $0x50] sm:$0xff]
      %v488 = vld [vmem:[%s3 + $0x58] sm:$0xff]
      %v489 = vld [vmem:[%s3 + $0x60] sm:$0xff]
      %v490 = vld [vmem:[%s3 + $0x68] sm:$0xff]
      %v491 = vld [vmem:[%s3 + $0x70] sm:$0xff]
      %v492 = vld [vmem:[%s3 + $0x78] sm:$0xff]
      %v493 = vld [vmem:[%s3 + $0x80] sm:$0xff]
      %v494 = vld [vmem:[%s3 + $0x88] sm:$0xff]
      %v495 = vld [vmem:[%s3 + $0x90] sm:$0xff]
      %v496 = vld [vmem:[%s3 + $0x98] sm:$0xff]
      %v497 = vld [vmem:[%s3 + $0xa0] sm:$0xff]
      %v498 = vld [vmem:[%s3 + $0xa8] sm:$0xff]
      %v499 = vld [vmem:[%s3 + $0xb0] sm:$0xff]
      %v500 = vld [vmem:[%s3 + $0xb8] sm:$0xff]
      %v501 = vld [vmem:[%s3 + $0xc0] sm:$0xff]
      %v502 = vld [vmem:[%s3 + $0xc8] sm:$0xff]
      %v503 = vld [vmem:[%s3 + $0xd0] sm:$0xff]
      %v504 = vld [vmem:[%s3 + $0xd8] sm:$0xff]
      %v505 = vld [vmem:[%s3 + $0xe0] sm:$0xff]
      %v506 = vld [vmem:[%s3 + $0xe8] sm:$0xff]
      %v507 = vld [vmem:[%s3 + $0xf0] sm:$0xff]
      %v508 = vld [vmem:[%s3 + $0xf8] sm:$0xff]
      %v509 = vld [vmem:[%s3 + $0x100] sm:$0xff]
      %v510 = vld [vmem:[%s3 + $0x108] sm:$0xff]
      %v511 = vld [vmem:[%s3 + $0x110] sm:$0xff]
      %v512 = vld [vmem:[%s3 + $0x118] sm:$0xff]
      %v513 = vld [vmem:[%s3 + $0x120] sm:$0xff]
      %v514 = vld [vmem:[%s3 + $0x128] sm:$0xff]
      %v515 = vld [vmem:[%s3 + $0x130] sm:$0xff]
      %v516 = vld [vmem:[%s3 + $0x138] sm:$0xff]
      %v517 = vld [vmem:[%s3 + $0x140] sm:$0xff]
      %v518 = vld [vmem:[%s3 + $0x148] sm:$0xff]
      %v519 = vld [vmem:[%s3 + $0x150] sm:$0xff]
      %v520 = vld [vmem:[%s3 + $0x158] sm:$0xff]
      %v521 = vld [vmem:[%s3 + $0x160] sm:$0xff]
      %v522 = vld [vmem:[%s3 + $0x168] sm:$0xff]
      %v523 = vld [vmem:[%s3 + $0x170] sm:$0xff]
      %v524 = vld [vmem:[%s3 + $0x178] sm:$0xff]
      %v525 = vld [vmem:[%s3 + $0x180] sm:$0xff]
      %v526 = vld [vmem:[%s3 + $0x188] sm:$0xff]
      %v527 = vld [vmem:[%s3 + $0x190] sm:$0xff]
      %v528 = vld [vmem:[%s3 + $0x198] sm:$0xff]
      %v529 = vld [vmem:[%s3 + $0x1a0] sm:$0xff]
      %v530 = vld [vmem:[%s3 + $0x1a8] sm:$0xff]
      %v531 = vld [vmem:[%s3 + $0x1b0] sm:$0xff]
      %v532 = vld [vmem:[%s3 + $0x1b8] sm:$0xff]
      %v533 = vld [vmem:[%s3 + $0x1c0] sm:$0xff]
      %v534 = vld [vmem:[%s3 + $0x1c8] sm:$0xff]
      %v535 = vld [vmem:[%s3 + $0x1d0] sm:$0xff]
      %v536 = vld [vmem:[%s3 + $0x1d8] sm:$0xff]
      %v537 = vld [vmem:[%s3 + $0x1e0] sm:$0xff]
      %v538 = vld [vmem:[%s3 + $0x1e8] sm:$0xff]
      %v539 = vld [vmem:[%s3 + $0x1f0] sm:$0xff]
      %v540 = vld [vmem:[%s3 + $0x1f8] sm:$0xff]
      %v541 = vld [vmem:[%s6] sm:$0xff]
      %v543 = vlaneseq
      %v544 = vshrl.u32 %v543, 7
      %v545 = vsub.s32 0, %v544
      %v546 = vrot.slane %v541, %v545
      %v547 = vlaneseq
      %v548 = vshrl.u32 %v547, 7
      %v549 = vsub.s32 1, %v548
      %v550 = vrot.slane %v541, %v549
      %v551 = vlaneseq
      %v552 = vshrl.u32 %v551, 7
      %v553 = vsub.s32 2, %v552
      %v554 = vrot.slane %v541, %v553
      %v555 = vlaneseq
      %v556 = vshrl.u32 %v555, 7
      %v557 = vsub.s32 3, %v556
      %v558 = vrot.slane %v541, %v557
      %v559 = vlaneseq
      %v560 = vshrl.u32 %v559, 7
      %v561 = vsub.s32 4, %v560
      %v562 = vrot.slane %v541, %v561
      %v563 = vlaneseq
      %v564 = vshrl.u32 %v563, 7
      %v565 = vsub.s32 5, %v564
      %v566 = vrot.slane %v541, %v565
      %v567 = vlaneseq
      %v568 = vshrl.u32 %v567, 7
      %v569 = vsub.s32 6, %v568
      %v570 = vrot.slane %v541, %v569
      %v571 = vlaneseq
      %v572 = vshrl.u32 %v571, 7
      %v573 = vsub.s32 7, %v572
      %v574 = vrot.slane %v541, %v573
      %v647 = vunpack.c.l.b16 %v477
      %v648 = vunpack.c.h.b16 %v477
      %v649 = vunpack.c.l.b16 %v478
      %v650 = vunpack.c.h.b16 %v478
      %v651 = vunpack.c.l.b16 %v479
      %v652 = vunpack.c.h.b16 %v479
      %v653 = vunpack.c.l.b16 %v480
      %v654 = vunpack.c.h.b16 %v480
      %v655 = vunpack.c.l.b16 %v481
      %v656 = vunpack.c.h.b16 %v481
      %v657 = vunpack.c.l.b16 %v482
      %v658 = vunpack.c.h.b16 %v482
      %v659 = vunpack.c.l.b16 %v483
      %v660 = vunpack.c.h.b16 %v483
      %v661 = vunpack.c.l.b16 %v484
      %v662 = vunpack.c.h.b16 %v484
      %v663 = vunpack.c.l.b16 %v485
      %v664 = vunpack.c.h.b16 %v485
      %v665 = vunpack.c.l.b16 %v486
      %v666 = vunpack.c.h.b16 %v486
      %v667 = vunpack.c.l.b16 %v487
      %v668 = vunpack.c.h.b16 %v487
      %v669 = vunpack.c.l.b16 %v488
      %v670 = vunpack.c.h.b16 %v488
      %v671 = vunpack.c.l.b16 %v489
      %v672 = vunpack.c.h.b16 %v489
      %v673 = vunpack.c.l.b16 %v490
      %v674 = vunpack.c.h.b16 %v490
      %v675 = vunpack.c.l.b16 %v491
      %v676 = vunpack.c.h.b16 %v491
      %v677 = vunpack.c.l.b16 %v492
      %v678 = vunpack.c.h.b16 %v492
      %v679 = vunpack.c.l.b16 %v493
      %v680 = vunpack.c.h.b16 %v493
      %v681 = vunpack.c.l.b16 %v494
      %v682 = vunpack.c.h.b16 %v494
      %v683 = vunpack.c.l.b16 %v495
      %v684 = vunpack.c.h.b16 %v495
      %v685 = vunpack.c.l.b16 %v496
      %v686 = vunpack.c.h.b16 %v496
      %v687 = vunpack.c.l.b16 %v497
      %v688 = vunpack.c.h.b16 %v497
      %v689 = vunpack.c.l.b16 %v498
      %v690 = vunpack.c.h.b16 %v498
      %v691 = vunpack.c.l.b16 %v499
      %v692 = vunpack.c.h.b16 %v499
      %v693 = vunpack.c.l.b16 %v500
      %v694 = vunpack.c.h.b16 %v500
      %v695 = vunpack.c.l.b16 %v501
      %v696 = vunpack.c.h.b16 %v501
      %v697 = vunpack.c.l.b16 %v502
      %v698 = vunpack.c.h.b16 %v502
      %v699 = vunpack.c.l.b16 %v503
      %v700 = vunpack.c.h.b16 %v503
      %v701 = vunpack.c.l.b16 %v504
      %v702 = vunpack.c.h.b16 %v504
      %v703 = vunpack.c.l.b16 %v505
      %v704 = vunpack.c.h.b16 %v505
      %v705 = vunpack.c.l.b16 %v506
      %v706 = vunpack.c.h.b16 %v506
      %v707 = vunpack.c.l.b16 %v507
      %v708 = vunpack.c.h.b16 %v507
      %v709 = vunpack.c.l.b16 %v508
      %v710 = vunpack.c.h.b16 %v508
      %v711 = vunpack.c.l.b16 %v509
      %v712 = vunpack.c.h.b16 %v509
      %v713 = vunpack.c.l.b16 %v510
      %v714 = vunpack.c.h.b16 %v510
      %v715 = vunpack.c.l.b16 %v511
      %v716 = vunpack.c.h.b16 %v511
      %v717 = vunpack.c.l.b16 %v512
      %v718 = vunpack.c.h.b16 %v512
      %v719 = vunpack.c.l.b16 %v513
      %v720 = vunpack.c.h.b16 %v513
      %v721 = vunpack.c.l.b16 %v514
      %v722 = vunpack.c.h.b16 %v514
      %v723 = vunpack.c.l.b16 %v515
      %v724 = vunpack.c.h.b16 %v515
      %v725 = vunpack.c.l.b16 %v516
      %v726 = vunpack.c.h.b16 %v516
      %v727 = vunpack.c.l.b16 %v517
      %v728 = vunpack.c.h.b16 %v517
      %v729 = vunpack.c.l.b16 %v518
      %v730 = vunpack.c.h.b16 %v518
      %v731 = vunpack.c.l.b16 %v519
      %v732 = vunpack.c.h.b16 %v519
      %v733 = vunpack.c.l.b16 %v520
      %v734 = vunpack.c.h.b16 %v520
      %v735 = vunpack.c.l.b16 %v521
      %v736 = vunpack.c.h.b16 %v521
      %v737 = vunpack.c.l.b16 %v522
      %v738 = vunpack.c.h.b16 %v522
      %v739 = vunpack.c.l.b16 %v523
      %v740 = vunpack.c.h.b16 %v523
      %v741 = vunpack.c.l.b16 %v524
      %v742 = vunpack.c.h.b16 %v524
      %v743 = vunpack.c.l.b16 %v525
      %v744 = vunpack.c.h.b16 %v525
      %v745 = vunpack.c.l.b16 %v526
      %v746 = vunpack.c.h.b16 %v526
      %v747 = vunpack.c.l.b16 %v527
      %v748 = vunpack.c.h.b16 %v527
      %v749 = vunpack.c.l.b16 %v528
      %v750 = vunpack.c.h.b16 %v528
      %v751 = vunpack.c.l.b16 %v529
      %v752 = vunpack.c.h.b16 %v529
      %v753 = vunpack.c.l.b16 %v530
      %v754 = vunpack.c.h.b16 %v530
      %v755 = vunpack.c.l.b16 %v531
      %v756 = vunpack.c.h.b16 %v531
      %v757 = vunpack.c.l.b16 %v532
      %v758 = vunpack.c.h.b16 %v532
      %v759 = vunpack.c.l.b16 %v533
      %v760 = vunpack.c.h.b16 %v533
      %v761 = vunpack.c.l.b16 %v534
      %v762 = vunpack.c.h.b16 %v534
      %v763 = vunpack.c.l.b16 %v535
      %v764 = vunpack.c.h.b16 %v535
      %v765 = vunpack.c.l.b16 %v536
      %v766 = vunpack.c.h.b16 %v536
      %v767 = vunpack.c.l.b16 %v537
      %v768 = vunpack.c.h.b16 %v537
      %v769 = vunpack.c.l.b16 %v538
      %v770 = vunpack.c.h.b16 %v538
      %v771 = vunpack.c.l.b16 %v539
      %v772 = vunpack.c.h.b16 %v539
      %v773 = vunpack.c.l.b16 %v540
      %v774 = vunpack.c.h.b16 %v540
      %v775 = vpack.c.b16 %v655, %v647
      %v776 = vpack.c.b16 %v656, %v648
      %v777 = vpack.c.b16 %v657, %v649
      %v778 = vpack.c.b16 %v658, %v650
      %v779 = vpack.c.b16 %v659, %v651
      %v780 = vpack.c.b16 %v660, %v652
      %v781 = vpack.c.b16 %v661, %v653
      %v782 = vpack.c.b16 %v662, %v654
      %v783 = vpack.c.b16 %v671, %v663
      %v784 = vpack.c.b16 %v672, %v664
      %v785 = vpack.c.b16 %v673, %v665
      %v786 = vpack.c.b16 %v674, %v666
      %v787 = vpack.c.b16 %v675, %v667
      %v788 = vpack.c.b16 %v676, %v668
      %v789 = vpack.c.b16 %v677, %v669
      %v790 = vpack.c.b16 %v678, %v670
      %v791 = vpack.c.b16 %v687, %v679
      %v792 = vpack.c.b16 %v688, %v680
      %v793 = vpack.c.b16 %v689, %v681
      %v794 = vpack.c.b16 %v690, %v682
      %v795 = vpack.c.b16 %v691, %v683
      %v796 = vpack.c.b16 %v692, %v684
      %v797 = vpack.c.b16 %v693, %v685
      %v798 = vpack.c.b16 %v694, %v686
      %v799 = vpack.c.b16 %v703, %v695
      %v800 = vpack.c.b16 %v704, %v696
      %v801 = vpack.c.b16 %v705, %v697
      %v802 = vpack.c.b16 %v706, %v698
      %v803 = vpack.c.b16 %v707, %v699
      %v804 = vpack.c.b16 %v708, %v700
      %v805 = vpack.c.b16 %v709, %v701
      %v806 = vpack.c.b16 %v710, %v702
      %v807 = vpack.c.b16 %v719, %v711
      %v808 = vpack.c.b16 %v720, %v712
      %v809 = vpack.c.b16 %v721, %v713
      %v810 = vpack.c.b16 %v722, %v714
      %v811 = vpack.c.b16 %v723, %v715
      %v812 = vpack.c.b16 %v724, %v716
      %v813 = vpack.c.b16 %v725, %v717
      %v814 = vpack.c.b16 %v726, %v718
      %v815 = vpack.c.b16 %v735, %v727
      %v816 = vpack.c.b16 %v736, %v728
      %v817 = vpack.c.b16 %v737, %v729
      %v818 = vpack.c.b16 %v738, %v730
      %v819 = vpack.c.b16 %v739, %v731
      %v820 = vpack.c.b16 %v740, %v732
      %v821 = vpack.c.b16 %v741, %v733
      %v822 = vpack.c.b16 %v742, %v734
      %v823 = vpack.c.b16 %v751, %v743
      %v824 = vpack.c.b16 %v752, %v744
      %v825 = vpack.c.b16 %v753, %v745
      %v826 = vpack.c.b16 %v754, %v746
      %v827 = vpack.c.b16 %v755, %v747
      %v828 = vpack.c.b16 %v756, %v748
      %v829 = vpack.c.b16 %v757, %v749
      %v830 = vpack.c.b16 %v758, %v750
      %v831 = vpack.c.b16 %v767, %v759
      %v832 = vpack.c.b16 %v768, %v760
      %v833 = vpack.c.b16 %v769, %v761
      %v834 = vpack.c.b16 %v770, %v762
      %v835 = vpack.c.b16 %v771, %v763
      %v836 = vpack.c.b16 %v772, %v764
      %v837 = vpack.c.b16 %v773, %v765
      %v838 = vpack.c.b16 %v774, %v766
      %903 = vmatprep.subr.bf16.mxu0 %v776
      %904 = vmatpush1.bf16.msra.mxu0 %v775
      %905 = vmatprep.subr.bf16.mxu0 %v784
      %906 = vmatpush1.bf16.msra.mxu0 %v783
      %907 = vmatprep.subr.bf16.mxu0 %v792
      %908 = vmatpush1.bf16.msra.mxu0 %v791
      %909 = vmatprep.subr.bf16.mxu0 %v800
      %910 = vmatpush1.bf16.msra.mxu0 %v799
      %911 = vmatprep.subr.bf16.mxu0 %v808
      %912 = vmatpush1.bf16.msra.mxu0 %v807
      %913 = vmatprep.subr.bf16.mxu0 %v816
      %914 = vmatpush1.bf16.msra.mxu0 %v815
      %915 = vmatprep.subr.bf16.mxu0 %v824
      %916 = vmatpush1.bf16.msra.mxu0 %v823
      %917 = vmatprep.subr.bf16.mxu0 %v832
      %918 = vmatpush1.bf16.msra.mxu0 %v831
      %919 = vmatprep.subr.bf16.mxu0 0
      %920 = vmatpush1.bf16.msra.mxu0 0
      %921 = vmatprep.subr.bf16.mxu0 0
      %922 = vmatpush1.bf16.msra.mxu0 0
      %923 = vmatprep.subr.bf16.mxu0 0
      %924 = vmatpush1.bf16.msra.mxu0 0
      %925 = vmatprep.subr.bf16.mxu0 0
      %926 = vmatpush1.bf16.msra.mxu0 0
      %927 = vmatprep.subr.bf16.mxu0 0
      %928 = vmatpush1.bf16.msra.mxu0 0
      %929 = vmatprep.subr.bf16.mxu0 0
      %930 = vmatpush1.bf16.msra.mxu0 0
      %931 = vmatprep.subr.bf16.mxu0 0
      %932 = vmatpush1.bf16.msra.mxu0 0
      %933 = vmatprep.subr.bf16.mxu0 0
      %934 = vmatpush1.bf16.msra.mxu0 0
      %935 = vmatprep.mubr.bf16.mxu0 0
      %936 = vmatmul.mubr.bf16.gmra.mrb[0].mxu0 %v476
      %v937 = vpop.f32.mrb[0].mxu0
      %v938 = vadd.f32 %v546, %v937
      %v939 = vpop.f32.mrb[0].mxu0
      %v940 = vadd.f32 %v550, %v939
      %v941 = vpop.f32.mrb[0].mxu0
      %v942 = vadd.f32 %v546, %v941
      %v943 = vpop.f32.mrb[0].mxu0
      %v944 = vadd.f32 %v550, %v943
      %945 = vdwg.mxu0
      %946 = vmatprep.subr.bf16.mxu0 %v778
      %947 = vmatpush1.bf16.msra.mxu0 %v777
      %948 = vmatprep.subr.bf16.mxu0 %v786
      %949 = vmatpush1.bf16.msra.mxu0 %v785
      %950 = vmatprep.subr.bf16.mxu0 %v794
      %951 = vmatpush1.bf16.msra.mxu0 %v793
      %952 = vmatprep.subr.bf16.mxu0 %v802
      %953 = vmatpush1.bf16.msra.mxu0 %v801
      %954 = vmatprep.subr.bf16.mxu0 %v810
      %955 = vmatpush1.bf16.msra.mxu0 %v809
      %956 = vmatprep.subr.bf16.mxu0 %v818
      %957 = vmatpush1.bf16.msra.mxu0 %v817
      %958 = vmatprep.subr.bf16.mxu0 %v826
      %959 = vmatpush1.bf16.msra.mxu0 %v825
      %960 = vmatprep.subr.bf16.mxu0 %v834
      %961 = vmatpush1.bf16.msra.mxu0 %v833
      %962 = vmatprep.subr.bf16.mxu0 0
      %963 = vmatpush1.bf16.msra.mxu0 0
      %964 = vmatprep.subr.bf16.mxu0 0
      %965 = vmatpush1.bf16.msra.mxu0 0
      %966 = vmatprep.subr.bf16.mxu0 0
      %967 = vmatpush1.bf16.msra.mxu0 0
      %968 = vmatprep.subr.bf16.mxu0 0
      %969 = vmatpush1.bf16.msra.mxu0 0
      %970 = vmatprep.subr.bf16.mxu0 0
      %971 = vmatpush1.bf16.msra.mxu0 0
      %972 = vmatprep.subr.bf16.mxu0 0
      %973 = vmatpush1.bf16.msra.mxu0 0
      %974 = vmatprep.subr.bf16.mxu0 0
      %975 = vmatpush1.bf16.msra.mxu0 0
      %976 = vmatprep.subr.bf16.mxu0 0
      %977 = vmatpush1.bf16.msra.mxu0 0
      %978 = vmatprep.mubr.bf16.mxu0 0
      %979 = vmatmul.mubr.bf16.gmra.mrb[0].mxu0 %v476
      %v980 = vpop.f32.mrb[0].mxu0
      %v981 = vadd.f32 %v554, %v980
      %v982 = vpop.f32.mrb[0].mxu0
      %v983 = vadd.f32 %v558, %v982
      %v984 = vpop.f32.mrb[0].mxu0
      %v985 = vadd.f32 %v554, %v984
      %v986 = vpop.f32.mrb[0].mxu0
      %v987 = vadd.f32 %v558, %v986
      %988 = vdwg.mxu0
      %989 = vmatprep.subr.bf16.mxu0 %v780
      %990 = vmatpush1.bf16.msra.mxu0 %v779
      %991 = vmatprep.subr.bf16.mxu0 %v788
      %992 = vmatpush1.bf16.msra.mxu0 %v787
      %993 = vmatprep.subr.bf16.mxu0 %v796
      %994 = vmatpush1.bf16.msra.mxu0 %v795
      %995 = vmatprep.subr.bf16.mxu0 %v804
      %996 = vmatpush1.bf16.msra.mxu0 %v803
      %997 = vmatprep.subr.bf16.mxu0 %v812
      %998 = vmatpush1.bf16.msra.mxu0 %v811
      %999 = vmatprep.subr.bf16.mxu0 %v820
      %1000 = vmatpush1.bf16.msra.mxu0 %v819
      %1001 = vmatprep.subr.bf16.mxu0 %v828
      %1002 = vmatpush1.bf16.msra.mxu0 %v827
      %1003 = vmatprep.subr.bf16.mxu0 %v836
      %1004 = vmatpush1.bf16.msra.mxu0 %v835
      %1005 = vmatprep.subr.bf16.mxu0 0
      %1006 = vmatpush1.bf16.msra.mxu0 0
      %1007 = vmatprep.subr.bf16.mxu0 0
      %1008 = vmatpush1.bf16.msra.mxu0 0
      %1009 = vmatprep.subr.bf16.mxu0 0
      %1010 = vmatpush1.bf16.msra.mxu0 0
      %1011 = vmatprep.subr.bf16.mxu0 0
      %1012 = vmatpush1.bf16.msra.mxu0 0
      %1013 = vmatprep.subr.bf16.mxu0 0
      %1014 = vmatpush1.bf16.msra.mxu0 0
      %1015 = vmatprep.subr.bf16.mxu0 0
      %1016 = vmatpush1.bf16.msra.mxu0 0
      %1017 = vmatprep.subr.bf16.mxu0 0
      %1018 = vmatpush1.bf16.msra.mxu0 0
      %1019 = vmatprep.subr.bf16.mxu0 0
      %1020 = vmatpush1.bf16.msra.mxu0 0
      %1021 = vmatprep.mubr.bf16.mxu0 0
      %1022 = vmatmul.mubr.bf16.gmra.mrb[0].mxu0 %v476
      %v1023 = vpop.f32.mrb[0].mxu0
      %v1024 = vadd.f32 %v562, %v1023
      %v1025 = vpop.f32.mrb[0].mxu0
      %v1026 = vadd.f32 %v566, %v1025
      %v1027 = vpop.f32.mrb[0].mxu0
      %v1028 = vadd.f32 %v562, %v1027
      %v1029 = vpop.f32.mrb[0].mxu0
      %v1030 = vadd.f32 %v566, %v1029
      %1031 = vdwg.mxu0
      %1032 = vmatprep.subr.bf16.mxu0 %v782
      %1033 = vmatpush1.bf16.msra.mxu0 %v781
      %1034 = vmatprep.subr.bf16.mxu0 %v790
      %1035 = vmatpush1.bf16.msra.mxu0 %v789
      %1036 = vmatprep.subr.bf16.mxu0 %v798
      %1037 = vmatpush1.bf16.msra.mxu0 %v797
      %1038 = vmatprep.subr.bf16.mxu0 %v806
      %1039 = vmatpush1.bf16.msra.mxu0 %v805
      %1040 = vmatprep.subr.bf16.mxu0 %v814
      %1041 = vmatpush1.bf16.msra.mxu0 %v813
      %1042 = vmatprep.subr.bf16.mxu0 %v822
      %1043 = vmatpush1.bf16.msra.mxu0 %v821
      %1044 = vmatprep.subr.bf16.mxu0 %v830
      %1045 = vmatpush1.bf16.msra.mxu0 %v829
      %1046 = vmatprep.subr.bf16.mxu0 %v838
      %1047 = vmatpush1.bf16.msra.mxu0 %v837
      %1048 = vmatprep.subr.bf16.mxu0 0
      %1049 = vmatpush1.bf16.msra.mxu0 0
      %1050 = vmatprep.subr.bf16.mxu0 0
      %1051 = vmatpush1.bf16.msra.mxu0 0
      %1052 = vmatprep.subr.bf16.mxu0 0
      %1053 = vmatpush1.bf16.msra.mxu0 0
      %1054 = vmatprep.subr.bf16.mxu0 0
      %1055 = vmatpush1.bf16.msra.mxu0 0
      %1056 = vmatprep.subr.bf16.mxu0 0
      %1057 = vmatpush1.bf16.msra.mxu0 0
      %1058 = vmatprep.subr.bf16.mxu0 0
      %1059 = vmatpush1.bf16.msra.mxu0 0
      %1060 = vmatprep.subr.bf16.mxu0 0
      %1061 = vmatpush1.bf16.msra.mxu0 0
      %1062 = vmatprep.subr.bf16.mxu0 0
      %1063 = vmatpush1.bf16.msra.mxu0 0
      %1064 = vmatprep.mubr.bf16.mxu0 0
      %1065 = vmatmul.mubr.bf16.gmra.mrb[0].mxu0 %v476
      %v1066 = vpop.f32.mrb[0].mxu0
      %v1067 = vadd.f32 %v570, %v1066
      %v1068 = vpop.f32.mrb[0].mxu0
      %v1069 = vadd.f32 %v574, %v1068
      %v1070 = vpop.f32.mrb[0].mxu0
      %v1071 = vadd.f32 %v570, %v1070
      %v1072 = vpop.f32.mrb[0].mxu0
      %v1073 = vadd.f32 %v574, %v1072
      %1074 = vdwg.mxu0
      %v1075 = vmax.f32 %v938, 0.0
      %v1076 = vmax.f32 %v940, 0.0
      %v1077 = vmax.f32 %v981, 0.0
      %v1078 = vmax.f32 %v983, 0.0
      %v1079 = vmax.f32 %v1024, 0.0
      %v1080 = vmax.f32 %v1026, 0.0
      %v1081 = vmax.f32 %v1067, 0.0
      %v1082 = vmax.f32 %v1069, 0.0
      %v1083 = vmax.f32 %v942, 0.0
      %v1084 = vmax.f32 %v944, 0.0
      %v1085 = vmax.f32 %v985, 0.0
      %v1086 = vmax.f32 %v987, 0.0
      %v1087 = vmax.f32 %v1028, 0.0
      %v1088 = vmax.f32 %v1030, 0.0
      %v1089 = vmax.f32 %v1071, 0.0
      %v1090 = vmax.f32 %v1073, 0.0
      %v1091 = vmax.f32 %v1075, %v1083
      %v1092 = vrot.slane %v1091, 4
      %v1093 = vmax.f32 %v1091, %v1092
      %v1094 = vrot.slane %v1093, 2
      %v1095 = vmax.f32 %v1093, %v1094
      %v1096 = vrot.slane %v1095, 1
      %v1097 = vmax.f32 %v1095, %v1096
      %v1098 = vmax.f32 %v1076, %v1084
      %v1099 = vrot.slane %v1098, 4
      %v1100 = vmax.f32 %v1098, %v1099
      %v1101 = vrot.slane %v1100, 2
      %v1102 = vmax.f32 %v1100, %v1101
      %v1103 = vrot.slane %v1102, 1
      %v1104 = vmax.f32 %v1102, %v1103
      %v1105 = vmax.f32 %v1077, %v1085
      %v1106 = vrot.slane %v1105, 4
      %v1107 = vmax.f32 %v1105, %v1106
      %v1108 = vrot.slane %v1107, 2
      %v1109 = vmax.f32 %v1107, %v1108
      %v1110 = vrot.slane %v1109, 1
      %v1111 = vmax.f32 %v1109, %v1110
      %v1112 = vmax.f32 %v1078, %v1086
      %v1113 = vrot.slane %v1112, 4
      %v1114 = vmax.f32 %v1112, %v1113
      %v1115 = vrot.slane %v1114, 2
      %v1116 = vmax.f32 %v1114, %v1115
      %v1117 = vrot.slane %v1116, 1
      %v1118 = vmax.f32 %v1116, %v1117
      %v1119 = vmax.f32 %v1079, %v1087
      %v1120 = vrot.slane %v1119, 4
      %v1121 = vmax.f32 %v1119, %v1120
      %v1122 = vrot.slane %v1121, 2
      %v1123 = vmax.f32 %v1121, %v1122
      %v1124 = vrot.slane %v1123, 1
      %v1125 = vmax.f32 %v1123, %v1124
      %v1126 = vmax.f32 %v1080, %v1088
      %v1127 = vrot.slane %v1126, 4
      %v1128 = vmax.f32 %v1126, %v1127
      %v1129 = vrot.slane %v1128, 2
      %v1130 = vmax.f32 %v1128, %v1129
      %v1131 = vrot.slane %v1130, 1
      %v1132 = vmax.f32 %v1130, %v1131
      %v1133 = vmax.f32 %v1081, %v1089
      %v1134 = vrot.slane %v1133, 4
      %v1135 = vmax.f32 %v1133, %v1134
      %v1136 = vrot.slane %v1135, 2
      %v1137 = vmax.f32 %v1135, %v1136
      %v1138 = vrot.slane %v1137, 1
      %v1139 = vmax.f32 %v1137, %v1138
      %v1140 = vmax.f32 %v1082, %v1090
      %v1141 = vrot.slane %v1140, 4
      %v1142 = vmax.f32 %v1140, %v1141
      %v1143 = vrot.slane %v1142, 2
      %v1144 = vmax.f32 %v1142, %v1143
      %v1145 = vrot.slane %v1144, 1
      %v1146 = vmax.f32 %v1144, %v1145
      %p1147 = scmp.eq.s32.totalorder %s23, 0
      // Predicated region
      $region49: #{_lambda_.4} parent=47 // pred_check
        %p1148 = pneg %p1147
      $region50: #{_lambda_.4} parent=47 // pred_check_branch
        %1150 = sbr.rel (%p1148) target = $region52
      $region51: #{_lambda_.4} parent=47 // pred_region
        %v1159 = vcombine.low %v1097, %v1104
        %v1160 = vcombine.low %v1111, %v1118
        %v1161 = vcombine.low %v1125, %v1132
        %v1162 = vcombine.low %v1139, %v1146
        %v1164 = vunpack.c.l.s4 1966171168
        %v1165 = vunpack.c.0.s8 %v1164
        %v1166 = vlaneseq
        %v1167 = vshrl.u32 %v1166, 7
        %v1168 = vsub.s32 %v1165, %v1167
        %v1169 = vrot.slane %v1159, %v1168
        %v1171 = vunpack.c.l.s4 1966171168
        %v1172 = vunpack.c.0.s8 %v1171
        %v1173 = vlaneseq
        %v1174 = vshrl.u32 %v1173, 7
        %v1175 = vsub.s32 %v1172, %v1174
        %v1176 = vrot.slane %v1160, %v1175
        %v1178 = vunpack.c.l.s4 1966171168
        %v1179 = vunpack.c.0.s8 %v1178
        %v1180 = vlaneseq
        %v1181 = vshrl.u32 %v1180, 7
        %v1182 = vsub.s32 %v1179, %v1181
        %v1183 = vrot.slane %v1161, %v1182
        %v1185 = vunpack.c.l.s4 1966171168
        %v1186 = vunpack.c.0.s8 %v1185
        %v1187 = vlaneseq
        %v1188 = vshrl.u32 %v1187, 7
        %v1189 = vsub.s32 %v1186, %v1188
        %v1190 = vrot.slane %v1162, %v1189
        %v1191 = vcombine.low %v1169, %v1176
        %v1192 = vcombine.low %v1183, %v1190
        %v1194 = vunpack.c.l.s4 1966171168
        %v1195 = vunpack.c.0.s8 %v1194
        %v1196 = vlaneseq
        %v1197 = vshrl.u32 %v1196, 7
        %v1198 = vsub.s32 %v1195, %v1197
        %v1199 = vrot.slane %v1191, %v1198
        %v1201 = vunpack.c.l.s4 1966171168
        %v1202 = vunpack.c.0.s8 %v1201
        %v1203 = vlaneseq
        %v1204 = vshrl.u32 %v1203, 7
        %v1205 = vsub.s32 %v1202, %v1204
        %v1206 = vrot.slane %v1192, %v1205
        %v1207 = vcombine.low %v1199, %v1206
        %1209 = vst [vmem:[%s321] sm:$0xff] %v1207
      $region52: #{_lambda_.4} parent=47 // pred_fallthru
        _
      %p1210 = scmp.ne.s32.totalorder %s23, 0
      // Predicated region
      $region53: #{_lambda_.4} parent=47 // pred_check
        %p1211 = pneg %p1210
      $region54: #{_lambda_.4} parent=47 // pred_check_branch
        %1213 = sbr.rel (%p1211) target = $region56
      $region55: #{_lambda_.4} parent=47 // pred_region
        %v1214 = vld [vmem:[%s321] sm:$0xff]
        %v1223 = vcombine.low %v1097, %v1104
        %v1224 = vcombine.low %v1111, %v1118
        %v1225 = vcombine.low %v1125, %v1132
        %v1226 = vcombine.low %v1139, %v1146
        %v1228 = vunpack.c.l.s4 1966171168
        %v1229 = vunpack.c.0.s8 %v1228
        %v1230 = vlaneseq
        %v1231 = vshrl.u32 %v1230, 7
        %v1232 = vsub.s32 %v1229, %v1231
        %v1233 = vrot.slane %v1223, %v1232
        %v1235 = vunpack.c.l.s4 1966171168
        %v1236 = vunpack.c.0.s8 %v1235
        %v1237 = vlaneseq
        %v1238 = vshrl.u32 %v1237, 7
        %v1239 = vsub.s32 %v1236, %v1238
        %v1240 = vrot.slane %v1224, %v1239
        %v1242 = vunpack.c.l.s4 1966171168
        %v1243 = vunpack.c.0.s8 %v1242
        %v1244 = vlaneseq
        %v1245 = vshrl.u32 %v1244, 7
        %v1246 = vsub.s32 %v1243, %v1245
        %v1247 = vrot.slane %v1225, %v1246
        %v1249 = vunpack.c.l.s4 1966171168
        %v1250 = vunpack.c.0.s8 %v1249
        %v1251 = vlaneseq
        %v1252 = vshrl.u32 %v1251, 7
        %v1253 = vsub.s32 %v1250, %v1252
        %v1254 = vrot.slane %v1226, %v1253
        %v1255 = vcombine.low %v1233, %v1240
        %v1256 = vcombine.low %v1247, %v1254
        %v1258 = vunpack.c.l.s4 1966171168
        %v1259 = vunpack.c.0.s8 %v1258
        %v1260 = vlaneseq
        %v1261 = vshrl.u32 %v1260, 7
        %v1262 = vsub.s32 %v1259, %v1261
        %v1263 = vrot.slane %v1255, %v1262
        %v1265 = vunpack.c.l.s4 1966171168
        %v1266 = vunpack.c.0.s8 %v1265
        %v1267 = vlaneseq
        %v1268 = vshrl.u32 %v1267, 7
        %v1269 = vsub.s32 %v1266, %v1268
        %v1270 = vrot.slane %v1256, %v1269
        %v1271 = vcombine.low %v1263, %v1270
        %v1273 = vmax.f32 %v1214, %v1271
        %1274 = vst [vmem:[%s321] sm:$0xff] %v1273
      $region56: #{_lambda_.4} parent=47 // pred_fallthru
        _
      %p1275 = scmp.lt.s32.totalorder %s22, 1
      %s1276 = scalar_select %p1275, %s22, 1
      %s1277 = smul.addr %s1276, 8
      %s1278 = scalar_lea.vmem %s7, %s1277
      // Predicated region
      $region57: #{_lambda_.4} parent=47 // pred_check
        %p1279 = pneg %p207
      $region58: #{_lambda_.4} parent=47 // pred_check_branch
        %1281 = sbr.rel (%p1279) target = $region60
      $region59: #{_lambda_.4} parent=47 // pred_region
        _
      $region60: #{_lambda_.4} parent=47 // pred_fallthru
        _
    $region48: #{_lambda_.4} parent=5 // pred_fallthru
      _
    %p1282 = scmp.le.s32.totalorder 2, %s13
    // Predicated region
    $region61: #{_lambda_.4} parent=5 // pred_check
      %p1283 = pneg %p1282
    $region62: #{_lambda_.4} parent=5 // pred_check_branch
      %1285 = sbr.rel (%p1283) target = $region64
    $region63: #{_lambda_.4} parent=5 // pred_region
      %s1286 = ssub.s32 %s13, 2
      // Predicated region
      $region65: #{_lambda_.4} parent=63 // pred_check
        %p1287 = pneg %p213
      $region66: #{_lambda_.4} parent=63 // pred_check_branch
        %1289 = sbr.rel (%p1287) target = $region68
      $region67: #{_lambda_.4} parent=63 // pred_region
        %p1290 = scmp.lt.s32.totalorder %s24, 1
        %s1291 = scalar_select %p1290, %s24, 1
        %s1292 = smul.addr %s1291, 8
        %s1293 = scalar_lea.vmem %s7, %s1292
      $region68: #{_lambda_.4} parent=63 // pred_fallthru
        _
    $region64: #{_lambda_.4} parent=5 // pred_fallthru
      _
  $region6: #{_lambda_.4} parent=0 // loop_footer
    %s17 = sadd.s32 1, %s13
  $region7: #{_lambda_.4} parent=0 // loop_footer_branch
    %12 = sbr.rel target = $region3
  $region8: #{_lambda_.4} parent=0 // loop_exit
    _

// kernel: _lambda_.6
$region0: #{_lambda_.6}
  #allocation0 [shape = 'u32[]', space=smem, size = 0x4, offset = 0x4, fixed_abs, tag = 'smem constant byte address 0x4 - core index']
  #allocation1 [shape = 'u32[144,128]{1,0:T(1,128)}', space=vmem, size = 0x12000, scoped, tag = 'internal scratch']
  %s0 = inlined_call_operand.vmem [shape: bf16[2,16,8], index: 0, kind: input, shape index: {}]
  %s1 = inlined_call_operand.vmem [shape: bf16[2,8,64], index: 1, kind: input, shape index: {}]
  %s2 = inlined_call_operand.vmem [shape: bf16[64,128], index: 2, kind: input, shape index: {}]
  %s3 = inlined_call_operand.vmem [shape: bf16[128,1024], index: 3, kind: input, shape index: {}]
  %s4 = inlined_call_operand.vmem [shape: f32[1,64], index: 4, kind: input, shape index: {}]
  %s5 = inlined_call_operand.vmem [shape: f32[1,128], index: 5, kind: input, shape index: {}]
  %s6 = inlined_call_operand.vmem [shape: f32[1,1024], index: 6, kind: input, shape index: {}]
  %s7 = inlined_call_operand.vmem [shape: f32[2,1,1024], index: 7, kind: output, shape index: {}]
  %s8 = sld [smem:[#allocation0]]
  $region69: #{_lambda_.6} parent=0
    _
  %s10 = ssub.s32 1, %s8
  %s11 = scalar_select 0, %s10, %s8
  loop: start=0, step=1, limit=4
  $region2: #{_lambda_.6} parent=0 // loop_pre_header
    _
  $region3: #{_lambda_.6} parent=0 // loop_header
    %s13 = sphi 0, %s17
    %p14 = scmp.ge.s32.totalorder %s13, 4
    %s20 = sphi 0, %s32
    %s21 = sphi 0, %s28
    %s22 = sphi 0, %s20
    %s23 = sphi 0, %s21
    %s24 = sphi 0, %s22
    %s25 = sphi 0, %s23
    %s37 = sphi 0, %s39
    %s40 = sphi 0, %s37
    %s41 = sphi 0, %s40
    %s57 = sphi 0, %s41
    %s63 = sphi 0, %s65
    %s66 = sphi 0, %s63
    %s67 = sphi 0, %s66
    %s83 = sphi 0, %s67
    %s87 = sphi 0, %s87
    %s89 = sphi 0, %s87
    %s90 = sphi 0, %s89
    %s104 = sphi 0, %s90
    %s108 = sphi 0, %s108
    %s110 = sphi 0, %s108
    %s111 = sphi 0, %s110
    %s125 = sphi 0, %s111
    %s129 = sphi 0, %s129
    %s131 = sphi 0, %s129
    %s132 = sphi 0, %s131
    %s146 = sphi 0, %s132
    %s150 = sphi 0, %s150
    %s152 = sphi 0, %s150
    %s153 = sphi 0, %s152
    %s167 = sphi 0, %s153
    %s171 = sphi 0, %s171
    %s173 = sphi 0, %s171
    %s174 = sphi 0, %s173
    %s188 = sphi 0, %s174
    %s194 = sphi 0, %s196
    %s197 = sphi 0, %s194
    %s198 = sphi 0, %s197
    %s214 = sphi 0, %s198
  $region4: #{_lambda_.6} parent=0 // loop_header_branch
    %16 = sbr.rel (%p14) target = $region8
  $region5: #{_lambda_.6} parent=0 // loop_body
    %s18 = ssub.s32 %s13, 1
    %s19 = ssub.s32 %s13, 2
    %s26 = sadd.s32 1, %s21
    %p27 = scmp.ge.s32.totalorder %s26, 1
    %s28 = scalar_select %p27, 0, %s26
    %s29 = sadd.s32 1, %s20
    %s30 = scalar_select %p27, %s29, %s20
    %p31 = scmp.ge.s32.totalorder %s30, 2
    %s32 = scalar_select %p31, 0, %s30
    %s33 = ssub.s32 %s20, %s32
    %s34 = ssub.s32 %s21, %s28
    %s35 = sor.u32 %s33, %s34
    %p36 = scmp.eq.s32.totalorder %s35, 0
    %s38 = sadd.s32 %s37, 1
    %s39 = scalar_select %p36, %s37, %s38
    %p42 = pneg %p36
    %p43 = scmp.eq.s32.totalorder %s13, 1
    %p44 = por %p42, %p43
    %p45 = scmp.ne.s32.totalorder %s37, %s40
    %p46 = scmp.eq.s32.totalorder %s13, 0
    %p47 = por %p45, %p46
    %p48 = scmp.ne.s32.totalorder %s37, %s40
    %p49 = scmp.eq.s32.totalorder %s18, 1
    %p50 = por %p48, %p49
    %p51 = scmp.ne.s32.totalorder %s40, %s41
    %p52 = scmp.eq.s32.totalorder %s18, 0
    %p53 = por %p51, %p52
    %p54 = scmp.ne.s32.totalorder %s40, %s41
    %p55 = scmp.eq.s32.totalorder %s19, 1
    %p56 = por %p54, %p55
    %p58 = scmp.ne.s32.totalorder %s41, %s57
    %p59 = scmp.eq.s32.totalorder %s19, 0
    %p60 = por %p58, %p59
    %s61 = ssub.s32 %s20, %s32
    %p62 = scmp.eq.s32.totalorder %s61, 0
    %s64 = sadd.s32 %s63, 1
    %s65 = scalar_select %p62, %s63, %s64
    %p68 = pneg %p62
    %p69 = scmp.eq.s32.totalorder %s13, 1
    %p70 = por %p68, %p69
    %p71 = scmp.ne.s32.totalorder %s63, %s66
    %p72 = scmp.eq.s32.totalorder %s13, 0
    %p73 = por %p71, %p72
    %p74 = scmp.ne.s32.totalorder %s63, %s66
    %p75 = scmp.eq.s32.totalorder %s18, 1
    %p76 = por %p74, %p75
    %p77 = scmp.ne.s32.totalorder %s66, %s67
    %p78 = scmp.eq.s32.totalorder %s18, 0
    %p79 = por %p77, %p78
    %p80 = scmp.ne.s32.totalorder %s66, %s67
    %p81 = scmp.eq.s32.totalorder %s19, 1
    %p82 = por %p80, %p81
    %p84 = scmp.ne.s32.totalorder %s67, %s83
    %p85 = scmp.eq.s32.totalorder %s19, 0
    %p86 = por %p84, %p85
    %s88 = sadd.s32 %s87, 1
    %p91 = scmp.eq.s32.totalorder %s13, 1
    %p92 = scmp.ne.s32.totalorder %s87, %s89
    %p93 = scmp.eq.s32.totalorder %s13, 0
    %p94 = por %p92, %p93
    %p95 = scmp.ne.s32.totalorder %s87, %s89
    %p96 = scmp.eq.s32.totalorder %s18, 1
    %p97 = por %p95, %p96
    %p98 = scmp.ne.s32.totalorder %s89, %s90
    %p99 = scmp.eq.s32.totalorder %s18, 0
    %p100 = por %p98, %p99
    %p101 = scmp.ne.s32.totalorder %s89, %s90
    %p102 = scmp.eq.s32.totalorder %s19, 1
    %p103 = por %p101, %p102
    %p105 = scmp.ne.s32.totalorder %s90, %s104
    %p106 = scmp.eq.s32.totalorder %s19, 0
    %p107 = por %p105, %p106
    %s109 = sadd.s32 %s108, 1
    %p112 = scmp.eq.s32.totalorder %s13, 1
    %p113 = scmp.ne.s32.totalorder %s108, %s110
    %p114 = scmp.eq.s32.totalorder %s13, 0
    %p115 = por %p113, %p114
    %p116 = scmp.ne.s32.totalorder %s108, %s110
    %p117 = scmp.eq.s32.totalorder %s18, 1
    %p118 = por %p116, %p117
    %p119 = scmp.ne.s32.totalorder %s110, %s111
    %p120 = scmp.eq.s32.totalorder %s18, 0
    %p121 = por %p119, %p120
    %p122 = scmp.ne.s32.totalorder %s110, %s111
    %p123 = scmp.eq.s32.totalorder %s19, 1
    %p124 = por %p122, %p123
    %p126 = scmp.ne.s32.totalorder %s111, %s125
    %p127 = scmp.eq.s32.totalorder %s19, 0
    %p128 = por %p126, %p127
    %s130 = sadd.s32 %s129, 1
    %p133 = scmp.eq.s32.totalorder %s13, 1
    %p134 = scmp.ne.s32.totalorder %s129, %s131
    %p135 = scmp.eq.s32.totalorder %s13, 0
    %p136 = por %p134, %p135
    %p137 = scmp.ne.s32.totalorder %s129, %s131
    %p138 = scmp.eq.s32.totalorder %s18, 1
    %p139 = por %p137, %p138
    %p140 = scmp.ne.s32.totalorder %s131, %s132
    %p141 = scmp.eq.s32.totalorder %s18, 0
    %p142 = por %p140, %p141
    %p143 = scmp.ne.s32.totalorder %s131, %s132
    %p144 = scmp.eq.s32.totalorder %s19, 1
    %p145 = por %p143, %p144
    %p147 = scmp.ne.s32.totalorder %s132, %s146
    %p148 = scmp.eq.s32.totalorder %s19, 0
    %p149 = por %p147, %p148
    %s151 = sadd.s32 %s150, 1
    %p154 = scmp.eq.s32.totalorder %s13, 1
    %p155 = scmp.ne.s32.totalorder %s150, %s152
    %p156 = scmp.eq.s32.totalorder %s13, 0
    %p157 = por %p155, %p156
    %p158 = scmp.ne.s32.totalorder %s150, %s152
    %p159 = scmp.eq.s32.totalorder %s18, 1
    %p160 = por %p158, %p159
    %p161 = scmp.ne.s32.totalorder %s152, %s153
    %p162 = scmp.eq.s32.totalorder %s18, 0
    %p163 = por %p161, %p162
    %p164 = scmp.ne.s32.totalorder %s152, %s153
    %p165 = scmp.eq.s32.totalorder %s19, 1
    %p166 = por %p164, %p165
    %p168 = scmp.ne.s32.totalorder %s153, %s167
    %p169 = scmp.eq.s32.totalorder %s19, 0
    %p170 = por %p168, %p169
    %s172 = sadd.s32 %s171, 1
    %p175 = scmp.eq.s32.totalorder %s13, 1
    %p176 = scmp.ne.s32.totalorder %s171, %s173
    %p177 = scmp.eq.s32.totalorder %s13, 0
    %p178 = por %p176, %p177
    %p179 = scmp.ne.s32.totalorder %s171, %s173
    %p180 = scmp.eq.s32.totalorder %s18, 1
    %p181 = por %p179, %p180
    %p182 = scmp.ne.s32.totalorder %s173, %s174
    %p183 = scmp.eq.s32.totalorder %s18, 0
    %p184 = por %p182, %p183
    %p185 = scmp.ne.s32.totalorder %s173, %s174
    %p186 = scmp.eq.s32.totalorder %s19, 1
    %p187 = por %p185, %p186
    %p189 = scmp.ne.s32.totalorder %s174, %s188
    %p190 = scmp.eq.s32.totalorder %s19, 0
    %p191 = por %p189, %p190
    %s192 = ssub.s32 %s20, %s32
    %p193 = scmp.eq.s32.totalorder %s192, 0
    %s195 = sadd.s32 %s194, 1
    %s196 = scalar_select %p193, %s194, %s195
    %p199 = pneg %p193
    %p200 = scmp.eq.s32.totalorder %s13, 1
    %p201 = por %p199, %p200
    %p202 = scmp.ne.s32.totalorder %s194, %s197
    %p203 = scmp.eq.s32.totalorder %s13, 0
    %p204 = por %p202, %p203
    %p205 = scmp.ne.s32.totalorder %s194, %s197
    %p206 = scmp.eq.s32.totalorder %s18, 1
    %p207 = por %p205, %p206
    %p208 = scmp.ne.s32.totalorder %s197, %s198
    %p209 = scmp.eq.s32.totalorder %s18, 0
    %p210 = por %p208, %p209
    %p211 = scmp.ne.s32.totalorder %s197, %s198
    %p212 = scmp.eq.s32.totalorder %s19, 1
    %p213 = por %p211, %p212
    %p215 = scmp.ne.s32.totalorder %s198, %s214
    %p216 = scmp.eq.s32.totalorder %s19, 0
    %p217 = por %p215, %p216
    %p218 = scmp.le.s32.totalorder 1, %s13
    %p219 = scmp.lt.s32.totalorder %s13, 3
    %p220 = pnand %p218, %p219
    %p221 = pneg %p220
    // Predicated region
    $region9: #{_lambda_.6} parent=5 // pred_check
      _
    $region10: #{_lambda_.6} parent=5 // pred_check_branch
      %223 = sbr.rel (%p220) target = $region12
    $region11: #{_lambda_.6} parent=5 // pred_region
      %s224 = ssub.s32 %s13, 1
      // Predicated region
      $region13: #{_lambda_.6} parent=11 // pred_check
        %p225 = pneg %p100
      $region14: #{_lambda_.6} parent=11 // pred_check_branch
        %227 = sbr.rel (%p225) target = $region16
      $region15: #{_lambda_.6} parent=11 // pred_region
        _
      $region16: #{_lambda_.6} parent=11 // pred_fallthru
        _
      // Predicated region
      $region17: #{_lambda_.6} parent=11 // pred_check
        %p228 = pneg %p121
      $region18: #{_lambda_.6} parent=11 // pred_check_branch
        %230 = sbr.rel (%p228) target = $region20
      $region19: #{_lambda_.6} parent=11 // pred_region
        _
      $region20: #{_lambda_.6} parent=11 // pred_fallthru
        _
      // Predicated region
      $region21: #{_lambda_.6} parent=11 // pred_check
        %p231 = pneg %p142
      $region22: #{_lambda_.6} parent=11 // pred_check_branch
        %233 = sbr.rel (%p231) target = $region24
      $region23: #{_lambda_.6} parent=11 // pred_region
        _
      $region24: #{_lambda_.6} parent=11 // pred_fallthru
        _
      // Predicated region
      $region25: #{_lambda_.6} parent=11 // pred_check
        %p234 = pneg %p163
      $region26: #{_lambda_.6} parent=11 // pred_check_branch
        %236 = sbr.rel (%p234) target = $region28
      $region27: #{_lambda_.6} parent=11 // pred_region
        _
      $region28: #{_lambda_.6} parent=11 // pred_fallthru
        _
      // Predicated region
      $region29: #{_lambda_.6} parent=11 // pred_check
        %p237 = pneg %p184
      $region30: #{_lambda_.6} parent=11 // pred_check_branch
        %239 = sbr.rel (%p237) target = $region32
      $region31: #{_lambda_.6} parent=11 // pred_region
        _
      $region32: #{_lambda_.6} parent=11 // pred_fallthru
        _
    $region12: #{_lambda_.6} parent=5 // pred_fallthru
      _
    %p240 = scmp.lt.s32.totalorder %s13, 2
    // Predicated region
    $region33: #{_lambda_.6} parent=5 // pred_check
      %p241 = pneg %p240
    $region34: #{_lambda_.6} parent=5 // pred_check_branch
      %243 = sbr.rel (%p241) target = $region36
    $region35: #{_lambda_.6} parent=5 // pred_region
      // Predicated region
      $region37: #{_lambda_.6} parent=35 // pred_check
        %p244 = pneg %p47
      $region38: #{_lambda_.6} parent=35 // pred_check_branch
        %246 = sbr.rel (%p244) target = $region40
      $region39: #{_lambda_.6} parent=35 // pred_region
        %s247 = smul.u32 2, %s21
        %p248 = scmp.lt.s32.totalorder %s20, 1
        %s249 = scalar_select %p248, %s20, 1
        %p250 = scmp.lt.s32.totalorder %s247, 1
        %s251 = scalar_select %p250, %s247, 1
        %s252 = smul.addr %s249, 2
        %s253 = sadd.s32 %s251, %s252
        %s254 = smul.addr %s253, 4
        %s255 = scalar_lea.vmem %s0, %s254
        %s256 = smul.u32 2, %s21
      $region40: #{_lambda_.6} parent=35 // pred_fallthru
        _
      // Predicated region
      $region41: #{_lambda_.6} parent=35 // pred_check
        %p257 = pneg %p73
      $region42: #{_lambda_.6} parent=35 // pred_check_branch
        %259 = sbr.rel (%p257) target = $region44
      $region43: #{_lambda_.6} parent=35 // pred_region
        %p260 = scmp.lt.s32.totalorder %s20, 1
        %s261 = scalar_select %p260, %s20, 1
        %s262 = smul.addr %s261, 4
        %s263 = scalar_lea.vmem %s1, %s262
      $region44: #{_lambda_.6} parent=35 // pred_fallthru
        _
    $region36: #{_lambda_.6} parent=5 // pred_fallthru
      _
    %p264 = scmp.le.s32.totalorder 1, %s13
    %p265 = scmp.lt.s32.totalorder %s13, 3
    %p266 = pnand %p264, %p265
    %p267 = pneg %p266
    // Predicated region
    $region45: #{_lambda_.6} parent=5 // pred_check
      _
    $region46: #{_lambda_.6} parent=5 // pred_check_branch
      %269 = sbr.rel (%p266) target = $region48
    $region47: #{_lambda_.6} parent=5 // pred_region
      %s270 = ssub.s32 %s13, 1
      %s271 = smul.u32 2, %s23
      %p272 = scmp.lt.s32.totalorder %s22, 1
      %s273 = scalar_select %p272, %s22, 1
      %p274 = scmp.lt.s32.totalorder %s271, 1
      %s275 = scalar_select %p274, %s271, 1
      %s276 = smul.addr %s273, 2
      %s277 = sadd.s32 %s275, %s276
      %s278 = smul.addr %s277, 4
      %s279 = scalar_lea.vmem %s0, %s278
      %p280 = pneg %p53
      %p281 = pneg %p50
      %p282 = scmp.lt.s32.totalorder %s22, 1
      %s283 = scalar_select %p282, %s22, 1
      %s284 = smul.addr %s283, 4
      %s285 = scalar_lea.vmem %s1, %s284
      %p286 = pneg %p79
      %p287 = pneg %p76
      %p288 = pneg %p100
      %p289 = pneg %p97
      %p290 = pneg %p121
      %p291 = pneg %p118
      %p292 = pneg %p142
      %p293 = pneg %p139
      %p294 = pneg %p163
      %p295 = pneg %p160
      %p296 = pneg %p184
      %p297 = pneg %p181
      %p298 = pneg %p210
      %p299 = pneg %p207
      %p300 = scmp.lt.s32.totalorder %s22, 1
      %s301 = scalar_select %p300, %s22, 1
      %s302 = smul.addr %s301, 8
      %s303 = scalar_lea.vmem %s7, %s302
      %s304 = smul.u32 2, %s23
      %p305 = scmp.lt.s32.totalorder %s22, 1
      %s306 = scalar_select %p305, %s22, 1
      %p307 = scmp.lt.s32.totalorder %s304, 1
      %s308 = scalar_select %p307, %s304, 1
      %s309 = smul.addr %s306, 2
      %s310 = sadd.s32 %s308, %s309
      %s311 = smul.addr %s310, 4
      %s312 = scalar_lea.vmem %s0, %s311
      %s313 = smul.u32 2, %s23
      %p314 = scmp.lt.s32.totalorder %s22, 1
      %s315 = scalar_select %p314, %s22, 1
      %s316 = smul.addr %s315, 4
      %s317 = scalar_lea.vmem %s1, %s316
      %p318 = scmp.lt.s32.totalorder %s22, 1
      %s319 = scalar_select %p318, %s22, 1
      %s320 = smul.addr %s319, 8
      %s321 = scalar_lea.vmem %s7, %s320
      %v323 = vld [vmem:[%s312] sm:$0xf]
      %v324 = vld [vmem:[%s312 + $0x4] sm:$0xf]
      %v325 = vld [vmem:[%s317] sm:$0xf]
      %v326 = vld [vmem:[%s4] sm:$0x1]
      %v328 = vlaneseq
      %v329 = vshrl.u32 %v328, 7
      %v330 = vsub.s32 0, %v329
      %v331 = vrot.slane %v326, %v330
      %v335 = vunpack.c.l.b16 %v323
      %v336 = vunpack.c.l.b16 %v324
      %v337 = vpack.c.b16 %v336, %v335
      %vm338 = vcmask 64512
      %v340 = vsel %vm338, %v337, 0
      %vm342 = vcmask 1043456
      %v344 = vsel %vm342, %v325, 0
      %346 = vmatprep.subr.bf16.mxu0 0
      %347 = vmatpush1.bf16.msra.mxu0 %v344
      %348 = vmatprep.subr.bf16.mxu0 0
      %349 = vmatpush1.bf16.msra.mxu0 0
      %350 = vmatprep.subr.bf16.mxu0 0
      %351 = vmatpush1.bf16.msra.mxu0 0
      %352 = vmatprep.subr.bf16.mxu0 0
      %353 = vmatpush1.bf16.msra.mxu0 0
      %354 = vmatprep.subr.bf16.mxu0 0
      %355 = vmatpush1.bf16.msra.mxu0 0
      %356 = vmatprep.subr.bf16.mxu0 0
      %357 = vmatpush1.bf16.msra.mxu0 0
      %358 = vmatprep.subr.bf16.mxu0 0
      %359 = vmatpush1.bf16.msra.mxu0 0
      %360 = vmatprep.subr.bf16.mxu0 0
      %361 = vmatpush1.bf16.msra.mxu0 0
      %362 = vmatprep.subr.bf16.mxu0 0
      %363 = vmatpush1.bf16.msra.mxu0 0
      %364 = vmatprep.subr.bf16.mxu0 0
      %365 = vmatpush1.bf16.msra.mxu0 0
      %366 = vmatprep.subr.bf16.mxu0 0
      %367 = vmatpush1.bf16.msra.mxu0 0
      %368 = vmatprep.subr.bf16.mxu0 0
      %369 = vmatpush1.bf16.msra.mxu0 0
      %370 = vmatprep.subr.bf16.mxu0 0
      %371 = vmatpush1.bf16.msra.mxu0 0
      %372 = vmatprep.subr.bf16.mxu0 0
      %373 = vmatpush1.bf16.msra.mxu0 0
      %374 = vmatprep.subr.bf16.mxu0 0
      %375 = vmatpush1.bf16.msra.mxu0 0
      %376 = vmatprep.subr.bf16.mxu0 0
      %377 = vmatpush1.bf16.msra.mxu0 0
      %378 = vmatprep.mubr.bf16.mxu0 0
      %379 = vmatmul.mubr.bf16.gmra.mrb[0].mxu0 %v340
      %v380 = vpop.f32.mrb[0].mxu0
      %v381 = vadd.f32 %v331, %v380
      %v382 = vpop.f32.mrb[0].mxu0
      %v383 = vpop.f32.mrb[0].mxu0
      %v384 = vadd.f32 %v331, %v383
      %v385 = vpop.f32.mrb[0].mxu0
      %386 = vdwg.mxu0
      %v387 = vmax.f32 %v381, 0.0
      %v388 = vmax.f32 %v384, 0.0
      %v389 = vpack.c.bf16 %v388, %v387
      %v390 = vld [vmem:[%s2] sm:$0xf]
      %v391 = vld [vmem:[%s2 + $0x4] sm:$0xf]
      %v392 = vld [vmem:[%s2 + $0x8] sm:$0xf]
      %v393 = vld [vmem:[%s2 + $0xc] sm:$0xf]
      %v394 = vld [vmem:[%s2 + $0x10] sm:$0xf]
      %v395 = vld [vmem:[%s2 + $0x14] sm:$0xf]
      %v396 = vld [vmem:[%s2 + $0x18] sm:$0xf]
      %v397 = vld [vmem:[%s2 + $0x1c] sm:$0xf]
      %v398 = vld [vmem:[%s5] sm:$0x1]
      %v400 = vlaneseq
      %v401 = vshrl.u32 %v400, 7
      %v402 = vsub.s32 0, %v401
      %v403 = vrot.slane %v398, %v402
      %v413 = vunpack.c.l.b16 %v390
      %v414 = vunpack.c.l.b16 %v391
      %v415 = vunpack.c.l.b16 %v392
      %v416 = vunpack.c.l.b16 %v393
      %v417 = vunpack.c.l.b16 %v394
      %v418 = vunpack.c.l.b16 %v395
      %v419 = vunpack.c.l.b16 %v396
      %v420 = vunpack.c.l.b16 %v397
      %v421 = vpack.c.b16 %v414, %v413
      %v422 = vpack.c.b16 %v416, %v415
      %v423 = vpack.c.b16 %v418, %v417
      %v424 = vpack.c.b16 %v420, %v419
      %vm429 = vcmask 523264
      %v431 = vsel %vm429, %v389, 0
      %433 = vmatprep.subr.bf16.mxu0 0
      %434 = vmatpush1.bf16.msra.mxu0 %v421
      %435 = vmatprep.subr.bf16.mxu0 0
      %436 = vmatpush1.bf16.msra.mxu0 %v422
      %437 = vmatprep.subr.bf16.mxu0 0
      %438 = vmatpush1.bf16.msra.mxu0 %v423
      %439 = vmatprep.subr.bf16.mxu0 0
      %440 = vmatpush1.bf16.msra.mxu0 %v424
      %441 = vmatprep.subr.bf16.mxu0 0
      %442 = vmatpush1.bf16.msra.mxu0 0
      %443 = vmatprep.subr.bf16.mxu0 0
      %444 = vmatpush1.bf16.msra.mxu0 0
      %445 = vmatprep.subr.bf16.mxu0 0
      %446 = vmatpush1.bf16.msra.mxu0 0
      %447 = vmatprep.subr.bf16.mxu0 0
      %448 = vmatpush1.bf16.msra.mxu0 0
      %449 = vmatprep.subr.bf16.mxu0 0
      %450 = vmatpush1.bf16.msra.mxu0 0
      %451 = vmatprep.subr.bf16.mxu0 0
      %452 = vmatpush1.bf16.msra.mxu0 0
      %453 = vmatprep.subr.bf16.mxu0 0
      %454 = vmatpush1.bf16.msra.mxu0 0
      %455 = vmatprep.subr.bf16.mxu0 0
      %456 = vmatpush1.bf16.msra.mxu0 0
      %457 = vmatprep.subr.bf16.mxu0 0
      %458 = vmatpush1.bf16.msra.mxu0 0
      %459 = vmatprep.subr.bf16.mxu0 0
      %460 = vmatpush1.bf16.msra.mxu0 0
      %461 = vmatprep.subr.bf16.mxu0 0
      %462 = vmatpush1.bf16.msra.mxu0 0
      %463 = vmatprep.subr.bf16.mxu0 0
      %464 = vmatpush1.bf16.msra.mxu0 0
      %465 = vmatprep.mubr.bf16.mxu0 0
      %466 = vmatmul.mubr.bf16.gmra.mrb[0].mxu0 %v431
      %v467 = vpop.f32.mrb[0].mxu0
      %v468 = vadd.f32 %v403, %v467
      %v469 = vpop.f32.mrb[0].mxu0
      %v470 = vpop.f32.mrb[0].mxu0
      %v471 = vadd.f32 %v403, %v470
      %v472 = vpop.f32.mrb[0].mxu0
      %473 = vdwg.mxu0
      %v474 = vmax.f32 %v468, 0.0
      %v475 = vmax.f32 %v471, 0.0
      %v476 = vpack.c.bf16 %v475, %v474
      %v477 = vld [vmem:[%s3] sm:$0xff]
      %v478 = vld [vmem:[%s3 + $0x8] sm:$0xff]
      %v479 = vld [vmem:[%s3 + $0x10] sm:$0xff]
      %v480 = vld [vmem:[%s3 + $0x18] sm:$0xff]
      %v481 = vld [vmem:[%s3 + $0x20] sm:$0xff]
      %v482 = vld [vmem:[%s3 + $0x28] sm:$0xff]
      %v483 = vld [vmem:[%s3 + $0x30] sm:$0xff]
      %v484 = vld [vmem:[%s3 + $0x38] sm:$0xff]
      %v485 = vld [vmem:[%s3 + $0x40] sm:$0xff]
      %v486 = vld [vmem:[%s3 + $0x48] sm:$0xff]
      %v487 = vld [vmem:[%s3 + $0x50] sm:$0xff]
      %v488 = vld [vmem:[%s3 + $0x58] sm:$0xff]
      %v489 = vld [vmem:[%s3 + $0x60] sm:$0xff]
      %v490 = vld [vmem:[%s3 + $0x68] sm:$0xff]
      %v491 = vld [vmem:[%s3 + $0x70] sm:$0xff]
      %v492 = vld [vmem:[%s3 + $0x78] sm:$0xff]
      %v493 = vld [vmem:[%s3 + $0x80] sm:$0xff]
      %v494 = vld [vmem:[%s3 + $0x88] sm:$0xff]
      %v495 = vld [vmem:[%s3 + $0x90] sm:$0xff]
      %v496 = vld [vmem:[%s3 + $0x98] sm:$0xff]
      %v497 = vld [vmem:[%s3 + $0xa0] sm:$0xff]
      %v498 = vld [vmem:[%s3 + $0xa8] sm:$0xff]
      %v499 = vld [vmem:[%s3 + $0xb0] sm:$0xff]
      %v500 = vld [vmem:[%s3 + $0xb8] sm:$0xff]
      %v501 = vld [vmem:[%s3 + $0xc0] sm:$0xff]
      %v502 = vld [vmem:[%s3 + $0xc8] sm:$0xff]
      %v503 = vld [vmem:[%s3 + $0xd0] sm:$0xff]
      %v504 = vld [vmem:[%s3 + $0xd8] sm:$0xff]
      %v505 = vld [vmem:[%s3 + $0xe0] sm:$0xff]
      %v506 = vld [vmem:[%s3 + $0xe8] sm:$0xff]
      %v507 = vld [vmem:[%s3 + $0xf0] sm:$0xff]
      %v508 = vld [vmem:[%s3 + $0xf8] sm:$0xff]
      %v509 = vld [vmem:[%s3 + $0x100] sm:$0xff]
      %v510 = vld [vmem:[%s3 + $0x108] sm:$0xff]
      %v511 = vld [vmem:[%s3 + $0x110] sm:$0xff]
      %v512 = vld [vmem:[%s3 + $0x118] sm:$0xff]
      %v513 = vld [vmem:[%s3 + $0x120] sm:$0xff]
      %v514 = vld [vmem:[%s3 + $0x128] sm:$0xff]
      %v515 = vld [vmem:[%s3 + $0x130] sm:$0xff]
      %v516 = vld [vmem:[%s3 + $0x138] sm:$0xff]
      %v517 = vld [vmem:[%s3 + $0x140] sm:$0xff]
      %v518 = vld [vmem:[%s3 + $0x148] sm:$0xff]
      %v519 = vld [vmem:[%s3 + $0x150] sm:$0xff]
      %v520 = vld [vmem:[%s3 + $0x158] sm:$0xff]
      %v521 = vld [vmem:[%s3 + $0x160] sm:$0xff]
      %v522 = vld [vmem:[%s3 + $0x168] sm:$0xff]
      %v523 = vld [vmem:[%s3 + $0x170] sm:$0xff]
      %v524 = vld [vmem:[%s3 + $0x178] sm:$0xff]
      %v525 = vld [vmem:[%s3 + $0x180] sm:$0xff]
      %v526 = vld [vmem:[%s3 + $0x188] sm:$0xff]
      %v527 = vld [vmem:[%s3 + $0x190] sm:$0xff]
      %v528 = vld [vmem:[%s3 + $0x198] sm:$0xff]
      %v529 = vld [vmem:[%s3 + $0x1a0] sm:$0xff]
      %v530 = vld [vmem:[%s3 + $0x1a8] sm:$0xff]
      %v531 = vld [vmem:[%s3 + $0x1b0] sm:$0xff]
      %v532 = vld [vmem:[%s3 + $0x1b8] sm:$0xff]
      %v533 = vld [vmem:[%s3 + $0x1c0] sm:$0xff]
      %v534 = vld [vmem:[%s3 + $0x1c8] sm:$0xff]
      %v535 = vld [vmem:[%s3 + $0x1d0] sm:$0xff]
      %v536 = vld [vmem:[%s3 + $0x1d8] sm:$0xff]
      %v537 = vld [vmem:[%s3 + $0x1e0] sm:$0xff]
      %v538 = vld [vmem:[%s3 + $0x1e8] sm:$0xff]
      %v539 = vld [vmem:[%s3 + $0x1f0] sm:$0xff]
      %v540 = vld [vmem:[%s3 + $0x1f8] sm:$0xff]
      %v541 = vld [vmem:[%s6] sm:$0xff]
      %v543 = vlaneseq
      %v544 = vshrl.u32 %v543, 7
      %v545 = vsub.s32 0, %v544
      %v546 = vrot.slane %v541, %v545
      %v547 = vlaneseq
      %v548 = vshrl.u32 %v547, 7
      %v549 = vsub.s32 1, %v548
      %v550 = vrot.slane %v541, %v549
      %v551 = vlaneseq
      %v552 = vshrl.u32 %v551, 7
      %v553 = vsub.s32 2, %v552
      %v554 = vrot.slane %v541, %v553
      %v555 = vlaneseq
      %v556 = vshrl.u32 %v555, 7
      %v557 = vsub.s32 3, %v556
      %v558 = vrot.slane %v541, %v557
      %v559 = vlaneseq
      %v560 = vshrl.u32 %v559, 7
      %v561 = vsub.s32 4, %v560
      %v562 = vrot.slane %v541, %v561
      %v563 = vlaneseq
      %v564 = vshrl.u32 %v563, 7
      %v565 = vsub.s32 5, %v564
      %v566 = vrot.slane %v541, %v565
      %v567 = vlaneseq
      %v568 = vshrl.u32 %v567, 7
      %v569 = vsub.s32 6, %v568
      %v570 = vrot.slane %v541, %v569
      %v571 = vlaneseq
      %v572 = vshrl.u32 %v571, 7
      %v573 = vsub.s32 7, %v572
      %v574 = vrot.slane %v541, %v573
      %v647 = vunpack.c.l.b16 %v477
      %v648 = vunpack.c.h.b16 %v477
      %v649 = vunpack.c.l.b16 %v478
      %v650 = vunpack.c.h.b16 %v478
      %v651 = vunpack.c.l.b16 %v479
      %v652 = vunpack.c.h.b16 %v479
      %v653 = vunpack.c.l.b16 %v480
      %v654 = vunpack.c.h.b16 %v480
      %v655 = vunpack.c.l.b16 %v481
      %v656 = vunpack.c.h.b16 %v481
      %v657 = vunpack.c.l.b16 %v482
      %v658 = vunpack.c.h.b16 %v482
      %v659 = vunpack.c.l.b16 %v483
      %v660 = vunpack.c.h.b16 %v483
      %v661 = vunpack.c.l.b16 %v484
      %v662 = vunpack.c.h.b16 %v484
      %v663 = vunpack.c.l.b16 %v485
      %v664 = vunpack.c.h.b16 %v485
      %v665 = vunpack.c.l.b16 %v486
      %v666 = vunpack.c.h.b16 %v486
      %v667 = vunpack.c.l.b16 %v487
      %v668 = vunpack.c.h.b16 %v487
      %v669 = vunpack.c.l.b16 %v488
      %v670 = vunpack.c.h.b16 %v488
      %v671 = vunpack.c.l.b16 %v489
      %v672 = vunpack.c.h.b16 %v489
      %v673 = vunpack.c.l.b16 %v490
      %v674 = vunpack.c.h.b16 %v490
      %v675 = vunpack.c.l.b16 %v491
      %v676 = vunpack.c.h.b16 %v491
      %v677 = vunpack.c.l.b16 %v492
      %v678 = vunpack.c.h.b16 %v492
      %v679 = vunpack.c.l.b16 %v493
      %v680 = vunpack.c.h.b16 %v493
      %v681 = vunpack.c.l.b16 %v494
      %v682 = vunpack.c.h.b16 %v494
      %v683 = vunpack.c.l.b16 %v495
      %v684 = vunpack.c.h.b16 %v495
      %v685 = vunpack.c.l.b16 %v496
      %v686 = vunpack.c.h.b16 %v496
      %v687 = vunpack.c.l.b16 %v497
      %v688 = vunpack.c.h.b16 %v497
      %v689 = vunpack.c.l.b16 %v498
      %v690 = vunpack.c.h.b16 %v498
      %v691 = vunpack.c.l.b16 %v499
      %v692 = vunpack.c.h.b16 %v499
      %v693 = vunpack.c.l.b16 %v500
      %v694 = vunpack.c.h.b16 %v500
      %v695 = vunpack.c.l.b16 %v501
      %v696 = vunpack.c.h.b16 %v501
      %v697 = vunpack.c.l.b16 %v502
      %v698 = vunpack.c.h.b16 %v502
      %v699 = vunpack.c.l.b16 %v503
      %v700 = vunpack.c.h.b16 %v503
      %v701 = vunpack.c.l.b16 %v504
      %v702 = vunpack.c.h.b16 %v504
      %v703 = vunpack.c.l.b16 %v505
      %v704 = vunpack.c.h.b16 %v505
      %v705 = vunpack.c.l.b16 %v506
      %v706 = vunpack.c.h.b16 %v506
      %v707 = vunpack.c.l.b16 %v507
      %v708 = vunpack.c.h.b16 %v507
      %v709 = vunpack.c.l.b16 %v508
      %v710 = vunpack.c.h.b16 %v508
      %v711 = vunpack.c.l.b16 %v509
      %v712 = vunpack.c.h.b16 %v509
      %v713 = vunpack.c.l.b16 %v510
      %v714 = vunpack.c.h.b16 %v510
      %v715 = vunpack.c.l.b16 %v511
      %v716 = vunpack.c.h.b16 %v511
      %v717 = vunpack.c.l.b16 %v512
      %v718 = vunpack.c.h.b16 %v512
      %v719 = vunpack.c.l.b16 %v513
      %v720 = vunpack.c.h.b16 %v513
      %v721 = vunpack.c.l.b16 %v514
      %v722 = vunpack.c.h.b16 %v514
      %v723 = vunpack.c.l.b16 %v515
      %v724 = vunpack.c.h.b16 %v515
      %v725 = vunpack.c.l.b16 %v516
      %v726 = vunpack.c.h.b16 %v516
      %v727 = vunpack.c.l.b16 %v517
      %v728 = vunpack.c.h.b16 %v517
      %v729 = vunpack.c.l.b16 %v518
      %v730 = vunpack.c.h.b16 %v518
      %v731 = vunpack.c.l.b16 %v519
      %v732 = vunpack.c.h.b16 %v519
      %v733 = vunpack.c.l.b16 %v520
      %v734 = vunpack.c.h.b16 %v520
      %v735 = vunpack.c.l.b16 %v521
      %v736 = vunpack.c.h.b16 %v521
      %v737 = vunpack.c.l.b16 %v522
      %v738 = vunpack.c.h.b16 %v522
      %v739 = vunpack.c.l.b16 %v523
      %v740 = vunpack.c.h.b16 %v523
      %v741 = vunpack.c.l.b16 %v524
      %v742 = vunpack.c.h.b16 %v524
      %v743 = vunpack.c.l.b16 %v525
      %v744 = vunpack.c.h.b16 %v525
      %v745 = vunpack.c.l.b16 %v526
      %v746 = vunpack.c.h.b16 %v526
      %v747 = vunpack.c.l.b16 %v527
      %v748 = vunpack.c.h.b16 %v527
      %v749 = vunpack.c.l.b16 %v528
      %v750 = vunpack.c.h.b16 %v528
      %v751 = vunpack.c.l.b16 %v529
      %v752 = vunpack.c.h.b16 %v529
      %v753 = vunpack.c.l.b16 %v530
      %v754 = vunpack.c.h.b16 %v530
      %v755 = vunpack.c.l.b16 %v531
      %v756 = vunpack.c.h.b16 %v531
      %v757 = vunpack.c.l.b16 %v532
      %v758 = vunpack.c.h.b16 %v532
      %v759 = vunpack.c.l.b16 %v533
      %v760 = vunpack.c.h.b16 %v533
      %v761 = vunpack.c.l.b16 %v534
      %v762 = vunpack.c.h.b16 %v534
      %v763 = vunpack.c.l.b16 %v535
      %v764 = vunpack.c.h.b16 %v535
      %v765 = vunpack.c.l.b16 %v536
      %v766 = vunpack.c.h.b16 %v536
      %v767 = vunpack.c.l.b16 %v537
      %v768 = vunpack.c.h.b16 %v537
      %v769 = vunpack.c.l.b16 %v538
      %v770 = vunpack.c.h.b16 %v538
      %v771 = vunpack.c.l.b16 %v539
      %v772 = vunpack.c.h.b16 %v539
      %v773 = vunpack.c.l.b16 %v540
      %v774 = vunpack.c.h.b16 %v540
      %v775 = vpack.c.b16 %v655, %v647
      %v776 = vpack.c.b16 %v656, %v648
      %v777 = vpack.c.b16 %v657, %v649
      %v778 = vpack.c.b16 %v658, %v650
      %v779 = vpack.c.b16 %v659, %v651
      %v780 = vpack.c.b16 %v660, %v652
      %v781 = vpack.c.b16 %v661, %v653
      %v782 = vpack.c.b16 %v662, %v654
      %v783 = vpack.c.b16 %v671, %v663
      %v784 = vpack.c.b16 %v672, %v664
      %v785 = vpack.c.b16 %v673, %v665
      %v786 = vpack.c.b16 %v674, %v666
      %v787 = vpack.c.b16 %v675, %v667
      %v788 = vpack.c.b16 %v676, %v668
      %v789 = vpack.c.b16 %v677, %v669
      %v790 = vpack.c.b16 %v678, %v670
      %v791 = vpack.c.b16 %v687, %v679
      %v792 = vpack.c.b16 %v688, %v680
      %v793 = vpack.c.b16 %v689, %v681
      %v794 = vpack.c.b16 %v690, %v682
      %v795 = vpack.c.b16 %v691, %v683
      %v796 = vpack.c.b16 %v692, %v684
      %v797 = vpack.c.b16 %v693, %v685
      %v798 = vpack.c.b16 %v694, %v686
      %v799 = vpack.c.b16 %v703, %v695
      %v800 = vpack.c.b16 %v704, %v696
      %v801 = vpack.c.b16 %v705, %v697
      %v802 = vpack.c.b16 %v706, %v698
      %v803 = vpack.c.b16 %v707, %v699
      %v804 = vpack.c.b16 %v708, %v700
      %v805 = vpack.c.b16 %v709, %v701
      %v806 = vpack.c.b16 %v710, %v702
      %v807 = vpack.c.b16 %v719, %v711
      %v808 = vpack.c.b16 %v720, %v712
      %v809 = vpack.c.b16 %v721, %v713
      %v810 = vpack.c.b16 %v722, %v714
      %v811 = vpack.c.b16 %v723, %v715
      %v812 = vpack.c.b16 %v724, %v716
      %v813 = vpack.c.b16 %v725, %v717
      %v814 = vpack.c.b16 %v726, %v718
      %v815 = vpack.c.b16 %v735, %v727
      %v816 = vpack.c.b16 %v736, %v728
      %v817 = vpack.c.b16 %v737, %v729
      %v818 = vpack.c.b16 %v738, %v730
      %v819 = vpack.c.b16 %v739, %v731
      %v820 = vpack.c.b16 %v740, %v732
      %v821 = vpack.c.b16 %v741, %v733
      %v822 = vpack.c.b16 %v742, %v734
      %v823 = vpack.c.b16 %v751, %v743
      %v824 = vpack.c.b16 %v752, %v744
      %v825 = vpack.c.b16 %v753, %v745
      %v826 = vpack.c.b16 %v754, %v746
      %v827 = vpack.c.b16 %v755, %v747
      %v828 = vpack.c.b16 %v756, %v748
      %v829 = vpack.c.b16 %v757, %v749
      %v830 = vpack.c.b16 %v758, %v750
      %v831 = vpack.c.b16 %v767, %v759
      %v832 = vpack.c.b16 %v768, %v760
      %v833 = vpack.c.b16 %v769, %v761
      %v834 = vpack.c.b16 %v770, %v762
      %v835 = vpack.c.b16 %v771, %v763
      %v836 = vpack.c.b16 %v772, %v764
      %v837 = vpack.c.b16 %v773, %v765
      %v838 = vpack.c.b16 %v774, %v766
      %903 = vmatprep.subr.bf16.mxu0 %v776
      %904 = vmatpush1.bf16.msra.mxu0 %v775
      %905 = vmatprep.subr.bf16.mxu0 %v784
      %906 = vmatpush1.bf16.msra.mxu0 %v783
      %907 = vmatprep.subr.bf16.mxu0 %v792
      %908 = vmatpush1.bf16.msra.mxu0 %v791
      %909 = vmatprep.subr.bf16.mxu0 %v800
      %910 = vmatpush1.bf16.msra.mxu0 %v799
      %911 = vmatprep.subr.bf16.mxu0 %v808
      %912 = vmatpush1.bf16.msra.mxu0 %v807
      %913 = vmatprep.subr.bf16.mxu0 %v816
      %914 = vmatpush1.bf16.msra.mxu0 %v815
      %915 = vmatprep.subr.bf16.mxu0 %v824
      %916 = vmatpush1.bf16.msra.mxu0 %v823
      %917 = vmatprep.subr.bf16.mxu0 %v832
      %918 = vmatpush1.bf16.msra.mxu0 %v831
      %919 = vmatprep.subr.bf16.mxu0 0
      %920 = vmatpush1.bf16.msra.mxu0 0
      %921 = vmatprep.subr.bf16.mxu0 0
      %922 = vmatpush1.bf16.msra.mxu0 0
      %923 = vmatprep.subr.bf16.mxu0 0
      %924 = vmatpush1.bf16.msra.mxu0 0
      %925 = vmatprep.subr.bf16.mxu0 0
      %926 = vmatpush1.bf16.msra.mxu0 0
      %927 = vmatprep.subr.bf16.mxu0 0
      %928 = vmatpush1.bf16.msra.mxu0 0
      %929 = vmatprep.subr.bf16.mxu0 0
      %930 = vmatpush1.bf16.msra.mxu0 0
      %931 = vmatprep.subr.bf16.mxu0 0
      %932 = vmatpush1.bf16.msra.mxu0 0
      %933 = vmatprep.subr.bf16.mxu0 0
      %934 = vmatpush1.bf16.msra.mxu0 0
      %935 = vmatprep.mubr.bf16.mxu0 0
      %936 = vmatmul.mubr.bf16.gmra.mrb[0].mxu0 %v476
      %v937 = vpop.f32.mrb[0].mxu0
      %v938 = vadd.f32 %v546, %v937
      %v939 = vpop.f32.mrb[0].mxu0
      %v940 = vadd.f32 %v550, %v939
      %v941 = vpop.f32.mrb[0].mxu0
      %v942 = vadd.f32 %v546, %v941
      %v943 = vpop.f32.mrb[0].mxu0
      %v944 = vadd.f32 %v550, %v943
      %945 = vdwg.mxu0
      %946 = vmatprep.subr.bf16.mxu0 %v778
      %947 = vmatpush1.bf16.msra.mxu0 %v777
      %948 = vmatprep.subr.bf16.mxu0 %v786
      %949 = vmatpush1.bf16.msra.mxu0 %v785
      %950 = vmatprep.subr.bf16.mxu0 %v794
      %951 = vmatpush1.bf16.msra.mxu0 %v793
      %952 = vmatprep.subr.bf16.mxu0 %v802
      %953 = vmatpush1.bf16.msra.mxu0 %v801
      %954 = vmatprep.subr.bf16.mxu0 %v810
      %955 = vmatpush1.bf16.msra.mxu0 %v809
      %956 = vmatprep.subr.bf16.mxu0 %v818
      %957 = vmatpush1.bf16.msra.mxu0 %v817
      %958 = vmatprep.subr.bf16.mxu0 %v826
      %959 = vmatpush1.bf16.msra.mxu0 %v825
      %960 = vmatprep.subr.bf16.mxu0 %v834
      %961 = vmatpush1.bf16.msra.mxu0 %v833
      %962 = vmatprep.subr.bf16.mxu0 0
      %963 = vmatpush1.bf16.msra.mxu0 0
      %964 = vmatprep.subr.bf16.mxu0 0
      %965 = vmatpush1.bf16.msra.mxu0 0
      %966 = vmatprep.subr.bf16.mxu0 0
      %967 = vmatpush1.bf16.msra.mxu0 0
      %968 = vmatprep.subr.bf16.mxu0 0
      %969 = vmatpush1.bf16.msra.mxu0 0
      %970 = vmatprep.subr.bf16.mxu0 0
      %971 = vmatpush1.bf16.msra.mxu0 0
      %972 = vmatprep.subr.bf16.mxu0 0
      %973 = vmatpush1.bf16.msra.mxu0 0
      %974 = vmatprep.subr.bf16.mxu0 0
      %975 = vmatpush1.bf16.msra.mxu0 0
      %976 = vmatprep.subr.bf16.mxu0 0
      %977 = vmatpush1.bf16.msra.mxu0 0
      %978 = vmatprep.mubr.bf16.mxu0 0
      %979 = vmatmul.mubr.bf16.gmra.mrb[0].mxu0 %v476
      %v980 = vpop.f32.mrb[0].mxu0
      %v981 = vadd.f32 %v554, %v980
      %v982 = vpop.f32.mrb[0].mxu0
      %v983 = vadd.f32 %v558, %v982
      %v984 = vpop.f32.mrb[0].mxu0
      %v985 = vadd.f32 %v554, %v984
      %v986 = vpop.f32.mrb[0].mxu0
      %v987 = vadd.f32 %v558, %v986
      %988 = vdwg.mxu0
      %989 = vmatprep.subr.bf16.mxu0 %v780
      %990 = vmatpush1.bf16.msra.mxu0 %v779
      %991 = vmatprep.subr.bf16.mxu0 %v788
      %992 = vmatpush1.bf16.msra.mxu0 %v787
      %993 = vmatprep.subr.bf16.mxu0 %v796
      %994 = vmatpush1.bf16.msra.mxu0 %v795
      %995 = vmatprep.subr.bf16.mxu0 %v804
      %996 = vmatpush1.bf16.msra.mxu0 %v803
      %997 = vmatprep.subr.bf16.mxu0 %v812
      %998 = vmatpush1.bf16.msra.mxu0 %v811
      %999 = vmatprep.subr.bf16.mxu0 %v820
      %1000 = vmatpush1.bf16.msra.mxu0 %v819
      %1001 = vmatprep.subr.bf16.mxu0 %v828
      %1002 = vmatpush1.bf16.msra.mxu0 %v827
      %1003 = vmatprep.subr.bf16.mxu0 %v836
      %1004 = vmatpush1.bf16.msra.mxu0 %v835
      %1005 = vmatprep.subr.bf16.mxu0 0
      %1006 = vmatpush1.bf16.msra.mxu0 0
      %1007 = vmatprep.subr.bf16.mxu0 0
      %1008 = vmatpush1.bf16.msra.mxu0 0
      %1009 = vmatprep.subr.bf16.mxu0 0
      %1010 = vmatpush1.bf16.msra.mxu0 0
      %1011 = vmatprep.subr.bf16.mxu0 0
      %1012 = vmatpush1.bf16.msra.mxu0 0
      %1013 = vmatprep.subr.bf16.mxu0 0
      %1014 = vmatpush1.bf16.msra.mxu0 0
      %1015 = vmatprep.subr.bf16.mxu0 0
      %1016 = vmatpush1.bf16.msra.mxu0 0
      %1017 = vmatprep.subr.bf16.mxu0 0
      %1018 = vmatpush1.bf16.msra.mxu0 0
      %1019 = vmatprep.subr.bf16.mxu0 0
      %1020 = vmatpush1.bf16.msra.mxu0 0
      %1021 = vmatprep.mubr.bf16.mxu0 0
      %1022 = vmatmul.mubr.bf16.gmra.mrb[0].mxu0 %v476
      %v1023 = vpop.f32.mrb[0].mxu0
      %v1024 = vadd.f32 %v562, %v1023
      %v1025 = vpop.f32.mrb[0].mxu0
      %v1026 = vadd.f32 %v566, %v1025
      %v1027 = vpop.f32.mrb[0].mxu0
      %v1028 = vadd.f32 %v562, %v1027
      %v1029 = vpop.f32.mrb[0].mxu0
      %v1030 = vadd.f32 %v566, %v1029
      %1031 = vdwg.mxu0
      %1032 = vmatprep.subr.bf16.mxu0 %v782
      %1033 = vmatpush1.bf16.msra.mxu0 %v781
      %1034 = vmatprep.subr.bf16.mxu0 %v790
      %1035 = vmatpush1.bf16.msra.mxu0 %v789
      %1036 = vmatprep.subr.bf16.mxu0 %v798
      %1037 = vmatpush1.bf16.msra.mxu0 %v797
      %1038 = vmatprep.subr.bf16.mxu0 %v806
      %1039 = vmatpush1.bf16.msra.mxu0 %v805
      %1040 = vmatprep.subr.bf16.mxu0 %v814
      %1041 = vmatpush1.bf16.msra.mxu0 %v813
      %1042 = vmatprep.subr.bf16.mxu0 %v822
      %1043 = vmatpush1.bf16.msra.mxu0 %v821
      %1044 = vmatprep.subr.bf16.mxu0 %v830
      %1045 = vmatpush1.bf16.msra.mxu0 %v829
      %1046 = vmatprep.subr.bf16.mxu0 %v838
      %1047 = vmatpush1.bf16.msra.mxu0 %v837
      %1048 = vmatprep.subr.bf16.mxu0 0
      %1049 = vmatpush1.bf16.msra.mxu0 0
      %1050 = vmatprep.subr.bf16.mxu0 0
      %1051 = vmatpush1.bf16.msra.mxu0 0
      %1052 = vmatprep.subr.bf16.mxu0 0
      %1053 = vmatpush1.bf16.msra.mxu0 0
      %1054 = vmatprep.subr.bf16.mxu0 0
      %1055 = vmatpush1.bf16.msra.mxu0 0
      %1056 = vmatprep.subr.bf16.mxu0 0
      %1057 = vmatpush1.bf16.msra.mxu0 0
      %1058 = vmatprep.subr.bf16.mxu0 0
      %1059 = vmatpush1.bf16.msra.mxu0 0
      %1060 = vmatprep.subr.bf16.mxu0 0
      %1061 = vmatpush1.bf16.msra.mxu0 0
      %1062 = vmatprep.subr.bf16.mxu0 0
      %1063 = vmatpush1.bf16.msra.mxu0 0
      %1064 = vmatprep.mubr.bf16.mxu0 0
      %1065 = vmatmul.mubr.bf16.gmra.mrb[0].mxu0 %v476
      %v1066 = vpop.f32.mrb[0].mxu0
      %v1067 = vadd.f32 %v570, %v1066
      %v1068 = vpop.f32.mrb[0].mxu0
      %v1069 = vadd.f32 %v574, %v1068
      %v1070 = vpop.f32.mrb[0].mxu0
      %v1071 = vadd.f32 %v570, %v1070
      %v1072 = vpop.f32.mrb[0].mxu0
      %v1073 = vadd.f32 %v574, %v1072
      %1074 = vdwg.mxu0
      %v1075 = vmax.f32 %v938, %v942
      %v1076 = vrot.slane %v1075, 4
      %v1077 = vmax.f32 %v1075, %v1076
      %v1078 = vrot.slane %v1077, 2
      %v1079 = vmax.f32 %v1077, %v1078
      %v1080 = vrot.slane %v1079, 1
      %v1081 = vmax.f32 %v1079, %v1080
      %v1082 = vmax.f32 %v940, %v944
      %v1083 = vrot.slane %v1082, 4
      %v1084 = vmax.f32 %v1082, %v1083
      %v1085 = vrot.slane %v1084, 2
      %v1086 = vmax.f32 %v1084, %v1085
      %v1087 = vrot.slane %v1086, 1
      %v1088 = vmax.f32 %v1086, %v1087
      %v1089 = vmax.f32 %v981, %v985
      %v1090 = vrot.slane %v1089, 4
      %v1091 = vmax.f32 %v1089, %v1090
      %v1092 = vrot.slane %v1091, 2
      %v1093 = vmax.f32 %v1091, %v1092
      %v1094 = vrot.slane %v1093, 1
      %v1095 = vmax.f32 %v1093, %v1094
      %v1096 = vmax.f32 %v983, %v987
      %v1097 = vrot.slane %v1096, 4
      %v1098 = vmax.f32 %v1096, %v1097
      %v1099 = vrot.slane %v1098, 2
      %v1100 = vmax.f32 %v1098, %v1099
      %v1101 = vrot.slane %v1100, 1
      %v1102 = vmax.f32 %v1100, %v1101
      %v1103 = vmax.f32 %v1024, %v1028
      %v1104 = vrot.slane %v1103, 4
      %v1105 = vmax.f32 %v1103, %v1104
      %v1106 = vrot.slane %v1105, 2
      %v1107 = vmax.f32 %v1105, %v1106
      %v1108 = vrot.slane %v1107, 1
      %v1109 = vmax.f32 %v1107, %v1108
      %v1110 = vmax.f32 %v1026, %v1030
      %v1111 = vrot.slane %v1110, 4
      %v1112 = vmax.f32 %v1110, %v1111
      %v1113 = vrot.slane %v1112, 2
      %v1114 = vmax.f32 %v1112, %v1113
      %v1115 = vrot.slane %v1114, 1
      %v1116 = vmax.f32 %v1114, %v1115
      %v1117 = vmax.f32 %v1067, %v1071
      %v1118 = vrot.slane %v1117, 4
      %v1119 = vmax.f32 %v1117, %v1118
      %v1120 = vrot.slane %v1119, 2
      %v1121 = vmax.f32 %v1119, %v1120
      %v1122 = vrot.slane %v1121, 1
      %v1123 = vmax.f32 %v1121, %v1122
      %v1124 = vmax.f32 %v1069, %v1073
      %v1125 = vrot.slane %v1124, 4
      %v1126 = vmax.f32 %v1124, %v1125
      %v1127 = vrot.slane %v1126, 2
      %v1128 = vmax.f32 %v1126, %v1127
      %v1129 = vrot.slane %v1128, 1
      %v1130 = vmax.f32 %v1128, %v1129
      %p1131 = scmp.eq.s32.totalorder %s23, 0
      // Predicated region
      $region49: #{_lambda_.6} parent=47 // pred_check
        %p1132 = pneg %p1131
      $region50: #{_lambda_.6} parent=47 // pred_check_branch
        %1134 = sbr.rel (%p1132) target = $region52
      $region51: #{_lambda_.6} parent=47 // pred_region
        %v1143 = vcombine.low %v1081, %v1088
        %v1144 = vcombine.low %v1095, %v1102
        %v1145 = vcombine.low %v1109, %v1116
        %v1146 = vcombine.low %v1123, %v1130
        %v1148 = vunpack.c.l.s4 1966171168
        %v1149 = vunpack.c.0.s8 %v1148
        %v1150 = vlaneseq
        %v1151 = vshrl.u32 %v1150, 7
        %v1152 = vsub.s32 %v1149, %v1151
        %v1153 = vrot.slane %v1143, %v1152
        %v1155 = vunpack.c.l.s4 1966171168
        %v1156 = vunpack.c.0.s8 %v1155
        %v1157 = vlaneseq
        %v1158 = vshrl.u32 %v1157, 7
        %v1159 = vsub.s32 %v1156, %v1158
        %v1160 = vrot.slane %v1144, %v1159
        %v1162 = vunpack.c.l.s4 1966171168
        %v1163 = vunpack.c.0.s8 %v1162
        %v1164 = vlaneseq
        %v1165 = vshrl.u32 %v1164, 7
        %v1166 = vsub.s32 %v1163, %v1165
        %v1167 = vrot.slane %v1145, %v1166
        %v1169 = vunpack.c.l.s4 1966171168
        %v1170 = vunpack.c.0.s8 %v1169
        %v1171 = vlaneseq
        %v1172 = vshrl.u32 %v1171, 7
        %v1173 = vsub.s32 %v1170, %v1172
        %v1174 = vrot.slane %v1146, %v1173
        %v1175 = vcombine.low %v1153, %v1160
        %v1176 = vcombine.low %v1167, %v1174
        %v1178 = vunpack.c.l.s4 1966171168
        %v1179 = vunpack.c.0.s8 %v1178
        %v1180 = vlaneseq
        %v1181 = vshrl.u32 %v1180, 7
        %v1182 = vsub.s32 %v1179, %v1181
        %v1183 = vrot.slane %v1175, %v1182
        %v1185 = vunpack.c.l.s4 1966171168
        %v1186 = vunpack.c.0.s8 %v1185
        %v1187 = vlaneseq
        %v1188 = vshrl.u32 %v1187, 7
        %v1189 = vsub.s32 %v1186, %v1188
        %v1190 = vrot.slane %v1176, %v1189
        %v1191 = vcombine.low %v1183, %v1190
        %1193 = vst [vmem:[%s321] sm:$0xff] %v1191
      $region52: #{_lambda_.6} parent=47 // pred_fallthru
        _
      %p1194 = scmp.ne.s32.totalorder %s23, 0
      // Predicated region
      $region53: #{_lambda_.6} parent=47 // pred_check
        %p1195 = pneg %p1194
      $region54: #{_lambda_.6} parent=47 // pred_check_branch
        %1197 = sbr.rel (%p1195) target = $region56
      $region55: #{_lambda_.6} parent=47 // pred_region
        %v1198 = vld [vmem:[%s321] sm:$0xff]
        %v1207 = vcombine.low %v1081, %v1088
        %v1208 = vcombine.low %v1095, %v1102
        %v1209 = vcombine.low %v1109, %v1116
        %v1210 = vcombine.low %v1123, %v1130
        %v1212 = vunpack.c.l.s4 1966171168
        %v1213 = vunpack.c.0.s8 %v1212
        %v1214 = vlaneseq
        %v1215 = vshrl.u32 %v1214, 7
        %v1216 = vsub.s32 %v1213, %v1215
        %v1217 = vrot.slane %v1207, %v1216
        %v1219 = vunpack.c.l.s4 1966171168
        %v1220 = vunpack.c.0.s8 %v1219
        %v1221 = vlaneseq
        %v1222 = vshrl.u32 %v1221, 7
        %v1223 = vsub.s32 %v1220, %v1222
        %v1224 = vrot.slane %v1208, %v1223
        %v1226 = vunpack.c.l.s4 1966171168
        %v1227 = vunpack.c.0.s8 %v1226
        %v1228 = vlaneseq
        %v1229 = vshrl.u32 %v1228, 7
        %v1230 = vsub.s32 %v1227, %v1229
        %v1231 = vrot.slane %v1209, %v1230
        %v1233 = vunpack.c.l.s4 1966171168
        %v1234 = vunpack.c.0.s8 %v1233
        %v1235 = vlaneseq
        %v1236 = vshrl.u32 %v1235, 7
        %v1237 = vsub.s32 %v1234, %v1236
        %v1238 = vrot.slane %v1210, %v1237
        %v1239 = vcombine.low %v1217, %v1224
        %v1240 = vcombine.low %v1231, %v1238
        %v1242 = vunpack.c.l.s4 1966171168
        %v1243 = vunpack.c.0.s8 %v1242
        %v1244 = vlaneseq
        %v1245 = vshrl.u32 %v1244, 7
        %v1246 = vsub.s32 %v1243, %v1245
        %v1247 = vrot.slane %v1239, %v1246
        %v1249 = vunpack.c.l.s4 1966171168
        %v1250 = vunpack.c.0.s8 %v1249
        %v1251 = vlaneseq
        %v1252 = vshrl.u32 %v1251, 7
        %v1253 = vsub.s32 %v1250, %v1252
        %v1254 = vrot.slane %v1240, %v1253
        %v1255 = vcombine.low %v1247, %v1254
        %v1257 = vmax.f32 %v1198, %v1255
        %1258 = vst [vmem:[%s321] sm:$0xff] %v1257
      $region56: #{_lambda_.6} parent=47 // pred_fallthru
        _
      %p1259 = scmp.lt.s32.totalorder %s22, 1
      %s1260 = scalar_select %p1259, %s22, 1
      %s1261 = smul.addr %s1260, 8
      %s1262 = scalar_lea.vmem %s7, %s1261
      // Predicated region
      $region57: #{_lambda_.6} parent=47 // pred_check
        %p1263 = pneg %p207
      $region58: #{_lambda_.6} parent=47 // pred_check_branch
        %1265 = sbr.rel (%p1263) target = $region60
      $region59: #{_lambda_.6} parent=47 // pred_region
        _
      $region60: #{_lambda_.6} parent=47 // pred_fallthru
        _
    $region48: #{_lambda_.6} parent=5 // pred_fallthru
      _
    %p1266 = scmp.le.s32.totalorder 2, %s13
    // Predicated region
    $region61: #{_lambda_.6} parent=5 // pred_check
      %p1267 = pneg %p1266
    $region62: #{_lambda_.6} parent=5 // pred_check_branch
      %1269 = sbr.rel (%p1267) target = $region64
    $region63: #{_lambda_.6} parent=5 // pred_region
      %s1270 = ssub.s32 %s13, 2
      // Predicated region
      $region65: #{_lambda_.6} parent=63 // pred_check
        %p1271 = pneg %p213
      $region66: #{_lambda_.6} parent=63 // pred_check_branch
        %1273 = sbr.rel (%p1271) target = $region68
      $region67: #{_lambda_.6} parent=63 // pred_region
        %p1274 = scmp.lt.s32.totalorder %s24, 1
        %s1275 = scalar_select %p1274, %s24, 1
        %s1276 = smul.addr %s1275, 8
        %s1277 = scalar_lea.vmem %s7, %s1276
      $region68: #{_lambda_.6} parent=63 // pred_fallthru
        _
    $region64: #{_lambda_.6} parent=5 // pred_fallthru
      _
  $region6: #{_lambda_.6} parent=0 // loop_footer
    %s17 = sadd.s32 1, %s13
  $region7: #{_lambda_.6} parent=0 // loop_footer_branch
    %12 = sbr.rel target = $region3
  $region8: #{_lambda_.6} parent=0 // loop_exit
    _

// kernel: _lambda_.5
$region0: #{_lambda_.5}
  #allocation0 [shape = 'u32[]', space=smem, size = 0x4, offset = 0x4, fixed_abs, tag = 'smem constant byte address 0x4 - core index']
  #allocation1 [shape = 'u32[144,128]{1,0:T(1,128)}', space=vmem, size = 0x12000, scoped, tag = 'internal scratch']
  %s0 = inlined_call_operand.vmem [shape: f32[2,1024], index: 0, kind: input, shape index: {}]
  %s1 = inlined_call_operand.vmem [shape: bf16[1024,512], index: 1, kind: input, shape index: {}]
  %s2 = inlined_call_operand.vmem [shape: f32[1,512], index: 2, kind: input, shape index: {}]
  %s3 = inlined_call_operand.vmem [shape: bf16[512,256], index: 3, kind: input, shape index: {}]
  %s4 = inlined_call_operand.vmem [shape: f32[1,256], index: 4, kind: input, shape index: {}]
  %s5 = inlined_call_operand.vmem [shape: bf16[256,128], index: 5, kind: input, shape index: {}]
  %s6 = inlined_call_operand.vmem [shape: f32[1,128], index: 6, kind: input, shape index: {}]
  %s7 = inlined_call_operand.vmem [shape: f32[2,128], index: 7, kind: output, shape index: {}]
  %s8 = sld [smem:[#allocation0]]
  $region38: #{_lambda_.5} parent=0
    _
  %s10 = ssub.s32 1, %s8
  %s11 = scalar_select 0, %s10, %s8
  // Predicated region
  $region2: #{_lambda_.5} parent=0 // pred_check
    _
  $region3: #{_lambda_.5} parent=0 // pred_check_branch
    %13 = sbr.rel (0) target = $region5
  $region4: #{_lambda_.5} parent=0 // pred_region
    _
  $region5: #{_lambda_.5} parent=0 // pred_fallthru
    _
  // Predicated region
  $region6: #{_lambda_.5} parent=0 // pred_check
    _
  $region7: #{_lambda_.5} parent=0 // pred_check_branch
    %15 = sbr.rel (0) target = $region9
  $region8: #{_lambda_.5} parent=0 // pred_region
    _
  $region9: #{_lambda_.5} parent=0 // pred_fallthru
    _
  // Predicated region
  $region10: #{_lambda_.5} parent=0 // pred_check
    _
  $region11: #{_lambda_.5} parent=0 // pred_check_branch
    %17 = sbr.rel (0) target = $region13
  $region12: #{_lambda_.5} parent=0 // pred_region
    _
  $region13: #{_lambda_.5} parent=0 // pred_fallthru
    _
  // Predicated region
  $region14: #{_lambda_.5} parent=0 // pred_check
    _
  $region15: #{_lambda_.5} parent=0 // pred_check_branch
    %19 = sbr.rel (0) target = $region17
  $region16: #{_lambda_.5} parent=0 // pred_region
    _
  $region17: #{_lambda_.5} parent=0 // pred_fallthru
    _
  // Predicated region
  $region18: #{_lambda_.5} parent=0 // pred_check
    _
  $region19: #{_lambda_.5} parent=0 // pred_check_branch
    %21 = sbr.rel (0) target = $region21
  $region20: #{_lambda_.5} parent=0 // pred_region
    _
  $region21: #{_lambda_.5} parent=0 // pred_fallthru
    _
  // Predicated region
  $region22: #{_lambda_.5} parent=0 // pred_check
    _
  $region23: #{_lambda_.5} parent=0 // pred_check_branch
    %23 = sbr.rel (0) target = $region25
  $region24: #{_lambda_.5} parent=0 // pred_region
    _
  $region25: #{_lambda_.5} parent=0 // pred_fallthru
    _
  // Predicated region
  $region26: #{_lambda_.5} parent=0 // pred_check
    _
  $region27: #{_lambda_.5} parent=0 // pred_check_branch
    %25 = sbr.rel (0) target = $region29
  $region28: #{_lambda_.5} parent=0 // pred_region
    _
  $region29: #{_lambda_.5} parent=0 // pred_fallthru
    _
  %v27 = vld [vmem:[%s0] sm:$0xff]
  %v28 = vld [vmem:[%s0 + $0x8] sm:$0xff]
  %v31 = vcombine.high %v27, %v27
  %v33 = vunpack.c.l.s4 1983009808
  %v34 = vunpack.c.0.s8 %v33
  %v35 = vlaneseq
  %v36 = vshrl.u32 %v35, 7
  %v37 = vsub.s32 %v34, %v36
  %v38 = vrot.slane %v27, %v37
  %v40 = vunpack.c.l.s4 1983009808
  %v41 = vunpack.c.0.s8 %v40
  %v42 = vlaneseq
  %v43 = vshrl.u32 %v42, 7
  %v44 = vsub.s32 %v41, %v43
  %v45 = vrot.slane %v31, %v44
  %v46 = vcombine.high %v38, %v38
  %v47 = vcombine.high %v45, %v45
  %v48 = vcombine.high %v28, %v28
  %v50 = vunpack.c.l.s4 1983009808
  %v51 = vunpack.c.0.s8 %v50
  %v52 = vlaneseq
  %v53 = vshrl.u32 %v52, 7
  %v54 = vsub.s32 %v51, %v53
  %v55 = vrot.slane %v28, %v54
  %v57 = vunpack.c.l.s4 1983009808
  %v58 = vunpack.c.0.s8 %v57
  %v59 = vlaneseq
  %v60 = vshrl.u32 %v59, 7
  %v61 = vsub.s32 %v58, %v60
  %v62 = vrot.slane %v48, %v61
  %v63 = vcombine.high %v55, %v55
  %v64 = vcombine.high %v62, %v62
  %v73 = vpack.c.bf16 %v38, %v38
  %v74 = vpack.c.bf16 %v46, %v46
  %v75 = vpack.c.bf16 %v45, %v45
  %v76 = vpack.c.bf16 %v47, %v47
  %v77 = vpack.c.bf16 %v55, %v55
  %v78 = vpack.c.bf16 %v63, %v63
  %v79 = vpack.c.bf16 %v62, %v62
  %v80 = vpack.c.bf16 %v64, %v64
  %v81 = vld [vmem:[%s1] sm:$0xff]
  %v82 = vld [vmem:[%s1 + $0x8] sm:$0xff]
  %v83 = vld [vmem:[%s1 + $0x10] sm:$0xff]
  %v84 = vld [vmem:[%s1 + $0x18] sm:$0xff]
  %v85 = vld [vmem:[%s1 + $0x20] sm:$0xff]
  %v86 = vld [vmem:[%s1 + $0x28] sm:$0xff]
  %v87 = vld [vmem:[%s1 + $0x30] sm:$0xff]
  %v88 = vld [vmem:[%s1 + $0x38] sm:$0xff]
  %v89 = vld [vmem:[%s1 + $0x40] sm:$0xff]
  %v90 = vld [vmem:[%s1 + $0x48] sm:$0xff]
  %v91 = vld [vmem:[%s1 + $0x50] sm:$0xff]
  %v92 = vld [vmem:[%s1 + $0x58] sm:$0xff]
  %v93 = vld [vmem:[%s1 + $0x60] sm:$0xff]
  %v94 = vld [vmem:[%s1 + $0x68] sm:$0xff]
  %v95 = vld [vmem:[%s1 + $0x70] sm:$0xff]
  %v96 = vld [vmem:[%s1 + $0x78] sm:$0xff]
  %v97 = vld [vmem:[%s1 + $0x80] sm:$0xff]
  %v98 = vld [vmem:[%s1 + $0x88] sm:$0xff]
  %v99 = vld [vmem:[%s1 + $0x90] sm:$0xff]
  %v100 = vld [vmem:[%s1 + $0x98] sm:$0xff]
  %v101 = vld [vmem:[%s1 + $0xa0] sm:$0xff]
  %v102 = vld [vmem:[%s1 + $0xa8] sm:$0xff]
  %v103 = vld [vmem:[%s1 + $0xb0] sm:$0xff]
  %v104 = vld [vmem:[%s1 + $0xb8] sm:$0xff]
  %v105 = vld [vmem:[%s1 + $0xc0] sm:$0xff]
  %v106 = vld [vmem:[%s1 + $0xc8] sm:$0xff]
  %v107 = vld [vmem:[%s1 + $0xd0] sm:$0xff]
  %v108 = vld [vmem:[%s1 + $0xd8] sm:$0xff]
  %v109 = vld [vmem:[%s1 + $0xe0] sm:$0xff]
  %v110 = vld [vmem:[%s1 + $0xe8] sm:$0xff]
  %v111 = vld [vmem:[%s1 + $0xf0] sm:$0xff]
  %v112 = vld [vmem:[%s1 + $0xf8] sm:$0xff]
  %v113 = vld [vmem:[%s1 + $0x100] sm:$0xff]
  %v114 = vld [vmem:[%s1 + $0x108] sm:$0xff]
  %v115 = vld [vmem:[%s1 + $0x110] sm:$0xff]
  %v116 = vld [vmem:[%s1 + $0x118] sm:$0xff]
  %v117 = vld [vmem:[%s1 + $0x120] sm:$0xff]
  %v118 = vld [vmem:[%s1 + $0x128] sm:$0xff]
  %v119 = vld [vmem:[%s1 + $0x130] sm:$0xff]
  %v120 = vld [vmem:[%s1 + $0x138] sm:$0xff]
  %v121 = vld [vmem:[%s1 + $0x140] sm:$0xff]
  %v122 = vld [vmem:[%s1 + $0x148] sm:$0xff]
  %v123 = vld [vmem:[%s1 + $0x150] sm:$0xff]
  %v124 = vld [vmem:[%s1 + $0x158] sm:$0xff]
  %v125 = vld [vmem:[%s1 + $0x160] sm:$0xff]
  %v126 = vld [vmem:[%s1 + $0x168] sm:$0xff]
  %v127 = vld [vmem:[%s1 + $0x170] sm:$0xff]
  %v128 = vld [vmem:[%s1 + $0x178] sm:$0xff]
  %v129 = vld [vmem:[%s1 + $0x180] sm:$0xff]
  %v130 = vld [vmem:[%s1 + $0x188] sm:$0xff]
  %v131 = vld [vmem:[%s1 + $0x190] sm:$0xff]
  %v132 = vld [vmem:[%s1 + $0x198] sm:$0xff]
  %v133 = vld [vmem:[%s1 + $0x1a0] sm:$0xff]
  %v134 = vld [vmem:[%s1 + $0x1a8] sm:$0xff]
  %v135 = vld [vmem:[%s1 + $0x1b0] sm:$0xff]
  %v136 = vld [vmem:[%s1 + $0x1b8] sm:$0xff]
  %v137 = vld [vmem:[%s1 + $0x1c0] sm:$0xff]
  %v138 = vld [vmem:[%s1 + $0x1c8] sm:$0xff]
  %v139 = vld [vmem:[%s1 + $0x1d0] sm:$0xff]
  %v140 = vld [vmem:[%s1 + $0x1d8] sm:$0xff]
  %v141 = vld [vmem:[%s1 + $0x1e0] sm:$0xff]
  %v142 = vld [vmem:[%s1 + $0x1e8] sm:$0xff]
  %v143 = vld [vmem:[%s1 + $0x1f0] sm:$0xff]
  %v144 = vld [vmem:[%s1 + $0x1f8] sm:$0xff]
  %v145 = vld [vmem:[%s1 + $0x200] sm:$0xff]
  %v146 = vld [vmem:[%s1 + $0x208] sm:$0xff]
  %v147 = vld [vmem:[%s1 + $0x210] sm:$0xff]
  %v148 = vld [vmem:[%s1 + $0x218] sm:$0xff]
  %v149 = vld [vmem:[%s1 + $0x220] sm:$0xff]
  %v150 = vld [vmem:[%s1 + $0x228] sm:$0xff]
  %v151 = vld [vmem:[%s1 + $0x230] sm:$0xff]
  %v152 = vld [vmem:[%s1 + $0x238] sm:$0xff]
  %v153 = vld [vmem:[%s1 + $0x240] sm:$0xff]
  %v154 = vld [vmem:[%s1 + $0x248] sm:$0xff]
  %v155 = vld [vmem:[%s1 + $0x250] sm:$0xff]
  %v156 = vld [vmem:[%s1 + $0x258] sm:$0xff]
  %v157 = vld [vmem:[%s1 + $0x260] sm:$0xff]
  %v158 = vld [vmem:[%s1 + $0x268] sm:$0xff]
  %v159 = vld [vmem:[%s1 + $0x270] sm:$0xff]
  %v160 = vld [vmem:[%s1 + $0x278] sm:$0xff]
  %v161 = vld [vmem:[%s1 + $0x280] sm:$0xff]
  %v162 = vld [vmem:[%s1 + $0x288] sm:$0xff]
  %v163 = vld [vmem:[%s1 + $0x290] sm:$0xff]
  %v164 = vld [vmem:[%s1 + $0x298] sm:$0xff]
  %v165 = vld [vmem:[%s1 + $0x2a0] sm:$0xff]
  %v166 = vld [vmem:[%s1 + $0x2a8] sm:$0xff]
  %v167 = vld [vmem:[%s1 + $0x2b0] sm:$0xff]
  %v168 = vld [vmem:[%s1 + $0x2b8] sm:$0xff]
  %v169 = vld [vmem:[%s1 + $0x2c0] sm:$0xff]
  %v170 = vld [vmem:[%s1 + $0x2c8] sm:$0xff]
  %v171 = vld [vmem:[%s1 + $0x2d0] sm:$0xff]
  %v172 = vld [vmem:[%s1 + $0x2d8] sm:$0xff]
  %v173 = vld [vmem:[%s1 + $0x2e0] sm:$0xff]
  %v174 = vld [vmem:[%s1 + $0x2e8] sm:$0xff]
  %v175 = vld [vmem:[%s1 + $0x2f0] sm:$0xff]
  %v176 = vld [vmem:[%s1 + $0x2f8] sm:$0xff]
  %v177 = vld [vmem:[%s1 + $0x300] sm:$0xff]
  %v178 = vld [vmem:[%s1 + $0x308] sm:$0xff]
  %v179 = vld [vmem:[%s1 + $0x310] sm:$0xff]
  %v180 = vld [vmem:[%s1 + $0x318] sm:$0xff]
  %v181 = vld [vmem:[%s1 + $0x320] sm:$0xff]
  %v182 = vld [vmem:[%s1 + $0x328] sm:$0xff]
  %v183 = vld [vmem:[%s1 + $0x330] sm:$0xff]
  %v184 = vld [vmem:[%s1 + $0x338] sm:$0xff]
  %v185 = vld [vmem:[%s1 + $0x340] sm:$0xff]
  %v186 = vld [vmem:[%s1 + $0x348] sm:$0xff]
  %v187 = vld [vmem:[%s1 + $0x350] sm:$0xff]
  %v188 = vld [vmem:[%s1 + $0x358] sm:$0xff]
  %v189 = vld [vmem:[%s1 + $0x360] sm:$0xff]
  %v190 = vld [vmem:[%s1 + $0x368] sm:$0xff]
  %v191 = vld [vmem:[%s1 + $0x370] sm:$0xff]
  %v192 = vld [vmem:[%s1 + $0x378] sm:$0xff]
  %v193 = vld [vmem:[%s1 + $0x380] sm:$0xff]
  %v194 = vld [vmem:[%s1 + $0x388] sm:$0xff]
  %v195 = vld [vmem:[%s1 + $0x390] sm:$0xff]
  %v196 = vld [vmem:[%s1 + $0x398] sm:$0xff]
  %v197 = vld [vmem:[%s1 + $0x3a0] sm:$0xff]
  %v198 = vld [vmem:[%s1 + $0x3a8] sm:$0xff]
  %v199 = vld [vmem:[%s1 + $0x3b0] sm:$0xff]
  %v200 = vld [vmem:[%s1 + $0x3b8] sm:$0xff]
  %v201 = vld [vmem:[%s1 + $0x3c0] sm:$0xff]
  %v202 = vld [vmem:[%s1 + $0x3c8] sm:$0xff]
  %v203 = vld [vmem:[%s1 + $0x3d0] sm:$0xff]
  %v204 = vld [vmem:[%s1 + $0x3d8] sm:$0xff]
  %v205 = vld [vmem:[%s1 + $0x3e0] sm:$0xff]
  %v206 = vld [vmem:[%s1 + $0x3e8] sm:$0xff]
  %v207 = vld [vmem:[%s1 + $0x3f0] sm:$0xff]
  %v208 = vld [vmem:[%s1 + $0x3f8] sm:$0xff]
  %v209 = vld [vmem:[%s1 + $0x400] sm:$0xff]
  %v210 = vld [vmem:[%s1 + $0x408] sm:$0xff]
  %v211 = vld [vmem:[%s1 + $0x410] sm:$0xff]
  %v212 = vld [vmem:[%s1 + $0x418] sm:$0xff]
  %v213 = vld [vmem:[%s1 + $0x420] sm:$0xff]
  %v214 = vld [vmem:[%s1 + $0x428] sm:$0xff]
  %v215 = vld [vmem:[%s1 + $0x430] sm:$0xff]
  %v216 = vld [vmem:[%s1 + $0x438] sm:$0xff]
  %v217 = vld [vmem:[%s1 + $0x440] sm:$0xff]
  %v218 = vld [vmem:[%s1 + $0x448] sm:$0xff]
  %v219 = vld [vmem:[%s1 + $0x450] sm:$0xff]
  %v220 = vld [vmem:[%s1 + $0x458] sm:$0xff]
  %v221 = vld [vmem:[%s1 + $0x460] sm:$0xff]
  %v222 = vld [vmem:[%s1 + $0x468] sm:$0xff]
  %v223 = vld [vmem:[%s1 + $0x470] sm:$0xff]
  %v224 = vld [vmem:[%s1 + $0x478] sm:$0xff]
  %v225 = vld [vmem:[%s1 + $0x480] sm:$0xff]
  %v226 = vld [vmem:[%s1 + $0x488] sm:$0xff]
  %v227 = vld [vmem:[%s1 + $0x490] sm:$0xff]
  %v228 = vld [vmem:[%s1 + $0x498] sm:$0xff]
  %v229 = vld [vmem:[%s1 + $0x4a0] sm:$0xff]
  %v230 = vld [vmem:[%s1 + $0x4a8] sm:$0xff]
  %v231 = vld [vmem:[%s1 + $0x4b0] sm:$0xff]
  %v232 = vld [vmem:[%s1 + $0x4b8] sm:$0xff]
  %v233 = vld [vmem:[%s1 + $0x4c0] sm:$0xff]
  %v234 = vld [vmem:[%s1 + $0x4c8] sm:$0xff]
  %v235 = vld [vmem:[%s1 + $0x4d0] sm:$0xff]
  %v236 = vld [vmem:[%s1 + $0x4d8] sm:$0xff]
  %v237 = vld [vmem:[%s1 + $0x4e0] sm:$0xff]
  %v238 = vld [vmem:[%s1 + $0x4e8] sm:$0xff]
  %v239 = vld [vmem:[%s1 + $0x4f0] sm:$0xff]
  %v240 = vld [vmem:[%s1 + $0x4f8] sm:$0xff]
  %v241 = vld [vmem:[%s1 + $0x500] sm:$0xff]
  %v242 = vld [vmem:[%s1 + $0x508] sm:$0xff]
  %v243 = vld [vmem:[%s1 + $0x510] sm:$0xff]
  %v244 = vld [vmem:[%s1 + $0x518] sm:$0xff]
  %v245 = vld [vmem:[%s1 + $0x520] sm:$0xff]
  %v246 = vld [vmem:[%s1 + $0x528] sm:$0xff]
  %v247 = vld [vmem:[%s1 + $0x530] sm:$0xff]
  %v248 = vld [vmem:[%s1 + $0x538] sm:$0xff]
  %v249 = vld [vmem:[%s1 + $0x540] sm:$0xff]
  %v250 = vld [vmem:[%s1 + $0x548] sm:$0xff]
  %v251 = vld [vmem:[%s1 + $0x550] sm:$0xff]
  %v252 = vld [vmem:[%s1 + $0x558] sm:$0xff]
  %v253 = vld [vmem:[%s1 + $0x560] sm:$0xff]
  %v254 = vld [vmem:[%s1 + $0x568] sm:$0xff]
  %v255 = vld [vmem:[%s1 + $0x570] sm:$0xff]
  %v256 = vld [vmem:[%s1 + $0x578] sm:$0xff]
  %v257 = vld [vmem:[%s1 + $0x580] sm:$0xff]
  %v258 = vld [vmem:[%s1 + $0x588] sm:$0xff]
  %v259 = vld [vmem:[%s1 + $0x590] sm:$0xff]
  %v260 = vld [vmem:[%s1 + $0x598] sm:$0xff]
  %v261 = vld [vmem:[%s1 + $0x5a0] sm:$0xff]
  %v262 = vld [vmem:[%s1 + $0x5a8] sm:$0xff]
  %v263 = vld [vmem:[%s1 + $0x5b0] sm:$0xff]
  %v264 = vld [vmem:[%s1 + $0x5b8] sm:$0xff]
  %v265 = vld [vmem:[%s1 + $0x5c0] sm:$0xff]
  %v266 = vld [vmem:[%s1 + $0x5c8] sm:$0xff]
  %v267 = vld [vmem:[%s1 + $0x5d0] sm:$0xff]
  %v268 = vld [vmem:[%s1 + $0x5d8] sm:$0xff]
  %v269 = vld [vmem:[%s1 + $0x5e0] sm:$0xff]
  %v270 = vld [vmem:[%s1 + $0x5e8] sm:$0xff]
  %v271 = vld [vmem:[%s1 + $0x5f0] sm:$0xff]
  %v272 = vld [vmem:[%s1 + $0x5f8] sm:$0xff]
  %v273 = vld [vmem:[%s1 + $0x600] sm:$0xff]
  %v274 = vld [vmem:[%s1 + $0x608] sm:$0xff]
  %v275 = vld [vmem:[%s1 + $0x610] sm:$0xff]
  %v276 = vld [vmem:[%s1 + $0x618] sm:$0xff]
  %v277 = vld [vmem:[%s1 + $0x620] sm:$0xff]
  %v278 = vld [vmem:[%s1 + $0x628] sm:$0xff]
  %v279 = vld [vmem:[%s1 + $0x630] sm:$0xff]
  %v280 = vld [vmem:[%s1 + $0x638] sm:$0xff]
  %v281 = vld [vmem:[%s1 + $0x640] sm:$0xff]
  %v282 = vld [vmem:[%s1 + $0x648] sm:$0xff]
  %v283 = vld [vmem:[%s1 + $0x650] sm:$0xff]
  %v284 = vld [vmem:[%s1 + $0x658] sm:$0xff]
  %v285 = vld [vmem:[%s1 + $0x660] sm:$0xff]
  %v286 = vld [vmem:[%s1 + $0x668] sm:$0xff]
  %v287 = vld [vmem:[%s1 + $0x670] sm:$0xff]
  %v288 = vld [vmem:[%s1 + $0x678] sm:$0xff]
  %v289 = vld [vmem:[%s1 + $0x680] sm:$0xff]
  %v290 = vld [vmem:[%s1 + $0x688] sm:$0xff]
  %v291 = vld [vmem:[%s1 + $0x690] sm:$0xff]
  %v292 = vld [vmem:[%s1 + $0x698] sm:$0xff]
  %v293 = vld [vmem:[%s1 + $0x6a0] sm:$0xff]
  %v294 = vld [vmem:[%s1 + $0x6a8] sm:$0xff]
  %v295 = vld [vmem:[%s1 + $0x6b0] sm:$0xff]
  %v296 = vld [vmem:[%s1 + $0x6b8] sm:$0xff]
  %v297 = vld [vmem:[%s1 + $0x6c0] sm:$0xff]
  %v298 = vld [vmem:[%s1 + $0x6c8] sm:$0xff]
  %v299 = vld [vmem:[%s1 + $0x6d0] sm:$0xff]
  %v300 = vld [vmem:[%s1 + $0x6d8] sm:$0xff]
  %v301 = vld [vmem:[%s1 + $0x6e0] sm:$0xff]
  %v302 = vld [vmem:[%s1 + $0x6e8] sm:$0xff]
  %v303 = vld [vmem:[%s1 + $0x6f0] sm:$0xff]
  %v304 = vld [vmem:[%s1 + $0x6f8] sm:$0xff]
  %v305 = vld [vmem:[%s1 + $0x700] sm:$0xff]
  %v306 = vld [vmem:[%s1 + $0x708] sm:$0xff]
  %v307 = vld [vmem:[%s1 + $0x710] sm:$0xff]
  %v308 = vld [vmem:[%s1 + $0x718] sm:$0xff]
  %v309 = vld [vmem:[%s1 + $0x720] sm:$0xff]
  %v310 = vld [vmem:[%s1 + $0x728] sm:$0xff]
  %v311 = vld [vmem:[%s1 + $0x730] sm:$0xff]
  %v312 = vld [vmem:[%s1 + $0x738] sm:$0xff]
  %v313 = vld [vmem:[%s1 + $0x740] sm:$0xff]
  %v314 = vld [vmem:[%s1 + $0x748] sm:$0xff]
  %v315 = vld [vmem:[%s1 + $0x750] sm:$0xff]
  %v316 = vld [vmem:[%s1 + $0x758] sm:$0xff]
  %v317 = vld [vmem:[%s1 + $0x760] sm:$0xff]
  %v318 = vld [vmem:[%s1 + $0x768] sm:$0xff]
  %v319 = vld [vmem:[%s1 + $0x770] sm:$0xff]
  %v320 = vld [vmem:[%s1 + $0x778] sm:$0xff]
  %v321 = vld [vmem:[%s1 + $0x780] sm:$0xff]
  %v322 = vld [vmem:[%s1 + $0x788] sm:$0xff]
  %v323 = vld [vmem:[%s1 + $0x790] sm:$0xff]
  %v324 = vld [vmem:[%s1 + $0x798] sm:$0xff]
  %v325 = vld [vmem:[%s1 + $0x7a0] sm:$0xff]
  %v326 = vld [vmem:[%s1 + $0x7a8] sm:$0xff]
  %v327 = vld [vmem:[%s1 + $0x7b0] sm:$0xff]
  %v328 = vld [vmem:[%s1 + $0x7b8] sm:$0xff]
  %v329 = vld [vmem:[%s1 + $0x7c0] sm:$0xff]
  %v330 = vld [vmem:[%s1 + $0x7c8] sm:$0xff]
  %v331 = vld [vmem:[%s1 + $0x7d0] sm:$0xff]
  %v332 = vld [vmem:[%s1 + $0x7d8] sm:$0xff]
  %v333 = vld [vmem:[%s1 + $0x7e0] sm:$0xff]
  %v334 = vld [vmem:[%s1 + $0x7e8] sm:$0xff]
  %v335 = vld [vmem:[%s1 + $0x7f0] sm:$0xff]
  %v336 = vld [vmem:[%s1 + $0x7f8] sm:$0xff]
  %v337 = vld [vmem:[%s2] sm:$0xf]
  %v339 = vlaneseq
  %v340 = vshrl.u32 %v339, 7
  %v341 = vsub.s32 0, %v340
  %v342 = vrot.slane %v337, %v341
  %v343 = vlaneseq
  %v344 = vshrl.u32 %v343, 7
  %v345 = vsub.s32 1, %v344
  %v346 = vrot.slane %v337, %v345
  %v347 = vlaneseq
  %v348 = vshrl.u32 %v347, 7
  %v349 = vsub.s32 2, %v348
  %v350 = vrot.slane %v337, %v349
  %v351 = vlaneseq
  %v352 = vshrl.u32 %v351, 7
  %v353 = vsub.s32 3, %v352
  %v354 = vrot.slane %v337, %v353
  %v615 = vunpack.c.l.b16 %v81
  %v616 = vunpack.c.h.b16 %v81
  %v617 = vunpack.c.l.b16 %v82
  %v618 = vunpack.c.h.b16 %v82
  %v619 = vunpack.c.l.b16 %v83
  %v620 = vunpack.c.h.b16 %v83
  %v621 = vunpack.c.l.b16 %v84
  %v622 = vunpack.c.h.b16 %v84
  %v623 = vunpack.c.l.b16 %v85
  %v624 = vunpack.c.h.b16 %v85
  %v625 = vunpack.c.l.b16 %v86
  %v626 = vunpack.c.h.b16 %v86
  %v627 = vunpack.c.l.b16 %v87
  %v628 = vunpack.c.h.b16 %v87
  %v629 = vunpack.c.l.b16 %v88
  %v630 = vunpack.c.h.b16 %v88
  %v631 = vunpack.c.l.b16 %v89
  %v632 = vunpack.c.h.b16 %v89
  %v633 = vunpack.c.l.b16 %v90
  %v634 = vunpack.c.h.b16 %v90
  %v635 = vunpack.c.l.b16 %v91
  %v636 = vunpack.c.h.b16 %v91
  %v637 = vunpack.c.l.b16 %v92
  %v638 = vunpack.c.h.b16 %v92
  %v639 = vunpack.c.l.b16 %v93
  %v640 = vunpack.c.h.b16 %v93
  %v641 = vunpack.c.l.b16 %v94
  %v642 = vunpack.c.h.b16 %v94
  %v643 = vunpack.c.l.b16 %v95
  %v644 = vunpack.c.h.b16 %v95
  %v645 = vunpack.c.l.b16 %v96
  %v646 = vunpack.c.h.b16 %v96
  %v647 = vunpack.c.l.b16 %v97
  %v648 = vunpack.c.h.b16 %v97
  %v649 = vunpack.c.l.b16 %v98
  %v650 = vunpack.c.h.b16 %v98
  %v651 = vunpack.c.l.b16 %v99
  %v652 = vunpack.c.h.b16 %v99
  %v653 = vunpack.c.l.b16 %v100
  %v654 = vunpack.c.h.b16 %v100
  %v655 = vunpack.c.l.b16 %v101
  %v656 = vunpack.c.h.b16 %v101
  %v657 = vunpack.c.l.b16 %v102
  %v658 = vunpack.c.h.b16 %v102
  %v659 = vunpack.c.l.b16 %v103
  %v660 = vunpack.c.h.b16 %v103
  %v661 = vunpack.c.l.b16 %v104
  %v662 = vunpack.c.h.b16 %v104
  %v663 = vunpack.c.l.b16 %v105
  %v664 = vunpack.c.h.b16 %v105
  %v665 = vunpack.c.l.b16 %v106
  %v666 = vunpack.c.h.b16 %v106
  %v667 = vunpack.c.l.b16 %v107
  %v668 = vunpack.c.h.b16 %v107
  %v669 = vunpack.c.l.b16 %v108
  %v670 = vunpack.c.h.b16 %v108
  %v671 = vunpack.c.l.b16 %v109
  %v672 = vunpack.c.h.b16 %v109
  %v673 = vunpack.c.l.b16 %v110
  %v674 = vunpack.c.h.b16 %v110
  %v675 = vunpack.c.l.b16 %v111
  %v676 = vunpack.c.h.b16 %v111
  %v677 = vunpack.c.l.b16 %v112
  %v678 = vunpack.c.h.b16 %v112
  %v679 = vunpack.c.l.b16 %v113
  %v680 = vunpack.c.h.b16 %v113
  %v681 = vunpack.c.l.b16 %v114
  %v682 = vunpack.c.h.b16 %v114
  %v683 = vunpack.c.l.b16 %v115
  %v684 = vunpack.c.h.b16 %v115
  %v685 = vunpack.c.l.b16 %v116
  %v686 = vunpack.c.h.b16 %v116
  %v687 = vunpack.c.l.b16 %v117
  %v688 = vunpack.c.h.b16 %v117
  %v689 = vunpack.c.l.b16 %v118
  %v690 = vunpack.c.h.b16 %v118
  %v691 = vunpack.c.l.b16 %v119
  %v692 = vunpack.c.h.b16 %v119
  %v693 = vunpack.c.l.b16 %v120
  %v694 = vunpack.c.h.b16 %v120
  %v695 = vunpack.c.l.b16 %v121
  %v696 = vunpack.c.h.b16 %v121
  %v697 = vunpack.c.l.b16 %v122
  %v698 = vunpack.c.h.b16 %v122
  %v699 = vunpack.c.l.b16 %v123
  %v700 = vunpack.c.h.b16 %v123
  %v701 = vunpack.c.l.b16 %v124
  %v702 = vunpack.c.h.b16 %v124
  %v703 = vunpack.c.l.b16 %v125
  %v704 = vunpack.c.h.b16 %v125
  %v705 = vunpack.c.l.b16 %v126
  %v706 = vunpack.c.h.b16 %v126
  %v707 = vunpack.c.l.b16 %v127
  %v708 = vunpack.c.h.b16 %v127
  %v709 = vunpack.c.l.b16 %v128
  %v710 = vunpack.c.h.b16 %v128
  %v711 = vunpack.c.l.b16 %v129
  %v712 = vunpack.c.h.b16 %v129
  %v713 = vunpack.c.l.b16 %v130
  %v714 = vunpack.c.h.b16 %v130
  %v715 = vunpack.c.l.b16 %v131
  %v716 = vunpack.c.h.b16 %v131
  %v717 = vunpack.c.l.b16 %v132
  %v718 = vunpack.c.h.b16 %v132
  %v719 = vunpack.c.l.b16 %v133
  %v720 = vunpack.c.h.b16 %v133
  %v721 = vunpack.c.l.b16 %v134
  %v722 = vunpack.c.h.b16 %v134
  %v723 = vunpack.c.l.b16 %v135
  %v724 = vunpack.c.h.b16 %v135
  %v725 = vunpack.c.l.b16 %v136
  %v726 = vunpack.c.h.b16 %v136
  %v727 = vunpack.c.l.b16 %v137
  %v728 = vunpack.c.h.b16 %v137
  %v729 = vunpack.c.l.b16 %v138
  %v730 = vunpack.c.h.b16 %v138
  %v731 = vunpack.c.l.b16 %v139
  %v732 = vunpack.c.h.b16 %v139
  %v733 = vunpack.c.l.b16 %v140
  %v734 = vunpack.c.h.b16 %v140
  %v735 = vunpack.c.l.b16 %v141
  %v736 = vunpack.c.h.b16 %v141
  %v737 = vunpack.c.l.b16 %v142
  %v738 = vunpack.c.h.b16 %v142
  %v739 = vunpack.c.l.b16 %v143
  %v740 = vunpack.c.h.b16 %v143
  %v741 = vunpack.c.l.b16 %v144
  %v742 = vunpack.c.h.b16 %v144
  %v743 = vunpack.c.l.b16 %v145
  %v744 = vunpack.c.h.b16 %v145
  %v745 = vunpack.c.l.b16 %v146
  %v746 = vunpack.c.h.b16 %v146
  %v747 = vunpack.c.l.b16 %v147
  %v748 = vunpack.c.h.b16 %v147
  %v749 = vunpack.c.l.b16 %v148
  %v750 = vunpack.c.h.b16 %v148
  %v751 = vunpack.c.l.b16 %v149
  %v752 = vunpack.c.h.b16 %v149
  %v753 = vunpack.c.l.b16 %v150
  %v754 = vunpack.c.h.b16 %v150
  %v755 = vunpack.c.l.b16 %v151
  %v756 = vunpack.c.h.b16 %v151
  %v757 = vunpack.c.l.b16 %v152
  %v758 = vunpack.c.h.b16 %v152
  %v759 = vunpack.c.l.b16 %v153
  %v760 = vunpack.c.h.b16 %v153
  %v761 = vunpack.c.l.b16 %v154
  %v762 = vunpack.c.h.b16 %v154
  %v763 = vunpack.c.l.b16 %v155
  %v764 = vunpack.c.h.b16 %v155
  %v765 = vunpack.c.l.b16 %v156
  %v766 = vunpack.c.h.b16 %v156
  %v767 = vunpack.c.l.b16 %v157
  %v768 = vunpack.c.h.b16 %v157
  %v769 = vunpack.c.l.b16 %v158
  %v770 = vunpack.c.h.b16 %v158
  %v771 = vunpack.c.l.b16 %v159
  %v772 = vunpack.c.h.b16 %v159
  %v773 = vunpack.c.l.b16 %v160
  %v774 = vunpack.c.h.b16 %v160
  %v775 = vunpack.c.l.b16 %v161
  %v776 = vunpack.c.h.b16 %v161
  %v777 = vunpack.c.l.b16 %v162
  %v778 = vunpack.c.h.b16 %v162
  %v779 = vunpack.c.l.b16 %v163
  %v780 = vunpack.c.h.b16 %v163
  %v781 = vunpack.c.l.b16 %v164
  %v782 = vunpack.c.h.b16 %v164
  %v783 = vunpack.c.l.b16 %v165
  %v784 = vunpack.c.h.b16 %v165
  %v785 = vunpack.c.l.b16 %v166
  %v786 = vunpack.c.h.b16 %v166
  %v787 = vunpack.c.l.b16 %v167
  %v788 = vunpack.c.h.b16 %v167
  %v789 = vunpack.c.l.b16 %v168
  %v790 = vunpack.c.h.b16 %v168
  %v791 = vunpack.c.l.b16 %v169
  %v792 = vunpack.c.h.b16 %v169
  %v793 = vunpack.c.l.b16 %v170
  %v794 = vunpack.c.h.b16 %v170
  %v795 = vunpack.c.l.b16 %v171
  %v796 = vunpack.c.h.b16 %v171
  %v797 = vunpack.c.l.b16 %v172
  %v798 = vunpack.c.h.b16 %v172
  %v799 = vunpack.c.l.b16 %v173
  %v800 = vunpack.c.h.b16 %v173
  %v801 = vunpack.c.l.b16 %v174
  %v802 = vunpack.c.h.b16 %v174
  %v803 = vunpack.c.l.b16 %v175
  %v804 = vunpack.c.h.b16 %v175
  %v805 = vunpack.c.l.b16 %v176
  %v806 = vunpack.c.h.b16 %v176
  %v807 = vunpack.c.l.b16 %v177
  %v808 = vunpack.c.h.b16 %v177
  %v809 = vunpack.c.l.b16 %v178
  %v810 = vunpack.c.h.b16 %v178
  %v811 = vunpack.c.l.b16 %v179
  %v812 = vunpack.c.h.b16 %v179
  %v813 = vunpack.c.l.b16 %v180
  %v814 = vunpack.c.h.b16 %v180
  %v815 = vunpack.c.l.b16 %v181
  %v816 = vunpack.c.h.b16 %v181
  %v817 = vunpack.c.l.b16 %v182
  %v818 = vunpack.c.h.b16 %v182
  %v819 = vunpack.c.l.b16 %v183
  %v820 = vunpack.c.h.b16 %v183
  %v821 = vunpack.c.l.b16 %v184
  %v822 = vunpack.c.h.b16 %v184
  %v823 = vunpack.c.l.b16 %v185
  %v824 = vunpack.c.h.b16 %v185
  %v825 = vunpack.c.l.b16 %v186
  %v826 = vunpack.c.h.b16 %v186
  %v827 = vunpack.c.l.b16 %v187
  %v828 = vunpack.c.h.b16 %v187
  %v829 = vunpack.c.l.b16 %v188
  %v830 = vunpack.c.h.b16 %v188
  %v831 = vunpack.c.l.b16 %v189
  %v832 = vunpack.c.h.b16 %v189
  %v833 = vunpack.c.l.b16 %v190
  %v834 = vunpack.c.h.b16 %v190
  %v835 = vunpack.c.l.b16 %v191
  %v836 = vunpack.c.h.b16 %v191
  %v837 = vunpack.c.l.b16 %v192
  %v838 = vunpack.c.h.b16 %v192
  %v839 = vunpack.c.l.b16 %v193
  %v840 = vunpack.c.h.b16 %v193
  %v841 = vunpack.c.l.b16 %v194
  %v842 = vunpack.c.h.b16 %v194
  %v843 = vunpack.c.l.b16 %v195
  %v844 = vunpack.c.h.b16 %v195
  %v845 = vunpack.c.l.b16 %v196
  %v846 = vunpack.c.h.b16 %v196
  %v847 = vunpack.c.l.b16 %v197
  %v848 = vunpack.c.h.b16 %v197
  %v849 = vunpack.c.l.b16 %v198
  %v850 = vunpack.c.h.b16 %v198
  %v851 = vunpack.c.l.b16 %v199
  %v852 = vunpack.c.h.b16 %v199
  %v853 = vunpack.c.l.b16 %v200
  %v854 = vunpack.c.h.b16 %v200
  %v855 = vunpack.c.l.b16 %v201
  %v856 = vunpack.c.h.b16 %v201
  %v857 = vunpack.c.l.b16 %v202
  %v858 = vunpack.c.h.b16 %v202
  %v859 = vunpack.c.l.b16 %v203
  %v860 = vunpack.c.h.b16 %v203
  %v861 = vunpack.c.l.b16 %v204
  %v862 = vunpack.c.h.b16 %v204
  %v863 = vunpack.c.l.b16 %v205
  %v864 = vunpack.c.h.b16 %v205
  %v865 = vunpack.c.l.b16 %v206
  %v866 = vunpack.c.h.b16 %v206
  %v867 = vunpack.c.l.b16 %v207
  %v868 = vunpack.c.h.b16 %v207
  %v869 = vunpack.c.l.b16 %v208
  %v870 = vunpack.c.h.b16 %v208
  %v871 = vunpack.c.l.b16 %v209
  %v872 = vunpack.c.h.b16 %v209
  %v873 = vunpack.c.l.b16 %v210
  %v874 = vunpack.c.h.b16 %v210
  %v875 = vunpack.c.l.b16 %v211
  %v876 = vunpack.c.h.b16 %v211
  %v877 = vunpack.c.l.b16 %v212
  %v878 = vunpack.c.h.b16 %v212
  %v879 = vunpack.c.l.b16 %v213
  %v880 = vunpack.c.h.b16 %v213
  %v881 = vunpack.c.l.b16 %v214
  %v882 = vunpack.c.h.b16 %v214
  %v883 = vunpack.c.l.b16 %v215
  %v884 = vunpack.c.h.b16 %v215
  %v885 = vunpack.c.l.b16 %v216
  %v886 = vunpack.c.h.b16 %v216
  %v887 = vunpack.c.l.b16 %v217
  %v888 = vunpack.c.h.b16 %v217
  %v889 = vunpack.c.l.b16 %v218
  %v890 = vunpack.c.h.b16 %v218
  %v891 = vunpack.c.l.b16 %v219
  %v892 = vunpack.c.h.b16 %v219
  %v893 = vunpack.c.l.b16 %v220
  %v894 = vunpack.c.h.b16 %v220
  %v895 = vunpack.c.l.b16 %v221
  %v896 = vunpack.c.h.b16 %v221
  %v897 = vunpack.c.l.b16 %v222
  %v898 = vunpack.c.h.b16 %v222
  %v899 = vunpack.c.l.b16 %v223
  %v900 = vunpack.c.h.b16 %v223
  %v901 = vunpack.c.l.b16 %v224
  %v902 = vunpack.c.h.b16 %v224
  %v903 = vunpack.c.l.b16 %v225
  %v904 = vunpack.c.h.b16 %v225
  %v905 = vunpack.c.l.b16 %v226
  %v906 = vunpack.c.h.b16 %v226
  %v907 = vunpack.c.l.b16 %v227
  %v908 = vunpack.c.h.b16 %v227
  %v909 = vunpack.c.l.b16 %v228
  %v910 = vunpack.c.h.b16 %v228
  %v911 = vunpack.c.l.b16 %v229
  %v912 = vunpack.c.h.b16 %v229
  %v913 = vunpack.c.l.b16 %v230
  %v914 = vunpack.c.h.b16 %v230
  %v915 = vunpack.c.l.b16 %v231
  %v916 = vunpack.c.h.b16 %v231
  %v917 = vunpack.c.l.b16 %v232
  %v918 = vunpack.c.h.b16 %v232
  %v919 = vunpack.c.l.b16 %v233
  %v920 = vunpack.c.h.b16 %v233
  %v921 = vunpack.c.l.b16 %v234
  %v922 = vunpack.c.h.b16 %v234
  %v923 = vunpack.c.l.b16 %v235
  %v924 = vunpack.c.h.b16 %v235
  %v925 = vunpack.c.l.b16 %v236
  %v926 = vunpack.c.h.b16 %v236
  %v927 = vunpack.c.l.b16 %v237
  %v928 = vunpack.c.h.b16 %v237
  %v929 = vunpack.c.l.b16 %v238
  %v930 = vunpack.c.h.b16 %v238
  %v931 = vunpack.c.l.b16 %v239
  %v932 = vunpack.c.h.b16 %v239
  %v933 = vunpack.c.l.b16 %v240
  %v934 = vunpack.c.h.b16 %v240
  %v935 = vunpack.c.l.b16 %v241
  %v936 = vunpack.c.h.b16 %v241
  %v937 = vunpack.c.l.b16 %v242
  %v938 = vunpack.c.h.b16 %v242
  %v939 = vunpack.c.l.b16 %v243
  %v940 = vunpack.c.h.b16 %v243
  %v941 = vunpack.c.l.b16 %v244
  %v942 = vunpack.c.h.b16 %v244
  %v943 = vunpack.c.l.b16 %v245
  %v944 = vunpack.c.h.b16 %v245
  %v945 = vunpack.c.l.b16 %v246
  %v946 = vunpack.c.h.b16 %v246
  %v947 = vunpack.c.l.b16 %v247
  %v948 = vunpack.c.h.b16 %v247
  %v949 = vunpack.c.l.b16 %v248
  %v950 = vunpack.c.h.b16 %v248
  %v951 = vunpack.c.l.b16 %v249
  %v952 = vunpack.c.h.b16 %v249
  %v953 = vunpack.c.l.b16 %v250
  %v954 = vunpack.c.h.b16 %v250
  %v955 = vunpack.c.l.b16 %v251
  %v956 = vunpack.c.h.b16 %v251
  %v957 = vunpack.c.l.b16 %v252
  %v958 = vunpack.c.h.b16 %v252
  %v959 = vunpack.c.l.b16 %v253
  %v960 = vunpack.c.h.b16 %v253
  %v961 = vunpack.c.l.b16 %v254
  %v962 = vunpack.c.h.b16 %v254
  %v963 = vunpack.c.l.b16 %v255
  %v964 = vunpack.c.h.b16 %v255
  %v965 = vunpack.c.l.b16 %v256
  %v966 = vunpack.c.h.b16 %v256
  %v967 = vunpack.c.l.b16 %v257
  %v968 = vunpack.c.h.b16 %v257
  %v969 = vunpack.c.l.b16 %v258
  %v970 = vunpack.c.h.b16 %v258
  %v971 = vunpack.c.l.b16 %v259
  %v972 = vunpack.c.h.b16 %v259
  %v973 = vunpack.c.l.b16 %v260
  %v974 = vunpack.c.h.b16 %v260
  %v975 = vunpack.c.l.b16 %v261
  %v976 = vunpack.c.h.b16 %v261
  %v977 = vunpack.c.l.b16 %v262
  %v978 = vunpack.c.h.b16 %v262
  %v979 = vunpack.c.l.b16 %v263
  %v980 = vunpack.c.h.b16 %v263
  %v981 = vunpack.c.l.b16 %v264
  %v982 = vunpack.c.h.b16 %v264
  %v983 = vunpack.c.l.b16 %v265
  %v984 = vunpack.c.h.b16 %v265
  %v985 = vunpack.c.l.b16 %v266
  %v986 = vunpack.c.h.b16 %v266
  %v987 = vunpack.c.l.b16 %v267
  %v988 = vunpack.c.h.b16 %v267
  %v989 = vunpack.c.l.b16 %v268
  %v990 = vunpack.c.h.b16 %v268
  %v991 = vunpack.c.l.b16 %v269
  %v992 = vunpack.c.h.b16 %v269
  %v993 = vunpack.c.l.b16 %v270
  %v994 = vunpack.c.h.b16 %v270
  %v995 = vunpack.c.l.b16 %v271
  %v996 = vunpack.c.h.b16 %v271
  %v997 = vunpack.c.l.b16 %v272
  %v998 = vunpack.c.h.b16 %v272
  %v999 = vunpack.c.l.b16 %v273
  %v1000 = vunpack.c.h.b16 %v273
  %v1001 = vunpack.c.l.b16 %v274
  %v1002 = vunpack.c.h.b16 %v274
  %v1003 = vunpack.c.l.b16 %v275
  %v1004 = vunpack.c.h.b16 %v275
  %v1005 = vunpack.c.l.b16 %v276
  %v1006 = vunpack.c.h.b16 %v276
  %v1007 = vunpack.c.l.b16 %v277
  %v1008 = vunpack.c.h.b16 %v277
  %v1009 = vunpack.c.l.b16 %v278
  %v1010 = vunpack.c.h.b16 %v278
  %v1011 = vunpack.c.l.b16 %v279
  %v1012 = vunpack.c.h.b16 %v279
  %v1013 = vunpack.c.l.b16 %v280
  %v1014 = vunpack.c.h.b16 %v280
  %v1015 = vunpack.c.l.b16 %v281
  %v1016 = vunpack.c.h.b16 %v281
  %v1017 = vunpack.c.l.b16 %v282
  %v1018 = vunpack.c.h.b16 %v282
  %v1019 = vunpack.c.l.b16 %v283
  %v1020 = vunpack.c.h.b16 %v283
  %v1021 = vunpack.c.l.b16 %v284
  %v1022 = vunpack.c.h.b16 %v284
  %v1023 = vunpack.c.l.b16 %v285
  %v1024 = vunpack.c.h.b16 %v285
  %v1025 = vunpack.c.l.b16 %v286
  %v1026 = vunpack.c.h.b16 %v286
  %v1027 = vunpack.c.l.b16 %v287
  %v1028 = vunpack.c.h.b16 %v287
  %v1029 = vunpack.c.l.b16 %v288
  %v1030 = vunpack.c.h.b16 %v288
  %v1031 = vunpack.c.l.b16 %v289
  %v1032 = vunpack.c.h.b16 %v289
  %v1033 = vunpack.c.l.b16 %v290
  %v1034 = vunpack.c.h.b16 %v290
  %v1035 = vunpack.c.l.b16 %v291
  %v1036 = vunpack.c.h.b16 %v291
  %v1037 = vunpack.c.l.b16 %v292
  %v1038 = vunpack.c.h.b16 %v292
  %v1039 = vunpack.c.l.b16 %v293
  %v1040 = vunpack.c.h.b16 %v293
  %v1041 = vunpack.c.l.b16 %v294
  %v1042 = vunpack.c.h.b16 %v294
  %v1043 = vunpack.c.l.b16 %v295
  %v1044 = vunpack.c.h.b16 %v295
  %v1045 = vunpack.c.l.b16 %v296
  %v1046 = vunpack.c.h.b16 %v296
  %v1047 = vunpack.c.l.b16 %v297
  %v1048 = vunpack.c.h.b16 %v297
  %v1049 = vunpack.c.l.b16 %v298
  %v1050 = vunpack.c.h.b16 %v298
  %v1051 = vunpack.c.l.b16 %v299
  %v1052 = vunpack.c.h.b16 %v299
  %v1053 = vunpack.c.l.b16 %v300
  %v1054 = vunpack.c.h.b16 %v300
  %v1055 = vunpack.c.l.b16 %v301
  %v1056 = vunpack.c.h.b16 %v301
  %v1057 = vunpack.c.l.b16 %v302
  %v1058 = vunpack.c.h.b16 %v302
  %v1059 = vunpack.c.l.b16 %v303
  %v1060 = vunpack.c.h.b16 %v303
  %v1061 = vunpack.c.l.b16 %v304
  %v1062 = vunpack.c.h.b16 %v304
  %v1063 = vunpack.c.l.b16 %v305
  %v1064 = vunpack.c.h.b16 %v305
  %v1065 = vunpack.c.l.b16 %v306
  %v1066 = vunpack.c.h.b16 %v306
  %v1067 = vunpack.c.l.b16 %v307
  %v1068 = vunpack.c.h.b16 %v307
  %v1069 = vunpack.c.l.b16 %v308
  %v1070 = vunpack.c.h.b16 %v308
  %v1071 = vunpack.c.l.b16 %v309
  %v1072 = vunpack.c.h.b16 %v309
  %v1073 = vunpack.c.l.b16 %v310
  %v1074 = vunpack.c.h.b16 %v310
  %v1075 = vunpack.c.l.b16 %v311
  %v1076 = vunpack.c.h.b16 %v311
  %v1077 = vunpack.c.l.b16 %v312
  %v1078 = vunpack.c.h.b16 %v312
  %v1079 = vunpack.c.l.b16 %v313
  %v1080 = vunpack.c.h.b16 %v313
  %v1081 = vunpack.c.l.b16 %v314
  %v1082 = vunpack.c.h.b16 %v314
  %v1083 = vunpack.c.l.b16 %v315
  %v1084 = vunpack.c.h.b16 %v315
  %v1085 = vunpack.c.l.b16 %v316
  %v1086 = vunpack.c.h.b16 %v316
  %v1087 = vunpack.c.l.b16 %v317
  %v1088 = vunpack.c.h.b16 %v317
  %v1089 = vunpack.c.l.b16 %v318
  %v1090 = vunpack.c.h.b16 %v318
  %v1091 = vunpack.c.l.b16 %v319
  %v1092 = vunpack.c.h.b16 %v319
  %v1093 = vunpack.c.l.b16 %v320
  %v1094 = vunpack.c.h.b16 %v320
  %v1095 = vunpack.c.l.b16 %v321
  %v1096 = vunpack.c.h.b16 %v321
  %v1097 = vunpack.c.l.b16 %v322
  %v1098 = vunpack.c.h.b16 %v322
  %v1099 = vunpack.c.l.b16 %v323
  %v1100 = vunpack.c.h.b16 %v323
  %v1101 = vunpack.c.l.b16 %v324
  %v1102 = vunpack.c.h.b16 %v324
  %v1103 = vunpack.c.l.b16 %v325
  %v1104 = vunpack.c.h.b16 %v325
  %v1105 = vunpack.c.l.b16 %v326
  %v1106 = vunpack.c.h.b16 %v326
  %v1107 = vunpack.c.l.b16 %v327
  %v1108 = vunpack.c.h.b16 %v327
  %v1109 = vunpack.c.l.b16 %v328
  %v1110 = vunpack.c.h.b16 %v328
  %v1111 = vunpack.c.l.b16 %v329
  %v1112 = vunpack.c.h.b16 %v329
  %v1113 = vunpack.c.l.b16 %v330
  %v1114 = vunpack.c.h.b16 %v330
  %v1115 = vunpack.c.l.b16 %v331
  %v1116 = vunpack.c.h.b16 %v331
  %v1117 = vunpack.c.l.b16 %v332
  %v1118 = vunpack.c.h.b16 %v332
  %v1119 = vunpack.c.l.b16 %v333
  %v1120 = vunpack.c.h.b16 %v333
  %v1121 = vunpack.c.l.b16 %v334
  %v1122 = vunpack.c.h.b16 %v334
  %v1123 = vunpack.c.l.b16 %v335
  %v1124 = vunpack.c.h.b16 %v335
  %v1125 = vunpack.c.l.b16 %v336
  %v1126 = vunpack.c.h.b16 %v336
  %v1127 = vpack.c.b16 %v619, %v615
  %v1128 = vpack.c.b16 %v620, %v616
  %v1129 = vpack.c.b16 %v621, %v617
  %v1130 = vpack.c.b16 %v622, %v618
  %v1131 = vpack.c.b16 %v627, %v623
  %v1132 = vpack.c.b16 %v628, %v624
  %v1133 = vpack.c.b16 %v629, %v625
  %v1134 = vpack.c.b16 %v630, %v626
  %v1135 = vpack.c.b16 %v635, %v631
  %v1136 = vpack.c.b16 %v636, %v632
  %v1137 = vpack.c.b16 %v637, %v633
  %v1138 = vpack.c.b16 %v638, %v634
  %v1139 = vpack.c.b16 %v643, %v639
  %v1140 = vpack.c.b16 %v644, %v640
  %v1141 = vpack.c.b16 %v645, %v641
  %v1142 = vpack.c.b16 %v646, %v642
  %v1143 = vpack.c.b16 %v651, %v647
  %v1144 = vpack.c.b16 %v652, %v648
  %v1145 = vpack.c.b16 %v653, %v649
  %v1146 = vpack.c.b16 %v654, %v650
  %v1147 = vpack.c.b16 %v659, %v655
  %v1148 = vpack.c.b16 %v660, %v656
  %v1149 = vpack.c.b16 %v661, %v657
  %v1150 = vpack.c.b16 %v662, %v658
  %v1151 = vpack.c.b16 %v667, %v663
  %v1152 = vpack.c.b16 %v668, %v664
  %v1153 = vpack.c.b16 %v669, %v665
  %v1154 = vpack.c.b16 %v670, %v666
  %v1155 = vpack.c.b16 %v675, %v671
  %v1156 = vpack.c.b16 %v676, %v672
  %v1157 = vpack.c.b16 %v677, %v673
  %v1158 = vpack.c.b16 %v678, %v674
  %v1159 = vpack.c.b16 %v683, %v679
  %v1160 = vpack.c.b16 %v684, %v680
  %v1161 = vpack.c.b16 %v685, %v681
  %v1162 = vpack.c.b16 %v686, %v682
  %v1163 = vpack.c.b16 %v691, %v687
  %v1164 = vpack.c.b16 %v692, %v688
  %v1165 = vpack.c.b16 %v693, %v689
  %v1166 = vpack.c.b16 %v694, %v690
  %v1167 = vpack.c.b16 %v699, %v695
  %v1168 = vpack.c.b16 %v700, %v696
  %v1169 = vpack.c.b16 %v701, %v697
  %v1170 = vpack.c.b16 %v702, %v698
  %v1171 = vpack.c.b16 %v707, %v703
  %v1172 = vpack.c.b16 %v708, %v704
  %v1173 = vpack.c.b16 %v709, %v705
  %v1174 = vpack.c.b16 %v710, %v706
  %v1175 = vpack.c.b16 %v715, %v711
  %v1176 = vpack.c.b16 %v716, %v712
  %v1177 = vpack.c.b16 %v717, %v713
  %v1178 = vpack.c.b16 %v718, %v714
  %v1179 = vpack.c.b16 %v723, %v719
  %v1180 = vpack.c.b16 %v724, %v720
  %v1181 = vpack.c.b16 %v725, %v721
  %v1182 = vpack.c.b16 %v726, %v722
  %v1183 = vpack.c.b16 %v731, %v727
  %v1184 = vpack.c.b16 %v732, %v728
  %v1185 = vpack.c.b16 %v733, %v729
  %v1186 = vpack.c.b16 %v734, %v730
  %v1187 = vpack.c.b16 %v739, %v735
  %v1188 = vpack.c.b16 %v740, %v736
  %v1189 = vpack.c.b16 %v741, %v737
  %v1190 = vpack.c.b16 %v742, %v738
  %v1191 = vpack.c.b16 %v747, %v743
  %v1192 = vpack.c.b16 %v748, %v744
  %v1193 = vpack.c.b16 %v749, %v745
  %v1194 = vpack.c.b16 %v750, %v746
  %v1195 = vpack.c.b16 %v755, %v751
  %v1196 = vpack.c.b16 %v756, %v752
  %v1197 = vpack.c.b16 %v757, %v753
  %v1198 = vpack.c.b16 %v758, %v754
  %v1199 = vpack.c.b16 %v763, %v759
  %v1200 = vpack.c.b16 %v764, %v760
  %v1201 = vpack.c.b16 %v765, %v761
  %v1202 = vpack.c.b16 %v766, %v762
  %v1203 = vpack.c.b16 %v771, %v767
  %v1204 = vpack.c.b16 %v772, %v768
  %v1205 = vpack.c.b16 %v773, %v769
  %v1206 = vpack.c.b16 %v774, %v770
  %v1207 = vpack.c.b16 %v779, %v775
  %v1208 = vpack.c.b16 %v780, %v776
  %v1209 = vpack.c.b16 %v781, %v777
  %v1210 = vpack.c.b16 %v782, %v778
  %v1211 = vpack.c.b16 %v787, %v783
  %v1212 = vpack.c.b16 %v788, %v784
  %v1213 = vpack.c.b16 %v789, %v785
  %v1214 = vpack.c.b16 %v790, %v786
  %v1215 = vpack.c.b16 %v795, %v791
  %v1216 = vpack.c.b16 %v796, %v792
  %v1217 = vpack.c.b16 %v797, %v793
  %v1218 = vpack.c.b16 %v798, %v794
  %v1219 = vpack.c.b16 %v803, %v799
  %v1220 = vpack.c.b16 %v804, %v800
  %v1221 = vpack.c.b16 %v805, %v801
  %v1222 = vpack.c.b16 %v806, %v802
  %v1223 = vpack.c.b16 %v811, %v807
  %v1224 = vpack.c.b16 %v812, %v808
  %v1225 = vpack.c.b16 %v813, %v809
  %v1226 = vpack.c.b16 %v814, %v810
  %v1227 = vpack.c.b16 %v819, %v815
  %v1228 = vpack.c.b16 %v820, %v816
  %v1229 = vpack.c.b16 %v821, %v817
  %v1230 = vpack.c.b16 %v822, %v818
  %v1231 = vpack.c.b16 %v827, %v823
  %v1232 = vpack.c.b16 %v828, %v824
  %v1233 = vpack.c.b16 %v829, %v825
  %v1234 = vpack.c.b16 %v830, %v826
  %v1235 = vpack.c.b16 %v835, %v831
  %v1236 = vpack.c.b16 %v836, %v832
  %v1237 = vpack.c.b16 %v837, %v833
  %v1238 = vpack.c.b16 %v838, %v834
  %v1239 = vpack.c.b16 %v843, %v839
  %v1240 = vpack.c.b16 %v844, %v840
  %v1241 = vpack.c.b16 %v845, %v841
  %v1242 = vpack.c.b16 %v846, %v842
  %v1243 = vpack.c.b16 %v851, %v847
  %v1244 = vpack.c.b16 %v852, %v848
  %v1245 = vpack.c.b16 %v853, %v849
  %v1246 = vpack.c.b16 %v854, %v850
  %v1247 = vpack.c.b16 %v859, %v855
  %v1248 = vpack.c.b16 %v860, %v856
  %v1249 = vpack.c.b16 %v861, %v857
  %v1250 = vpack.c.b16 %v862, %v858
  %v1251 = vpack.c.b16 %v867, %v863
  %v1252 = vpack.c.b16 %v868, %v864
  %v1253 = vpack.c.b16 %v869, %v865
  %v1254 = vpack.c.b16 %v870, %v866
  %v1255 = vpack.c.b16 %v875, %v871
  %v1256 = vpack.c.b16 %v876, %v872
  %v1257 = vpack.c.b16 %v877, %v873
  %v1258 = vpack.c.b16 %v878, %v874
  %v1259 = vpack.c.b16 %v883, %v879
  %v1260 = vpack.c.b16 %v884, %v880
  %v1261 = vpack.c.b16 %v885, %v881
  %v1262 = vpack.c.b16 %v886, %v882
  %v1263 = vpack.c.b16 %v891, %v887
  %v1264 = vpack.c.b16 %v892, %v888
  %v1265 = vpack.c.b16 %v893, %v889
  %v1266 = vpack.c.b16 %v894, %v890
  %v1267 = vpack.c.b16 %v899, %v895
  %v1268 = vpack.c.b16 %v900, %v896
  %v1269 = vpack.c.b16 %v901, %v897
  %v1270 = vpack.c.b16 %v902, %v898
  %v1271 = vpack.c.b16 %v907, %v903
  %v1272 = vpack.c.b16 %v908, %v904
  %v1273 = vpack.c.b16 %v909, %v905
  %v1274 = vpack.c.b16 %v910, %v906
  %v1275 = vpack.c.b16 %v915, %v911
  %v1276 = vpack.c.b16 %v916, %v912
  %v1277 = vpack.c.b16 %v917, %v913
  %v1278 = vpack.c.b16 %v918, %v914
  %v1279 = vpack.c.b16 %v923, %v919
  %v1280 = vpack.c.b16 %v924, %v920
  %v1281 = vpack.c.b16 %v925, %v921
  %v1282 = vpack.c.b16 %v926, %v922
  %v1283 = vpack.c.b16 %v931, %v927
  %v1284 = vpack.c.b16 %v932, %v928
  %v1285 = vpack.c.b16 %v933, %v929
  %v1286 = vpack.c.b16 %v934, %v930
  %v1287 = vpack.c.b16 %v939, %v935
  %v1288 = vpack.c.b16 %v940, %v936
  %v1289 = vpack.c.b16 %v941, %v937
  %v1290 = vpack.c.b16 %v942, %v938
  %v1291 = vpack.c.b16 %v947, %v943
  %v1292 = vpack.c.b16 %v948, %v944
  %v1293 = vpack.c.b16 %v949, %v945
  %v1294 = vpack.c.b16 %v950, %v946
  %v1295 = vpack.c.b16 %v955, %v951
  %v1296 = vpack.c.b16 %v956, %v952
  %v1297 = vpack.c.b16 %v957, %v953
  %v1298 = vpack.c.b16 %v958, %v954
  %v1299 = vpack.c.b16 %v963, %v959
  %v1300 = vpack.c.b16 %v964, %v960
  %v1301 = vpack.c.b16 %v965, %v961
  %v1302 = vpack.c.b16 %v966, %v962
  %v1303 = vpack.c.b16 %v971, %v967
  %v1304 = vpack.c.b16 %v972, %v968
  %v1305 = vpack.c.b16 %v973, %v969
  %v1306 = vpack.c.b16 %v974, %v970
  %v1307 = vpack.c.b16 %v979, %v975
  %v1308 = vpack.c.b16 %v980, %v976
  %v1309 = vpack.c.b16 %v981, %v977
  %v1310 = vpack.c.b16 %v982, %v978
  %v1311 = vpack.c.b16 %v987, %v983
  %v1312 = vpack.c.b16 %v988, %v984
  %v1313 = vpack.c.b16 %v989, %v985
  %v1314 = vpack.c.b16 %v990, %v986
  %v1315 = vpack.c.b16 %v995, %v991
  %v1316 = vpack.c.b16 %v996, %v992
  %v1317 = vpack.c.b16 %v997, %v993
  %v1318 = vpack.c.b16 %v998, %v994
  %v1319 = vpack.c.b16 %v1003, %v999
  %v1320 = vpack.c.b16 %v1004, %v1000
  %v1321 = vpack.c.b16 %v1005, %v1001
  %v1322 = vpack.c.b16 %v1006, %v1002
  %v1323 = vpack.c.b16 %v1011, %v1007
  %v1324 = vpack.c.b16 %v1012, %v1008
  %v1325 = vpack.c.b16 %v1013, %v1009
  %v1326 = vpack.c.b16 %v1014, %v1010
  %v1327 = vpack.c.b16 %v1019, %v1015
  %v1328 = vpack.c.b16 %v1020, %v1016
  %v1329 = vpack.c.b16 %v1021, %v1017
  %v1330 = vpack.c.b16 %v1022, %v1018
  %v1331 = vpack.c.b16 %v1027, %v1023
  %v1332 = vpack.c.b16 %v1028, %v1024
  %v1333 = vpack.c.b16 %v1029, %v1025
  %v1334 = vpack.c.b16 %v1030, %v1026
  %v1335 = vpack.c.b16 %v1035, %v1031
  %v1336 = vpack.c.b16 %v1036, %v1032
  %v1337 = vpack.c.b16 %v1037, %v1033
  %v1338 = vpack.c.b16 %v1038, %v1034
  %v1339 = vpack.c.b16 %v1043, %v1039
  %v1340 = vpack.c.b16 %v1044, %v1040
  %v1341 = vpack.c.b16 %v1045, %v1041
  %v1342 = vpack.c.b16 %v1046, %v1042
  %v1343 = vpack.c.b16 %v1051, %v1047
  %v1344 = vpack.c.b16 %v1052, %v1048
  %v1345 = vpack.c.b16 %v1053, %v1049
  %v1346 = vpack.c.b16 %v1054, %v1050
  %v1347 = vpack.c.b16 %v1059, %v1055
  %v1348 = vpack.c.b16 %v1060, %v1056
  %v1349 = vpack.c.b16 %v1061, %v1057
  %v1350 = vpack.c.b16 %v1062, %v1058
  %v1351 = vpack.c.b16 %v1067, %v1063
  %v1352 = vpack.c.b16 %v1068, %v1064
  %v1353 = vpack.c.b16 %v1069, %v1065
  %v1354 = vpack.c.b16 %v1070, %v1066
  %v1355 = vpack.c.b16 %v1075, %v1071
  %v1356 = vpack.c.b16 %v1076, %v1072
  %v1357 = vpack.c.b16 %v1077, %v1073
  %v1358 = vpack.c.b16 %v1078, %v1074
  %v1359 = vpack.c.b16 %v1083, %v1079
  %v1360 = vpack.c.b16 %v1084, %v1080
  %v1361 = vpack.c.b16 %v1085, %v1081
  %v1362 = vpack.c.b16 %v1086, %v1082
  %v1363 = vpack.c.b16 %v1091, %v1087
  %v1364 = vpack.c.b16 %v1092, %v1088
  %v1365 = vpack.c.b16 %v1093, %v1089
  %v1366 = vpack.c.b16 %v1094, %v1090
  %v1367 = vpack.c.b16 %v1099, %v1095
  %v1368 = vpack.c.b16 %v1100, %v1096
  %v1369 = vpack.c.b16 %v1101, %v1097
  %v1370 = vpack.c.b16 %v1102, %v1098
  %v1371 = vpack.c.b16 %v1107, %v1103
  %v1372 = vpack.c.b16 %v1108, %v1104
  %v1373 = vpack.c.b16 %v1109, %v1105
  %v1374 = vpack.c.b16 %v1110, %v1106
  %v1375 = vpack.c.b16 %v1115, %v1111
  %v1376 = vpack.c.b16 %v1116, %v1112
  %v1377 = vpack.c.b16 %v1117, %v1113
  %v1378 = vpack.c.b16 %v1118, %v1114
  %v1379 = vpack.c.b16 %v1123, %v1119
  %v1380 = vpack.c.b16 %v1124, %v1120
  %v1381 = vpack.c.b16 %v1125, %v1121
  %v1382 = vpack.c.b16 %v1126, %v1122
  %1639 = vmatprep.subr.bf16.mxu0 %v1128
  %1640 = vmatpush1.bf16.msra.mxu0 %v1127
  %1641 = vmatprep.subr.bf16.mxu0 %v1132
  %1642 = vmatpush1.bf16.msra.mxu0 %v1131
  %1643 = vmatprep.subr.bf16.mxu0 %v1136
  %1644 = vmatpush1.bf16.msra.mxu0 %v1135
  %1645 = vmatprep.subr.bf16.mxu0 %v1140
  %1646 = vmatpush1.bf16.msra.mxu0 %v1139
  %1647 = vmatprep.subr.bf16.mxu0 %v1144
  %1648 = vmatpush1.bf16.msra.mxu0 %v1143
  %1649 = vmatprep.subr.bf16.mxu0 %v1148
  %1650 = vmatpush1.bf16.msra.mxu0 %v1147
  %1651 = vmatprep.subr.bf16.mxu0 %v1152
  %1652 = vmatpush1.bf16.msra.mxu0 %v1151
  %1653 = vmatprep.subr.bf16.mxu0 %v1156
  %1654 = vmatpush1.bf16.msra.mxu0 %v1155
  %1655 = vmatprep.subr.bf16.mxu0 %v1160
  %1656 = vmatpush1.bf16.msra.mxu0 %v1159
  %1657 = vmatprep.subr.bf16.mxu0 %v1164
  %1658 = vmatpush1.bf16.msra.mxu0 %v1163
  %1659 = vmatprep.subr.bf16.mxu0 %v1168
  %1660 = vmatpush1.bf16.msra.mxu0 %v1167
  %1661 = vmatprep.subr.bf16.mxu0 %v1172
  %1662 = vmatpush1.bf16.msra.mxu0 %v1171
  %1663 = vmatprep.subr.bf16.mxu0 %v1176
  %1664 = vmatpush1.bf16.msra.mxu0 %v1175
  %1665 = vmatprep.subr.bf16.mxu0 %v1180
  %1666 = vmatpush1.bf16.msra.mxu0 %v1179
  %1667 = vmatprep.subr.bf16.mxu0 %v1184
  %1668 = vmatpush1.bf16.msra.mxu0 %v1183
  %1669 = vmatprep.subr.bf16.mxu0 %v1188
  %1670 = vmatpush1.bf16.msra.mxu0 %v1187
  %1671 = vmatprep.mubr.bf16.mxu0 %v74
  %1672 = vmatmul.mubr.bf16.gmra.mrb[0].mxu0 %v73
  %v1673 = vpop.f32.mrb[0].mxu0
  %v1674 = vadd.f32 %v342, %v1673
  %v1675 = vpop.f32.mrb[0].mxu0
  %v1676 = vadd.f32 %v346, %v1675
  %v1677 = vpop.f32.mrb[0].mxu0
  %v1678 = vpop.f32.mrb[0].mxu0
  %1679 = vdwg.mxu0
  %1680 = vmatprep.subr.bf16.mxu0 %v1192
  %1681 = vmatpush1.bf16.msra.mxu0 %v1191
  %1682 = vmatprep.subr.bf16.mxu0 %v1196
  %1683 = vmatpush1.bf16.msra.mxu0 %v1195
  %1684 = vmatprep.subr.bf16.mxu0 %v1200
  %1685 = vmatpush1.bf16.msra.mxu0 %v1199
  %1686 = vmatprep.subr.bf16.mxu0 %v1204
  %1687 = vmatpush1.bf16.msra.mxu0 %v1203
  %1688 = vmatprep.subr.bf16.mxu0 %v1208
  %1689 = vmatpush1.bf16.msra.mxu0 %v1207
  %1690 = vmatprep.subr.bf16.mxu0 %v1212
  %1691 = vmatpush1.bf16.msra.mxu0 %v1211
  %1692 = vmatprep.subr.bf16.mxu0 %v1216
  %1693 = vmatpush1.bf16.msra.mxu0 %v1215
  %1694 = vmatprep.subr.bf16.mxu0 %v1220
  %1695 = vmatpush1.bf16.msra.mxu0 %v1219
  %1696 = vmatprep.subr.bf16.mxu0 %v1224
  %1697 = vmatpush1.bf16.msra.mxu0 %v1223
  %1698 = vmatprep.subr.bf16.mxu0 %v1228
  %1699 = vmatpush1.bf16.msra.mxu0 %v1227
  %1700 = vmatprep.subr.bf16.mxu0 %v1232
  %1701 = vmatpush1.bf16.msra.mxu0 %v1231
  %1702 = vmatprep.subr.bf16.mxu0 %v1236
  %1703 = vmatpush1.bf16.msra.mxu0 %v1235
  %1704 = vmatprep.subr.bf16.mxu0 %v1240
  %1705 = vmatpush1.bf16.msra.mxu0 %v1239
  %1706 = vmatprep.subr.bf16.mxu0 %v1244
  %1707 = vmatpush1.bf16.msra.mxu0 %v1243
  %1708 = vmatprep.subr.bf16.mxu0 %v1248
  %1709 = vmatpush1.bf16.msra.mxu0 %v1247
  %1710 = vmatprep.subr.bf16.mxu0 %v1252
  %1711 = vmatpush1.bf16.msra.mxu0 %v1251
  %1712 = vmatprep.mubr.bf16.mxu0 %v76
  %1713 = vmatmul.mubr.bf16.gmra.mrb[0].mxu0 %v75
  %v1714 = vpop.f32.mrb[0].mxu0
  %v1715 = vadd.f32 %v1674, %v1714
  %v1716 = vpop.f32.mrb[0].mxu0
  %v1717 = vadd.f32 %v1676, %v1716
  %v1718 = vpop.f32.mrb[0].mxu0
  %v1719 = vpop.f32.mrb[0].mxu0
  %1720 = vdwg.mxu0
  %1721 = vmatprep.subr.bf16.mxu0 %v1256
  %1722 = vmatpush1.bf16.msra.mxu0 %v1255
  %1723 = vmatprep.subr.bf16.mxu0 %v1260
  %1724 = vmatpush1.bf16.msra.mxu0 %v1259
  %1725 = vmatprep.subr.bf16.mxu0 %v1264
  %1726 = vmatpush1.bf16.msra.mxu0 %v1263
  %1727 = vmatprep.subr.bf16.mxu0 %v1268
  %1728 = vmatpush1.bf16.msra.mxu0 %v1267
  %1729 = vmatprep.subr.bf16.mxu0 %v1272
  %1730 = vmatpush1.bf16.msra.mxu0 %v1271
  %1731 = vmatprep.subr.bf16.mxu0 %v1276
  %1732 = vmatpush1.bf16.msra.mxu0 %v1275
  %1733 = vmatprep.subr.bf16.mxu0 %v1280
  %1734 = vmatpush1.bf16.msra.mxu0 %v1279
  %1735 = vmatprep.subr.bf16.mxu0 %v1284
  %1736 = vmatpush1.bf16.msra.mxu0 %v1283
  %1737 = vmatprep.subr.bf16.mxu0 %v1288
  %1738 = vmatpush1.bf16.msra.mxu0 %v1287
  %1739 = vmatprep.subr.bf16.mxu0 %v1292
  %1740 = vmatpush1.bf16.msra.mxu0 %v1291
  %1741 = vmatprep.subr.bf16.mxu0 %v1296
  %1742 = vmatpush1.bf16.msra.mxu0 %v1295
  %1743 = vmatprep.subr.bf16.mxu0 %v1300
  %1744 = vmatpush1.bf16.msra.mxu0 %v1299
  %1745 = vmatprep.subr.bf16.mxu0 %v1304
  %1746 = vmatpush1.bf16.msra.mxu0 %v1303
  %1747 = vmatprep.subr.bf16.mxu0 %v1308
  %1748 = vmatpush1.bf16.msra.mxu0 %v1307
  %1749 = vmatprep.subr.bf16.mxu0 %v1312
  %1750 = vmatpush1.bf16.msra.mxu0 %v1311
  %1751 = vmatprep.subr.bf16.mxu0 %v1316
  %1752 = vmatpush1.bf16.msra.mxu0 %v1315
  %1753 = vmatprep.mubr.bf16.mxu0 %v78
  %1754 = vmatmul.mubr.bf16.gmra.mrb[0].mxu0 %v77
  %v1755 = vpop.f32.mrb[0].mxu0
  %v1756 = vadd.f32 %v1715, %v1755
  %v1757 = vpop.f32.mrb[0].mxu0
  %v1758 = vadd.f32 %v1717, %v1757
  %v1759 = vpop.f32.mrb[0].mxu0
  %v1760 = vpop.f32.mrb[0].mxu0
  %1761 = vdwg.mxu0
  %1762 = vmatprep.subr.bf16.mxu0 %v1320
  %1763 = vmatpush1.bf16.msra.mxu0 %v1319
  %1764 = vmatprep.subr.bf16.mxu0 %v1324
  %1765 = vmatpush1.bf16.msra.mxu0 %v1323
  %1766 = vmatprep.subr.bf16.mxu0 %v1328
  %1767 = vmatpush1.bf16.msra.mxu0 %v1327
  %1768 = vmatprep.subr.bf16.mxu0 %v1332
  %1769 = vmatpush1.bf16.msra.mxu0 %v1331
  %1770 = vmatprep.subr.bf16.mxu0 %v1336
  %1771 = vmatpush1.bf16.msra.mxu0 %v1335
  %1772 = vmatprep.subr.bf16.mxu0 %v1340
  %1773 = vmatpush1.bf16.msra.mxu0 %v1339
  %1774 = vmatprep.subr.bf16.mxu0 %v1344
  %1775 = vmatpush1.bf16.msra.mxu0 %v1343
  %1776 = vmatprep.subr.bf16.mxu0 %v1348
  %1777 = vmatpush1.bf16.msra.mxu0 %v1347
  %1778 = vmatprep.subr.bf16.mxu0 %v1352
  %1779 = vmatpush1.bf16.msra.mxu0 %v1351
  %1780 = vmatprep.subr.bf16.mxu0 %v1356
  %1781 = vmatpush1.bf16.msra.mxu0 %v1355
  %1782 = vmatprep.subr.bf16.mxu0 %v1360
  %1783 = vmatpush1.bf16.msra.mxu0 %v1359
  %1784 = vmatprep.subr.bf16.mxu0 %v1364
  %1785 = vmatpush1.bf16.msra.mxu0 %v1363
  %1786 = vmatprep.subr.bf16.mxu0 %v1368
  %1787 = vmatpush1.bf16.msra.mxu0 %v1367
  %1788 = vmatprep.subr.bf16.mxu0 %v1372
  %1789 = vmatpush1.bf16.msra.mxu0 %v1371
  %1790 = vmatprep.subr.bf16.mxu0 %v1376
  %1791 = vmatpush1.bf16.msra.mxu0 %v1375
  %1792 = vmatprep.subr.bf16.mxu0 %v1380
  %1793 = vmatpush1.bf16.msra.mxu0 %v1379
  %1794 = vmatprep.mubr.bf16.mxu0 %v80
  %1795 = vmatmul.mubr.bf16.gmra.mrb[0].mxu0 %v79
  %v1796 = vpop.f32.mrb[0].mxu0
  %v1797 = vadd.f32 %v1756, %v1796
  %v1798 = vpop.f32.mrb[0].mxu0
  %v1799 = vadd.f32 %v1758, %v1798
  %v1800 = vpop.f32.mrb[0].mxu0
  %v1801 = vpop.f32.mrb[0].mxu0
  %1802 = vdwg.mxu0
  %1803 = vmatprep.subr.bf16.mxu0 %v1130
  %1804 = vmatpush1.bf16.msra.mxu0 %v1129
  %1805 = vmatprep.subr.bf16.mxu0 %v1134
  %1806 = vmatpush1.bf16.msra.mxu0 %v1133
  %1807 = vmatprep.subr.bf16.mxu0 %v1138
  %1808 = vmatpush1.bf16.msra.mxu0 %v1137
  %1809 = vmatprep.subr.bf16.mxu0 %v1142
  %1810 = vmatpush1.bf16.msra.mxu0 %v1141
  %1811 = vmatprep.subr.bf16.mxu0 %v1146
  %1812 = vmatpush1.bf16.msra.mxu0 %v1145
  %1813 = vmatprep.subr.bf16.mxu0 %v1150
  %1814 = vmatpush1.bf16.msra.mxu0 %v1149
  %1815 = vmatprep.subr.bf16.mxu0 %v1154
  %1816 = vmatpush1.bf16.msra.mxu0 %v1153
  %1817 = vmatprep.subr.bf16.mxu0 %v1158
  %1818 = vmatpush1.bf16.msra.mxu0 %v1157
  %1819 = vmatprep.subr.bf16.mxu0 %v1162
  %1820 = vmatpush1.bf16.msra.mxu0 %v1161
  %1821 = vmatprep.subr.bf16.mxu0 %v1166
  %1822 = vmatpush1.bf16.msra.mxu0 %v1165
  %1823 = vmatprep.subr.bf16.mxu0 %v1170
  %1824 = vmatpush1.bf16.msra.mxu0 %v1169
  %1825 = vmatprep.subr.bf16.mxu0 %v1174
  %1826 = vmatpush1.bf16.msra.mxu0 %v1173
  %1827 = vmatprep.subr.bf16.mxu0 %v1178
  %1828 = vmatpush1.bf16.msra.mxu0 %v1177
  %1829 = vmatprep.subr.bf16.mxu0 %v1182
  %1830 = vmatpush1.bf16.msra.mxu0 %v1181
  %1831 = vmatprep.subr.bf16.mxu0 %v1186
  %1832 = vmatpush1.bf16.msra.mxu0 %v1185
  %1833 = vmatprep.subr.bf16.mxu0 %v1190
  %1834 = vmatpush1.bf16.msra.mxu0 %v1189
  %1835 = vmatprep.mubr.bf16.mxu0 %v74
  %1836 = vmatmul.mubr.bf16.gmra.mrb[0].mxu0 %v73
  %v1837 = vpop.f32.mrb[0].mxu0
  %v1838 = vadd.f32 %v350, %v1837
  %v1839 = vpop.f32.mrb[0].mxu0
  %v1840 = vadd.f32 %v354, %v1839
  %v1841 = vpop.f32.mrb[0].mxu0
  %v1842 = vpop.f32.mrb[0].mxu0
  %1843 = vdwg.mxu0
  %1844 = vmatprep.subr.bf16.mxu0 %v1194
  %1845 = vmatpush1.bf16.msra.mxu0 %v1193
  %1846 = vmatprep.subr.bf16.mxu0 %v1198
  %1847 = vmatpush1.bf16.msra.mxu0 %v1197
  %1848 = vmatprep.subr.bf16.mxu0 %v1202
  %1849 = vmatpush1.bf16.msra.mxu0 %v1201
  %1850 = vmatprep.subr.bf16.mxu0 %v1206
  %1851 = vmatpush1.bf16.msra.mxu0 %v1205
  %1852 = vmatprep.subr.bf16.mxu0 %v1210
  %1853 = vmatpush1.bf16.msra.mxu0 %v1209
  %1854 = vmatprep.subr.bf16.mxu0 %v1214
  %1855 = vmatpush1.bf16.msra.mxu0 %v1213
  %1856 = vmatprep.subr.bf16.mxu0 %v1218
  %1857 = vmatpush1.bf16.msra.mxu0 %v1217
  %1858 = vmatprep.subr.bf16.mxu0 %v1222
  %1859 = vmatpush1.bf16.msra.mxu0 %v1221
  %1860 = vmatprep.subr.bf16.mxu0 %v1226
  %1861 = vmatpush1.bf16.msra.mxu0 %v1225
  %1862 = vmatprep.subr.bf16.mxu0 %v1230
  %1863 = vmatpush1.bf16.msra.mxu0 %v1229
  %1864 = vmatprep.subr.bf16.mxu0 %v1234
  %1865 = vmatpush1.bf16.msra.mxu0 %v1233
  %1866 = vmatprep.subr.bf16.mxu0 %v1238
  %1867 = vmatpush1.bf16.msra.mxu0 %v1237
  %1868 = vmatprep.subr.bf16.mxu0 %v1242
  %1869 = vmatpush1.bf16.msra.mxu0 %v1241
  %1870 = vmatprep.subr.bf16.mxu0 %v1246
  %1871 = vmatpush1.bf16.msra.mxu0 %v1245
  %1872 = vmatprep.subr.bf16.mxu0 %v1250
  %1873 = vmatpush1.bf16.msra.mxu0 %v1249
  %1874 = vmatprep.subr.bf16.mxu0 %v1254
  %1875 = vmatpush1.bf16.msra.mxu0 %v1253
  %1876 = vmatprep.mubr.bf16.mxu0 %v76
  %1877 = vmatmul.mubr.bf16.gmra.mrb[0].mxu0 %v75
  %v1878 = vpop.f32.mrb[0].mxu0
  %v1879 = vadd.f32 %v1838, %v1878
  %v1880 = vpop.f32.mrb[0].mxu0
  %v1881 = vadd.f32 %v1840, %v1880
  %v1882 = vpop.f32.mrb[0].mxu0
  %v1883 = vpop.f32.mrb[0].mxu0
  %1884 = vdwg.mxu0
  %1885 = vmatprep.subr.bf16.mxu0 %v1258
  %1886 = vmatpush1.bf16.msra.mxu0 %v1257
  %1887 = vmatprep.subr.bf16.mxu0 %v1262
  %1888 = vmatpush1.bf16.msra.mxu0 %v1261
  %1889 = vmatprep.subr.bf16.mxu0 %v1266
  %1890 = vmatpush1.bf16.msra.mxu0 %v1265
  %1891 = vmatprep.subr.bf16.mxu0 %v1270
  %1892 = vmatpush1.bf16.msra.mxu0 %v1269
  %1893 = vmatprep.subr.bf16.mxu0 %v1274
  %1894 = vmatpush1.bf16.msra.mxu0 %v1273
  %1895 = vmatprep.subr.bf16.mxu0 %v1278
  %1896 = vmatpush1.bf16.msra.mxu0 %v1277
  %1897 = vmatprep.subr.bf16.mxu0 %v1282
  %1898 = vmatpush1.bf16.msra.mxu0 %v1281
  %1899 = vmatprep.subr.bf16.mxu0 %v1286
  %1900 = vmatpush1.bf16.msra.mxu0 %v1285
  %1901 = vmatprep.subr.bf16.mxu0 %v1290
  %1902 = vmatpush1.bf16.msra.mxu0 %v1289
  %1903 = vmatprep.subr.bf16.mxu0 %v1294
  %1904 = vmatpush1.bf16.msra.mxu0 %v1293
  %1905 = vmatprep.subr.bf16.mxu0 %v1298
  %1906 = vmatpush1.bf16.msra.mxu0 %v1297
  %1907 = vmatprep.subr.bf16.mxu0 %v1302
  %1908 = vmatpush1.bf16.msra.mxu0 %v1301
  %1909 = vmatprep.subr.bf16.mxu0 %v1306
  %1910 = vmatpush1.bf16.msra.mxu0 %v1305
  %1911 = vmatprep.subr.bf16.mxu0 %v1310
  %1912 = vmatpush1.bf16.msra.mxu0 %v1309
  %1913 = vmatprep.subr.bf16.mxu0 %v1314
  %1914 = vmatpush1.bf16.msra.mxu0 %v1313
  %1915 = vmatprep.subr.bf16.mxu0 %v1318
  %1916 = vmatpush1.bf16.msra.mxu0 %v1317
  %1917 = vmatprep.mubr.bf16.mxu0 %v78
  %1918 = vmatmul.mubr.bf16.gmra.mrb[0].mxu0 %v77
  %v1919 = vpop.f32.mrb[0].mxu0
  %v1920 = vadd.f32 %v1879, %v1919
  %v1921 = vpop.f32.mrb[0].mxu0
  %v1922 = vadd.f32 %v1881, %v1921
  %v1923 = vpop.f32.mrb[0].mxu0
  %v1924 = vpop.f32.mrb[0].mxu0
  %1925 = vdwg.mxu0
  %1926 = vmatprep.subr.bf16.mxu0 %v1322
  %1927 = vmatpush1.bf16.msra.mxu0 %v1321
  %1928 = vmatprep.subr.bf16.mxu0 %v1326
  %1929 = vmatpush1.bf16.msra.mxu0 %v1325
  %1930 = vmatprep.subr.bf16.mxu0 %v1330
  %1931 = vmatpush1.bf16.msra.mxu0 %v1329
  %1932 = vmatprep.subr.bf16.mxu0 %v1334
  %1933 = vmatpush1.bf16.msra.mxu0 %v1333
  %1934 = vmatprep.subr.bf16.mxu0 %v1338
  %1935 = vmatpush1.bf16.msra.mxu0 %v1337
  %1936 = vmatprep.subr.bf16.mxu0 %v1342
  %1937 = vmatpush1.bf16.msra.mxu0 %v1341
  %1938 = vmatprep.subr.bf16.mxu0 %v1346
  %1939 = vmatpush1.bf16.msra.mxu0 %v1345
  %1940 = vmatprep.subr.bf16.mxu0 %v1350
  %1941 = vmatpush1.bf16.msra.mxu0 %v1349
  %1942 = vmatprep.subr.bf16.mxu0 %v1354
  %1943 = vmatpush1.bf16.msra.mxu0 %v1353
  %1944 = vmatprep.subr.bf16.mxu0 %v1358
  %1945 = vmatpush1.bf16.msra.mxu0 %v1357
  %1946 = vmatprep.subr.bf16.mxu0 %v1362
  %1947 = vmatpush1.bf16.msra.mxu0 %v1361
  %1948 = vmatprep.subr.bf16.mxu0 %v1366
  %1949 = vmatpush1.bf16.msra.mxu0 %v1365
  %1950 = vmatprep.subr.bf16.mxu0 %v1370
  %1951 = vmatpush1.bf16.msra.mxu0 %v1369
  %1952 = vmatprep.subr.bf16.mxu0 %v1374
  %1953 = vmatpush1.bf16.msra.mxu0 %v1373
  %1954 = vmatprep.subr.bf16.mxu0 %v1378
  %1955 = vmatpush1.bf16.msra.mxu0 %v1377
  %1956 = vmatprep.subr.bf16.mxu0 %v1382
  %1957 = vmatpush1.bf16.msra.mxu0 %v1381
  %1958 = vmatprep.mubr.bf16.mxu0 %v80
  %1959 = vmatmul.mubr.bf16.gmra.mrb[0].mxu0 %v79
  %v1960 = vpop.f32.mrb[0].mxu0
  %v1961 = vadd.f32 %v1920, %v1960
  %v1962 = vpop.f32.mrb[0].mxu0
  %v1963 = vadd.f32 %v1922, %v1962
  %v1964 = vpop.f32.mrb[0].mxu0
  %v1965 = vpop.f32.mrb[0].mxu0
  %1966 = vdwg.mxu0
  %v1967 = vmax.f32 %v1797, 0.0
  %v1968 = vmax.f32 %v1799, 0.0
  %v1969 = vmax.f32 %v1961, 0.0
  %v1970 = vmax.f32 %v1963, 0.0
  %v1971 = vpack.c.bf16 %v1967, %v1967
  %v1972 = vpack.c.bf16 %v1968, %v1968
  %v1973 = vpack.c.bf16 %v1969, %v1969
  %v1974 = vpack.c.bf16 %v1970, %v1970
  %v1975 = vld [vmem:[%s3] sm:$0xff]
  %v1976 = vld [vmem:[%s3 + $0x8] sm:$0xff]
  %v1977 = vld [vmem:[%s3 + $0x10] sm:$0xff]
  %v1978 = vld [vmem:[%s3 + $0x18] sm:$0xff]
  %v1979 = vld [vmem:[%s3 + $0x20] sm:$0xff]
  %v1980 = vld [vmem:[%s3 + $0x28] sm:$0xff]
  %v1981 = vld [vmem:[%s3 + $0x30] sm:$0xff]
  %v1982 = vld [vmem:[%s3 + $0x38] sm:$0xff]
  %v1983 = vld [vmem:[%s3 + $0x40] sm:$0xff]
  %v1984 = vld [vmem:[%s3 + $0x48] sm:$0xff]
  %v1985 = vld [vmem:[%s3 + $0x50] sm:$0xff]
  %v1986 = vld [vmem:[%s3 + $0x58] sm:$0xff]
  %v1987 = vld [vmem:[%s3 + $0x60] sm:$0xff]
  %v1988 = vld [vmem:[%s3 + $0x68] sm:$0xff]
  %v1989 = vld [vmem:[%s3 + $0x70] sm:$0xff]
  %v1990 = vld [vmem:[%s3 + $0x78] sm:$0xff]
  %v1991 = vld [vmem:[%s3 + $0x80] sm:$0xff]
  %v1992 = vld [vmem:[%s3 + $0x88] sm:$0xff]
  %v1993 = vld [vmem:[%s3 + $0x90] sm:$0xff]
  %v1994 = vld [vmem:[%s3 + $0x98] sm:$0xff]
  %v1995 = vld [vmem:[%s3 + $0xa0] sm:$0xff]
  %v1996 = vld [vmem:[%s3 + $0xa8] sm:$0xff]
  %v1997 = vld [vmem:[%s3 + $0xb0] sm:$0xff]
  %v1998 = vld [vmem:[%s3 + $0xb8] sm:$0xff]
  %v1999 = vld [vmem:[%s3 + $0xc0] sm:$0xff]
  %v2000 = vld [vmem:[%s3 + $0xc8] sm:$0xff]
  %v2001 = vld [vmem:[%s3 + $0xd0] sm:$0xff]
  %v2002 = vld [vmem:[%s3 + $0xd8] sm:$0xff]
  %v2003 = vld [vmem:[%s3 + $0xe0] sm:$0xff]
  %v2004 = vld [vmem:[%s3 + $0xe8] sm:$0xff]
  %v2005 = vld [vmem:[%s3 + $0xf0] sm:$0xff]
  %v2006 = vld [vmem:[%s3 + $0xf8] sm:$0xff]
  %v2007 = vld [vmem:[%s3 + $0x100] sm:$0xff]
  %v2008 = vld [vmem:[%s3 + $0x108] sm:$0xff]
  %v2009 = vld [vmem:[%s3 + $0x110] sm:$0xff]
  %v2010 = vld [vmem:[%s3 + $0x118] sm:$0xff]
  %v2011 = vld [vmem:[%s3 + $0x120] sm:$0xff]
  %v2012 = vld [vmem:[%s3 + $0x128] sm:$0xff]
  %v2013 = vld [vmem:[%s3 + $0x130] sm:$0xff]
  %v2014 = vld [vmem:[%s3 + $0x138] sm:$0xff]
  %v2015 = vld [vmem:[%s3 + $0x140] sm:$0xff]
  %v2016 = vld [vmem:[%s3 + $0x148] sm:$0xff]
  %v2017 = vld [vmem:[%s3 + $0x150] sm:$0xff]
  %v2018 = vld [vmem:[%s3 + $0x158] sm:$0xff]
  %v2019 = vld [vmem:[%s3 + $0x160] sm:$0xff]
  %v2020 = vld [vmem:[%s3 + $0x168] sm:$0xff]
  %v2021 = vld [vmem:[%s3 + $0x170] sm:$0xff]
  %v2022 = vld [vmem:[%s3 + $0x178] sm:$0xff]
  %v2023 = vld [vmem:[%s3 + $0x180] sm:$0xff]
  %v2024 = vld [vmem:[%s3 + $0x188] sm:$0xff]
  %v2025 = vld [vmem:[%s3 + $0x190] sm:$0xff]
  %v2026 = vld [vmem:[%s3 + $0x198] sm:$0xff]
  %v2027 = vld [vmem:[%s3 + $0x1a0] sm:$0xff]
  %v2028 = vld [vmem:[%s3 + $0x1a8] sm:$0xff]
  %v2029 = vld [vmem:[%s3 + $0x1b0] sm:$0xff]
  %v2030 = vld [vmem:[%s3 + $0x1b8] sm:$0xff]
  %v2031 = vld [vmem:[%s3 + $0x1c0] sm:$0xff]
  %v2032 = vld [vmem:[%s3 + $0x1c8] sm:$0xff]
  %v2033 = vld [vmem:[%s3 + $0x1d0] sm:$0xff]
  %v2034 = vld [vmem:[%s3 + $0x1d8] sm:$0xff]
  %v2035 = vld [vmem:[%s3 + $0x1e0] sm:$0xff]
  %v2036 = vld [vmem:[%s3 + $0x1e8] sm:$0xff]
  %v2037 = vld [vmem:[%s3 + $0x1f0] sm:$0xff]
  %v2038 = vld [vmem:[%s3 + $0x1f8] sm:$0xff]
  %v2039 = vld [vmem:[%s4] sm:$0x3]
  %v2041 = vlaneseq
  %v2042 = vshrl.u32 %v2041, 7
  %v2043 = vsub.s32 0, %v2042
  %v2044 = vrot.slane %v2039, %v2043
  %v2045 = vlaneseq
  %v2046 = vshrl.u32 %v2045, 7
  %v2047 = vsub.s32 1, %v2046
  %v2048 = vrot.slane %v2039, %v2047
  %v2115 = vunpack.c.l.b16 %v1975
  %v2116 = vunpack.c.h.b16 %v1975
  %v2117 = vunpack.c.l.b16 %v1976
  %v2118 = vunpack.c.h.b16 %v1976
  %v2119 = vunpack.c.l.b16 %v1977
  %v2120 = vunpack.c.h.b16 %v1977
  %v2121 = vunpack.c.l.b16 %v1978
  %v2122 = vunpack.c.h.b16 %v1978
  %v2123 = vunpack.c.l.b16 %v1979
  %v2124 = vunpack.c.h.b16 %v1979
  %v2125 = vunpack.c.l.b16 %v1980
  %v2126 = vunpack.c.h.b16 %v1980
  %v2127 = vunpack.c.l.b16 %v1981
  %v2128 = vunpack.c.h.b16 %v1981
  %v2129 = vunpack.c.l.b16 %v1982
  %v2130 = vunpack.c.h.b16 %v1982
  %v2131 = vunpack.c.l.b16 %v1983
  %v2132 = vunpack.c.h.b16 %v1983
  %v2133 = vunpack.c.l.b16 %v1984
  %v2134 = vunpack.c.h.b16 %v1984
  %v2135 = vunpack.c.l.b16 %v1985
  %v2136 = vunpack.c.h.b16 %v1985
  %v2137 = vunpack.c.l.b16 %v1986
  %v2138 = vunpack.c.h.b16 %v1986
  %v2139 = vunpack.c.l.b16 %v1987
  %v2140 = vunpack.c.h.b16 %v1987
  %v2141 = vunpack.c.l.b16 %v1988
  %v2142 = vunpack.c.h.b16 %v1988
  %v2143 = vunpack.c.l.b16 %v1989
  %v2144 = vunpack.c.h.b16 %v1989
  %v2145 = vunpack.c.l.b16 %v1990
  %v2146 = vunpack.c.h.b16 %v1990
  %v2147 = vunpack.c.l.b16 %v1991
  %v2148 = vunpack.c.h.b16 %v1991
  %v2149 = vunpack.c.l.b16 %v1992
  %v2150 = vunpack.c.h.b16 %v1992
  %v2151 = vunpack.c.l.b16 %v1993
  %v2152 = vunpack.c.h.b16 %v1993
  %v2153 = vunpack.c.l.b16 %v1994
  %v2154 = vunpack.c.h.b16 %v1994
  %v2155 = vunpack.c.l.b16 %v1995
  %v2156 = vunpack.c.h.b16 %v1995
  %v2157 = vunpack.c.l.b16 %v1996
  %v2158 = vunpack.c.h.b16 %v1996
  %v2159 = vunpack.c.l.b16 %v1997
  %v2160 = vunpack.c.h.b16 %v1997
  %v2161 = vunpack.c.l.b16 %v1998
  %v2162 = vunpack.c.h.b16 %v1998
  %v2163 = vunpack.c.l.b16 %v1999
  %v2164 = vunpack.c.h.b16 %v1999
  %v2165 = vunpack.c.l.b16 %v2000
  %v2166 = vunpack.c.h.b16 %v2000
  %v2167 = vunpack.c.l.b16 %v2001
  %v2168 = vunpack.c.h.b16 %v2001
  %v2169 = vunpack.c.l.b16 %v2002
  %v2170 = vunpack.c.h.b16 %v2002
  %v2171 = vunpack.c.l.b16 %v2003
  %v2172 = vunpack.c.h.b16 %v2003
  %v2173 = vunpack.c.l.b16 %v2004
  %v2174 = vunpack.c.h.b16 %v2004
  %v2175 = vunpack.c.l.b16 %v2005
  %v2176 = vunpack.c.h.b16 %v2005
  %v2177 = vunpack.c.l.b16 %v2006
  %v2178 = vunpack.c.h.b16 %v2006
  %v2179 = vunpack.c.l.b16 %v2007
  %v2180 = vunpack.c.h.b16 %v2007
  %v2181 = vunpack.c.l.b16 %v2008
  %v2182 = vunpack.c.h.b16 %v2008
  %v2183 = vunpack.c.l.b16 %v2009
  %v2184 = vunpack.c.h.b16 %v2009
  %v2185 = vunpack.c.l.b16 %v2010
  %v2186 = vunpack.c.h.b16 %v2010
  %v2187 = vunpack.c.l.b16 %v2011
  %v2188 = vunpack.c.h.b16 %v2011
  %v2189 = vunpack.c.l.b16 %v2012
  %v2190 = vunpack.c.h.b16 %v2012
  %v2191 = vunpack.c.l.b16 %v2013
  %v2192 = vunpack.c.h.b16 %v2013
  %v2193 = vunpack.c.l.b16 %v2014
  %v2194 = vunpack.c.h.b16 %v2014
  %v2195 = vunpack.c.l.b16 %v2015
  %v2196 = vunpack.c.h.b16 %v2015
  %v2197 = vunpack.c.l.b16 %v2016
  %v2198 = vunpack.c.h.b16 %v2016
  %v2199 = vunpack.c.l.b16 %v2017
  %v2200 = vunpack.c.h.b16 %v2017
  %v2201 = vunpack.c.l.b16 %v2018
  %v2202 = vunpack.c.h.b16 %v2018
  %v2203 = vunpack.c.l.b16 %v2019
  %v2204 = vunpack.c.h.b16 %v2019
  %v2205 = vunpack.c.l.b16 %v2020
  %v2206 = vunpack.c.h.b16 %v2020
  %v2207 = vunpack.c.l.b16 %v2021
  %v2208 = vunpack.c.h.b16 %v2021
  %v2209 = vunpack.c.l.b16 %v2022
  %v2210 = vunpack.c.h.b16 %v2022
  %v2211 = vunpack.c.l.b16 %v2023
  %v2212 = vunpack.c.h.b16 %v2023
  %v2213 = vunpack.c.l.b16 %v2024
  %v2214 = vunpack.c.h.b16 %v2024
  %v2215 = vunpack.c.l.b16 %v2025
  %v2216 = vunpack.c.h.b16 %v2025
  %v2217 = vunpack.c.l.b16 %v2026
  %v2218 = vunpack.c.h.b16 %v2026
  %v2219 = vunpack.c.l.b16 %v2027
  %v2220 = vunpack.c.h.b16 %v2027
  %v2221 = vunpack.c.l.b16 %v2028
  %v2222 = vunpack.c.h.b16 %v2028
  %v2223 = vunpack.c.l.b16 %v2029
  %v2224 = vunpack.c.h.b16 %v2029
  %v2225 = vunpack.c.l.b16 %v2030
  %v2226 = vunpack.c.h.b16 %v2030
  %v2227 = vunpack.c.l.b16 %v2031
  %v2228 = vunpack.c.h.b16 %v2031
  %v2229 = vunpack.c.l.b16 %v2032
  %v2230 = vunpack.c.h.b16 %v2032
  %v2231 = vunpack.c.l.b16 %v2033
  %v2232 = vunpack.c.h.b16 %v2033
  %v2233 = vunpack.c.l.b16 %v2034
  %v2234 = vunpack.c.h.b16 %v2034
  %v2235 = vunpack.c.l.b16 %v2035
  %v2236 = vunpack.c.h.b16 %v2035
  %v2237 = vunpack.c.l.b16 %v2036
  %v2238 = vunpack.c.h.b16 %v2036
  %v2239 = vunpack.c.l.b16 %v2037
  %v2240 = vunpack.c.h.b16 %v2037
  %v2241 = vunpack.c.l.b16 %v2038
  %v2242 = vunpack.c.h.b16 %v2038
  %v2243 = vpack.c.b16 %v2117, %v2115
  %v2244 = vpack.c.b16 %v2118, %v2116
  %v2245 = vpack.c.b16 %v2121, %v2119
  %v2246 = vpack.c.b16 %v2122, %v2120
  %v2247 = vpack.c.b16 %v2125, %v2123
  %v2248 = vpack.c.b16 %v2126, %v2124
  %v2249 = vpack.c.b16 %v2129, %v2127
  %v2250 = vpack.c.b16 %v2130, %v2128
  %v2251 = vpack.c.b16 %v2133, %v2131
  %v2252 = vpack.c.b16 %v2134, %v2132
  %v2253 = vpack.c.b16 %v2137, %v2135
  %v2254 = vpack.c.b16 %v2138, %v2136
  %v2255 = vpack.c.b16 %v2141, %v2139
  %v2256 = vpack.c.b16 %v2142, %v2140
  %v2257 = vpack.c.b16 %v2145, %v2143
  %v2258 = vpack.c.b16 %v2146, %v2144
  %v2259 = vpack.c.b16 %v2149, %v2147
  %v2260 = vpack.c.b16 %v2150, %v2148
  %v2261 = vpack.c.b16 %v2153, %v2151
  %v2262 = vpack.c.b16 %v2154, %v2152
  %v2263 = vpack.c.b16 %v2157, %v2155
  %v2264 = vpack.c.b16 %v2158, %v2156
  %v2265 = vpack.c.b16 %v2161, %v2159
  %v2266 = vpack.c.b16 %v2162, %v2160
  %v2267 = vpack.c.b16 %v2165, %v2163
  %v2268 = vpack.c.b16 %v2166, %v2164
  %v2269 = vpack.c.b16 %v2169, %v2167
  %v2270 = vpack.c.b16 %v2170, %v2168
  %v2271 = vpack.c.b16 %v2173, %v2171
  %v2272 = vpack.c.b16 %v2174, %v2172
  %v2273 = vpack.c.b16 %v2177, %v2175
  %v2274 = vpack.c.b16 %v2178, %v2176
  %v2275 = vpack.c.b16 %v2181, %v2179
  %v2276 = vpack.c.b16 %v2182, %v2180
  %v2277 = vpack.c.b16 %v2185, %v2183
  %v2278 = vpack.c.b16 %v2186, %v2184
  %v2279 = vpack.c.b16 %v2189, %v2187
  %v2280 = vpack.c.b16 %v2190, %v2188
  %v2281 = vpack.c.b16 %v2193, %v2191
  %v2282 = vpack.c.b16 %v2194, %v2192
  %v2283 = vpack.c.b16 %v2197, %v2195
  %v2284 = vpack.c.b16 %v2198, %v2196
  %v2285 = vpack.c.b16 %v2201, %v2199
  %v2286 = vpack.c.b16 %v2202, %v2200
  %v2287 = vpack.c.b16 %v2205, %v2203
  %v2288 = vpack.c.b16 %v2206, %v2204
  %v2289 = vpack.c.b16 %v2209, %v2207
  %v2290 = vpack.c.b16 %v2210, %v2208
  %v2291 = vpack.c.b16 %v2213, %v2211
  %v2292 = vpack.c.b16 %v2214, %v2212
  %v2293 = vpack.c.b16 %v2217, %v2215
  %v2294 = vpack.c.b16 %v2218, %v2216
  %v2295 = vpack.c.b16 %v2221, %v2219
  %v2296 = vpack.c.b16 %v2222, %v2220
  %v2297 = vpack.c.b16 %v2225, %v2223
  %v2298 = vpack.c.b16 %v2226, %v2224
  %v2299 = vpack.c.b16 %v2229, %v2227
  %v2300 = vpack.c.b16 %v2230, %v2228
  %v2301 = vpack.c.b16 %v2233, %v2231
  %v2302 = vpack.c.b16 %v2234, %v2232
  %v2303 = vpack.c.b16 %v2237, %v2235
  %v2304 = vpack.c.b16 %v2238, %v2236
  %v2305 = vpack.c.b16 %v2241, %v2239
  %v2306 = vpack.c.b16 %v2242, %v2240
  %2371 = vmatprep.subr.bf16.mxu0 %v2244
  %2372 = vmatpush1.bf16.msra.mxu0 %v2243
  %2373 = vmatprep.subr.bf16.mxu0 %v2246
  %2374 = vmatpush1.bf16.msra.mxu0 %v2245
  %2375 = vmatprep.subr.bf16.mxu0 %v2248
  %2376 = vmatpush1.bf16.msra.mxu0 %v2247
  %2377 = vmatprep.subr.bf16.mxu0 %v2250
  %2378 = vmatpush1.bf16.msra.mxu0 %v2249
  %2379 = vmatprep.subr.bf16.mxu0 %v2252
  %2380 = vmatpush1.bf16.msra.mxu0 %v2251
  %2381 = vmatprep.subr.bf16.mxu0 %v2254
  %2382 = vmatpush1.bf16.msra.mxu0 %v2253
  %2383 = vmatprep.subr.bf16.mxu0 %v2256
  %2384 = vmatpush1.bf16.msra.mxu0 %v2255
  %2385 = vmatprep.subr.bf16.mxu0 %v2258
  %2386 = vmatpush1.bf16.msra.mxu0 %v2257
  %2387 = vmatprep.subr.bf16.mxu0 %v2260
  %2388 = vmatpush1.bf16.msra.mxu0 %v2259
  %2389 = vmatprep.subr.bf16.mxu0 %v2262
  %2390 = vmatpush1.bf16.msra.mxu0 %v2261
  %2391 = vmatprep.subr.bf16.mxu0 %v2264
  %2392 = vmatpush1.bf16.msra.mxu0 %v2263
  %2393 = vmatprep.subr.bf16.mxu0 %v2266
  %2394 = vmatpush1.bf16.msra.mxu0 %v2265
  %2395 = vmatprep.subr.bf16.mxu0 %v2268
  %2396 = vmatpush1.bf16.msra.mxu0 %v2267
  %2397 = vmatprep.subr.bf16.mxu0 %v2270
  %2398 = vmatpush1.bf16.msra.mxu0 %v2269
  %2399 = vmatprep.subr.bf16.mxu0 %v2272
  %2400 = vmatpush1.bf16.msra.mxu0 %v2271
  %2401 = vmatprep.subr.bf16.mxu0 %v2274
  %2402 = vmatpush1.bf16.msra.mxu0 %v2273
  %2403 = vmatprep.mubr.bf16.mxu0 %v1972
  %2404 = vmatmul.mubr.bf16.gmra.mrb[0].mxu0 %v1971
  %v2405 = vpop.f32.mrb[0].mxu0
  %v2406 = vadd.f32 %v2044, %v2405
  %v2407 = vpop.f32.mrb[0].mxu0
  %v2408 = vadd.f32 %v2048, %v2407
  %v2409 = vpop.f32.mrb[0].mxu0
  %v2410 = vpop.f32.mrb[0].mxu0
  %2411 = vdwg.mxu0
  %2412 = vmatprep.subr.bf16.mxu0 %v2276
  %2413 = vmatpush1.bf16.msra.mxu0 %v2275
  %2414 = vmatprep.subr.bf16.mxu0 %v2278
  %2415 = vmatpush1.bf16.msra.mxu0 %v2277
  %2416 = vmatprep.subr.bf16.mxu0 %v2280
  %2417 = vmatpush1.bf16.msra.mxu0 %v2279
  %2418 = vmatprep.subr.bf16.mxu0 %v2282
  %2419 = vmatpush1.bf16.msra.mxu0 %v2281
  %2420 = vmatprep.subr.bf16.mxu0 %v2284
  %2421 = vmatpush1.bf16.msra.mxu0 %v2283
  %2422 = vmatprep.subr.bf16.mxu0 %v2286
  %2423 = vmatpush1.bf16.msra.mxu0 %v2285
  %2424 = vmatprep.subr.bf16.mxu0 %v2288
  %2425 = vmatpush1.bf16.msra.mxu0 %v2287
  %2426 = vmatprep.subr.bf16.mxu0 %v2290
  %2427 = vmatpush1.bf16.msra.mxu0 %v2289
  %2428 = vmatprep.subr.bf16.mxu0 %v2292
  %2429 = vmatpush1.bf16.msra.mxu0 %v2291
  %2430 = vmatprep.subr.bf16.mxu0 %v2294
  %2431 = vmatpush1.bf16.msra.mxu0 %v2293
  %2432 = vmatprep.subr.bf16.mxu0 %v2296
  %2433 = vmatpush1.bf16.msra.mxu0 %v2295
  %2434 = vmatprep.subr.bf16.mxu0 %v2298
  %2435 = vmatpush1.bf16.msra.mxu0 %v2297
  %2436 = vmatprep.subr.bf16.mxu0 %v2300
  %2437 = vmatpush1.bf16.msra.mxu0 %v2299
  %2438 = vmatprep.subr.bf16.mxu0 %v2302
  %2439 = vmatpush1.bf16.msra.mxu0 %v2301
  %2440 = vmatprep.subr.bf16.mxu0 %v2304
  %2441 = vmatpush1.bf16.msra.mxu0 %v2303
  %2442 = vmatprep.subr.bf16.mxu0 %v2306
  %2443 = vmatpush1.bf16.msra.mxu0 %v2305
  %2444 = vmatprep.mubr.bf16.mxu0 %v1974
  %2445 = vmatmul.mubr.bf16.gmra.mrb[0].mxu0 %v1973
  %v2446 = vpop.f32.mrb[0].mxu0
  %v2447 = vadd.f32 %v2406, %v2446
  %v2448 = vpop.f32.mrb[0].mxu0
  %v2449 = vadd.f32 %v2408, %v2448
  %v2450 = vpop.f32.mrb[0].mxu0
  %v2451 = vpop.f32.mrb[0].mxu0
  %2452 = vdwg.mxu0
  %v2453 = vmax.f32 %v2447, 0.0
  %v2454 = vmax.f32 %v2449, 0.0
  %v2455 = vpack.c.bf16 %v2453, %v2453
  %v2456 = vpack.c.bf16 %v2454, %v2454
  %v2457 = vld [vmem:[%s5] sm:$0xf]
  %v2458 = vld [vmem:[%s5 + $0x4] sm:$0xf]
  %v2459 = vld [vmem:[%s5 + $0x8] sm:$0xf]
  %v2460 = vld [vmem:[%s5 + $0xc] sm:$0xf]
  %v2461 = vld [vmem:[%s5 + $0x10] sm:$0xf]
  %v2462 = vld [vmem:[%s5 + $0x14] sm:$0xf]
  %v2463 = vld [vmem:[%s5 + $0x18] sm:$0xf]
  %v2464 = vld [vmem:[%s5 + $0x1c] sm:$0xf]
  %v2465 = vld [vmem:[%s5 + $0x20] sm:$0xf]
  %v2466 = vld [vmem:[%s5 + $0x24] sm:$0xf]
  %v2467 = vld [vmem:[%s5 + $0x28] sm:$0xf]
  %v2468 = vld [vmem:[%s5 + $0x2c] sm:$0xf]
  %v2469 = vld [vmem:[%s5 + $0x30] sm:$0xf]
  %v2470 = vld [vmem:[%s5 + $0x34] sm:$0xf]
  %v2471 = vld [vmem:[%s5 + $0x38] sm:$0xf]
  %v2472 = vld [vmem:[%s5 + $0x3c] sm:$0xf]
  %v2473 = vld [vmem:[%s5 + $0x40] sm:$0xf]
  %v2474 = vld [vmem:[%s5 + $0x44] sm:$0xf]
  %v2475 = vld [vmem:[%s5 + $0x48] sm:$0xf]
  %v2476 = vld [vmem:[%s5 + $0x4c] sm:$0xf]
  %v2477 = vld [vmem:[%s5 + $0x50] sm:$0xf]
  %v2478 = vld [vmem:[%s5 + $0x54] sm:$0xf]
  %v2479 = vld [vmem:[%s5 + $0x58] sm:$0xf]
  %v2480 = vld [vmem:[%s5 + $0x5c] sm:$0xf]
  %v2481 = vld [vmem:[%s5 + $0x60] sm:$0xf]
  %v2482 = vld [vmem:[%s5 + $0x64] sm:$0xf]
  %v2483 = vld [vmem:[%s5 + $0x68] sm:$0xf]
  %v2484 = vld [vmem:[%s5 + $0x6c] sm:$0xf]
  %v2485 = vld [vmem:[%s5 + $0x70] sm:$0xf]
  %v2486 = vld [vmem:[%s5 + $0x74] sm:$0xf]
  %v2487 = vld [vmem:[%s5 + $0x78] sm:$0xf]
  %v2488 = vld [vmem:[%s5 + $0x7c] sm:$0xf]
  %v2489 = vld [vmem:[%s6] sm:$0x1]
  %v2491 = vlaneseq
  %v2492 = vshrl.u32 %v2491, 7
  %v2493 = vsub.s32 0, %v2492
  %v2494 = vrot.slane %v2489, %v2493
  %v2528 = vunpack.c.l.b16 %v2457
  %v2529 = vunpack.c.l.b16 %v2458
  %v2530 = vunpack.c.l.b16 %v2459
  %v2531 = vunpack.c.l.b16 %v2460
  %v2532 = vunpack.c.l.b16 %v2461
  %v2533 = vunpack.c.l.b16 %v2462
  %v2534 = vunpack.c.l.b16 %v2463
  %v2535 = vunpack.c.l.b16 %v2464
  %v2536 = vunpack.c.l.b16 %v2465
  %v2537 = vunpack.c.l.b16 %v2466
  %v2538 = vunpack.c.l.b16 %v2467
  %v2539 = vunpack.c.l.b16 %v2468
  %v2540 = vunpack.c.l.b16 %v2469
  %v2541 = vunpack.c.l.b16 %v2470
  %v2542 = vunpack.c.l.b16 %v2471
  %v2543 = vunpack.c.l.b16 %v2472
  %v2544 = vunpack.c.l.b16 %v2473
  %v2545 = vunpack.c.l.b16 %v2474
  %v2546 = vunpack.c.l.b16 %v2475
  %v2547 = vunpack.c.l.b16 %v2476
  %v2548 = vunpack.c.l.b16 %v2477
  %v2549 = vunpack.c.l.b16 %v2478
  %v2550 = vunpack.c.l.b16 %v2479
  %v2551 = vunpack.c.l.b16 %v2480
  %v2552 = vunpack.c.l.b16 %v2481
  %v2553 = vunpack.c.l.b16 %v2482
  %v2554 = vunpack.c.l.b16 %v2483
  %v2555 = vunpack.c.l.b16 %v2484
  %v2556 = vunpack.c.l.b16 %v2485
  %v2557 = vunpack.c.l.b16 %v2486
  %v2558 = vunpack.c.l.b16 %v2487
  %v2559 = vunpack.c.l.b16 %v2488
  %v2560 = vpack.c.b16 %v2529, %v2528
  %v2561 = vpack.c.b16 %v2531, %v2530
  %v2562 = vpack.c.b16 %v2533, %v2532
  %v2563 = vpack.c.b16 %v2535, %v2534
  %v2564 = vpack.c.b16 %v2537, %v2536
  %v2565 = vpack.c.b16 %v2539, %v2538
  %v2566 = vpack.c.b16 %v2541, %v2540
  %v2567 = vpack.c.b16 %v2543, %v2542
  %v2568 = vpack.c.b16 %v2545, %v2544
  %v2569 = vpack.c.b16 %v2547, %v2546
  %v2570 = vpack.c.b16 %v2549, %v2548
  %v2571 = vpack.c.b16 %v2551, %v2550
  %v2572 = vpack.c.b16 %v2553, %v2552
  %v2573 = vpack.c.b16 %v2555, %v2554
  %v2574 = vpack.c.b16 %v2557, %v2556
  %v2575 = vpack.c.b16 %v2559, %v2558
  %2592 = vmatprep.subr.bf16.mxu0 0
  %2593 = vmatpush1.bf16.msra.mxu0 %v2560
  %2594 = vmatprep.subr.bf16.mxu0 0
  %2595 = vmatpush1.bf16.msra.mxu0 %v2561
  %2596 = vmatprep.subr.bf16.mxu0 0
  %2597 = vmatpush1.bf16.msra.mxu0 %v2562
  %2598 = vmatprep.subr.bf16.mxu0 0
  %2599 = vmatpush1.bf16.msra.mxu0 %v2563
  %2600 = vmatprep.subr.bf16.mxu0 0
  %2601 = vmatpush1.bf16.msra.mxu0 %v2564
  %2602 = vmatprep.subr.bf16.mxu0 0
  %2603 = vmatpush1.bf16.msra.mxu0 %v2565
  %2604 = vmatprep.subr.bf16.mxu0 0
  %2605 = vmatpush1.bf16.msra.mxu0 %v2566
  %2606 = vmatprep.subr.bf16.mxu0 0
  %2607 = vmatpush1.bf16.msra.mxu0 %v2567
  %2608 = vmatprep.subr.bf16.mxu0 0
  %2609 = vmatpush1.bf16.msra.mxu0 %v2568
  %2610 = vmatprep.subr.bf16.mxu0 0
  %2611 = vmatpush1.bf16.msra.mxu0 %v2569
  %2612 = vmatprep.subr.bf16.mxu0 0
  %2613 = vmatpush1.bf16.msra.mxu0 %v2570
  %2614 = vmatprep.subr.bf16.mxu0 0
  %2615 = vmatpush1.bf16.msra.mxu0 %v2571
  %2616 = vmatprep.subr.bf16.mxu0 0
  %2617 = vmatpush1.bf16.msra.mxu0 %v2572
  %2618 = vmatprep.subr.bf16.mxu0 0
  %2619 = vmatpush1.bf16.msra.mxu0 %v2573
  %2620 = vmatprep.subr.bf16.mxu0 0
  %2621 = vmatpush1.bf16.msra.mxu0 %v2574
  %2622 = vmatprep.subr.bf16.mxu0 0
  %2623 = vmatpush1.bf16.msra.mxu0 %v2575
  %2624 = vmatprep.mubr.bf16.mxu0 %v2456
  %2625 = vmatmul.mubr.bf16.gmra.mrb[0].mxu0 %v2455
  %v2626 = vpop.f32.mrb[0].mxu0
  %v2627 = vadd.f32 %v2494, %v2626
  %v2628 = vpop.f32.mrb[0].mxu0
  %v2629 = vpop.f32.mrb[0].mxu0
  %v2630 = vpop.f32.mrb[0].mxu0
  %2631 = vdwg.mxu0
  %2632 = vst [vmem:[%s7] sm:$0x3] %v2627
  // Predicated region
  $region30: #{_lambda_.5} parent=0 // pred_check
    _
  $region31: #{_lambda_.5} parent=0 // pred_check_branch
    %2634 = sbr.rel (0) target = $region33
  $region32: #{_lambda_.5} parent=0 // pred_region
    _
  $region33: #{_lambda_.5} parent=0 // pred_fallthru
    _
  // Predicated region
  $region34: #{_lambda_.5} parent=0 // pred_check
    _
  $region35: #{_lambda_.5} parent=0 // pred_check_branch
    %2636 = sbr.rel (0) target = $region37
  $region36: #{_lambda_.5} parent=0 // pred_region
    _
  $region37: #{_lambda_.5} parent=0 // pred_fallthru
    _

// kernel: _lambda_.7
$region0: #{_lambda_.7}
  #allocation0 [shape = 'u32[]', space=smem, size = 0x4, offset = 0x4, fixed_abs, tag = 'smem constant byte address 0x4 - core index']
  #allocation1 [shape = 'u32[144,128]{1,0:T(1,128)}', space=vmem, size = 0x12000, scoped, tag = 'internal scratch']
  %s0 = inlined_call_operand.vmem [shape: f32[2,1024], index: 0, kind: input, shape index: {}]
  %s1 = inlined_call_operand.vmem [shape: bf16[1024,512], index: 1, kind: input, shape index: {}]
  %s2 = inlined_call_operand.vmem [shape: f32[1,512], index: 2, kind: input, shape index: {}]
  %s3 = inlined_call_operand.vmem [shape: bf16[512,256], index: 3, kind: input, shape index: {}]
  %s4 = inlined_call_operand.vmem [shape: f32[1,256], index: 4, kind: input, shape index: {}]
  %s5 = inlined_call_operand.vmem [shape: bf16[256,128], index: 5, kind: input, shape index: {}]
  %s6 = inlined_call_operand.vmem [shape: f32[1,128], index: 6, kind: input, shape index: {}]
  %s7 = inlined_call_operand.hbm [shape: f32[2,128], index: 7, kind: output, shape index: {}]
  %s8 = sld [smem:[#allocation0]]
  $region38: #{_lambda_.7} parent=0
    _
  %s10 = ssub.s32 1, %s8
  %s11 = scalar_select 0, %s10, %s8
  $region1: #{_lambda_.7} parent=0
    #allocation2 [shape = 'u8[1024]{0}', space=vmem, size = 0x400, scoped, tag = 'output window, operand 0, single buffered']
    #allocation3 [shape = 's32[1]{0}', space=sflag, size = 0x4, scoped, tag = 'scoped memory for _lambda_.7']
    %12 = vsyncpa [#allocation3], 0
    // Predicated region
    $region2: #{_lambda_.7} parent=1 // pred_check
      _
    $region3: #{_lambda_.7} parent=1 // pred_check_branch
      %14 = sbr.rel (0) target = $region5
    $region4: #{_lambda_.7} parent=1 // pred_region
      _
    $region5: #{_lambda_.7} parent=1 // pred_fallthru
      _
    // Predicated region
    $region6: #{_lambda_.7} parent=1 // pred_check
      _
    $region7: #{_lambda_.7} parent=1 // pred_check_branch
      %16 = sbr.rel (0) target = $region9
    $region8: #{_lambda_.7} parent=1 // pred_region
      _
    $region9: #{_lambda_.7} parent=1 // pred_fallthru
      _
    // Predicated region
    $region10: #{_lambda_.7} parent=1 // pred_check
      _
    $region11: #{_lambda_.7} parent=1 // pred_check_branch
      %18 = sbr.rel (0) target = $region13
    $region12: #{_lambda_.7} parent=1 // pred_region
      _
    $region13: #{_lambda_.7} parent=1 // pred_fallthru
      _
    // Predicated region
    $region14: #{_lambda_.7} parent=1 // pred_check
      _
    $region15: #{_lambda_.7} parent=1 // pred_check_branch
      %20 = sbr.rel (0) target = $region17
    $region16: #{_lambda_.7} parent=1 // pred_region
      _
    $region17: #{_lambda_.7} parent=1 // pred_fallthru
      _
    // Predicated region
    $region18: #{_lambda_.7} parent=1 // pred_check
      _
    $region19: #{_lambda_.7} parent=1 // pred_check_branch
      %22 = sbr.rel (0) target = $region21
    $region20: #{_lambda_.7} parent=1 // pred_region
      _
    $region21: #{_lambda_.7} parent=1 // pred_fallthru
      _
    // Predicated region
    $region22: #{_lambda_.7} parent=1 // pred_check
      _
    $region23: #{_lambda_.7} parent=1 // pred_check_branch
      %24 = sbr.rel (0) target = $region25
    $region24: #{_lambda_.7} parent=1 // pred_region
      _
    $region25: #{_lambda_.7} parent=1 // pred_fallthru
      _
    // Predicated region
    $region26: #{_lambda_.7} parent=1 // pred_check
      _
    $region27: #{_lambda_.7} parent=1 // pred_check_branch
      %26 = sbr.rel (0) target = $region29
    $region28: #{_lambda_.7} parent=1 // pred_region
      _
    $region29: #{_lambda_.7} parent=1 // pred_fallthru
      _
    %v28 = vld [vmem:[%s0] sm:$0xff]
    %v29 = vld [vmem:[%s0 + $0x8] sm:$0xff]
    %v32 = vcombine.high %v28, %v28
    %v34 = vunpack.c.l.s4 1983009808
    %v35 = vunpack.c.0.s8 %v34
    %v36 = vlaneseq
    %v37 = vshrl.u32 %v36, 7
    %v38 = vsub.s32 %v35, %v37
    %v39 = vrot.slane %v28, %v38
    %v41 = vunpack.c.l.s4 1983009808
    %v42 = vunpack.c.0.s8 %v41
    %v43 = vlaneseq
    %v44 = vshrl.u32 %v43, 7
    %v45 = vsub.s32 %v42, %v44
    %v46 = vrot.slane %v32, %v45
    %v47 = vcombine.high %v39, %v39
    %v48 = vcombine.high %v46, %v46
    %v49 = vcombine.high %v29, %v29
    %v51 = vunpack.c.l.s4 1983009808
    %v52 = vunpack.c.0.s8 %v51
    %v53 = vlaneseq
    %v54 = vshrl.u32 %v53, 7
    %v55 = vsub.s32 %v52, %v54
    %v56 = vrot.slane %v29, %v55
    %v58 = vunpack.c.l.s4 1983009808
    %v59 = vunpack.c.0.s8 %v58
    %v60 = vlaneseq
    %v61 = vshrl.u32 %v60, 7
    %v62 = vsub.s32 %v59, %v61
    %v63 = vrot.slane %v49, %v62
    %v64 = vcombine.high %v56, %v56
    %v65 = vcombine.high %v63, %v63
    %v74 = vpack.c.bf16 %v39, %v39
    %v75 = vpack.c.bf16 %v47, %v47
    %v76 = vpack.c.bf16 %v46, %v46
    %v77 = vpack.c.bf16 %v48, %v48
    %v78 = vpack.c.bf16 %v56, %v56
    %v79 = vpack.c.bf16 %v64, %v64
    %v80 = vpack.c.bf16 %v63, %v63
    %v81 = vpack.c.bf16 %v65, %v65
    %v82 = vld [vmem:[%s1] sm:$0xff]
    %v83 = vld [vmem:[%s1 + $0x8] sm:$0xff]
    %v84 = vld [vmem:[%s1 + $0x10] sm:$0xff]
    %v85 = vld [vmem:[%s1 + $0x18] sm:$0xff]
    %v86 = vld [vmem:[%s1 + $0x20] sm:$0xff]
    %v87 = vld [vmem:[%s1 + $0x28] sm:$0xff]
    %v88 = vld [vmem:[%s1 + $0x30] sm:$0xff]
    %v89 = vld [vmem:[%s1 + $0x38] sm:$0xff]
    %v90 = vld [vmem:[%s1 + $0x40] sm:$0xff]
    %v91 = vld [vmem:[%s1 + $0x48] sm:$0xff]
    %v92 = vld [vmem:[%s1 + $0x50] sm:$0xff]
    %v93 = vld [vmem:[%s1 + $0x58] sm:$0xff]
    %v94 = vld [vmem:[%s1 + $0x60] sm:$0xff]
    %v95 = vld [vmem:[%s1 + $0x68] sm:$0xff]
    %v96 = vld [vmem:[%s1 + $0x70] sm:$0xff]
    %v97 = vld [vmem:[%s1 + $0x78] sm:$0xff]
    %v98 = vld [vmem:[%s1 + $0x80] sm:$0xff]
    %v99 = vld [vmem:[%s1 + $0x88] sm:$0xff]
    %v100 = vld [vmem:[%s1 + $0x90] sm:$0xff]
    %v101 = vld [vmem:[%s1 + $0x98] sm:$0xff]
    %v102 = vld [vmem:[%s1 + $0xa0] sm:$0xff]
    %v103 = vld [vmem:[%s1 + $0xa8] sm:$0xff]
    %v104 = vld [vmem:[%s1 + $0xb0] sm:$0xff]
    %v105 = vld [vmem:[%s1 + $0xb8] sm:$0xff]
    %v106 = vld [vmem:[%s1 + $0xc0] sm:$0xff]
    %v107 = vld [vmem:[%s1 + $0xc8] sm:$0xff]
    %v108 = vld [vmem:[%s1 + $0xd0] sm:$0xff]
    %v109 = vld [vmem:[%s1 + $0xd8] sm:$0xff]
    %v110 = vld [vmem:[%s1 + $0xe0] sm:$0xff]
    %v111 = vld [vmem:[%s1 + $0xe8] sm:$0xff]
    %v112 = vld [vmem:[%s1 + $0xf0] sm:$0xff]
    %v113 = vld [vmem:[%s1 + $0xf8] sm:$0xff]
    %v114 = vld [vmem:[%s1 + $0x100] sm:$0xff]
    %v115 = vld [vmem:[%s1 + $0x108] sm:$0xff]
    %v116 = vld [vmem:[%s1 + $0x110] sm:$0xff]
    %v117 = vld [vmem:[%s1 + $0x118] sm:$0xff]
    %v118 = vld [vmem:[%s1 + $0x120] sm:$0xff]
    %v119 = vld [vmem:[%s1 + $0x128] sm:$0xff]
    %v120 = vld [vmem:[%s1 + $0x130] sm:$0xff]
    %v121 = vld [vmem:[%s1 + $0x138] sm:$0xff]
    %v122 = vld [vmem:[%s1 + $0x140] sm:$0xff]
    %v123 = vld [vmem:[%s1 + $0x148] sm:$0xff]
    %v124 = vld [vmem:[%s1 + $0x150] sm:$0xff]
    %v125 = vld [vmem:[%s1 + $0x158] sm:$0xff]
    %v126 = vld [vmem:[%s1 + $0x160] sm:$0xff]
    %v127 = vld [vmem:[%s1 + $0x168] sm:$0xff]
    %v128 = vld [vmem:[%s1 + $0x170] sm:$0xff]
    %v129 = vld [vmem:[%s1 + $0x178] sm:$0xff]
    %v130 = vld [vmem:[%s1 + $0x180] sm:$0xff]
    %v131 = vld [vmem:[%s1 + $0x188] sm:$0xff]
    %v132 = vld [vmem:[%s1 + $0x190] sm:$0xff]
    %v133 = vld [vmem:[%s1 + $0x198] sm:$0xff]
    %v134 = vld [vmem:[%s1 + $0x1a0] sm:$0xff]
    %v135 = vld [vmem:[%s1 + $0x1a8] sm:$0xff]
    %v136 = vld [vmem:[%s1 + $0x1b0] sm:$0xff]
    %v137 = vld [vmem:[%s1 + $0x1b8] sm:$0xff]
    %v138 = vld [vmem:[%s1 + $0x1c0] sm:$0xff]
    %v139 = vld [vmem:[%s1 + $0x1c8] sm:$0xff]
    %v140 = vld [vmem:[%s1 + $0x1d0] sm:$0xff]
    %v141 = vld [vmem:[%s1 + $0x1d8] sm:$0xff]
    %v142 = vld [vmem:[%s1 + $0x1e0] sm:$0xff]
    %v143 = vld [vmem:[%s1 + $0x1e8] sm:$0xff]
    %v144 = vld [vmem:[%s1 + $0x1f0] sm:$0xff]
    %v145 = vld [vmem:[%s1 + $0x1f8] sm:$0xff]
    %v146 = vld [vmem:[%s1 + $0x200] sm:$0xff]
    %v147 = vld [vmem:[%s1 + $0x208] sm:$0xff]
    %v148 = vld [vmem:[%s1 + $0x210] sm:$0xff]
    %v149 = vld [vmem:[%s1 + $0x218] sm:$0xff]
    %v150 = vld [vmem:[%s1 + $0x220] sm:$0xff]
    %v151 = vld [vmem:[%s1 + $0x228] sm:$0xff]
    %v152 = vld [vmem:[%s1 + $0x230] sm:$0xff]
    %v153 = vld [vmem:[%s1 + $0x238] sm:$0xff]
    %v154 = vld [vmem:[%s1 + $0x240] sm:$0xff]
    %v155 = vld [vmem:[%s1 + $0x248] sm:$0xff]
    %v156 = vld [vmem:[%s1 + $0x250] sm:$0xff]
    %v157 = vld [vmem:[%s1 + $0x258] sm:$0xff]
    %v158 = vld [vmem:[%s1 + $0x260] sm:$0xff]
    %v159 = vld [vmem:[%s1 + $0x268] sm:$0xff]
    %v160 = vld [vmem:[%s1 + $0x270] sm:$0xff]
    %v161 = vld [vmem:[%s1 + $0x278] sm:$0xff]
    %v162 = vld [vmem:[%s1 + $0x280] sm:$0xff]
    %v163 = vld [vmem:[%s1 + $0x288] sm:$0xff]
    %v164 = vld [vmem:[%s1 + $0x290] sm:$0xff]
    %v165 = vld [vmem:[%s1 + $0x298] sm:$0xff]
    %v166 = vld [vmem:[%s1 + $0x2a0] sm:$0xff]
    %v167 = vld [vmem:[%s1 + $0x2a8] sm:$0xff]
    %v168 = vld [vmem:[%s1 + $0x2b0] sm:$0xff]
    %v169 = vld [vmem:[%s1 + $0x2b8] sm:$0xff]
    %v170 = vld [vmem:[%s1 + $0x2c0] sm:$0xff]
    %v171 = vld [vmem:[%s1 + $0x2c8] sm:$0xff]
    %v172 = vld [vmem:[%s1 + $0x2d0] sm:$0xff]
    %v173 = vld [vmem:[%s1 + $0x2d8] sm:$0xff]
    %v174 = vld [vmem:[%s1 + $0x2e0] sm:$0xff]
    %v175 = vld [vmem:[%s1 + $0x2e8] sm:$0xff]
    %v176 = vld [vmem:[%s1 + $0x2f0] sm:$0xff]
    %v177 = vld [vmem:[%s1 + $0x2f8] sm:$0xff]
    %v178 = vld [vmem:[%s1 + $0x300] sm:$0xff]
    %v179 = vld [vmem:[%s1 + $0x308] sm:$0xff]
    %v180 = vld [vmem:[%s1 + $0x310] sm:$0xff]
    %v181 = vld [vmem:[%s1 + $0x318] sm:$0xff]
    %v182 = vld [vmem:[%s1 + $0x320] sm:$0xff]
    %v183 = vld [vmem:[%s1 + $0x328] sm:$0xff]
    %v184 = vld [vmem:[%s1 + $0x330] sm:$0xff]
    %v185 = vld [vmem:[%s1 + $0x338] sm:$0xff]
    %v186 = vld [vmem:[%s1 + $0x340] sm:$0xff]
    %v187 = vld [vmem:[%s1 + $0x348] sm:$0xff]
    %v188 = vld [vmem:[%s1 + $0x350] sm:$0xff]
    %v189 = vld [vmem:[%s1 + $0x358] sm:$0xff]
    %v190 = vld [vmem:[%s1 + $0x360] sm:$0xff]
    %v191 = vld [vmem:[%s1 + $0x368] sm:$0xff]
    %v192 = vld [vmem:[%s1 + $0x370] sm:$0xff]
    %v193 = vld [vmem:[%s1 + $0x378] sm:$0xff]
    %v194 = vld [vmem:[%s1 + $0x380] sm:$0xff]
    %v195 = vld [vmem:[%s1 + $0x388] sm:$0xff]
    %v196 = vld [vmem:[%s1 + $0x390] sm:$0xff]
    %v197 = vld [vmem:[%s1 + $0x398] sm:$0xff]
    %v198 = vld [vmem:[%s1 + $0x3a0] sm:$0xff]
    %v199 = vld [vmem:[%s1 + $0x3a8] sm:$0xff]
    %v200 = vld [vmem:[%s1 + $0x3b0] sm:$0xff]
    %v201 = vld [vmem:[%s1 + $0x3b8] sm:$0xff]
    %v202 = vld [vmem:[%s1 + $0x3c0] sm:$0xff]
    %v203 = vld [vmem:[%s1 + $0x3c8] sm:$0xff]
    %v204 = vld [vmem:[%s1 + $0x3d0] sm:$0xff]
    %v205 = vld [vmem:[%s1 + $0x3d8] sm:$0xff]
    %v206 = vld [vmem:[%s1 + $0x3e0] sm:$0xff]
    %v207 = vld [vmem:[%s1 + $0x3e8] sm:$0xff]
    %v208 = vld [vmem:[%s1 + $0x3f0] sm:$0xff]
    %v209 = vld [vmem:[%s1 + $0x3f8] sm:$0xff]
    %v210 = vld [vmem:[%s1 + $0x400] sm:$0xff]
    %v211 = vld [vmem:[%s1 + $0x408] sm:$0xff]
    %v212 = vld [vmem:[%s1 + $0x410] sm:$0xff]
    %v213 = vld [vmem:[%s1 + $0x418] sm:$0xff]
    %v214 = vld [vmem:[%s1 + $0x420] sm:$0xff]
    %v215 = vld [vmem:[%s1 + $0x428] sm:$0xff]
    %v216 = vld [vmem:[%s1 + $0x430] sm:$0xff]
    %v217 = vld [vmem:[%s1 + $0x438] sm:$0xff]
    %v218 = vld [vmem:[%s1 + $0x440] sm:$0xff]
    %v219 = vld [vmem:[%s1 + $0x448] sm:$0xff]
    %v220 = vld [vmem:[%s1 + $0x450] sm:$0xff]
    %v221 = vld [vmem:[%s1 + $0x458] sm:$0xff]
    %v222 = vld [vmem:[%s1 + $0x460] sm:$0xff]
    %v223 = vld [vmem:[%s1 + $0x468] sm:$0xff]
    %v224 = vld [vmem:[%s1 + $0x470] sm:$0xff]
    %v225 = vld [vmem:[%s1 + $0x478] sm:$0xff]
    %v226 = vld [vmem:[%s1 + $0x480] sm:$0xff]
    %v227 = vld [vmem:[%s1 + $0x488] sm:$0xff]
    %v228 = vld [vmem:[%s1 + $0x490] sm:$0xff]
    %v229 = vld [vmem:[%s1 + $0x498] sm:$0xff]
    %v230 = vld [vmem:[%s1 + $0x4a0] sm:$0xff]
    %v231 = vld [vmem:[%s1 + $0x4a8] sm:$0xff]
    %v232 = vld [vmem:[%s1 + $0x4b0] sm:$0xff]
    %v233 = vld [vmem:[%s1 + $0x4b8] sm:$0xff]
    %v234 = vld [vmem:[%s1 + $0x4c0] sm:$0xff]
    %v235 = vld [vmem:[%s1 + $0x4c8] sm:$0xff]
    %v236 = vld [vmem:[%s1 + $0x4d0] sm:$0xff]
    %v237 = vld [vmem:[%s1 + $0x4d8] sm:$0xff]
    %v238 = vld [vmem:[%s1 + $0x4e0] sm:$0xff]
    %v239 = vld [vmem:[%s1 + $0x4e8] sm:$0xff]
    %v240 = vld [vmem:[%s1 + $0x4f0] sm:$0xff]
    %v241 = vld [vmem:[%s1 + $0x4f8] sm:$0xff]
    %v242 = vld [vmem:[%s1 + $0x500] sm:$0xff]
    %v243 = vld [vmem:[%s1 + $0x508] sm:$0xff]
    %v244 = vld [vmem:[%s1 + $0x510] sm:$0xff]
    %v245 = vld [vmem:[%s1 + $0x518] sm:$0xff]
    %v246 = vld [vmem:[%s1 + $0x520] sm:$0xff]
    %v247 = vld [vmem:[%s1 + $0x528] sm:$0xff]
    %v248 = vld [vmem:[%s1 + $0x530] sm:$0xff]
    %v249 = vld [vmem:[%s1 + $0x538] sm:$0xff]
    %v250 = vld [vmem:[%s1 + $0x540] sm:$0xff]
    %v251 = vld [vmem:[%s1 + $0x548] sm:$0xff]
    %v252 = vld [vmem:[%s1 + $0x550] sm:$0xff]
    %v253 = vld [vmem:[%s1 + $0x558] sm:$0xff]
    %v254 = vld [vmem:[%s1 + $0x560] sm:$0xff]
    %v255 = vld [vmem:[%s1 + $0x568] sm:$0xff]
    %v256 = vld [vmem:[%s1 + $0x570] sm:$0xff]
    %v257 = vld [vmem:[%s1 + $0x578] sm:$0xff]
    %v258 = vld [vmem:[%s1 + $0x580] sm:$0xff]
    %v259 = vld [vmem:[%s1 + $0x588] sm:$0xff]
    %v260 = vld [vmem:[%s1 + $0x590] sm:$0xff]
    %v261 = vld [vmem:[%s1 + $0x598] sm:$0xff]
    %v262 = vld [vmem:[%s1 + $0x5a0] sm:$0xff]
    %v263 = vld [vmem:[%s1 + $0x5a8] sm:$0xff]
    %v264 = vld [vmem:[%s1 + $0x5b0] sm:$0xff]
    %v265 = vld [vmem:[%s1 + $0x5b8] sm:$0xff]
    %v266 = vld [vmem:[%s1 + $0x5c0] sm:$0xff]
    %v267 = vld [vmem:[%s1 + $0x5c8] sm:$0xff]
    %v268 = vld [vmem:[%s1 + $0x5d0] sm:$0xff]
    %v269 = vld [vmem:[%s1 + $0x5d8] sm:$0xff]
    %v270 = vld [vmem:[%s1 + $0x5e0] sm:$0xff]
    %v271 = vld [vmem:[%s1 + $0x5e8] sm:$0xff]
    %v272 = vld [vmem:[%s1 + $0x5f0] sm:$0xff]
    %v273 = vld [vmem:[%s1 + $0x5f8] sm:$0xff]
    %v274 = vld [vmem:[%s1 + $0x600] sm:$0xff]
    %v275 = vld [vmem:[%s1 + $0x608] sm:$0xff]
    %v276 = vld [vmem:[%s1 + $0x610] sm:$0xff]
    %v277 = vld [vmem:[%s1 + $0x618] sm:$0xff]
    %v278 = vld [vmem:[%s1 + $0x620] sm:$0xff]
    %v279 = vld [vmem:[%s1 + $0x628] sm:$0xff]
    %v280 = vld [vmem:[%s1 + $0x630] sm:$0xff]
    %v281 = vld [vmem:[%s1 + $0x638] sm:$0xff]
    %v282 = vld [vmem:[%s1 + $0x640] sm:$0xff]
    %v283 = vld [vmem:[%s1 + $0x648] sm:$0xff]
    %v284 = vld [vmem:[%s1 + $0x650] sm:$0xff]
    %v285 = vld [vmem:[%s1 + $0x658] sm:$0xff]
    %v286 = vld [vmem:[%s1 + $0x660] sm:$0xff]
    %v287 = vld [vmem:[%s1 + $0x668] sm:$0xff]
    %v288 = vld [vmem:[%s1 + $0x670] sm:$0xff]
    %v289 = vld [vmem:[%s1 + $0x678] sm:$0xff]
    %v290 = vld [vmem:[%s1 + $0x680] sm:$0xff]
    %v291 = vld [vmem:[%s1 + $0x688] sm:$0xff]
    %v292 = vld [vmem:[%s1 + $0x690] sm:$0xff]
    %v293 = vld [vmem:[%s1 + $0x698] sm:$0xff]
    %v294 = vld [vmem:[%s1 + $0x6a0] sm:$0xff]
    %v295 = vld [vmem:[%s1 + $0x6a8] sm:$0xff]
    %v296 = vld [vmem:[%s1 + $0x6b0] sm:$0xff]
    %v297 = vld [vmem:[%s1 + $0x6b8] sm:$0xff]
    %v298 = vld [vmem:[%s1 + $0x6c0] sm:$0xff]
    %v299 = vld [vmem:[%s1 + $0x6c8] sm:$0xff]
    %v300 = vld [vmem:[%s1 + $0x6d0] sm:$0xff]
    %v301 = vld [vmem:[%s1 + $0x6d8] sm:$0xff]
    %v302 = vld [vmem:[%s1 + $0x6e0] sm:$0xff]
    %v303 = vld [vmem:[%s1 + $0x6e8] sm:$0xff]
    %v304 = vld [vmem:[%s1 + $0x6f0] sm:$0xff]
    %v305 = vld [vmem:[%s1 + $0x6f8] sm:$0xff]
    %v306 = vld [vmem:[%s1 + $0x700] sm:$0xff]
    %v307 = vld [vmem:[%s1 + $0x708] sm:$0xff]
    %v308 = vld [vmem:[%s1 + $0x710] sm:$0xff]
    %v309 = vld [vmem:[%s1 + $0x718] sm:$0xff]
    %v310 = vld [vmem:[%s1 + $0x720] sm:$0xff]
    %v311 = vld [vmem:[%s1 + $0x728] sm:$0xff]
    %v312 = vld [vmem:[%s1 + $0x730] sm:$0xff]
    %v313 = vld [vmem:[%s1 + $0x738] sm:$0xff]
    %v314 = vld [vmem:[%s1 + $0x740] sm:$0xff]
    %v315 = vld [vmem:[%s1 + $0x748] sm:$0xff]
    %v316 = vld [vmem:[%s1 + $0x750] sm:$0xff]
    %v317 = vld [vmem:[%s1 + $0x758] sm:$0xff]
    %v318 = vld [vmem:[%s1 + $0x760] sm:$0xff]
    %v319 = vld [vmem:[%s1 + $0x768] sm:$0xff]
    %v320 = vld [vmem:[%s1 + $0x770] sm:$0xff]
    %v321 = vld [vmem:[%s1 + $0x778] sm:$0xff]
    %v322 = vld [vmem:[%s1 + $0x780] sm:$0xff]
    %v323 = vld [vmem:[%s1 + $0x788] sm:$0xff]
    %v324 = vld [vmem:[%s1 + $0x790] sm:$0xff]
    %v325 = vld [vmem:[%s1 + $0x798] sm:$0xff]
    %v326 = vld [vmem:[%s1 + $0x7a0] sm:$0xff]
    %v327 = vld [vmem:[%s1 + $0x7a8] sm:$0xff]
    %v328 = vld [vmem:[%s1 + $0x7b0] sm:$0xff]
    %v329 = vld [vmem:[%s1 + $0x7b8] sm:$0xff]
    %v330 = vld [vmem:[%s1 + $0x7c0] sm:$0xff]
    %v331 = vld [vmem:[%s1 + $0x7c8] sm:$0xff]
    %v332 = vld [vmem:[%s1 + $0x7d0] sm:$0xff]
    %v333 = vld [vmem:[%s1 + $0x7d8] sm:$0xff]
    %v334 = vld [vmem:[%s1 + $0x7e0] sm:$0xff]
    %v335 = vld [vmem:[%s1 + $0x7e8] sm:$0xff]
    %v336 = vld [vmem:[%s1 + $0x7f0] sm:$0xff]
    %v337 = vld [vmem:[%s1 + $0x7f8] sm:$0xff]
    %v338 = vld [vmem:[%s2] sm:$0xf]
    %v340 = vlaneseq
    %v341 = vshrl.u32 %v340, 7
    %v342 = vsub.s32 0, %v341
    %v343 = vrot.slane %v338, %v342
    %v344 = vlaneseq
    %v345 = vshrl.u32 %v344, 7
    %v346 = vsub.s32 1, %v345
    %v347 = vrot.slane %v338, %v346
    %v348 = vlaneseq
    %v349 = vshrl.u32 %v348, 7
    %v350 = vsub.s32 2, %v349
    %v351 = vrot.slane %v338, %v350
    %v352 = vlaneseq
    %v353 = vshrl.u32 %v352, 7
    %v354 = vsub.s32 3, %v353
    %v355 = vrot.slane %v338, %v354
    %v616 = vunpack.c.l.b16 %v82
    %v617 = vunpack.c.h.b16 %v82
    %v618 = vunpack.c.l.b16 %v83
    %v619 = vunpack.c.h.b16 %v83
    %v620 = vunpack.c.l.b16 %v84
    %v621 = vunpack.c.h.b16 %v84
    %v622 = vunpack.c.l.b16 %v85
    %v623 = vunpack.c.h.b16 %v85
    %v624 = vunpack.c.l.b16 %v86
    %v625 = vunpack.c.h.b16 %v86
    %v626 = vunpack.c.l.b16 %v87
    %v627 = vunpack.c.h.b16 %v87
    %v628 = vunpack.c.l.b16 %v88
    %v629 = vunpack.c.h.b16 %v88
    %v630 = vunpack.c.l.b16 %v89
    %v631 = vunpack.c.h.b16 %v89
    %v632 = vunpack.c.l.b16 %v90
    %v633 = vunpack.c.h.b16 %v90
    %v634 = vunpack.c.l.b16 %v91
    %v635 = vunpack.c.h.b16 %v91
    %v636 = vunpack.c.l.b16 %v92
    %v637 = vunpack.c.h.b16 %v92
    %v638 = vunpack.c.l.b16 %v93
    %v639 = vunpack.c.h.b16 %v93
    %v640 = vunpack.c.l.b16 %v94
    %v641 = vunpack.c.h.b16 %v94
    %v642 = vunpack.c.l.b16 %v95
    %v643 = vunpack.c.h.b16 %v95
    %v644 = vunpack.c.l.b16 %v96
    %v645 = vunpack.c.h.b16 %v96
    %v646 = vunpack.c.l.b16 %v97
    %v647 = vunpack.c.h.b16 %v97
    %v648 = vunpack.c.l.b16 %v98
    %v649 = vunpack.c.h.b16 %v98
    %v650 = vunpack.c.l.b16 %v99
    %v651 = vunpack.c.h.b16 %v99
    %v652 = vunpack.c.l.b16 %v100
    %v653 = vunpack.c.h.b16 %v100
    %v654 = vunpack.c.l.b16 %v101
    %v655 = vunpack.c.h.b16 %v101
    %v656 = vunpack.c.l.b16 %v102
    %v657 = vunpack.c.h.b16 %v102
    %v658 = vunpack.c.l.b16 %v103
    %v659 = vunpack.c.h.b16 %v103
    %v660 = vunpack.c.l.b16 %v104
    %v661 = vunpack.c.h.b16 %v104
    %v662 = vunpack.c.l.b16 %v105
    %v663 = vunpack.c.h.b16 %v105
    %v664 = vunpack.c.l.b16 %v106
    %v665 = vunpack.c.h.b16 %v106
    %v666 = vunpack.c.l.b16 %v107
    %v667 = vunpack.c.h.b16 %v107
    %v668 = vunpack.c.l.b16 %v108
    %v669 = vunpack.c.h.b16 %v108
    %v670 = vunpack.c.l.b16 %v109
    %v671 = vunpack.c.h.b16 %v109
    %v672 = vunpack.c.l.b16 %v110
    %v673 = vunpack.c.h.b16 %v110
    %v674 = vunpack.c.l.b16 %v111
    %v675 = vunpack.c.h.b16 %v111
    %v676 = vunpack.c.l.b16 %v112
    %v677 = vunpack.c.h.b16 %v112
    %v678 = vunpack.c.l.b16 %v113
    %v679 = vunpack.c.h.b16 %v113
    %v680 = vunpack.c.l.b16 %v114
    %v681 = vunpack.c.h.b16 %v114
    %v682 = vunpack.c.l.b16 %v115
    %v683 = vunpack.c.h.b16 %v115
    %v684 = vunpack.c.l.b16 %v116
    %v685 = vunpack.c.h.b16 %v116
    %v686 = vunpack.c.l.b16 %v117
    %v687 = vunpack.c.h.b16 %v117
    %v688 = vunpack.c.l.b16 %v118
    %v689 = vunpack.c.h.b16 %v118
    %v690 = vunpack.c.l.b16 %v119
    %v691 = vunpack.c.h.b16 %v119
    %v692 = vunpack.c.l.b16 %v120
    %v693 = vunpack.c.h.b16 %v120
    %v694 = vunpack.c.l.b16 %v121
    %v695 = vunpack.c.h.b16 %v121
    %v696 = vunpack.c.l.b16 %v122
    %v697 = vunpack.c.h.b16 %v122
    %v698 = vunpack.c.l.b16 %v123
    %v699 = vunpack.c.h.b16 %v123
    %v700 = vunpack.c.l.b16 %v124
    %v701 = vunpack.c.h.b16 %v124
    %v702 = vunpack.c.l.b16 %v125
    %v703 = vunpack.c.h.b16 %v125
    %v704 = vunpack.c.l.b16 %v126
    %v705 = vunpack.c.h.b16 %v126
    %v706 = vunpack.c.l.b16 %v127
    %v707 = vunpack.c.h.b16 %v127
    %v708 = vunpack.c.l.b16 %v128
    %v709 = vunpack.c.h.b16 %v128
    %v710 = vunpack.c.l.b16 %v129
    %v711 = vunpack.c.h.b16 %v129
    %v712 = vunpack.c.l.b16 %v130
    %v713 = vunpack.c.h.b16 %v130
    %v714 = vunpack.c.l.b16 %v131
    %v715 = vunpack.c.h.b16 %v131
    %v716 = vunpack.c.l.b16 %v132
    %v717 = vunpack.c.h.b16 %v132
    %v718 = vunpack.c.l.b16 %v133
    %v719 = vunpack.c.h.b16 %v133
    %v720 = vunpack.c.l.b16 %v134
    %v721 = vunpack.c.h.b16 %v134
    %v722 = vunpack.c.l.b16 %v135
    %v723 = vunpack.c.h.b16 %v135
    %v724 = vunpack.c.l.b16 %v136
    %v725 = vunpack.c.h.b16 %v136
    %v726 = vunpack.c.l.b16 %v137
    %v727 = vunpack.c.h.b16 %v137
    %v728 = vunpack.c.l.b16 %v138
    %v729 = vunpack.c.h.b16 %v138
    %v730 = vunpack.c.l.b16 %v139
    %v731 = vunpack.c.h.b16 %v139
    %v732 = vunpack.c.l.b16 %v140
    %v733 = vunpack.c.h.b16 %v140
    %v734 = vunpack.c.l.b16 %v141
    %v735 = vunpack.c.h.b16 %v141
    %v736 = vunpack.c.l.b16 %v142
    %v737 = vunpack.c.h.b16 %v142
    %v738 = vunpack.c.l.b16 %v143
    %v739 = vunpack.c.h.b16 %v143
    %v740 = vunpack.c.l.b16 %v144
    %v741 = vunpack.c.h.b16 %v144
    %v742 = vunpack.c.l.b16 %v145
    %v743 = vunpack.c.h.b16 %v145
    %v744 = vunpack.c.l.b16 %v146
    %v745 = vunpack.c.h.b16 %v146
    %v746 = vunpack.c.l.b16 %v147
    %v747 = vunpack.c.h.b16 %v147
    %v748 = vunpack.c.l.b16 %v148
    %v749 = vunpack.c.h.b16 %v148
    %v750 = vunpack.c.l.b16 %v149
    %v751 = vunpack.c.h.b16 %v149
    %v752 = vunpack.c.l.b16 %v150
    %v753 = vunpack.c.h.b16 %v150
    %v754 = vunpack.c.l.b16 %v151
    %v755 = vunpack.c.h.b16 %v151
    %v756 = vunpack.c.l.b16 %v152
    %v757 = vunpack.c.h.b16 %v152
    %v758 = vunpack.c.l.b16 %v153
    %v759 = vunpack.c.h.b16 %v153
    %v760 = vunpack.c.l.b16 %v154
    %v761 = vunpack.c.h.b16 %v154
    %v762 = vunpack.c.l.b16 %v155
    %v763 = vunpack.c.h.b16 %v155
    %v764 = vunpack.c.l.b16 %v156
    %v765 = vunpack.c.h.b16 %v156
    %v766 = vunpack.c.l.b16 %v157
    %v767 = vunpack.c.h.b16 %v157
    %v768 = vunpack.c.l.b16 %v158
    %v769 = vunpack.c.h.b16 %v158
    %v770 = vunpack.c.l.b16 %v159
    %v771 = vunpack.c.h.b16 %v159
    %v772 = vunpack.c.l.b16 %v160
    %v773 = vunpack.c.h.b16 %v160
    %v774 = vunpack.c.l.b16 %v161
    %v775 = vunpack.c.h.b16 %v161
    %v776 = vunpack.c.l.b16 %v162
    %v777 = vunpack.c.h.b16 %v162
    %v778 = vunpack.c.l.b16 %v163
    %v779 = vunpack.c.h.b16 %v163
    %v780 = vunpack.c.l.b16 %v164
    %v781 = vunpack.c.h.b16 %v164
    %v782 = vunpack.c.l.b16 %v165
    %v783 = vunpack.c.h.b16 %v165
    %v784 = vunpack.c.l.b16 %v166
    %v785 = vunpack.c.h.b16 %v166
    %v786 = vunpack.c.l.b16 %v167
    %v787 = vunpack.c.h.b16 %v167
    %v788 = vunpack.c.l.b16 %v168
    %v789 = vunpack.c.h.b16 %v168
    %v790 = vunpack.c.l.b16 %v169
    %v791 = vunpack.c.h.b16 %v169
    %v792 = vunpack.c.l.b16 %v170
    %v793 = vunpack.c.h.b16 %v170
    %v794 = vunpack.c.l.b16 %v171
    %v795 = vunpack.c.h.b16 %v171
    %v796 = vunpack.c.l.b16 %v172
    %v797 = vunpack.c.h.b16 %v172
    %v798 = vunpack.c.l.b16 %v173
    %v799 = vunpack.c.h.b16 %v173
    %v800 = vunpack.c.l.b16 %v174
    %v801 = vunpack.c.h.b16 %v174
    %v802 = vunpack.c.l.b16 %v175
    %v803 = vunpack.c.h.b16 %v175
    %v804 = vunpack.c.l.b16 %v176
    %v805 = vunpack.c.h.b16 %v176
    %v806 = vunpack.c.l.b16 %v177
    %v807 = vunpack.c.h.b16 %v177
    %v808 = vunpack.c.l.b16 %v178
    %v809 = vunpack.c.h.b16 %v178
    %v810 = vunpack.c.l.b16 %v179
    %v811 = vunpack.c.h.b16 %v179
    %v812 = vunpack.c.l.b16 %v180
    %v813 = vunpack.c.h.b16 %v180
    %v814 = vunpack.c.l.b16 %v181
    %v815 = vunpack.c.h.b16 %v181
    %v816 = vunpack.c.l.b16 %v182
    %v817 = vunpack.c.h.b16 %v182
    %v818 = vunpack.c.l.b16 %v183
    %v819 = vunpack.c.h.b16 %v183
    %v820 = vunpack.c.l.b16 %v184
    %v821 = vunpack.c.h.b16 %v184
    %v822 = vunpack.c.l.b16 %v185
    %v823 = vunpack.c.h.b16 %v185
    %v824 = vunpack.c.l.b16 %v186
    %v825 = vunpack.c.h.b16 %v186
    %v826 = vunpack.c.l.b16 %v187
    %v827 = vunpack.c.h.b16 %v187
    %v828 = vunpack.c.l.b16 %v188
    %v829 = vunpack.c.h.b16 %v188
    %v830 = vunpack.c.l.b16 %v189
    %v831 = vunpack.c.h.b16 %v189
    %v832 = vunpack.c.l.b16 %v190
    %v833 = vunpack.c.h.b16 %v190
    %v834 = vunpack.c.l.b16 %v191
    %v835 = vunpack.c.h.b16 %v191
    %v836 = vunpack.c.l.b16 %v192
    %v837 = vunpack.c.h.b16 %v192
    %v838 = vunpack.c.l.b16 %v193
    %v839 = vunpack.c.h.b16 %v193
    %v840 = vunpack.c.l.b16 %v194
    %v841 = vunpack.c.h.b16 %v194
    %v842 = vunpack.c.l.b16 %v195
    %v843 = vunpack.c.h.b16 %v195
    %v844 = vunpack.c.l.b16 %v196
    %v845 = vunpack.c.h.b16 %v196
    %v846 = vunpack.c.l.b16 %v197
    %v847 = vunpack.c.h.b16 %v197
    %v848 = vunpack.c.l.b16 %v198
    %v849 = vunpack.c.h.b16 %v198
    %v850 = vunpack.c.l.b16 %v199
    %v851 = vunpack.c.h.b16 %v199
    %v852 = vunpack.c.l.b16 %v200
    %v853 = vunpack.c.h.b16 %v200
    %v854 = vunpack.c.l.b16 %v201
    %v855 = vunpack.c.h.b16 %v201
    %v856 = vunpack.c.l.b16 %v202
    %v857 = vunpack.c.h.b16 %v202
    %v858 = vunpack.c.l.b16 %v203
    %v859 = vunpack.c.h.b16 %v203
    %v860 = vunpack.c.l.b16 %v204
    %v861 = vunpack.c.h.b16 %v204
    %v862 = vunpack.c.l.b16 %v205
    %v863 = vunpack.c.h.b16 %v205
    %v864 = vunpack.c.l.b16 %v206
    %v865 = vunpack.c.h.b16 %v206
    %v866 = vunpack.c.l.b16 %v207
    %v867 = vunpack.c.h.b16 %v207
    %v868 = vunpack.c.l.b16 %v208
    %v869 = vunpack.c.h.b16 %v208
    %v870 = vunpack.c.l.b16 %v209
    %v871 = vunpack.c.h.b16 %v209
    %v872 = vunpack.c.l.b16 %v210
    %v873 = vunpack.c.h.b16 %v210
    %v874 = vunpack.c.l.b16 %v211
    %v875 = vunpack.c.h.b16 %v211
    %v876 = vunpack.c.l.b16 %v212
    %v877 = vunpack.c.h.b16 %v212
    %v878 = vunpack.c.l.b16 %v213
    %v879 = vunpack.c.h.b16 %v213
    %v880 = vunpack.c.l.b16 %v214
    %v881 = vunpack.c.h.b16 %v214
    %v882 = vunpack.c.l.b16 %v215
    %v883 = vunpack.c.h.b16 %v215
    %v884 = vunpack.c.l.b16 %v216
    %v885 = vunpack.c.h.b16 %v216
    %v886 = vunpack.c.l.b16 %v217
    %v887 = vunpack.c.h.b16 %v217
    %v888 = vunpack.c.l.b16 %v218
    %v889 = vunpack.c.h.b16 %v218
    %v890 = vunpack.c.l.b16 %v219
    %v891 = vunpack.c.h.b16 %v219
    %v892 = vunpack.c.l.b16 %v220
    %v893 = vunpack.c.h.b16 %v220
    %v894 = vunpack.c.l.b16 %v221
    %v895 = vunpack.c.h.b16 %v221
    %v896 = vunpack.c.l.b16 %v222
    %v897 = vunpack.c.h.b16 %v222
    %v898 = vunpack.c.l.b16 %v223
    %v899 = vunpack.c.h.b16 %v223
    %v900 = vunpack.c.l.b16 %v224
    %v901 = vunpack.c.h.b16 %v224
    %v902 = vunpack.c.l.b16 %v225
    %v903 = vunpack.c.h.b16 %v225
    %v904 = vunpack.c.l.b16 %v226
    %v905 = vunpack.c.h.b16 %v226
    %v906 = vunpack.c.l.b16 %v227
    %v907 = vunpack.c.h.b16 %v227
    %v908 = vunpack.c.l.b16 %v228
    %v909 = vunpack.c.h.b16 %v228
    %v910 = vunpack.c.l.b16 %v229
    %v911 = vunpack.c.h.b16 %v229
    %v912 = vunpack.c.l.b16 %v230
    %v913 = vunpack.c.h.b16 %v230
    %v914 = vunpack.c.l.b16 %v231
    %v915 = vunpack.c.h.b16 %v231
    %v916 = vunpack.c.l.b16 %v232
    %v917 = vunpack.c.h.b16 %v232
    %v918 = vunpack.c.l.b16 %v233
    %v919 = vunpack.c.h.b16 %v233
    %v920 = vunpack.c.l.b16 %v234
    %v921 = vunpack.c.h.b16 %v234
    %v922 = vunpack.c.l.b16 %v235
    %v923 = vunpack.c.h.b16 %v235
    %v924 = vunpack.c.l.b16 %v236
    %v925 = vunpack.c.h.b16 %v236
    %v926 = vunpack.c.l.b16 %v237
    %v927 = vunpack.c.h.b16 %v237
    %v928 = vunpack.c.l.b16 %v238
    %v929 = vunpack.c.h.b16 %v238
    %v930 = vunpack.c.l.b16 %v239
    %v931 = vunpack.c.h.b16 %v239
    %v932 = vunpack.c.l.b16 %v240
    %v933 = vunpack.c.h.b16 %v240
    %v934 = vunpack.c.l.b16 %v241
    %v935 = vunpack.c.h.b16 %v241
    %v936 = vunpack.c.l.b16 %v242
    %v937 = vunpack.c.h.b16 %v242
    %v938 = vunpack.c.l.b16 %v243
    %v939 = vunpack.c.h.b16 %v243
    %v940 = vunpack.c.l.b16 %v244
    %v941 = vunpack.c.h.b16 %v244
    %v942 = vunpack.c.l.b16 %v245
    %v943 = vunpack.c.h.b16 %v245
    %v944 = vunpack.c.l.b16 %v246
    %v945 = vunpack.c.h.b16 %v246
    %v946 = vunpack.c.l.b16 %v247
    %v947 = vunpack.c.h.b16 %v247
    %v948 = vunpack.c.l.b16 %v248
    %v949 = vunpack.c.h.b16 %v248
    %v950 = vunpack.c.l.b16 %v249
    %v951 = vunpack.c.h.b16 %v249
    %v952 = vunpack.c.l.b16 %v250
    %v953 = vunpack.c.h.b16 %v250
    %v954 = vunpack.c.l.b16 %v251
    %v955 = vunpack.c.h.b16 %v251
    %v956 = vunpack.c.l.b16 %v252
    %v957 = vunpack.c.h.b16 %v252
    %v958 = vunpack.c.l.b16 %v253
    %v959 = vunpack.c.h.b16 %v253
    %v960 = vunpack.c.l.b16 %v254
    %v961 = vunpack.c.h.b16 %v254
    %v962 = vunpack.c.l.b16 %v255
    %v963 = vunpack.c.h.b16 %v255
    %v964 = vunpack.c.l.b16 %v256
    %v965 = vunpack.c.h.b16 %v256
    %v966 = vunpack.c.l.b16 %v257
    %v967 = vunpack.c.h.b16 %v257
    %v968 = vunpack.c.l.b16 %v258
    %v969 = vunpack.c.h.b16 %v258
    %v970 = vunpack.c.l.b16 %v259
    %v971 = vunpack.c.h.b16 %v259
    %v972 = vunpack.c.l.b16 %v260
    %v973 = vunpack.c.h.b16 %v260
    %v974 = vunpack.c.l.b16 %v261
    %v975 = vunpack.c.h.b16 %v261
    %v976 = vunpack.c.l.b16 %v262
    %v977 = vunpack.c.h.b16 %v262
    %v978 = vunpack.c.l.b16 %v263
    %v979 = vunpack.c.h.b16 %v263
    %v980 = vunpack.c.l.b16 %v264
    %v981 = vunpack.c.h.b16 %v264
    %v982 = vunpack.c.l.b16 %v265
    %v983 = vunpack.c.h.b16 %v265
    %v984 = vunpack.c.l.b16 %v266
    %v985 = vunpack.c.h.b16 %v266
    %v986 = vunpack.c.l.b16 %v267
    %v987 = vunpack.c.h.b16 %v267
    %v988 = vunpack.c.l.b16 %v268
    %v989 = vunpack.c.h.b16 %v268
    %v990 = vunpack.c.l.b16 %v269
    %v991 = vunpack.c.h.b16 %v269
    %v992 = vunpack.c.l.b16 %v270
    %v993 = vunpack.c.h.b16 %v270
    %v994 = vunpack.c.l.b16 %v271
    %v995 = vunpack.c.h.b16 %v271
    %v996 = vunpack.c.l.b16 %v272
    %v997 = vunpack.c.h.b16 %v272
    %v998 = vunpack.c.l.b16 %v273
    %v999 = vunpack.c.h.b16 %v273
    %v1000 = vunpack.c.l.b16 %v274
    %v1001 = vunpack.c.h.b16 %v274
    %v1002 = vunpack.c.l.b16 %v275
    %v1003 = vunpack.c.h.b16 %v275
    %v1004 = vunpack.c.l.b16 %v276
    %v1005 = vunpack.c.h.b16 %v276
    %v1006 = vunpack.c.l.b16 %v277
    %v1007 = vunpack.c.h.b16 %v277
    %v1008 = vunpack.c.l.b16 %v278
    %v1009 = vunpack.c.h.b16 %v278
    %v1010 = vunpack.c.l.b16 %v279
    %v1011 = vunpack.c.h.b16 %v279
    %v1012 = vunpack.c.l.b16 %v280
    %v1013 = vunpack.c.h.b16 %v280
    %v1014 = vunpack.c.l.b16 %v281
    %v1015 = vunpack.c.h.b16 %v281
    %v1016 = vunpack.c.l.b16 %v282
    %v1017 = vunpack.c.h.b16 %v282
    %v1018 = vunpack.c.l.b16 %v283
    %v1019 = vunpack.c.h.b16 %v283
    %v1020 = vunpack.c.l.b16 %v284
    %v1021 = vunpack.c.h.b16 %v284
    %v1022 = vunpack.c.l.b16 %v285
    %v1023 = vunpack.c.h.b16 %v285
    %v1024 = vunpack.c.l.b16 %v286
    %v1025 = vunpack.c.h.b16 %v286
    %v1026 = vunpack.c.l.b16 %v287
    %v1027 = vunpack.c.h.b16 %v287
    %v1028 = vunpack.c.l.b16 %v288
    %v1029 = vunpack.c.h.b16 %v288
    %v1030 = vunpack.c.l.b16 %v289
    %v1031 = vunpack.c.h.b16 %v289
    %v1032 = vunpack.c.l.b16 %v290
    %v1033 = vunpack.c.h.b16 %v290
    %v1034 = vunpack.c.l.b16 %v291
    %v1035 = vunpack.c.h.b16 %v291
    %v1036 = vunpack.c.l.b16 %v292
    %v1037 = vunpack.c.h.b16 %v292
    %v1038 = vunpack.c.l.b16 %v293
    %v1039 = vunpack.c.h.b16 %v293
    %v1040 = vunpack.c.l.b16 %v294
    %v1041 = vunpack.c.h.b16 %v294
    %v1042 = vunpack.c.l.b16 %v295
    %v1043 = vunpack.c.h.b16 %v295
    %v1044 = vunpack.c.l.b16 %v296
    %v1045 = vunpack.c.h.b16 %v296
    %v1046 = vunpack.c.l.b16 %v297
    %v1047 = vunpack.c.h.b16 %v297
    %v1048 = vunpack.c.l.b16 %v298
    %v1049 = vunpack.c.h.b16 %v298
    %v1050 = vunpack.c.l.b16 %v299
    %v1051 = vunpack.c.h.b16 %v299
    %v1052 = vunpack.c.l.b16 %v300
    %v1053 = vunpack.c.h.b16 %v300
    %v1054 = vunpack.c.l.b16 %v301
    %v1055 = vunpack.c.h.b16 %v301
    %v1056 = vunpack.c.l.b16 %v302
    %v1057 = vunpack.c.h.b16 %v302
    %v1058 = vunpack.c.l.b16 %v303
    %v1059 = vunpack.c.h.b16 %v303
    %v1060 = vunpack.c.l.b16 %v304
    %v1061 = vunpack.c.h.b16 %v304
    %v1062 = vunpack.c.l.b16 %v305
    %v1063 = vunpack.c.h.b16 %v305
    %v1064 = vunpack.c.l.b16 %v306
    %v1065 = vunpack.c.h.b16 %v306
    %v1066 = vunpack.c.l.b16 %v307
    %v1067 = vunpack.c.h.b16 %v307
    %v1068 = vunpack.c.l.b16 %v308
    %v1069 = vunpack.c.h.b16 %v308
    %v1070 = vunpack.c.l.b16 %v309
    %v1071 = vunpack.c.h.b16 %v309
    %v1072 = vunpack.c.l.b16 %v310
    %v1073 = vunpack.c.h.b16 %v310
    %v1074 = vunpack.c.l.b16 %v311
    %v1075 = vunpack.c.h.b16 %v311
    %v1076 = vunpack.c.l.b16 %v312
    %v1077 = vunpack.c.h.b16 %v312
    %v1078 = vunpack.c.l.b16 %v313
    %v1079 = vunpack.c.h.b16 %v313
    %v1080 = vunpack.c.l.b16 %v314
    %v1081 = vunpack.c.h.b16 %v314
    %v1082 = vunpack.c.l.b16 %v315
    %v1083 = vunpack.c.h.b16 %v315
    %v1084 = vunpack.c.l.b16 %v316
    %v1085 = vunpack.c.h.b16 %v316
    %v1086 = vunpack.c.l.b16 %v317
    %v1087 = vunpack.c.h.b16 %v317
    %v1088 = vunpack.c.l.b16 %v318
    %v1089 = vunpack.c.h.b16 %v318
    %v1090 = vunpack.c.l.b16 %v319
    %v1091 = vunpack.c.h.b16 %v319
    %v1092 = vunpack.c.l.b16 %v320
    %v1093 = vunpack.c.h.b16 %v320
    %v1094 = vunpack.c.l.b16 %v321
    %v1095 = vunpack.c.h.b16 %v321
    %v1096 = vunpack.c.l.b16 %v322
    %v1097 = vunpack.c.h.b16 %v322
    %v1098 = vunpack.c.l.b16 %v323
    %v1099 = vunpack.c.h.b16 %v323
    %v1100 = vunpack.c.l.b16 %v324
    %v1101 = vunpack.c.h.b16 %v324
    %v1102 = vunpack.c.l.b16 %v325
    %v1103 = vunpack.c.h.b16 %v325
    %v1104 = vunpack.c.l.b16 %v326
    %v1105 = vunpack.c.h.b16 %v326
    %v1106 = vunpack.c.l.b16 %v327
    %v1107 = vunpack.c.h.b16 %v327
    %v1108 = vunpack.c.l.b16 %v328
    %v1109 = vunpack.c.h.b16 %v328
    %v1110 = vunpack.c.l.b16 %v329
    %v1111 = vunpack.c.h.b16 %v329
    %v1112 = vunpack.c.l.b16 %v330
    %v1113 = vunpack.c.h.b16 %v330
    %v1114 = vunpack.c.l.b16 %v331
    %v1115 = vunpack.c.h.b16 %v331
    %v1116 = vunpack.c.l.b16 %v332
    %v1117 = vunpack.c.h.b16 %v332
    %v1118 = vunpack.c.l.b16 %v333
    %v1119 = vunpack.c.h.b16 %v333
    %v1120 = vunpack.c.l.b16 %v334
    %v1121 = vunpack.c.h.b16 %v334
    %v1122 = vunpack.c.l.b16 %v335
    %v1123 = vunpack.c.h.b16 %v335
    %v1124 = vunpack.c.l.b16 %v336
    %v1125 = vunpack.c.h.b16 %v336
    %v1126 = vunpack.c.l.b16 %v337
    %v1127 = vunpack.c.h.b16 %v337
    %v1128 = vpack.c.b16 %v620, %v616
    %v1129 = vpack.c.b16 %v621, %v617
    %v1130 = vpack.c.b16 %v622, %v618
    %v1131 = vpack.c.b16 %v623, %v619
    %v1132 = vpack.c.b16 %v628, %v624
    %v1133 = vpack.c.b16 %v629, %v625
    %v1134 = vpack.c.b16 %v630, %v626
    %v1135 = vpack.c.b16 %v631, %v627
    %v1136 = vpack.c.b16 %v636, %v632
    %v1137 = vpack.c.b16 %v637, %v633
    %v1138 = vpack.c.b16 %v638, %v634
    %v1139 = vpack.c.b16 %v639, %v635
    %v1140 = vpack.c.b16 %v644, %v640
    %v1141 = vpack.c.b16 %v645, %v641
    %v1142 = vpack.c.b16 %v646, %v642
    %v1143 = vpack.c.b16 %v647, %v643
    %v1144 = vpack.c.b16 %v652, %v648
    %v1145 = vpack.c.b16 %v653, %v649
    %v1146 = vpack.c.b16 %v654, %v650
    %v1147 = vpack.c.b16 %v655, %v651
    %v1148 = vpack.c.b16 %v660, %v656
    %v1149 = vpack.c.b16 %v661, %v657
    %v1150 = vpack.c.b16 %v662, %v658
    %v1151 = vpack.c.b16 %v663, %v659
    %v1152 = vpack.c.b16 %v668, %v664
    %v1153 = vpack.c.b16 %v669, %v665
    %v1154 = vpack.c.b16 %v670, %v666
    %v1155 = vpack.c.b16 %v671, %v667
    %v1156 = vpack.c.b16 %v676, %v672
    %v1157 = vpack.c.b16 %v677, %v673
    %v1158 = vpack.c.b16 %v678, %v674
    %v1159 = vpack.c.b16 %v679, %v675
    %v1160 = vpack.c.b16 %v684, %v680
    %v1161 = vpack.c.b16 %v685, %v681
    %v1162 = vpack.c.b16 %v686, %v682
    %v1163 = vpack.c.b16 %v687, %v683
    %v1164 = vpack.c.b16 %v692, %v688
    %v1165 = vpack.c.b16 %v693, %v689
    %v1166 = vpack.c.b16 %v694, %v690
    %v1167 = vpack.c.b16 %v695, %v691
    %v1168 = vpack.c.b16 %v700, %v696
    %v1169 = vpack.c.b16 %v701, %v697
    %v1170 = vpack.c.b16 %v702, %v698
    %v1171 = vpack.c.b16 %v703, %v699
    %v1172 = vpack.c.b16 %v708, %v704
    %v1173 = vpack.c.b16 %v709, %v705
    %v1174 = vpack.c.b16 %v710, %v706
    %v1175 = vpack.c.b16 %v711, %v707
    %v1176 = vpack.c.b16 %v716, %v712
    %v1177 = vpack.c.b16 %v717, %v713
    %v1178 = vpack.c.b16 %v718, %v714
    %v1179 = vpack.c.b16 %v719, %v715
    %v1180 = vpack.c.b16 %v724, %v720
    %v1181 = vpack.c.b16 %v725, %v721
    %v1182 = vpack.c.b16 %v726, %v722
    %v1183 = vpack.c.b16 %v727, %v723
    %v1184 = vpack.c.b16 %v732, %v728
    %v1185 = vpack.c.b16 %v733, %v729
    %v1186 = vpack.c.b16 %v734, %v730
    %v1187 = vpack.c.b16 %v735, %v731
    %v1188 = vpack.c.b16 %v740, %v736
    %v1189 = vpack.c.b16 %v741, %v737
    %v1190 = vpack.c.b16 %v742, %v738
    %v1191 = vpack.c.b16 %v743, %v739
    %v1192 = vpack.c.b16 %v748, %v744
    %v1193 = vpack.c.b16 %v749, %v745
    %v1194 = vpack.c.b16 %v750, %v746
    %v1195 = vpack.c.b16 %v751, %v747
    %v1196 = vpack.c.b16 %v756, %v752
    %v1197 = vpack.c.b16 %v757, %v753
    %v1198 = vpack.c.b16 %v758, %v754
    %v1199 = vpack.c.b16 %v759, %v755
    %v1200 = vpack.c.b16 %v764, %v760
    %v1201 = vpack.c.b16 %v765, %v761
    %v1202 = vpack.c.b16 %v766, %v762
    %v1203 = vpack.c.b16 %v767, %v763
    %v1204 = vpack.c.b16 %v772, %v768
    %v1205 = vpack.c.b16 %v773, %v769
    %v1206 = vpack.c.b16 %v774, %v770
    %v1207 = vpack.c.b16 %v775, %v771
    %v1208 = vpack.c.b16 %v780, %v776
    %v1209 = vpack.c.b16 %v781, %v777
    %v1210 = vpack.c.b16 %v782, %v778
    %v1211 = vpack.c.b16 %v783, %v779
    %v1212 = vpack.c.b16 %v788, %v784
    %v1213 = vpack.c.b16 %v789, %v785
    %v1214 = vpack.c.b16 %v790, %v786
    %v1215 = vpack.c.b16 %v791, %v787
    %v1216 = vpack.c.b16 %v796, %v792
    %v1217 = vpack.c.b16 %v797, %v793
    %v1218 = vpack.c.b16 %v798, %v794
    %v1219 = vpack.c.b16 %v799, %v795
    %v1220 = vpack.c.b16 %v804, %v800
    %v1221 = vpack.c.b16 %v805, %v801
    %v1222 = vpack.c.b16 %v806, %v802
    %v1223 = vpack.c.b16 %v807, %v803
    %v1224 = vpack.c.b16 %v812, %v808
    %v1225 = vpack.c.b16 %v813, %v809
    %v1226 = vpack.c.b16 %v814, %v810
    %v1227 = vpack.c.b16 %v815, %v811
    %v1228 = vpack.c.b16 %v820, %v816
    %v1229 = vpack.c.b16 %v821, %v817
    %v1230 = vpack.c.b16 %v822, %v818
    %v1231 = vpack.c.b16 %v823, %v819
    %v1232 = vpack.c.b16 %v828, %v824
    %v1233 = vpack.c.b16 %v829, %v825
    %v1234 = vpack.c.b16 %v830, %v826
    %v1235 = vpack.c.b16 %v831, %v827
    %v1236 = vpack.c.b16 %v836, %v832
    %v1237 = vpack.c.b16 %v837, %v833
    %v1238 = vpack.c.b16 %v838, %v834
    %v1239 = vpack.c.b16 %v839, %v835
    %v1240 = vpack.c.b16 %v844, %v840
    %v1241 = vpack.c.b16 %v845, %v841
    %v1242 = vpack.c.b16 %v846, %v842
    %v1243 = vpack.c.b16 %v847, %v843
    %v1244 = vpack.c.b16 %v852, %v848
    %v1245 = vpack.c.b16 %v853, %v849
    %v1246 = vpack.c.b16 %v854, %v850
    %v1247 = vpack.c.b16 %v855, %v851
    %v1248 = vpack.c.b16 %v860, %v856
    %v1249 = vpack.c.b16 %v861, %v857
    %v1250 = vpack.c.b16 %v862, %v858
    %v1251 = vpack.c.b16 %v863, %v859
    %v1252 = vpack.c.b16 %v868, %v864
    %v1253 = vpack.c.b16 %v869, %v865
    %v1254 = vpack.c.b16 %v870, %v866
    %v1255 = vpack.c.b16 %v871, %v867
    %v1256 = vpack.c.b16 %v876, %v872
    %v1257 = vpack.c.b16 %v877, %v873
    %v1258 = vpack.c.b16 %v878, %v874
    %v1259 = vpack.c.b16 %v879, %v875
    %v1260 = vpack.c.b16 %v884, %v880
    %v1261 = vpack.c.b16 %v885, %v881
    %v1262 = vpack.c.b16 %v886, %v882
    %v1263 = vpack.c.b16 %v887, %v883
    %v1264 = vpack.c.b16 %v892, %v888
    %v1265 = vpack.c.b16 %v893, %v889
    %v1266 = vpack.c.b16 %v894, %v890
    %v1267 = vpack.c.b16 %v895, %v891
    %v1268 = vpack.c.b16 %v900, %v896
    %v1269 = vpack.c.b16 %v901, %v897
    %v1270 = vpack.c.b16 %v902, %v898
    %v1271 = vpack.c.b16 %v903, %v899
    %v1272 = vpack.c.b16 %v908, %v904
    %v1273 = vpack.c.b16 %v909, %v905
    %v1274 = vpack.c.b16 %v910, %v906
    %v1275 = vpack.c.b16 %v911, %v907
    %v1276 = vpack.c.b16 %v916, %v912
    %v1277 = vpack.c.b16 %v917, %v913
    %v1278 = vpack.c.b16 %v918, %v914
    %v1279 = vpack.c.b16 %v919, %v915
    %v1280 = vpack.c.b16 %v924, %v920
    %v1281 = vpack.c.b16 %v925, %v921
    %v1282 = vpack.c.b16 %v926, %v922
    %v1283 = vpack.c.b16 %v927, %v923
    %v1284 = vpack.c.b16 %v932, %v928
    %v1285 = vpack.c.b16 %v933, %v929
    %v1286 = vpack.c.b16 %v934, %v930
    %v1287 = vpack.c.b16 %v935, %v931
    %v1288 = vpack.c.b16 %v940, %v936
    %v1289 = vpack.c.b16 %v941, %v937
    %v1290 = vpack.c.b16 %v942, %v938
    %v1291 = vpack.c.b16 %v943, %v939
    %v1292 = vpack.c.b16 %v948, %v944
    %v1293 = vpack.c.b16 %v949, %v945
    %v1294 = vpack.c.b16 %v950, %v946
    %v1295 = vpack.c.b16 %v951, %v947
    %v1296 = vpack.c.b16 %v956, %v952
    %v1297 = vpack.c.b16 %v957, %v953
    %v1298 = vpack.c.b16 %v958, %v954
    %v1299 = vpack.c.b16 %v959, %v955
    %v1300 = vpack.c.b16 %v964, %v960
    %v1301 = vpack.c.b16 %v965, %v961
    %v1302 = vpack.c.b16 %v966, %v962
    %v1303 = vpack.c.b16 %v967, %v963
    %v1304 = vpack.c.b16 %v972, %v968
    %v1305 = vpack.c.b16 %v973, %v969
    %v1306 = vpack.c.b16 %v974, %v970
    %v1307 = vpack.c.b16 %v975, %v971
    %v1308 = vpack.c.b16 %v980, %v976
    %v1309 = vpack.c.b16 %v981, %v977
    %v1310 = vpack.c.b16 %v982, %v978
    %v1311 = vpack.c.b16 %v983, %v979
    %v1312 = vpack.c.b16 %v988, %v984
    %v1313 = vpack.c.b16 %v989, %v985
    %v1314 = vpack.c.b16 %v990, %v986
    %v1315 = vpack.c.b16 %v991, %v987
    %v1316 = vpack.c.b16 %v996, %v992
    %v1317 = vpack.c.b16 %v997, %v993
    %v1318 = vpack.c.b16 %v998, %v994
    %v1319 = vpack.c.b16 %v999, %v995
    %v1320 = vpack.c.b16 %v1004, %v1000
    %v1321 = vpack.c.b16 %v1005, %v1001
    %v1322 = vpack.c.b16 %v1006, %v1002
    %v1323 = vpack.c.b16 %v1007, %v1003
    %v1324 = vpack.c.b16 %v1012, %v1008
    %v1325 = vpack.c.b16 %v1013, %v1009
    %v1326 = vpack.c.b16 %v1014, %v1010
    %v1327 = vpack.c.b16 %v1015, %v1011
    %v1328 = vpack.c.b16 %v1020, %v1016
    %v1329 = vpack.c.b16 %v1021, %v1017
    %v1330 = vpack.c.b16 %v1022, %v1018
    %v1331 = vpack.c.b16 %v1023, %v1019
    %v1332 = vpack.c.b16 %v1028, %v1024
    %v1333 = vpack.c.b16 %v1029, %v1025
    %v1334 = vpack.c.b16 %v1030, %v1026
    %v1335 = vpack.c.b16 %v1031, %v1027
    %v1336 = vpack.c.b16 %v1036, %v1032
    %v1337 = vpack.c.b16 %v1037, %v1033
    %v1338 = vpack.c.b16 %v1038, %v1034
    %v1339 = vpack.c.b16 %v1039, %v1035
    %v1340 = vpack.c.b16 %v1044, %v1040
    %v1341 = vpack.c.b16 %v1045, %v1041
    %v1342 = vpack.c.b16 %v1046, %v1042
    %v1343 = vpack.c.b16 %v1047, %v1043
    %v1344 = vpack.c.b16 %v1052, %v1048
    %v1345 = vpack.c.b16 %v1053, %v1049
    %v1346 = vpack.c.b16 %v1054, %v1050
    %v1347 = vpack.c.b16 %v1055, %v1051
    %v1348 = vpack.c.b16 %v1060, %v1056
    %v1349 = vpack.c.b16 %v1061, %v1057
    %v1350 = vpack.c.b16 %v1062, %v1058
    %v1351 = vpack.c.b16 %v1063, %v1059
    %v1352 = vpack.c.b16 %v1068, %v1064
    %v1353 = vpack.c.b16 %v1069, %v1065
    %v1354 = vpack.c.b16 %v1070, %v1066
    %v1355 = vpack.c.b16 %v1071, %v1067
    %v1356 = vpack.c.b16 %v1076, %v1072
    %v1357 = vpack.c.b16 %v1077, %v1073
    %v1358 = vpack.c.b16 %v1078, %v1074
    %v1359 = vpack.c.b16 %v1079, %v1075
    %v1360 = vpack.c.b16 %v1084, %v1080
    %v1361 = vpack.c.b16 %v1085, %v1081
    %v1362 = vpack.c.b16 %v1086, %v1082
    %v1363 = vpack.c.b16 %v1087, %v1083
    %v1364 = vpack.c.b16 %v1092, %v1088
    %v1365 = vpack.c.b16 %v1093, %v1089
    %v1366 = vpack.c.b16 %v1094, %v1090
    %v1367 = vpack.c.b16 %v1095, %v1091
    %v1368 = vpack.c.b16 %v1100, %v1096
    %v1369 = vpack.c.b16 %v1101, %v1097
    %v1370 = vpack.c.b16 %v1102, %v1098
    %v1371 = vpack.c.b16 %v1103, %v1099
    %v1372 = vpack.c.b16 %v1108, %v1104
    %v1373 = vpack.c.b16 %v1109, %v1105
    %v1374 = vpack.c.b16 %v1110, %v1106
    %v1375 = vpack.c.b16 %v1111, %v1107
    %v1376 = vpack.c.b16 %v1116, %v1112
    %v1377 = vpack.c.b16 %v1117, %v1113
    %v1378 = vpack.c.b16 %v1118, %v1114
    %v1379 = vpack.c.b16 %v1119, %v1115
    %v1380 = vpack.c.b16 %v1124, %v1120
    %v1381 = vpack.c.b16 %v1125, %v1121
    %v1382 = vpack.c.b16 %v1126, %v1122
    %v1383 = vpack.c.b16 %v1127, %v1123
    %1640 = vmatprep.subr.bf16.mxu0 %v1129
    %1641 = vmatpush1.bf16.msra.mxu0 %v1128
    %1642 = vmatprep.subr.bf16.mxu0 %v1133
    %1643 = vmatpush1.bf16.msra.mxu0 %v1132
    %1644 = vmatprep.subr.bf16.mxu0 %v1137
    %1645 = vmatpush1.bf16.msra.mxu0 %v1136
    %1646 = vmatprep.subr.bf16.mxu0 %v1141
    %1647 = vmatpush1.bf16.msra.mxu0 %v1140
    %1648 = vmatprep.subr.bf16.mxu0 %v1145
    %1649 = vmatpush1.bf16.msra.mxu0 %v1144
    %1650 = vmatprep.subr.bf16.mxu0 %v1149
    %1651 = vmatpush1.bf16.msra.mxu0 %v1148
    %1652 = vmatprep.subr.bf16.mxu0 %v1153
    %1653 = vmatpush1.bf16.msra.mxu0 %v1152
    %1654 = vmatprep.subr.bf16.mxu0 %v1157
    %1655 = vmatpush1.bf16.msra.mxu0 %v1156
    %1656 = vmatprep.subr.bf16.mxu0 %v1161
    %1657 = vmatpush1.bf16.msra.mxu0 %v1160
    %1658 = vmatprep.subr.bf16.mxu0 %v1165
    %1659 = vmatpush1.bf16.msra.mxu0 %v1164
    %1660 = vmatprep.subr.bf16.mxu0 %v1169
    %1661 = vmatpush1.bf16.msra.mxu0 %v1168
    %1662 = vmatprep.subr.bf16.mxu0 %v1173
    %1663 = vmatpush1.bf16.msra.mxu0 %v1172
    %1664 = vmatprep.subr.bf16.mxu0 %v1177
    %1665 = vmatpush1.bf16.msra.mxu0 %v1176
    %1666 = vmatprep.subr.bf16.mxu0 %v1181
    %1667 = vmatpush1.bf16.msra.mxu0 %v1180
    %1668 = vmatprep.subr.bf16.mxu0 %v1185
    %1669 = vmatpush1.bf16.msra.mxu0 %v1184
    %1670 = vmatprep.subr.bf16.mxu0 %v1189
    %1671 = vmatpush1.bf16.msra.mxu0 %v1188
    %1672 = vmatprep.mubr.bf16.mxu0 %v75
    %1673 = vmatmul.mubr.bf16.gmra.mrb[0].mxu0 %v74
    %v1674 = vpop.f32.mrb[0].mxu0
    %v1675 = vadd.f32 %v343, %v1674
    %v1676 = vpop.f32.mrb[0].mxu0
    %v1677 = vadd.f32 %v347, %v1676
    %v1678 = vpop.f32.mrb[0].mxu0
    %v1679 = vpop.f32.mrb[0].mxu0
    %1680 = vdwg.mxu0
    %1681 = vmatprep.subr.bf16.mxu0 %v1193
    %1682 = vmatpush1.bf16.msra.mxu0 %v1192
    %1683 = vmatprep.subr.bf16.mxu0 %v1197
    %1684 = vmatpush1.bf16.msra.mxu0 %v1196
    %1685 = vmatprep.subr.bf16.mxu0 %v1201
    %1686 = vmatpush1.bf16.msra.mxu0 %v1200
    %1687 = vmatprep.subr.bf16.mxu0 %v1205
    %1688 = vmatpush1.bf16.msra.mxu0 %v1204
    %1689 = vmatprep.subr.bf16.mxu0 %v1209
    %1690 = vmatpush1.bf16.msra.mxu0 %v1208
    %1691 = vmatprep.subr.bf16.mxu0 %v1213
    %1692 = vmatpush1.bf16.msra.mxu0 %v1212
    %1693 = vmatprep.subr.bf16.mxu0 %v1217
    %1694 = vmatpush1.bf16.msra.mxu0 %v1216
    %1695 = vmatprep.subr.bf16.mxu0 %v1221
    %1696 = vmatpush1.bf16.msra.mxu0 %v1220
    %1697 = vmatprep.subr.bf16.mxu0 %v1225
    %1698 = vmatpush1.bf16.msra.mxu0 %v1224
    %1699 = vmatprep.subr.bf16.mxu0 %v1229
    %1700 = vmatpush1.bf16.msra.mxu0 %v1228
    %1701 = vmatprep.subr.bf16.mxu0 %v1233
    %1702 = vmatpush1.bf16.msra.mxu0 %v1232
    %1703 = vmatprep.subr.bf16.mxu0 %v1237
    %1704 = vmatpush1.bf16.msra.mxu0 %v1236
    %1705 = vmatprep.subr.bf16.mxu0 %v1241
    %1706 = vmatpush1.bf16.msra.mxu0 %v1240
    %1707 = vmatprep.subr.bf16.mxu0 %v1245
    %1708 = vmatpush1.bf16.msra.mxu0 %v1244
    %1709 = vmatprep.subr.bf16.mxu0 %v1249
    %1710 = vmatpush1.bf16.msra.mxu0 %v1248
    %1711 = vmatprep.subr.bf16.mxu0 %v1253
    %1712 = vmatpush1.bf16.msra.mxu0 %v1252
    %1713 = vmatprep.mubr.bf16.mxu0 %v77
    %1714 = vmatmul.mubr.bf16.gmra.mrb[0].mxu0 %v76
    %v1715 = vpop.f32.mrb[0].mxu0
    %v1716 = vadd.f32 %v1675, %v1715
    %v1717 = vpop.f32.mrb[0].mxu0
    %v1718 = vadd.f32 %v1677, %v1717
    %v1719 = vpop.f32.mrb[0].mxu0
    %v1720 = vpop.f32.mrb[0].mxu0
    %1721 = vdwg.mxu0
    %1722 = vmatprep.subr.bf16.mxu0 %v1257
    %1723 = vmatpush1.bf16.msra.mxu0 %v1256
    %1724 = vmatprep.subr.bf16.mxu0 %v1261
    %1725 = vmatpush1.bf16.msra.mxu0 %v1260
    %1726 = vmatprep.subr.bf16.mxu0 %v1265
    %1727 = vmatpush1.bf16.msra.mxu0 %v1264
    %1728 = vmatprep.subr.bf16.mxu0 %v1269
    %1729 = vmatpush1.bf16.msra.mxu0 %v1268
    %1730 = vmatprep.subr.bf16.mxu0 %v1273
    %1731 = vmatpush1.bf16.msra.mxu0 %v1272
    %1732 = vmatprep.subr.bf16.mxu0 %v1277
    %1733 = vmatpush1.bf16.msra.mxu0 %v1276
    %1734 = vmatprep.subr.bf16.mxu0 %v1281
    %1735 = vmatpush1.bf16.msra.mxu0 %v1280
    %1736 = vmatprep.subr.bf16.mxu0 %v1285
    %1737 = vmatpush1.bf16.msra.mxu0 %v1284
    %1738 = vmatprep.subr.bf16.mxu0 %v1289
    %1739 = vmatpush1.bf16.msra.mxu0 %v1288
    %1740 = vmatprep.subr.bf16.mxu0 %v1293
    %1741 = vmatpush1.bf16.msra.mxu0 %v1292
    %1742 = vmatprep.subr.bf16.mxu0 %v1297
    %1743 = vmatpush1.bf16.msra.mxu0 %v1296
    %1744 = vmatprep.subr.bf16.mxu0 %v1301
    %1745 = vmatpush1.bf16.msra.mxu0 %v1300
    %1746 = vmatprep.subr.bf16.mxu0 %v1305
    %1747 = vmatpush1.bf16.msra.mxu0 %v1304
    %1748 = vmatprep.subr.bf16.mxu0 %v1309
    %1749 = vmatpush1.bf16.msra.mxu0 %v1308
    %1750 = vmatprep.subr.bf16.mxu0 %v1313
    %1751 = vmatpush1.bf16.msra.mxu0 %v1312
    %1752 = vmatprep.subr.bf16.mxu0 %v1317
    %1753 = vmatpush1.bf16.msra.mxu0 %v1316
    %1754 = vmatprep.mubr.bf16.mxu0 %v79
    %1755 = vmatmul.mubr.bf16.gmra.mrb[0].mxu0 %v78
    %v1756 = vpop.f32.mrb[0].mxu0
    %v1757 = vadd.f32 %v1716, %v1756
    %v1758 = vpop.f32.mrb[0].mxu0
    %v1759 = vadd.f32 %v1718, %v1758
    %v1760 = vpop.f32.mrb[0].mxu0
    %v1761 = vpop.f32.mrb[0].mxu0
    %1762 = vdwg.mxu0
    %1763 = vmatprep.subr.bf16.mxu0 %v1321
    %1764 = vmatpush1.bf16.msra.mxu0 %v1320
    %1765 = vmatprep.subr.bf16.mxu0 %v1325
    %1766 = vmatpush1.bf16.msra.mxu0 %v1324
    %1767 = vmatprep.subr.bf16.mxu0 %v1329
    %1768 = vmatpush1.bf16.msra.mxu0 %v1328
    %1769 = vmatprep.subr.bf16.mxu0 %v1333
    %1770 = vmatpush1.bf16.msra.mxu0 %v1332
    %1771 = vmatprep.subr.bf16.mxu0 %v1337
    %1772 = vmatpush1.bf16.msra.mxu0 %v1336
    %1773 = vmatprep.subr.bf16.mxu0 %v1341
    %1774 = vmatpush1.bf16.msra.mxu0 %v1340
    %1775 = vmatprep.subr.bf16.mxu0 %v1345
    %1776 = vmatpush1.bf16.msra.mxu0 %v1344
    %1777 = vmatprep.subr.bf16.mxu0 %v1349
    %1778 = vmatpush1.bf16.msra.mxu0 %v1348
    %1779 = vmatprep.subr.bf16.mxu0 %v1353
    %1780 = vmatpush1.bf16.msra.mxu0 %v1352
    %1781 = vmatprep.subr.bf16.mxu0 %v1357
    %1782 = vmatpush1.bf16.msra.mxu0 %v1356
    %1783 = vmatprep.subr.bf16.mxu0 %v1361
    %1784 = vmatpush1.bf16.msra.mxu0 %v1360
    %1785 = vmatprep.subr.bf16.mxu0 %v1365
    %1786 = vmatpush1.bf16.msra.mxu0 %v1364
    %1787 = vmatprep.subr.bf16.mxu0 %v1369
    %1788 = vmatpush1.bf16.msra.mxu0 %v1368
    %1789 = vmatprep.subr.bf16.mxu0 %v1373
    %1790 = vmatpush1.bf16.msra.mxu0 %v1372
    %1791 = vmatprep.subr.bf16.mxu0 %v1377
    %1792 = vmatpush1.bf16.msra.mxu0 %v1376
    %1793 = vmatprep.subr.bf16.mxu0 %v1381
    %1794 = vmatpush1.bf16.msra.mxu0 %v1380
    %1795 = vmatprep.mubr.bf16.mxu0 %v81
    %1796 = vmatmul.mubr.bf16.gmra.mrb[0].mxu0 %v80
    %v1797 = vpop.f32.mrb[0].mxu0
    %v1798 = vadd.f32 %v1757, %v1797
    %v1799 = vpop.f32.mrb[0].mxu0
    %v1800 = vadd.f32 %v1759, %v1799
    %v1801 = vpop.f32.mrb[0].mxu0
    %v1802 = vpop.f32.mrb[0].mxu0
    %1803 = vdwg.mxu0
    %1804 = vmatprep.subr.bf16.mxu0 %v1131
    %1805 = vmatpush1.bf16.msra.mxu0 %v1130
    %1806 = vmatprep.subr.bf16.mxu0 %v1135
    %1807 = vmatpush1.bf16.msra.mxu0 %v1134
    %1808 = vmatprep.subr.bf16.mxu0 %v1139
    %1809 = vmatpush1.bf16.msra.mxu0 %v1138
    %1810 = vmatprep.subr.bf16.mxu0 %v1143
    %1811 = vmatpush1.bf16.msra.mxu0 %v1142
    %1812 = vmatprep.subr.bf16.mxu0 %v1147
    %1813 = vmatpush1.bf16.msra.mxu0 %v1146
    %1814 = vmatprep.subr.bf16.mxu0 %v1151
    %1815 = vmatpush1.bf16.msra.mxu0 %v1150
    %1816 = vmatprep.subr.bf16.mxu0 %v1155
    %1817 = vmatpush1.bf16.msra.mxu0 %v1154
    %1818 = vmatprep.subr.bf16.mxu0 %v1159
    %1819 = vmatpush1.bf16.msra.mxu0 %v1158
    %1820 = vmatprep.subr.bf16.mxu0 %v1163
    %1821 = vmatpush1.bf16.msra.mxu0 %v1162
    %1822 = vmatprep.subr.bf16.mxu0 %v1167
    %1823 = vmatpush1.bf16.msra.mxu0 %v1166
    %1824 = vmatprep.subr.bf16.mxu0 %v1171
    %1825 = vmatpush1.bf16.msra.mxu0 %v1170
    %1826 = vmatprep.subr.bf16.mxu0 %v1175
    %1827 = vmatpush1.bf16.msra.mxu0 %v1174
    %1828 = vmatprep.subr.bf16.mxu0 %v1179
    %1829 = vmatpush1.bf16.msra.mxu0 %v1178
    %1830 = vmatprep.subr.bf16.mxu0 %v1183
    %1831 = vmatpush1.bf16.msra.mxu0 %v1182
    %1832 = vmatprep.subr.bf16.mxu0 %v1187
    %1833 = vmatpush1.bf16.msra.mxu0 %v1186
    %1834 = vmatprep.subr.bf16.mxu0 %v1191
    %1835 = vmatpush1.bf16.msra.mxu0 %v1190
    %1836 = vmatprep.mubr.bf16.mxu0 %v75
    %1837 = vmatmul.mubr.bf16.gmra.mrb[0].mxu0 %v74
    %v1838 = vpop.f32.mrb[0].mxu0
    %v1839 = vadd.f32 %v351, %v1838
    %v1840 = vpop.f32.mrb[0].mxu0
    %v1841 = vadd.f32 %v355, %v1840
    %v1842 = vpop.f32.mrb[0].mxu0
    %v1843 = vpop.f32.mrb[0].mxu0
    %1844 = vdwg.mxu0
    %1845 = vmatprep.subr.bf16.mxu0 %v1195
    %1846 = vmatpush1.bf16.msra.mxu0 %v1194
    %1847 = vmatprep.subr.bf16.mxu0 %v1199
    %1848 = vmatpush1.bf16.msra.mxu0 %v1198
    %1849 = vmatprep.subr.bf16.mxu0 %v1203
    %1850 = vmatpush1.bf16.msra.mxu0 %v1202
    %1851 = vmatprep.subr.bf16.mxu0 %v1207
    %1852 = vmatpush1.bf16.msra.mxu0 %v1206
    %1853 = vmatprep.subr.bf16.mxu0 %v1211
    %1854 = vmatpush1.bf16.msra.mxu0 %v1210
    %1855 = vmatprep.subr.bf16.mxu0 %v1215
    %1856 = vmatpush1.bf16.msra.mxu0 %v1214
    %1857 = vmatprep.subr.bf16.mxu0 %v1219
    %1858 = vmatpush1.bf16.msra.mxu0 %v1218
    %1859 = vmatprep.subr.bf16.mxu0 %v1223
    %1860 = vmatpush1.bf16.msra.mxu0 %v1222
    %1861 = vmatprep.subr.bf16.mxu0 %v1227
    %1862 = vmatpush1.bf16.msra.mxu0 %v1226
    %1863 = vmatprep.subr.bf16.mxu0 %v1231
    %1864 = vmatpush1.bf16.msra.mxu0 %v1230
    %1865 = vmatprep.subr.bf16.mxu0 %v1235
    %1866 = vmatpush1.bf16.msra.mxu0 %v1234
    %1867 = vmatprep.subr.bf16.mxu0 %v1239
    %1868 = vmatpush1.bf16.msra.mxu0 %v1238
    %1869 = vmatprep.subr.bf16.mxu0 %v1243
    %1870 = vmatpush1.bf16.msra.mxu0 %v1242
    %1871 = vmatprep.subr.bf16.mxu0 %v1247
    %1872 = vmatpush1.bf16.msra.mxu0 %v1246
    %1873 = vmatprep.subr.bf16.mxu0 %v1251
    %1874 = vmatpush1.bf16.msra.mxu0 %v1250
    %1875 = vmatprep.subr.bf16.mxu0 %v1255
    %1876 = vmatpush1.bf16.msra.mxu0 %v1254
    %1877 = vmatprep.mubr.bf16.mxu0 %v77
    %1878 = vmatmul.mubr.bf16.gmra.mrb[0].mxu0 %v76
    %v1879 = vpop.f32.mrb[0].mxu0
    %v1880 = vadd.f32 %v1839, %v1879
    %v1881 = vpop.f32.mrb[0].mxu0
    %v1882 = vadd.f32 %v1841, %v1881
    %v1883 = vpop.f32.mrb[0].mxu0
    %v1884 = vpop.f32.mrb[0].mxu0
    %1885 = vdwg.mxu0
    %1886 = vmatprep.subr.bf16.mxu0 %v1259
    %1887 = vmatpush1.bf16.msra.mxu0 %v1258
    %1888 = vmatprep.subr.bf16.mxu0 %v1263
    %1889 = vmatpush1.bf16.msra.mxu0 %v1262
    %1890 = vmatprep.subr.bf16.mxu0 %v1267
    %1891 = vmatpush1.bf16.msra.mxu0 %v1266
    %1892 = vmatprep.subr.bf16.mxu0 %v1271
    %1893 = vmatpush1.bf16.msra.mxu0 %v1270
    %1894 = vmatprep.subr.bf16.mxu0 %v1275
    %1895 = vmatpush1.bf16.msra.mxu0 %v1274
    %1896 = vmatprep.subr.bf16.mxu0 %v1279
    %1897 = vmatpush1.bf16.msra.mxu0 %v1278
    %1898 = vmatprep.subr.bf16.mxu0 %v1283
    %1899 = vmatpush1.bf16.msra.mxu0 %v1282
    %1900 = vmatprep.subr.bf16.mxu0 %v1287
    %1901 = vmatpush1.bf16.msra.mxu0 %v1286
    %1902 = vmatprep.subr.bf16.mxu0 %v1291
    %1903 = vmatpush1.bf16.msra.mxu0 %v1290
    %1904 = vmatprep.subr.bf16.mxu0 %v1295
    %1905 = vmatpush1.bf16.msra.mxu0 %v1294
    %1906 = vmatprep.subr.bf16.mxu0 %v1299
    %1907 = vmatpush1.bf16.msra.mxu0 %v1298
    %1908 = vmatprep.subr.bf16.mxu0 %v1303
    %1909 = vmatpush1.bf16.msra.mxu0 %v1302
    %1910 = vmatprep.subr.bf16.mxu0 %v1307
    %1911 = vmatpush1.bf16.msra.mxu0 %v1306
    %1912 = vmatprep.subr.bf16.mxu0 %v1311
    %1913 = vmatpush1.bf16.msra.mxu0 %v1310
    %1914 = vmatprep.subr.bf16.mxu0 %v1315
    %1915 = vmatpush1.bf16.msra.mxu0 %v1314
    %1916 = vmatprep.subr.bf16.mxu0 %v1319
    %1917 = vmatpush1.bf16.msra.mxu0 %v1318
    %1918 = vmatprep.mubr.bf16.mxu0 %v79
    %1919 = vmatmul.mubr.bf16.gmra.mrb[0].mxu0 %v78
    %v1920 = vpop.f32.mrb[0].mxu0
    %v1921 = vadd.f32 %v1880, %v1920
    %v1922 = vpop.f32.mrb[0].mxu0
    %v1923 = vadd.f32 %v1882, %v1922
    %v1924 = vpop.f32.mrb[0].mxu0
    %v1925 = vpop.f32.mrb[0].mxu0
    %1926 = vdwg.mxu0
    %1927 = vmatprep.subr.bf16.mxu0 %v1323
    %1928 = vmatpush1.bf16.msra.mxu0 %v1322
    %1929 = vmatprep.subr.bf16.mxu0 %v1327
    %1930 = vmatpush1.bf16.msra.mxu0 %v1326
    %1931 = vmatprep.subr.bf16.mxu0 %v1331
    %1932 = vmatpush1.bf16.msra.mxu0 %v1330
    %1933 = vmatprep.subr.bf16.mxu0 %v1335
    %1934 = vmatpush1.bf16.msra.mxu0 %v1334
    %1935 = vmatprep.subr.bf16.mxu0 %v1339
    %1936 = vmatpush1.bf16.msra.mxu0 %v1338
    %1937 = vmatprep.subr.bf16.mxu0 %v1343
    %1938 = vmatpush1.bf16.msra.mxu0 %v1342
    %1939 = vmatprep.subr.bf16.mxu0 %v1347
    %1940 = vmatpush1.bf16.msra.mxu0 %v1346
    %1941 = vmatprep.subr.bf16.mxu0 %v1351
    %1942 = vmatpush1.bf16.msra.mxu0 %v1350
    %1943 = vmatprep.subr.bf16.mxu0 %v1355
    %1944 = vmatpush1.bf16.msra.mxu0 %v1354
    %1945 = vmatprep.subr.bf16.mxu0 %v1359
    %1946 = vmatpush1.bf16.msra.mxu0 %v1358
    %1947 = vmatprep.subr.bf16.mxu0 %v1363
    %1948 = vmatpush1.bf16.msra.mxu0 %v1362
    %1949 = vmatprep.subr.bf16.mxu0 %v1367
    %1950 = vmatpush1.bf16.msra.mxu0 %v1366
    %1951 = vmatprep.subr.bf16.mxu0 %v1371
    %1952 = vmatpush1.bf16.msra.mxu0 %v1370
    %1953 = vmatprep.subr.bf16.mxu0 %v1375
    %1954 = vmatpush1.bf16.msra.mxu0 %v1374
    %1955 = vmatprep.subr.bf16.mxu0 %v1379
    %1956 = vmatpush1.bf16.msra.mxu0 %v1378
    %1957 = vmatprep.subr.bf16.mxu0 %v1383
    %1958 = vmatpush1.bf16.msra.mxu0 %v1382
    %1959 = vmatprep.mubr.bf16.mxu0 %v81
    %1960 = vmatmul.mubr.bf16.gmra.mrb[0].mxu0 %v80
    %v1961 = vpop.f32.mrb[0].mxu0
    %v1962 = vadd.f32 %v1921, %v1961
    %v1963 = vpop.f32.mrb[0].mxu0
    %v1964 = vadd.f32 %v1923, %v1963
    %v1965 = vpop.f32.mrb[0].mxu0
    %v1966 = vpop.f32.mrb[0].mxu0
    %1967 = vdwg.mxu0
    %v1968 = vmax.f32 %v1798, 0.0
    %v1969 = vmax.f32 %v1800, 0.0
    %v1970 = vmax.f32 %v1962, 0.0
    %v1971 = vmax.f32 %v1964, 0.0
    %v1972 = vpack.c.bf16 %v1968, %v1968
    %v1973 = vpack.c.bf16 %v1969, %v1969
    %v1974 = vpack.c.bf16 %v1970, %v1970
    %v1975 = vpack.c.bf16 %v1971, %v1971
    %v1976 = vld [vmem:[%s3] sm:$0xff]
    %v1977 = vld [vmem:[%s3 + $0x8] sm:$0xff]
    %v1978 = vld [vmem:[%s3 + $0x10] sm:$0xff]
    %v1979 = vld [vmem:[%s3 + $0x18] sm:$0xff]
    %v1980 = vld [vmem:[%s3 + $0x20] sm:$0xff]
    %v1981 = vld [vmem:[%s3 + $0x28] sm:$0xff]
    %v1982 = vld [vmem:[%s3 + $0x30] sm:$0xff]
    %v1983 = vld [vmem:[%s3 + $0x38] sm:$0xff]
    %v1984 = vld [vmem:[%s3 + $0x40] sm:$0xff]
    %v1985 = vld [vmem:[%s3 + $0x48] sm:$0xff]
    %v1986 = vld [vmem:[%s3 + $0x50] sm:$0xff]
    %v1987 = vld [vmem:[%s3 + $0x58] sm:$0xff]
    %v1988 = vld [vmem:[%s3 + $0x60] sm:$0xff]
    %v1989 = vld [vmem:[%s3 + $0x68] sm:$0xff]
    %v1990 = vld [vmem:[%s3 + $0x70] sm:$0xff]
    %v1991 = vld [vmem:[%s3 + $0x78] sm:$0xff]
    %v1992 = vld [vmem:[%s3 + $0x80] sm:$0xff]
    %v1993 = vld [vmem:[%s3 + $0x88] sm:$0xff]
    %v1994 = vld [vmem:[%s3 + $0x90] sm:$0xff]
    %v1995 = vld [vmem:[%s3 + $0x98] sm:$0xff]
    %v1996 = vld [vmem:[%s3 + $0xa0] sm:$0xff]
    %v1997 = vld [vmem:[%s3 + $0xa8] sm:$0xff]
    %v1998 = vld [vmem:[%s3 + $0xb0] sm:$0xff]
    %v1999 = vld [vmem:[%s3 + $0xb8] sm:$0xff]
    %v2000 = vld [vmem:[%s3 + $0xc0] sm:$0xff]
    %v2001 = vld [vmem:[%s3 + $0xc8] sm:$0xff]
    %v2002 = vld [vmem:[%s3 + $0xd0] sm:$0xff]
    %v2003 = vld [vmem:[%s3 + $0xd8] sm:$0xff]
    %v2004 = vld [vmem:[%s3 + $0xe0] sm:$0xff]
    %v2005 = vld [vmem:[%s3 + $0xe8] sm:$0xff]
    %v2006 = vld [vmem:[%s3 + $0xf0] sm:$0xff]
    %v2007 = vld [vmem:[%s3 + $0xf8] sm:$0xff]
    %v2008 = vld [vmem:[%s3 + $0x100] sm:$0xff]
    %v2009 = vld [vmem:[%s3 + $0x108] sm:$0xff]
    %v2010 = vld [vmem:[%s3 + $0x110] sm:$0xff]
    %v2011 = vld [vmem:[%s3 + $0x118] sm:$0xff]
    %v2012 = vld [vmem:[%s3 + $0x120] sm:$0xff]
    %v2013 = vld [vmem:[%s3 + $0x128] sm:$0xff]
    %v2014 = vld [vmem:[%s3 + $0x130] sm:$0xff]
    %v2015 = vld [vmem:[%s3 + $0x138] sm:$0xff]
    %v2016 = vld [vmem:[%s3 + $0x140] sm:$0xff]
    %v2017 = vld [vmem:[%s3 + $0x148] sm:$0xff]
    %v2018 = vld [vmem:[%s3 + $0x150] sm:$0xff]
    %v2019 = vld [vmem:[%s3 + $0x158] sm:$0xff]
    %v2020 = vld [vmem:[%s3 + $0x160] sm:$0xff]
    %v2021 = vld [vmem:[%s3 + $0x168] sm:$0xff]
    %v2022 = vld [vmem:[%s3 + $0x170] sm:$0xff]
    %v2023 = vld [vmem:[%s3 + $0x178] sm:$0xff]
    %v2024 = vld [vmem:[%s3 + $0x180] sm:$0xff]
    %v2025 = vld [vmem:[%s3 + $0x188] sm:$0xff]
    %v2026 = vld [vmem:[%s3 + $0x190] sm:$0xff]
    %v2027 = vld [vmem:[%s3 + $0x198] sm:$0xff]
    %v2028 = vld [vmem:[%s3 + $0x1a0] sm:$0xff]
    %v2029 = vld [vmem:[%s3 + $0x1a8] sm:$0xff]
    %v2030 = vld [vmem:[%s3 + $0x1b0] sm:$0xff]
    %v2031 = vld [vmem:[%s3 + $0x1b8] sm:$0xff]
    %v2032 = vld [vmem:[%s3 + $0x1c0] sm:$0xff]
    %v2033 = vld [vmem:[%s3 + $0x1c8] sm:$0xff]
    %v2034 = vld [vmem:[%s3 + $0x1d0] sm:$0xff]
    %v2035 = vld [vmem:[%s3 + $0x1d8] sm:$0xff]
    %v2036 = vld [vmem:[%s3 + $0x1e0] sm:$0xff]
    %v2037 = vld [vmem:[%s3 + $0x1e8] sm:$0xff]
    %v2038 = vld [vmem:[%s3 + $0x1f0] sm:$0xff]
    %v2039 = vld [vmem:[%s3 + $0x1f8] sm:$0xff]
    %v2040 = vld [vmem:[%s4] sm:$0x3]
    %v2042 = vlaneseq
    %v2043 = vshrl.u32 %v2042, 7
    %v2044 = vsub.s32 0, %v2043
    %v2045 = vrot.slane %v2040, %v2044
    %v2046 = vlaneseq
    %v2047 = vshrl.u32 %v2046, 7
    %v2048 = vsub.s32 1, %v2047
    %v2049 = vrot.slane %v2040, %v2048
    %v2116 = vunpack.c.l.b16 %v1976
    %v2117 = vunpack.c.h.b16 %v1976
    %v2118 = vunpack.c.l.b16 %v1977
    %v2119 = vunpack.c.h.b16 %v1977
    %v2120 = vunpack.c.l.b16 %v1978
    %v2121 = vunpack.c.h.b16 %v1978
    %v2122 = vunpack.c.l.b16 %v1979
    %v2123 = vunpack.c.h.b16 %v1979
    %v2124 = vunpack.c.l.b16 %v1980
    %v2125 = vunpack.c.h.b16 %v1980
    %v2126 = vunpack.c.l.b16 %v1981
    %v2127 = vunpack.c.h.b16 %v1981
    %v2128 = vunpack.c.l.b16 %v1982
    %v2129 = vunpack.c.h.b16 %v1982
    %v2130 = vunpack.c.l.b16 %v1983
    %v2131 = vunpack.c.h.b16 %v1983
    %v2132 = vunpack.c.l.b16 %v1984
    %v2133 = vunpack.c.h.b16 %v1984
    %v2134 = vunpack.c.l.b16 %v1985
    %v2135 = vunpack.c.h.b16 %v1985
    %v2136 = vunpack.c.l.b16 %v1986
    %v2137 = vunpack.c.h.b16 %v1986
    %v2138 = vunpack.c.l.b16 %v1987
    %v2139 = vunpack.c.h.b16 %v1987
    %v2140 = vunpack.c.l.b16 %v1988
    %v2141 = vunpack.c.h.b16 %v1988
    %v2142 = vunpack.c.l.b16 %v1989
    %v2143 = vunpack.c.h.b16 %v1989
    %v2144 = vunpack.c.l.b16 %v1990
    %v2145 = vunpack.c.h.b16 %v1990
    %v2146 = vunpack.c.l.b16 %v1991
    %v2147 = vunpack.c.h.b16 %v1991
    %v2148 = vunpack.c.l.b16 %v1992
    %v2149 = vunpack.c.h.b16 %v1992
    %v2150 = vunpack.c.l.b16 %v1993
    %v2151 = vunpack.c.h.b16 %v1993
    %v2152 = vunpack.c.l.b16 %v1994
    %v2153 = vunpack.c.h.b16 %v1994
    %v2154 = vunpack.c.l.b16 %v1995
    %v2155 = vunpack.c.h.b16 %v1995
    %v2156 = vunpack.c.l.b16 %v1996
    %v2157 = vunpack.c.h.b16 %v1996
    %v2158 = vunpack.c.l.b16 %v1997
    %v2159 = vunpack.c.h.b16 %v1997
    %v2160 = vunpack.c.l.b16 %v1998
    %v2161 = vunpack.c.h.b16 %v1998
    %v2162 = vunpack.c.l.b16 %v1999
    %v2163 = vunpack.c.h.b16 %v1999
    %v2164 = vunpack.c.l.b16 %v2000
    %v2165 = vunpack.c.h.b16 %v2000
    %v2166 = vunpack.c.l.b16 %v2001
    %v2167 = vunpack.c.h.b16 %v2001
    %v2168 = vunpack.c.l.b16 %v2002
    %v2169 = vunpack.c.h.b16 %v2002
    %v2170 = vunpack.c.l.b16 %v2003
    %v2171 = vunpack.c.h.b16 %v2003
    %v2172 = vunpack.c.l.b16 %v2004
    %v2173 = vunpack.c.h.b16 %v2004
    %v2174 = vunpack.c.l.b16 %v2005
    %v2175 = vunpack.c.h.b16 %v2005
    %v2176 = vunpack.c.l.b16 %v2006
    %v2177 = vunpack.c.h.b16 %v2006
    %v2178 = vunpack.c.l.b16 %v2007
    %v2179 = vunpack.c.h.b16 %v2007
    %v2180 = vunpack.c.l.b16 %v2008
    %v2181 = vunpack.c.h.b16 %v2008
    %v2182 = vunpack.c.l.b16 %v2009
    %v2183 = vunpack.c.h.b16 %v2009
    %v2184 = vunpack.c.l.b16 %v2010
    %v2185 = vunpack.c.h.b16 %v2010
    %v2186 = vunpack.c.l.b16 %v2011
    %v2187 = vunpack.c.h.b16 %v2011
    %v2188 = vunpack.c.l.b16 %v2012
    %v2189 = vunpack.c.h.b16 %v2012
    %v2190 = vunpack.c.l.b16 %v2013
    %v2191 = vunpack.c.h.b16 %v2013
    %v2192 = vunpack.c.l.b16 %v2014
    %v2193 = vunpack.c.h.b16 %v2014
    %v2194 = vunpack.c.l.b16 %v2015
    %v2195 = vunpack.c.h.b16 %v2015
    %v2196 = vunpack.c.l.b16 %v2016
    %v2197 = vunpack.c.h.b16 %v2016
    %v2198 = vunpack.c.l.b16 %v2017
    %v2199 = vunpack.c.h.b16 %v2017
    %v2200 = vunpack.c.l.b16 %v2018
    %v2201 = vunpack.c.h.b16 %v2018
    %v2202 = vunpack.c.l.b16 %v2019
    %v2203 = vunpack.c.h.b16 %v2019
    %v2204 = vunpack.c.l.b16 %v2020
    %v2205 = vunpack.c.h.b16 %v2020
    %v2206 = vunpack.c.l.b16 %v2021
    %v2207 = vunpack.c.h.b16 %v2021
    %v2208 = vunpack.c.l.b16 %v2022
    %v2209 = vunpack.c.h.b16 %v2022
    %v2210 = vunpack.c.l.b16 %v2023
    %v2211 = vunpack.c.h.b16 %v2023
    %v2212 = vunpack.c.l.b16 %v2024
    %v2213 = vunpack.c.h.b16 %v2024
    %v2214 = vunpack.c.l.b16 %v2025
    %v2215 = vunpack.c.h.b16 %v2025
    %v2216 = vunpack.c.l.b16 %v2026
    %v2217 = vunpack.c.h.b16 %v2026
    %v2218 = vunpack.c.l.b16 %v2027
    %v2219 = vunpack.c.h.b16 %v2027
    %v2220 = vunpack.c.l.b16 %v2028
    %v2221 = vunpack.c.h.b16 %v2028
    %v2222 = vunpack.c.l.b16 %v2029
    %v2223 = vunpack.c.h.b16 %v2029
    %v2224 = vunpack.c.l.b16 %v2030
    %v2225 = vunpack.c.h.b16 %v2030
    %v2226 = vunpack.c.l.b16 %v2031
    %v2227 = vunpack.c.h.b16 %v2031
    %v2228 = vunpack.c.l.b16 %v2032
    %v2229 = vunpack.c.h.b16 %v2032
    %v2230 = vunpack.c.l.b16 %v2033
    %v2231 = vunpack.c.h.b16 %v2033
    %v2232 = vunpack.c.l.b16 %v2034
    %v2233 = vunpack.c.h.b16 %v2034
    %v2234 = vunpack.c.l.b16 %v2035
    %v2235 = vunpack.c.h.b16 %v2035
    %v2236 = vunpack.c.l.b16 %v2036
    %v2237 = vunpack.c.h.b16 %v2036
    %v2238 = vunpack.c.l.b16 %v2037
    %v2239 = vunpack.c.h.b16 %v2037
    %v2240 = vunpack.c.l.b16 %v2038
    %v2241 = vunpack.c.h.b16 %v2038
    %v2242 = vunpack.c.l.b16 %v2039
    %v2243 = vunpack.c.h.b16 %v2039
    %v2244 = vpack.c.b16 %v2118, %v2116
    %v2245 = vpack.c.b16 %v2119, %v2117
    %v2246 = vpack.c.b16 %v2122, %v2120
    %v2247 = vpack.c.b16 %v2123, %v2121
    %v2248 = vpack.c.b16 %v2126, %v2124
    %v2249 = vpack.c.b16 %v2127, %v2125
    %v2250 = vpack.c.b16 %v2130, %v2128
    %v2251 = vpack.c.b16 %v2131, %v2129
    %v2252 = vpack.c.b16 %v2134, %v2132
    %v2253 = vpack.c.b16 %v2135, %v2133
    %v2254 = vpack.c.b16 %v2138, %v2136
    %v2255 = vpack.c.b16 %v2139, %v2137
    %v2256 = vpack.c.b16 %v2142, %v2140
    %v2257 = vpack.c.b16 %v2143, %v2141
    %v2258 = vpack.c.b16 %v2146, %v2144
    %v2259 = vpack.c.b16 %v2147, %v2145
    %v2260 = vpack.c.b16 %v2150, %v2148
    %v2261 = vpack.c.b16 %v2151, %v2149
    %v2262 = vpack.c.b16 %v2154, %v2152
    %v2263 = vpack.c.b16 %v2155, %v2153
    %v2264 = vpack.c.b16 %v2158, %v2156
    %v2265 = vpack.c.b16 %v2159, %v2157
    %v2266 = vpack.c.b16 %v2162, %v2160
    %v2267 = vpack.c.b16 %v2163, %v2161
    %v2268 = vpack.c.b16 %v2166, %v2164
    %v2269 = vpack.c.b16 %v2167, %v2165
    %v2270 = vpack.c.b16 %v2170, %v2168
    %v2271 = vpack.c.b16 %v2171, %v2169
    %v2272 = vpack.c.b16 %v2174, %v2172
    %v2273 = vpack.c.b16 %v2175, %v2173
    %v2274 = vpack.c.b16 %v2178, %v2176
    %v2275 = vpack.c.b16 %v2179, %v2177
    %v2276 = vpack.c.b16 %v2182, %v2180
    %v2277 = vpack.c.b16 %v2183, %v2181
    %v2278 = vpack.c.b16 %v2186, %v2184
    %v2279 = vpack.c.b16 %v2187, %v2185
    %v2280 = vpack.c.b16 %v2190, %v2188
    %v2281 = vpack.c.b16 %v2191, %v2189
    %v2282 = vpack.c.b16 %v2194, %v2192
    %v2283 = vpack.c.b16 %v2195, %v2193
    %v2284 = vpack.c.b16 %v2198, %v2196
    %v2285 = vpack.c.b16 %v2199, %v2197
    %v2286 = vpack.c.b16 %v2202, %v2200
    %v2287 = vpack.c.b16 %v2203, %v2201
    %v2288 = vpack.c.b16 %v2206, %v2204
    %v2289 = vpack.c.b16 %v2207, %v2205
    %v2290 = vpack.c.b16 %v2210, %v2208
    %v2291 = vpack.c.b16 %v2211, %v2209
    %v2292 = vpack.c.b16 %v2214, %v2212
    %v2293 = vpack.c.b16 %v2215, %v2213
    %v2294 = vpack.c.b16 %v2218, %v2216
    %v2295 = vpack.c.b16 %v2219, %v2217
    %v2296 = vpack.c.b16 %v2222, %v2220
    %v2297 = vpack.c.b16 %v2223, %v2221
    %v2298 = vpack.c.b16 %v2226, %v2224
    %v2299 = vpack.c.b16 %v2227, %v2225
    %v2300 = vpack.c.b16 %v2230, %v2228
    %v2301 = vpack.c.b16 %v2231, %v2229
    %v2302 = vpack.c.b16 %v2234, %v2232
    %v2303 = vpack.c.b16 %v2235, %v2233
    %v2304 = vpack.c.b16 %v2238, %v2236
    %v2305 = vpack.c.b16 %v2239, %v2237
    %v2306 = vpack.c.b16 %v2242, %v2240
    %v2307 = vpack.c.b16 %v2243, %v2241
    %2372 = vmatprep.subr.bf16.mxu0 %v2245
    %2373 = vmatpush1.bf16.msra.mxu0 %v2244
    %2374 = vmatprep.subr.bf16.mxu0 %v2247
    %2375 = vmatpush1.bf16.msra.mxu0 %v2246
    %2376 = vmatprep.subr.bf16.mxu0 %v2249
    %2377 = vmatpush1.bf16.msra.mxu0 %v2248
    %2378 = vmatprep.subr.bf16.mxu0 %v2251
    %2379 = vmatpush1.bf16.msra.mxu0 %v2250
    %2380 = vmatprep.subr.bf16.mxu0 %v2253
    %2381 = vmatpush1.bf16.msra.mxu0 %v2252
    %2382 = vmatprep.subr.bf16.mxu0 %v2255
    %2383 = vmatpush1.bf16.msra.mxu0 %v2254
    %2384 = vmatprep.subr.bf16.mxu0 %v2257
    %2385 = vmatpush1.bf16.msra.mxu0 %v2256
    %2386 = vmatprep.subr.bf16.mxu0 %v2259
    %2387 = vmatpush1.bf16.msra.mxu0 %v2258
    %2388 = vmatprep.subr.bf16.mxu0 %v2261
    %2389 = vmatpush1.bf16.msra.mxu0 %v2260
    %2390 = vmatprep.subr.bf16.mxu0 %v2263
    %2391 = vmatpush1.bf16.msra.mxu0 %v2262
    %2392 = vmatprep.subr.bf16.mxu0 %v2265
    %2393 = vmatpush1.bf16.msra.mxu0 %v2264
    %2394 = vmatprep.subr.bf16.mxu0 %v2267
    %2395 = vmatpush1.bf16.msra.mxu0 %v2266
    %2396 = vmatprep.subr.bf16.mxu0 %v2269
    %2397 = vmatpush1.bf16.msra.mxu0 %v2268
    %2398 = vmatprep.subr.bf16.mxu0 %v2271
    %2399 = vmatpush1.bf16.msra.mxu0 %v2270
    %2400 = vmatprep.subr.bf16.mxu0 %v2273
    %2401 = vmatpush1.bf16.msra.mxu0 %v2272
    %2402 = vmatprep.subr.bf16.mxu0 %v2275
    %2403 = vmatpush1.bf16.msra.mxu0 %v2274
    %2404 = vmatprep.mubr.bf16.mxu0 %v1973
    %2405 = vmatmul.mubr.bf16.gmra.mrb[0].mxu0 %v1972
    %v2406 = vpop.f32.mrb[0].mxu0
    %v2407 = vadd.f32 %v2045, %v2406
    %v2408 = vpop.f32.mrb[0].mxu0
    %v2409 = vadd.f32 %v2049, %v2408
    %v2410 = vpop.f32.mrb[0].mxu0
    %v2411 = vpop.f32.mrb[0].mxu0
    %2412 = vdwg.mxu0
    %2413 = vmatprep.subr.bf16.mxu0 %v2277
    %2414 = vmatpush1.bf16.msra.mxu0 %v2276
    %2415 = vmatprep.subr.bf16.mxu0 %v2279
    %2416 = vmatpush1.bf16.msra.mxu0 %v2278
    %2417 = vmatprep.subr.bf16.mxu0 %v2281
    %2418 = vmatpush1.bf16.msra.mxu0 %v2280
    %2419 = vmatprep.subr.bf16.mxu0 %v2283
    %2420 = vmatpush1.bf16.msra.mxu0 %v2282
    %2421 = vmatprep.subr.bf16.mxu0 %v2285
    %2422 = vmatpush1.bf16.msra.mxu0 %v2284
    %2423 = vmatprep.subr.bf16.mxu0 %v2287
    %2424 = vmatpush1.bf16.msra.mxu0 %v2286
    %2425 = vmatprep.subr.bf16.mxu0 %v2289
    %2426 = vmatpush1.bf16.msra.mxu0 %v2288
    %2427 = vmatprep.subr.bf16.mxu0 %v2291
    %2428 = vmatpush1.bf16.msra.mxu0 %v2290
    %2429 = vmatprep.subr.bf16.mxu0 %v2293
    %2430 = vmatpush1.bf16.msra.mxu0 %v2292
    %2431 = vmatprep.subr.bf16.mxu0 %v2295
    %2432 = vmatpush1.bf16.msra.mxu0 %v2294
    %2433 = vmatprep.subr.bf16.mxu0 %v2297
    %2434 = vmatpush1.bf16.msra.mxu0 %v2296
    %2435 = vmatprep.subr.bf16.mxu0 %v2299
    %2436 = vmatpush1.bf16.msra.mxu0 %v2298
    %2437 = vmatprep.subr.bf16.mxu0 %v2301
    %2438 = vmatpush1.bf16.msra.mxu0 %v2300
    %2439 = vmatprep.subr.bf16.mxu0 %v2303
    %2440 = vmatpush1.bf16.msra.mxu0 %v2302
    %2441 = vmatprep.subr.bf16.mxu0 %v2305
    %2442 = vmatpush1.bf16.msra.mxu0 %v2304
    %2443 = vmatprep.subr.bf16.mxu0 %v2307
    %2444 = vmatpush1.bf16.msra.mxu0 %v2306
    %2445 = vmatprep.mubr.bf16.mxu0 %v1975
    %2446 = vmatmul.mubr.bf16.gmra.mrb[0].mxu0 %v1974
    %v2447 = vpop.f32.mrb[0].mxu0
    %v2448 = vadd.f32 %v2407, %v2447
    %v2449 = vpop.f32.mrb[0].mxu0
    %v2450 = vadd.f32 %v2409, %v2449
    %v2451 = vpop.f32.mrb[0].mxu0
    %v2452 = vpop.f32.mrb[0].mxu0
    %2453 = vdwg.mxu0
    %v2454 = vmax.f32 %v2448, 0.0
    %v2455 = vmax.f32 %v2450, 0.0
    %v2456 = vpack.c.bf16 %v2454, %v2454
    %v2457 = vpack.c.bf16 %v2455, %v2455
    %v2458 = vld [vmem:[%s5] sm:$0xf]
    %v2459 = vld [vmem:[%s5 + $0x4] sm:$0xf]
    %v2460 = vld [vmem:[%s5 + $0x8] sm:$0xf]
    %v2461 = vld [vmem:[%s5 + $0xc] sm:$0xf]
    %v2462 = vld [vmem:[%s5 + $0x10] sm:$0xf]
    %v2463 = vld [vmem:[%s5 + $0x14] sm:$0xf]
    %v2464 = vld [vmem:[%s5 + $0x18] sm:$0xf]
    %v2465 = vld [vmem:[%s5 + $0x1c] sm:$0xf]
    %v2466 = vld [vmem:[%s5 + $0x20] sm:$0xf]
    %v2467 = vld [vmem:[%s5 + $0x24] sm:$0xf]
    %v2468 = vld [vmem:[%s5 + $0x28] sm:$0xf]
    %v2469 = vld [vmem:[%s5 + $0x2c] sm:$0xf]
    %v2470 = vld [vmem:[%s5 + $0x30] sm:$0xf]
    %v2471 = vld [vmem:[%s5 + $0x34] sm:$0xf]
    %v2472 = vld [vmem:[%s5 + $0x38] sm:$0xf]
    %v2473 = vld [vmem:[%s5 + $0x3c] sm:$0xf]
    %v2474 = vld [vmem:[%s5 + $0x40] sm:$0xf]
    %v2475 = vld [vmem:[%s5 + $0x44] sm:$0xf]
    %v2476 = vld [vmem:[%s5 + $0x48] sm:$0xf]
    %v2477 = vld [vmem:[%s5 + $0x4c] sm:$0xf]
    %v2478 = vld [vmem:[%s5 + $0x50] sm:$0xf]
    %v2479 = vld [vmem:[%s5 + $0x54] sm:$0xf]
    %v2480 = vld [vmem:[%s5 + $0x58] sm:$0xf]
    %v2481 = vld [vmem:[%s5 + $0x5c] sm:$0xf]
    %v2482 = vld [vmem:[%s5 + $0x60] sm:$0xf]
    %v2483 = vld [vmem:[%s5 + $0x64] sm:$0xf]
    %v2484 = vld [vmem:[%s5 + $0x68] sm:$0xf]
    %v2485 = vld [vmem:[%s5 + $0x6c] sm:$0xf]
    %v2486 = vld [vmem:[%s5 + $0x70] sm:$0xf]
    %v2487 = vld [vmem:[%s5 + $0x74] sm:$0xf]
    %v2488 = vld [vmem:[%s5 + $0x78] sm:$0xf]
    %v2489 = vld [vmem:[%s5 + $0x7c] sm:$0xf]
    %v2490 = vld [vmem:[%s6] sm:$0x1]
    %v2492 = vlaneseq
    %v2493 = vshrl.u32 %v2492, 7
    %v2494 = vsub.s32 0, %v2493
    %v2495 = vrot.slane %v2490, %v2494
    %v2529 = vunpack.c.l.b16 %v2458
    %v2530 = vunpack.c.l.b16 %v2459
    %v2531 = vunpack.c.l.b16 %v2460
    %v2532 = vunpack.c.l.b16 %v2461
    %v2533 = vunpack.c.l.b16 %v2462
    %v2534 = vunpack.c.l.b16 %v2463
    %v2535 = vunpack.c.l.b16 %v2464
    %v2536 = vunpack.c.l.b16 %v2465
    %v2537 = vunpack.c.l.b16 %v2466
    %v2538 = vunpack.c.l.b16 %v2467
    %v2539 = vunpack.c.l.b16 %v2468
    %v2540 = vunpack.c.l.b16 %v2469
    %v2541 = vunpack.c.l.b16 %v2470
    %v2542 = vunpack.c.l.b16 %v2471
    %v2543 = vunpack.c.l.b16 %v2472
    %v2544 = vunpack.c.l.b16 %v2473
    %v2545 = vunpack.c.l.b16 %v2474
    %v2546 = vunpack.c.l.b16 %v2475
    %v2547 = vunpack.c.l.b16 %v2476
    %v2548 = vunpack.c.l.b16 %v2477
    %v2549 = vunpack.c.l.b16 %v2478
    %v2550 = vunpack.c.l.b16 %v2479
    %v2551 = vunpack.c.l.b16 %v2480
    %v2552 = vunpack.c.l.b16 %v2481
    %v2553 = vunpack.c.l.b16 %v2482
    %v2554 = vunpack.c.l.b16 %v2483
    %v2555 = vunpack.c.l.b16 %v2484
    %v2556 = vunpack.c.l.b16 %v2485
    %v2557 = vunpack.c.l.b16 %v2486
    %v2558 = vunpack.c.l.b16 %v2487
    %v2559 = vunpack.c.l.b16 %v2488
    %v2560 = vunpack.c.l.b16 %v2489
    %v2561 = vpack.c.b16 %v2530, %v2529
    %v2562 = vpack.c.b16 %v2532, %v2531
    %v2563 = vpack.c.b16 %v2534, %v2533
    %v2564 = vpack.c.b16 %v2536, %v2535
    %v2565 = vpack.c.b16 %v2538, %v2537
    %v2566 = vpack.c.b16 %v2540, %v2539
    %v2567 = vpack.c.b16 %v2542, %v2541
    %v2568 = vpack.c.b16 %v2544, %v2543
    %v2569 = vpack.c.b16 %v2546, %v2545
    %v2570 = vpack.c.b16 %v2548, %v2547
    %v2571 = vpack.c.b16 %v2550, %v2549
    %v2572 = vpack.c.b16 %v2552, %v2551
    %v2573 = vpack.c.b16 %v2554, %v2553
    %v2574 = vpack.c.b16 %v2556, %v2555
    %v2575 = vpack.c.b16 %v2558, %v2557
    %v2576 = vpack.c.b16 %v2560, %v2559
    %2593 = vmatprep.subr.bf16.mxu0 0
    %2594 = vmatpush1.bf16.msra.mxu0 %v2561
    %2595 = vmatprep.subr.bf16.mxu0 0
    %2596 = vmatpush1.bf16.msra.mxu0 %v2562
    %2597 = vmatprep.subr.bf16.mxu0 0
    %2598 = vmatpush1.bf16.msra.mxu0 %v2563
    %2599 = vmatprep.subr.bf16.mxu0 0
    %2600 = vmatpush1.bf16.msra.mxu0 %v2564
    %2601 = vmatprep.subr.bf16.mxu0 0
    %2602 = vmatpush1.bf16.msra.mxu0 %v2565
    %2603 = vmatprep.subr.bf16.mxu0 0
    %2604 = vmatpush1.bf16.msra.mxu0 %v2566
    %2605 = vmatprep.subr.bf16.mxu0 0
    %2606 = vmatpush1.bf16.msra.mxu0 %v2567
    %2607 = vmatprep.subr.bf16.mxu0 0
    %2608 = vmatpush1.bf16.msra.mxu0 %v2568
    %2609 = vmatprep.subr.bf16.mxu0 0
    %2610 = vmatpush1.bf16.msra.mxu0 %v2569
    %2611 = vmatprep.subr.bf16.mxu0 0
    %2612 = vmatpush1.bf16.msra.mxu0 %v2570
    %2613 = vmatprep.subr.bf16.mxu0 0
    %2614 = vmatpush1.bf16.msra.mxu0 %v2571
    %2615 = vmatprep.subr.bf16.mxu0 0
    %2616 = vmatpush1.bf16.msra.mxu0 %v2572
    %2617 = vmatprep.subr.bf16.mxu0 0
    %2618 = vmatpush1.bf16.msra.mxu0 %v2573
    %2619 = vmatprep.subr.bf16.mxu0 0
    %2620 = vmatpush1.bf16.msra.mxu0 %v2574
    %2621 = vmatprep.subr.bf16.mxu0 0
    %2622 = vmatpush1.bf16.msra.mxu0 %v2575
    %2623 = vmatprep.subr.bf16.mxu0 0
    %2624 = vmatpush1.bf16.msra.mxu0 %v2576
    %2625 = vmatprep.mubr.bf16.mxu0 %v2457
    %2626 = vmatmul.mubr.bf16.gmra.mrb[0].mxu0 %v2456
    %v2627 = vpop.f32.mrb[0].mxu0
    %v2628 = vadd.f32 %v2495, %v2627
    %v2629 = vpop.f32.mrb[0].mxu0
    %v2630 = vpop.f32.mrb[0].mxu0
    %v2631 = vpop.f32.mrb[0].mxu0
    %2632 = vdwg.mxu0
    %v2633 = vlaneseq
    %v2634 = vand.u32 %v2633, 127
    %vm2635 = vcmp.lt.s32.totalorder %v2634, 2
    %v2636 = vsel %vm2635, %v2628, -inf
    %vm2637 = vcmask 1041408
    %v2638 = vsel %vm2637, %v2636, -inf
    %2639 = vmax.xlane.f32.xlu0 %v2638
    %v2640 = vpop.xlane.xlu0 %2639
    %v2641 = vsub.f32 %v2628, %v2640
    %v2642 = vmul.f32 %v2641, 1.442695
    %v2643 = vpow.pop %v2642
    %v2644 = vsel %vm2635, %v2643, 0.0
    %v2645 = vsel %vm2637, %v2644, 0.0
    %2646 = vadd.xlane.f32.xlu0 %v2645
    %v2647 = vpop.xlane.xlu0 %2646
    %v2648 = vlog2.pop %v2647
    %v2649 = vmul.f32 %v2648, 0.6931472
    %v2650 = vsub.f32 %v2641, %v2649
    %2651 = vst [vmem:[#allocation2] sm:$0x3] %v2650
    // Predicated region
    $region30: #{_lambda_.7} parent=1 // pred_check
      _
    $region31: #{_lambda_.7} parent=1 // pred_check_branch
      %2653 = sbr.rel (0) target = $region33
    $region32: #{_lambda_.7} parent=1 // pred_region
      %s2655 = ssub.s32 32, 32
      %2656 = vsyncadd [#allocation3], %s2655
      %s2658 = sshll.u32 [#allocation2], 4
      %s2659 = int_to_ptr.vmem [resolvable:$true] %s2658
      %2661 = dma.vmem_to_hbm [thread:$0]  %s2659, 32, %s7, [#allocation3]
    $region33: #{_lambda_.7} parent=1 // pred_fallthru
      _
    // Predicated region
    $region34: #{_lambda_.7} parent=1 // pred_check
      _
    $region35: #{_lambda_.7} parent=1 // pred_check_branch
      %2663 = sbr.rel (0) target = $region37
    $region36: #{_lambda_.7} parent=1 // pred_region
      %2664 = dma.done [#allocation3], 32
    $region37: #{_lambda_.7} parent=1 // pred_fallthru
      _
    %2665 = vsyncpa [#allocation3], 1

</llo_original>
